<compile_context>
chip_gen: v6e
topology: v6e:2x2x1
jax: 0.10.0
libtpu: 0.0.40
codegen_flags: <defaults>
</compile_context>

<pallas_src>
import math
from functools import partial

import jax
import jax.numpy as jnp
from jax.experimental import pallas as pl
from jax.experimental.pallas import tpu as pltpu


# ----------------------------- hardware-aware sizing ------------------------

def _vmem_capacity_bytes():
    try:
        info = pltpu.get_tpu_info()
        cap = getattr(info, "vmem_capacity_bytes", None)
        if cap:
            return int(cap)
    except Exception:
        pass
    return 128 * 1024 * 1024            # v5e / v6e default


_VMEM_CAP = _vmem_capacity_bytes()
VMEM_LIMIT = min(64 * 1024 * 1024, _VMEM_CAP // 2)
_BIG_VMEM = _VMEM_CAP >= 100 * 1024 * 1024
MAX_ROW_TILE = 512 if _BIG_VMEM else 256     # rows / grid step, linear kernels
MAX_ATTN_TILE = 256 if _BIG_VMEM else 128    # point rows / grid step, attention

_cparams = pltpu.CompilerParams(
    dimension_semantics=("parallel",),
    vmem_limit_bytes=VMEM_LIMIT)


def _cdiv(a, b):
    return (a + b - 1) // b


def _round_up(x, m):
    return ((x + m - 1) // m) * m


def _row_tiling(R, max_tile):
    """Sublane-aligned row tile.  Guarantees >=2 grid programs when R > 8
    (keeps both v7x TensorCores busy) and keeps padding < one tile."""
    R8 = _round_up(max(R, 8), 8)
    n = max(2, _cdiv(R8, max_tile))
    tile = min(_round_up(_cdiv(R8, n), 8), R8)
    Rp = _round_up(R8, tile)
    return tile, Rp


def _pad_axis(x, target, axis):
    cur = x.shape[axis]
    if cur == target:
        return x
    pads = [(0, 0)] * x.ndim
    pads[axis] = (0, target - cur)
    return jnp.pad(x, pads)


# ----------------------------- Pallas kernels ------------------------------

def _linear_kernel(relu, x_ref, w_ref, b_ref, o_ref):
    y = jnp.dot(x_ref[...].astype(jnp.bfloat16), w_ref[...],
                preferred_element_type=jnp.float32) + b_ref[...]
    if relu:
        y = jnp.maximum(y, 0.0)
    o_ref[...] = y


def _mlp2_kernel(relu1, relu2, x_ref, w1_ref, b1_ref, w2_ref, b2_ref, o_ref):
    h = jnp.dot(x_ref[...].astype(jnp.bfloat16), w1_ref[...],
                preferred_element_type=jnp.float32) + b1_ref[...]
    if relu1:
        h = jnp.maximum(h, 0.0)
    y = jnp.dot(h.astype(jnp.bfloat16), w2_ref[...],
                preferred_element_type=jnp.float32) + b2_ref[...]
    if relu2:
        y = jnp.maximum(y, 0.0)
    o_ref[...] = y


def _pt_attention_kernel(K, q_ref, kv_ref, rel_ref,
                         d1w_ref, d1b_ref, d2w_ref, d2b_ref,
                         g1w_ref, g1b_ref, g2w_ref, g2b_ref,
                         f2w_ref, f2b_ref, pre_ref, o_ref):
    """Fused pos-MLP + gamma-MLP + per-channel softmax over K neighbours +
    weighted aggregation + fc2 + residual.  Static unrolled K loop; all
    intermediates are (tile, D) slabs (no relayouts)."""
    q = q_ref[...]                          # (TR, D) f32
    TR, D = q.shape
    d1w = d1w_ref[...]                      # (3, D) f32 (used on the VPU)
    d1b = d1b_ref[...]
    d2w, d2b = d2w_ref[...], d2b_ref[...]
    g1w, g1b = g1w_ref[...], g1b_ref[...]
    g2w, g2b = g2w_ref[...], g2b_ref[...]   # 1/sqrt(d_model) folded in

    m = None                                # running max   (TR, D)
    s = None                                # running sum   (TR, D)
    acc = None                              # running num.  (TR, D)
    for j in range(K):                      # static unroll over neighbours
        kvj = kv_ref[j]                     # (TR, 2D) f32
        kj = kvj[:, :D]
        vj = kvj[:, D:]
        relj = rel_ref[j]                   # (TR, 3) f32
        # pos-MLP layer 1: contraction depth 3 -> three VPU FMAs, not MXU.
        pos = (relj[:, 0:1] * d1w[0:1, :]
               + relj[:, 1:2] * d1w[1:2, :]
               + relj[:, 2:3] * d1w[2:3, :] + d1b)
        pos = jnp.maximum(pos, 0.0)
        pos = jnp.dot(pos.astype(jnp.bfloat16), d2w,
                      preferred_element_type=jnp.float32) + d2b
        # gamma MLP on (q - k + pos)
        g = q - kj + pos
        h = jnp.dot(g.astype(jnp.bfloat16), g1w,
                    preferred_element_type=jnp.float32) + g1b
        h = jnp.maximum(h, 0.0)
        logits = jnp.dot(h.astype(jnp.bfloat16), g2w,
                         preferred_element_type=jnp.float32) + g2b
        vpe = vj + pos
        # online per-channel softmax across the K neighbours
        if j == 0:
            m = logits
            s = jnp.ones_like(logits)
            acc = vpe
        else:
            m_new = jnp.maximum(m, logits)
            alpha = jnp.exp(m - m_new)
            e = jnp.exp(logits - m_new)
            s = alpha * s + e
            acc = alpha * acc + e * vpe
            m = m_new
    attn_out = acc * pl.reciprocal(s, approx=True)        # (TR, D)
    # fused fc2 + residual epilogue
    y = jnp.dot(attn_out.astype(jnp.bfloat16), f2w_ref[...],
                preferred_element_type=jnp.float32) + f2b_ref[...]
    o_ref[...] = y + pre_ref[...]


# ----------------------------- Pallas wrappers ------------------------------

def pallas_linear(x, w, b=None, relu=False):
    """y = x @ w + b (+ relu).  x: (R, Cin) -> (R, Cout), f32 in/out."""
    R, Cin = x.shape
    Cout = w.shape[1]
    if b is None:
        b = jnp.zeros((Cout,), jnp.float32)
    tile, Rp = _row_tiling(R, MAX_ROW_TILE)
    xp = _pad_axis(x.astype(jnp.float32), Rp, 0)
    cost = pl.CostEstimate(
        flops=2 * Rp * Cin * Cout, transcendentals=0,
        bytes_accessed=int(4 * Rp * (Cin + Cout) + 2 * Cin * Cout))
    out = pl.pallas_call(
        partial(_linear_kernel, relu),
        out_shape=jax.ShapeDtypeStruct((Rp, Cout), jnp.float32),
        grid=(Rp // tile,),
        in_specs=[
            pl.BlockSpec((tile, Cin), lambda i: (i, 0)),
            pl.BlockSpec((Cin, Cout), lambda i: (0, 0)),
            pl.BlockSpec((1, Cout), lambda i: (0, 0)),
        ],
        out_specs=pl.BlockSpec((tile, Cout), lambda i: (i, 0)),
        compiler_params=_cparams,
        cost_estimate=cost,
    )(xp, w.astype(jnp.bfloat16), b.reshape(1, Cout).astype(jnp.float32))
    return out if Rp == R else out[:R]


def pallas_mlp2(x, w1, b1, w2, b2, relu1=False, relu2=False):
    """Two chained linear layers in one kernel.  x: (R, C0) -> (R, C2)."""
    R, C0 = x.shape
    C1, C2 = w1.shape[1], w2.shape[1]
    tile, Rp = _row_tiling(R, MAX_ROW_TILE)
    xp = _pad_axis(x.astype(jnp.float32), Rp, 0)
    cost = pl.CostEstimate(
        flops=2 * Rp * (C0 * C1 + C1 * C2), transcendentals=0,
        bytes_accessed=int(4 * Rp * (C0 + C2) + 2 * (C0 * C1 + C1 * C2)))
    out = pl.pallas_call(
        partial(_mlp2_kernel, relu1, relu2),
        out_shape=jax.ShapeDtypeStruct((Rp, C2), jnp.float32),
        grid=(Rp // tile,),
        in_specs=[
            pl.BlockSpec((tile, C0), lambda i: (i, 0)),
            pl.BlockSpec((C0, C1), lambda i: (0, 0)),
            pl.BlockSpec((1, C1), lambda i: (0, 0)),
            pl.BlockSpec((C1, C2), lambda i: (0, 0)),
            pl.BlockSpec((1, C2), lambda i: (0, 0)),
        ],
        out_specs=pl.BlockSpec((tile, C2), lambda i: (i, 0)),
        compiler_params=_cparams,
        cost_estimate=cost,
    )(xp, w1.astype(jnp.bfloat16), b1.reshape(1, C1).astype(jnp.float32),
      w2.astype(jnp.bfloat16), b2.reshape(1, C2).astype(jnp.float32))
    return out if Rp == R else out[:R]


def pallas_point_attention(q, kv_g, rel, weights, pre, K):
    """q:(R,D), kv_g:(K,R,2D), rel:(K,R,3), pre:(R,C) -> fc2(attn) + pre."""
    R, D = q.shape
    C = pre.shape[1]
    tile, Rp = _row_tiling(R, MAX_ATTN_TILE)
    qp = _pad_axis(q.astype(jnp.float32), Rp, 0)
    kvp = _pad_axis(kv_g.astype(jnp.float32), Rp, 1)
    relp = _pad_axis(rel.astype(jnp.float32), Rp, 1)
    prep = _pad_axis(pre.astype(jnp.float32), Rp, 0)
    (d1w, d1b) = weights['d1']
    (d2w, d2b) = weights['d2']
    (g1w, g1b) = weights['g1']
    (g2w, g2b) = weights['g2']
    (f2w, f2b) = weights['fc2']

    def row(b):
        return b.reshape(1, -1).astype(jnp.float32)

    wspec = lambda shape: pl.BlockSpec(shape, lambda i: (0, 0))
    cost = pl.CostEstimate(
        flops=2 * Rp * K * 3 * D * D + 2 * Rp * D * C,
        transcendentals=2 * Rp * K * D,
        bytes_accessed=int(4 * (Rp * D + K * Rp * (2 * D + 3) + 2 * Rp * C)
                           + 2 * (3 * D * D + D * C)))
    out = pl.pallas_call(
        partial(_pt_attention_kernel, K),
        out_shape=jax.ShapeDtypeStruct((Rp, C), jnp.float32),
        grid=(Rp // tile,),
        in_specs=[
            pl.BlockSpec((tile, D), lambda i: (i, 0)),          # q
            pl.BlockSpec((K, tile, 2 * D), lambda i: (0, i, 0)),  # gathered k|v
            pl.BlockSpec((K, tile, 3), lambda i: (0, i, 0)),      # relative xyz
            wspec((3, D)), wspec((1, D)),                       # delta1 (VPU)
            wspec((D, D)), wspec((1, D)),                       # delta2
            wspec((D, D)), wspec((1, D)),                       # gamma1
            wspec((D, D)), wspec((1, D)),                       # gamma2 (scaled)
            wspec((D, C)), wspec((1, C)),                       # fc2
            pl.BlockSpec((tile, C), lambda i: (i, 0)),          # residual
        ],
        out_specs=pl.BlockSpec((tile, C), lambda i: (i, 0)),
        compiler_params=_cparams,
        cost_estimate=cost,
    )(qp, kvp, relp,
      d1w.astype(jnp.float32), row(d1b),
      d2w.astype(jnp.bfloat16), row(d2b),
      g1w.astype(jnp.bfloat16), row(g1b),
      g2w.astype(jnp.bfloat16), row(g2b),
      f2w.astype(jnp.bfloat16), row(f2b),
      prep)
    return out if Rp == R else out[:R]


# ----------------------------- point-cloud glue -----------------------------

def square_distance(src, dst):
    # src (B,N,C), dst (B,M,C) -> (B,N,M)
    return (jnp.sum(src ** 2, -1, keepdims=True)
            - 2.0 * jnp.einsum('bnc,bmc->bnm', src, dst)
            + jnp.sum(dst ** 2, -1)[:, None, :])


def knn_indices(query, base, k):
    dists = square_distance(query, base)
    _, idx = jax.lax.top_k(-dists, k)        # ascending distance order
    return idx


def index_points(points, idx):
    # points (B,N,C), idx (B, ...) of int -> (B, ..., C)
    B = points.shape[0]
    batch = jnp.arange(B).reshape((B,) + (1,) * (idx.ndim - 1))
    return points[batch, idx]


def farthest_point_sample(xyz, npoint):
    # TODO(synk): torch reference starts FPS at a random index (we use index 0
    # for determinism) and this serial argmax chain stays in XLA; a Pallas FPS
    # kernel keeping the distance vector in VMEM would help at large N.
    B, N, _ = xyz.shape

    def body(i, state):
        centroids, distance, farthest = state
        centroids = centroids.at[:, i].set(farthest)
        centroid = xyz[jnp.arange(B), farthest][:, None, :]      # (B,1,3)
        d = jnp.sum((xyz - centroid) ** 2, -1)
        distance = jnp.minimum(distance, d)
        farthest = jnp.argmax(distance, -1).astype(jnp.int32)
        return centroids, distance, farthest

    init = (jnp.zeros((B, npoint), jnp.int32),
            jnp.full((B, N), 1e10, jnp.float32),
            jnp.zeros((B,), jnp.int32))
    centroids, _, _ = jax.lax.fori_loop(0, npoint, body, init)
    return centroids


# ----------------------------- model blocks --------------------------------

def transformer_block(p, xyz, features, k):
    """Point-Transformer vector-attention block (fully fused Pallas kernels)."""
    B, N, C = features.shape
    D = p['wq'][0].shape[1]                                      # d_model

    knn_idx = knn_indices(xyz, xyz, k)                           # (B,N,k)
    knn_xyz = index_points(xyz, knn_idx)                         # (B,N,k,3)

    pre = features

    # fc1 followed by fused (Wq|Wk|Wv) projection -> one kernel. Output is
    # zero-padded to 128 lanes so its stores are unmasked / lane-dense.
    wqkv = jnp.concatenate([p['wq'][0], p['wk'][0], p['wv'][0]], axis=1)
    bqkv = jnp.concatenate([p['wq'][1], p['wk'][1], p['wv'][1]], axis=0)
    out_cols = 3 * D
    pad_cols = _round_up(out_cols, 128)
    if pad_cols != out_cols:
        wqkv = jnp.pad(wqkv, ((0, 0), (0, pad_cols - out_cols)))
        bqkv = jnp.pad(bqkv, ((0, pad_cols - out_cols),))
    qkv = pallas_mlp2(features.reshape(-1, C), p['fc1'][0], p['fc1'][1],
                      wqkv, bqkv).reshape(B, N, pad_cols)
    q = qkv[..., :D]
    kv = qkv[..., D:3 * D]                                       # (B,N,2D)

    # ONE gather for k and v on the concatenated slab, K axis leading so each
    # neighbour is a clean (rows, 2D) slab inside the kernel.
    # TODO(synk): for large N, gather inside the kernel via scalar-prefetched
    # knn_idx instead of materializing (K,R,2D) in HBM.
    kv_g = index_points(kv, knn_idx)                             # (B,N,K,2D)
    kv_g = jnp.transpose(kv_g, (2, 0, 1, 3)).reshape(k, B * N, 2 * D)
    rel = xyz[:, :, None, :] - knn_xyz                           # (B,N,K,3)
    rel = jnp.transpose(rel, (2, 0, 1, 3)).reshape(k, B * N, 3)

    # torch: softmax(gamma(...) / sqrt(d_model)) -> fold scale into gamma2.
    inv_sqrt_d = 1.0 / math.sqrt(D)
    weights = dict(
        d1=p['delta1'], d2=p['delta2'], g1=p['gamma1'],
        g2=(p['gamma2'][0] * inv_sqrt_d, p['gamma2'][1] * inv_sqrt_d),
        fc2=p['fc2'])
    out = pallas_point_attention(q.reshape(-1, D), kv_g, rel, weights,
                                 pre.reshape(-1, C), k)
    return out.reshape(B, N, C)


def transition_down(p, xyz, points, npoint, nsample):
    """PointNetSetAbstraction(group_all=False, knn=True)."""
    B = xyz.shape[0]
    fps_idx = farthest_point_sample(xyz, npoint)
    new_xyz = index_points(xyz, fps_idx)                         # (B,S,3)
    idx = knn_indices(new_xyz, xyz, nsample)                     # (B,S,K)
    grouped_xyz = index_points(xyz, idx)                         # (B,S,K,3)
    grouped_xyz_norm = grouped_xyz - new_xyz[:, :, None, :]
    grouped_points = index_points(points, idx)                   # (B,S,K,D)
    new_points = jnp.concatenate([grouped_xyz_norm, grouped_points], -1)

    # Conv2d(1x1)+BN(eval, folded)+ReLU over channels == row-wise linear.
    feat = new_points.reshape(-1, new_points.shape[-1])
    mlps = p['mlps']
    if len(mlps) == 2:
        (w1, b1), (w2, b2) = mlps
        feat = pallas_mlp2(feat, w1, b1, w2, b2, relu1=True, relu2=True)
    else:
        for (w, b) in mlps:
            feat = pallas_linear(feat, w, b, relu=True)
    feat = feat.reshape(B, npoint, nsample, -1)
    new_points = jnp.max(feat, axis=2)                           # max over nsample
    return new_xyz, new_points


def backbone_forward(params, x, cfg):
    xyz = x[..., :3]
    B, N, _ = x.shape
    h = pallas_mlp2(x.reshape(-1, cfg['input_dim']),
                    params['fc1a'][0], params['fc1a'][1],
                    params['fc1b'][0], params['fc1b'][1],
                    relu1=True, relu2=False).reshape(B, N, 32)
    points = transformer_block(params['transformer1'], xyz, h, cfg['nneighbor'])
    xyz_and_feats = [(xyz, points)]
    for i in range(cfg['nblocks']):
        npoint = cfg['num_point'] // (4 ** (i + 1))
        xyz, points = transition_down(params['td'][i], xyz, points,
                                      npoint, cfg['nneighbor'])
        points = transformer_block(params['tf'][i], xyz, points, cfg['nneighbor'])
        xyz_and_feats.append((xyz, points))
    return points, xyz_and_feats


# ----------------------------- parameter init ------------------------------

def _init_linear(key, cin, cout, bias=True):
    k1, k2 = jax.random.split(key)
    lim = 1.0 / math.sqrt(cin)
    w = jax.random.uniform(k1, (cin, cout), jnp.float32, -lim, lim)
    b = (jax.random.uniform(k2, (cout,), jnp.float32, -lim, lim)
         if bias else jnp.zeros((cout,), jnp.float32))
    return w, b


def _init_conv_bn(key, cin, cout, eps=1e-5):
    """Conv2d(1x1) weights with eval-mode BatchNorm folded in."""
    k1, k2, k3, k4 = jax.random.split(key, 4)
    lim = 1.0 / math.sqrt(cin)
    w = jax.random.uniform(k1, (cin, cout), jnp.float32, -lim, lim)
    b = jax.random.uniform(k2, (cout,), jnp.float32, -lim, lim)
    gamma = 1.0 + 0.1 * jax.random.normal(k3, (cout,), jnp.float32)
    beta = 0.1 * jax.random.normal(k4, (cout,), jnp.float32)
    mean = jnp.zeros((cout,), jnp.float32)
    var = jnp.ones((cout,), jnp.float32)
    s = gamma / jnp.sqrt(var + eps)
    return w * s[None, :], (b - mean) * s + beta


def _init_transformer(key, d_points, d_model):
    ks = jax.random.split(key, 9)
    return dict(
        fc1=_init_linear(ks[0], d_points, d_model),
        fc2=_init_linear(ks[1], d_model, d_points),
        delta1=_init_linear(ks[2], 3, d_model),
        delta2=_init_linear(ks[3], d_model, d_model),
        gamma1=_init_linear(ks[4], d_model, d_model),
        gamma2=_init_linear(ks[5], d_model, d_model),
        wq=_init_linear(ks[6], d_model, d_model, bias=False),
        wk=_init_linear(ks[7], d_model, d_model, bias=False),
        wv=_init_linear(ks[8], d_model, d_model, bias=False),
    )


def init_backbone(key, cfg):
    d_points = cfg['input_dim']
    d_model = cfg['transformer_dim']
    ks = jax.random.split(key, 3 + 2 * cfg['nblocks'])
    params = dict(
        fc1a=_init_linear(ks[0], d_points, 32),
        fc1b=_init_linear(ks[1], 32, 32),
        transformer1=_init_transformer(ks[2], 32, d_model),
        td=[], tf=[],
    )
    for i in range(cfg['nblocks']):
        channel = 32 * 2 ** (i + 1)
        cin = channel // 2 + 3
        ka, kb = jax.random.split(ks[3 + 2 * i])
        params['td'].append(dict(mlps=[_init_conv_bn(ka, cin, channel),
                                       _init_conv_bn(kb, channel, channel)]))
        params['tf'].append(_init_transformer(ks[4 + 2 * i], channel, d_model))
    return params


# ----------------------------------- main -----------------------------------

if __name__ == "__main__":
    cfg = dict(num_point=32, nblocks=1, nneighbor=8, transformer_dim=32,
               input_dim=6, num_class=8)
    key = jax.random.PRNGKey(0)
    kp, kx = jax.random.split(key)
    params = init_backbone(kp, cfg)
    x = jax.random.normal(kx, (2, cfg['num_point'], cfg['input_dim']), jnp.float32)

    fwd = jax.jit(lambda p, xx: backbone_forward(p, xx, cfg))
    points, xyz_and_feats = fwd(params, x)
    jax.block_until_ready(points)
    for xyz_i, feat_i in xyz_and_feats:
        jax.block_until_ready(feat_i)

    assert points.shape == (2, cfg['num_point'] // 4, 64)
    assert bool(jnp.all(jnp.isfinite(points)))
    print("KERNEL_OK")
</pallas_src>

<mosaic_0001>
module attributes {stable_mosaic.version = 11 : i64} {
  func.func @_mlp2_kernel(%arg0: i32, %arg1: memref<32x6xf32, #tpu.memory_space<vmem>>, %arg2: memref<6x32xbf16, #tpu.memory_space<vmem>>, %arg3: memref<1x32xf32, #tpu.memory_space<vmem>>, %arg4: memref<32x32xbf16, #tpu.memory_space<vmem>>, %arg5: memref<1x32xf32, #tpu.memory_space<vmem>>, %arg6: memref<32x32xf32, #tpu.memory_space<vmem>>) attributes {dimension_semantics = [#tpu.dimension_semantics<parallel>], iteration_bounds = array<i64: 2>, scalar_prefetch = 0 : i64, scratch_operands = 0 : i64, tpu.core_type = #tpu.core_type<tc>, window_params = [{transform_indices = @transform_0, window_bounds = array<i64: 32, 6>}, {pipeline_mode = #tpu.pipeline_mode<synchronous>, transform_indices = @transform_1, window_bounds = array<i64: 6, 32>}, {pipeline_mode = #tpu.pipeline_mode<synchronous>, transform_indices = @transform_2, window_bounds = array<i64: 1, 32>}, {pipeline_mode = #tpu.pipeline_mode<synchronous>, transform_indices = @transform_3, window_bounds = array<i64: 32, 32>}, {pipeline_mode = #tpu.pipeline_mode<synchronous>, transform_indices = @transform_4, window_bounds = array<i64: 1, 32>}, {transform_indices = @transform_5, window_bounds = array<i64: 32, 32>}]} {
    %c0 = arith.constant 0 : index
    %c0_0 = arith.constant 0 : index
    %0 = vector.load %arg1[%c0, %c0_0] : memref<32x6xf32, #tpu.memory_space<vmem>>, vector<32x6xf32>
    %1 = arith.truncf %0 : vector<32x6xf32> to vector<32x6xbf16>
    %c0_1 = arith.constant 0 : index
    %c0_2 = arith.constant 0 : index
    %2 = vector.load %arg2[%c0_1, %c0_2] : memref<6x32xbf16, #tpu.memory_space<vmem>>, vector<6x32xbf16>
    %cst = arith.constant dense<0.000000e+00> : vector<32x32xf32>
    %3 = tpu.matmul %1, %2, %cst {dimension_numbers = #tpu.dot_dimension_numbers<[1], [0], [0], [1], [0, 0, 1, 1], [], []>} : vector<32x6xbf16>, vector<6x32xbf16>, vector<32x32xf32> -> vector<32x32xf32>
    %c0_3 = arith.constant 0 : index
    %c0_4 = arith.constant 0 : index
    %4 = vector.load %arg3[%c0_3, %c0_4] : memref<1x32xf32, #tpu.memory_space<vmem>>, vector<1x32xf32>
    %5 = vector.broadcast %4 : vector<1x32xf32> to vector<32x32xf32>
    %6 = arith.addf %3, %5 : vector<32x32xf32>
    %cst_5 = arith.constant 0.000000e+00 : f32
    %7 = vector.broadcast %cst_5 : f32 to vector<32x32xf32>
    %8 = arith.maximumf %6, %7 : vector<32x32xf32>
    %9 = arith.truncf %8 : vector<32x32xf32> to vector<32x32xbf16>
    %c0_6 = arith.constant 0 : index
    %c0_7 = arith.constant 0 : index
    %10 = vector.load %arg4[%c0_6, %c0_7] : memref<32x32xbf16, #tpu.memory_space<vmem>>, vector<32x32xbf16>
    %cst_8 = arith.constant dense<0.000000e+00> : vector<32x32xf32>
    %11 = tpu.matmul %9, %10, %cst_8 {dimension_numbers = #tpu.dot_dimension_numbers<[1], [0], [0], [1], [0, 0, 1, 1], [], []>} : vector<32x32xbf16>, vector<32x32xbf16>, vector<32x32xf32> -> vector<32x32xf32>
    %c0_9 = arith.constant 0 : index
    %c0_10 = arith.constant 0 : index
    %12 = vector.load %arg5[%c0_9, %c0_10] : memref<1x32xf32, #tpu.memory_space<vmem>>, vector<1x32xf32>
    %13 = vector.broadcast %12 : vector<1x32xf32> to vector<32x32xf32>
    %14 = arith.addf %11, %13 : vector<32x32xf32>
    %c0_11 = arith.constant 0 : index
    %c0_12 = arith.constant 0 : index
    %15 = vector.load %arg6[%c0_11, %c0_12] : memref<32x32xf32, #tpu.memory_space<vmem>>, vector<32x32xf32>
    tpu.vector_store %arg6[%c0_11, %c0_12], %14 {strides = array<i32>} : memref<32x32xf32, #tpu.memory_space<vmem>>, vector<32x32xf32>,
    return
  }
  func.func @transform_0(%arg0: i32) -> (i32, i32) {
    %c0_i32 = arith.constant 0 : i32
    %c0_i32_0 = arith.constant 0 : i32
    return %arg0, %c0_i32 : i32, i32
  }
  func.func @transform_1(%arg0: i32) -> (i32, i32) {
    %c0_i32 = arith.constant 0 : i32
    %c0_i32_0 = arith.constant 0 : i32
    %c0_i32_1 = arith.constant 0 : i32
    return %c0_i32, %c0_i32_0 : i32, i32
  }
  func.func @transform_2(%arg0: i32) -> (i32, i32) {
    %c0_i32 = arith.constant 0 : i32
    %c0_i32_0 = arith.constant 0 : i32
    %c0_i32_1 = arith.constant 0 : i32
    return %c0_i32, %c0_i32_0 : i32, i32
  }
  func.func @transform_3(%arg0: i32) -> (i32, i32) {
    %c0_i32 = arith.constant 0 : i32
    %c0_i32_0 = arith.constant 0 : i32
    %c0_i32_1 = arith.constant 0 : i32
    return %c0_i32, %c0_i32_0 : i32, i32
  }
  func.func @transform_4(%arg0: i32) -> (i32, i32) {
    %c0_i32 = arith.constant 0 : i32
    %c0_i32_0 = arith.constant 0 : i32
    %c0_i32_1 = arith.constant 0 : i32
    return %c0_i32, %c0_i32_0 : i32, i32
  }
  func.func @transform_5(%arg0: i32) -> (i32, i32) {
    %c0_i32 = arith.constant 0 : i32
    %c0_i32_0 = arith.constant 0 : i32
    return %arg0, %c0_i32 : i32, i32
  }
}

module attributes {stable_mosaic.version = 11 : i64} {
  func.func @_mlp2_kernel(%arg0: i32, %arg1: memref<32x32xf32, #tpu.memory_space<vmem>>, %arg2: memref<32x32xbf16, #tpu.memory_space<vmem>>, %arg3: memref<1x32xf32, #tpu.memory_space<vmem>>, %arg4: memref<32x128xbf16, #tpu.memory_space<vmem>>, %arg5: memref<1x128xf32, #tpu.memory_space<vmem>>, %arg6: memref<32x128xf32, #tpu.memory_space<vmem>>) attributes {dimension_semantics = [#tpu.dimension_semantics<parallel>], iteration_bounds = array<i64: 2>, scalar_prefetch = 0 : i64, scratch_operands = 0 : i64, tpu.core_type = #tpu.core_type<tc>, window_params = [{transform_indices = @transform_0, window_bounds = array<i64: 32, 32>}, {pipeline_mode = #tpu.pipeline_mode<synchronous>, transform_indices = @transform_1, window_bounds = array<i64: 32, 32>}, {pipeline_mode = #tpu.pipeline_mode<synchronous>, transform_indices = @transform_2, window_bounds = array<i64: 1, 32>}, {pipeline_mode = #tpu.pipeline_mode<synchronous>, transform_indices = @transform_3, window_bounds = array<i64: 32, 128>}, {pipeline_mode = #tpu.pipeline_mode<synchronous>, transform_indices = @transform_4, window_bounds = array<i64: 1, 128>}, {transform_indices = @transform_5, window_bounds = array<i64: 32, 128>}]} {
    %c0 = arith.constant 0 : index
    %c0_0 = arith.constant 0 : index
    %0 = vector.load %arg1[%c0, %c0_0] : memref<32x32xf32, #tpu.memory_space<vmem>>, vector<32x32xf32>
    %1 = arith.truncf %0 : vector<32x32xf32> to vector<32x32xbf16>
    %c0_1 = arith.constant 0 : index
    %c0_2 = arith.constant 0 : index
    %2 = vector.load %arg2[%c0_1, %c0_2] : memref<32x32xbf16, #tpu.memory_space<vmem>>, vector<32x32xbf16>
    %cst = arith.constant dense<0.000000e+00> : vector<32x32xf32>
    %3 = tpu.matmul %1, %2, %cst {dimension_numbers = #tpu.dot_dimension_numbers<[1], [0], [0], [1], [0, 0, 1, 1], [], []>} : vector<32x32xbf16>, vector<32x32xbf16>, vector<32x32xf32> -> vector<32x32xf32>
    %c0_3 = arith.constant 0 : index
    %c0_4 = arith.constant 0 : index
    %4 = vector.load %arg3[%c0_3, %c0_4] : memref<1x32xf32, #tpu.memory_space<vmem>>, vector<1x32xf32>
    %5 = vector.broadcast %4 : vector<1x32xf32> to vector<32x32xf32>
    %6 = arith.addf %3, %5 : vector<32x32xf32>
    %7 = arith.truncf %6 : vector<32x32xf32> to vector<32x32xbf16>
    %c0_5 = arith.constant 0 : index
    %c0_6 = arith.constant 0 : index
    %8 = vector.load %arg4[%c0_5, %c0_6] : memref<32x128xbf16, #tpu.memory_space<vmem>>, vector<32x128xbf16>
    %cst_7 = arith.constant dense<0.000000e+00> : vector<32x128xf32>
    %9 = tpu.matmul %7, %8, %cst_7 {dimension_numbers = #tpu.dot_dimension_numbers<[1], [0], [0], [1], [0, 0, 1, 1], [], []>} : vector<32x32xbf16>, vector<32x128xbf16>, vector<32x128xf32> -> vector<32x128xf32>
    %c0_8 = arith.constant 0 : index
    %c0_9 = arith.constant 0 : index
    %10 = vector.load %arg5[%c0_8, %c0_9] : memref<1x128xf32, #tpu.memory_space<vmem>>, vector<1x128xf32>
    %11 = vector.broadcast %10 : vector<1x128xf32> to vector<32x128xf32>
    %12 = arith.addf %9, %11 : vector<32x128xf32>
    %c0_10 = arith.constant 0 : index
    %c0_11 = arith.constant 0 : index
    %13 = vector.load %arg6[%c0_10, %c0_11] : memref<32x128xf32, #tpu.memory_space<vmem>>, vector<32x128xf32>
    tpu.vector_store %arg6[%c0_10, %c0_11], %12 {strides = array<i32>} : memref<32x128xf32, #tpu.memory_space<vmem>>, vector<32x128xf32>,
    return
  }
  func.func @transform_0(%arg0: i32) -> (i32, i32) {
    %c0_i32 = arith.constant 0 : i32
    %c0_i32_0 = arith.constant 0 : i32
    return %arg0, %c0_i32 : i32, i32
  }
  func.func @transform_1(%arg0: i32) -> (i32, i32) {
    %c0_i32 = arith.constant 0 : i32
    %c0_i32_0 = arith.constant 0 : i32
    %c0_i32_1 = arith.constant 0 : i32
    return %c0_i32, %c0_i32_0 : i32, i32
  }
  func.func @transform_2(%arg0: i32) -> (i32, i32) {
    %c0_i32 = arith.constant 0 : i32
    %c0_i32_0 = arith.constant 0 : i32
    %c0_i32_1 = arith.constant 0 : i32
    return %c0_i32, %c0_i32_0 : i32, i32
  }
  func.func @transform_3(%arg0: i32) -> (i32, i32) {
    %c0_i32 = arith.constant 0 : i32
    %c0_i32_0 = arith.constant 0 : i32
    %c0_i32_1 = arith.constant 0 : i32
    return %c0_i32, %c0_i32_0 : i32, i32
  }
  func.func @transform_4(%arg0: i32) -> (i32, i32) {
    %c0_i32 = arith.constant 0 : i32
    %c0_i32_0 = arith.constant 0 : i32
    %c0_i32_1 = arith.constant 0 : i32
    return %c0_i32, %c0_i32_0 : i32, i32
  }
  func.func @transform_5(%arg0: i32) -> (i32, i32) {
    %c0_i32 = arith.constant 0 : i32
    %c0_i32_0 = arith.constant 0 : i32
    return %arg0, %c0_i32 : i32, i32
  }
}

module attributes {stable_mosaic.version = 11 : i64} {
  func.func @_pt_attention_kernel(%arg0: i32, %arg1: memref<32x32xf32, #tpu.memory_space<vmem>>, %arg2: memref<8x32x64xf32, #tpu.memory_space<vmem>>, %arg3: memref<8x32x3xf32, #tpu.memory_space<vmem>>, %arg4: memref<3x32xf32, #tpu.memory_space<vmem>>, %arg5: memref<1x32xf32, #tpu.memory_space<vmem>>, %arg6: memref<32x32xbf16, #tpu.memory_space<vmem>>, %arg7: memref<1x32xf32, #tpu.memory_space<vmem>>, %arg8: memref<32x32xbf16, #tpu.memory_space<vmem>>, %arg9: memref<1x32xf32, #tpu.memory_space<vmem>>, %arg10: memref<32x32xbf16, #tpu.memory_space<vmem>>, %arg11: memref<1x32xf32, #tpu.memory_space<vmem>>, %arg12: memref<32x32xbf16, #tpu.memory_space<vmem>>, %arg13: memref<1x32xf32, #tpu.memory_space<vmem>>, %arg14: memref<32x32xf32, #tpu.memory_space<vmem>>, %arg15: memref<32x32xf32, #tpu.memory_space<vmem>>) attributes {dimension_semantics = [#tpu.dimension_semantics<parallel>], iteration_bounds = array<i64: 2>, scalar_prefetch = 0 : i64, scratch_operands = 0 : i64, tpu.core_type = #tpu.core_type<tc>, window_params = [{transform_indices = @transform_0, window_bounds = array<i64: 32, 32>}, {transform_indices = @transform_1, window_bounds = array<i64: 8, 32, 64>}, {transform_indices = @transform_2, window_bounds = array<i64: 8, 32, 3>}, {pipeline_mode = #tpu.pipeline_mode<synchronous>, transform_indices = @transform_3, window_bounds = array<i64: 3, 32>}, {pipeline_mode = #tpu.pipeline_mode<synchronous>, transform_indices = @transform_4, window_bounds = array<i64: 1, 32>}, {pipeline_mode = #tpu.pipeline_mode<synchronous>, transform_indices = @transform_5, window_bounds = array<i64: 32, 32>}, {pipeline_mode = #tpu.pipeline_mode<synchronous>, transform_indices = @transform_6, window_bounds = array<i64: 1, 32>}, {pipeline_mode = #tpu.pipeline_mode<synchronous>, transform_indices = @transform_7, window_bounds = array<i64: 32, 32>}, {pipeline_mode = #tpu.pipeline_mode<synchronous>, transform_indices = @transform_8, window_bounds = array<i64: 1, 32>}, {pipeline_mode = #tpu.pipeline_mode<synchronous>, transform_indices = @transform_9, window_bounds = array<i64: 32, 32>}, {pipeline_mode = #tpu.pipeline_mode<synchronous>, transform_indices = @transform_10, window_bounds = array<i64: 1, 32>}, {pipeline_mode = #tpu.pipeline_mode<synchronous>, transform_indices = @transform_11, window_bounds = array<i64: 32, 32>}, {pipeline_mode = #tpu.pipeline_mode<synchronous>, transform_indices = @transform_12, window_bounds = array<i64: 1, 32>}, {transform_indices = @transform_13, window_bounds = array<i64: 32, 32>}, {transform_indices = @transform_14, window_bounds = array<i64: 32, 32>}]} {
    %c0 = arith.constant 0 : index
    %c0_0 = arith.constant 0 : index
    %0 = vector.load %arg1[%c0, %c0_0] : memref<32x32xf32, #tpu.memory_space<vmem>>, vector<32x32xf32>
    %c0_1 = arith.constant 0 : index
    %c0_2 = arith.constant 0 : index
    %1 = vector.load %arg4[%c0_1, %c0_2] : memref<3x32xf32, #tpu.memory_space<vmem>>, vector<3x32xf32>
    %c0_3 = arith.constant 0 : index
    %c0_4 = arith.constant 0 : index
    %2 = vector.load %arg5[%c0_3, %c0_4] : memref<1x32xf32, #tpu.memory_space<vmem>>, vector<1x32xf32>
    %c0_5 = arith.constant 0 : index
    %c0_6 = arith.constant 0 : index
    %3 = vector.load %arg6[%c0_5, %c0_6] : memref<32x32xbf16, #tpu.memory_space<vmem>>, vector<32x32xbf16>
    %c0_7 = arith.constant 0 : index
    %c0_8 = arith.constant 0 : index
    %4 = vector.load %arg7[%c0_7, %c0_8] : memref<1x32xf32, #tpu.memory_space<vmem>>, vector<1x32xf32>
    %c0_9 = arith.constant 0 : index
    %c0_10 = arith.constant 0 : index
    %5 = vector.load %arg8[%c0_9, %c0_10] : memref<32x32xbf16, #tpu.memory_space<vmem>>, vector<32x32xbf16>
    %c0_11 = arith.constant 0 : index
    %c0_12 = arith.constant 0 : index
    %6 = vector.load %arg9[%c0_11, %c0_12] : memref<1x32xf32, #tpu.memory_space<vmem>>, vector<1x32xf32>
    %c0_13 = arith.constant 0 : index
    %c0_14 = arith.constant 0 : index
    %7 = vector.load %arg10[%c0_13, %c0_14] : memref<32x32xbf16, #tpu.memory_space<vmem>>, vector<32x32xbf16>
    %c0_15 = arith.constant 0 : index
    %c0_16 = arith.constant 0 : index
    %8 = vector.load %arg11[%c0_15, %c0_16] : memref<1x32xf32, #tpu.memory_space<vmem>>, vector<1x32xf32>
    %c0_17 = arith.constant 0 : index
    %c0_18 = arith.constant 0 : index
    %c0_19 = arith.constant 0 : index
    %9 = vector.load %arg2[%c0_17, %c0_18, %c0_19] : memref<8x32x64xf32, #tpu.memory_space<vmem>>, vector<1x32x64xf32>
    %10 = vector.shape_cast %9 : vector<1x32x64xf32> to vector<32x64xf32>
    %11 = vector.extract_strided_slice %10 {offsets = [0, 0], sizes = [32, 32], strides = [1, 1]} : vector<32x64xf32> to vector<32x32xf32>
    %12 = vector.extract_strided_slice %10 {offsets = [0, 32], sizes = [32, 32], strides = [1, 1]} : vector<32x64xf32> to vector<32x32xf32>
    %c0_20 = arith.constant 0 : index
    %c0_21 = arith.constant 0 : index
    %c0_22 = arith.constant 0 : index
    %13 = vector.load %arg3[%c0_20, %c0_21, %c0_22] : memref<8x32x3xf32, #tpu.memory_space<vmem>>, vector<1x32x3xf32>
    %14 = vector.shape_cast %13 : vector<1x32x3xf32> to vector<32x3xf32>
    %15 = vector.extract_strided_slice %14 {offsets = [0, 0], sizes = [32, 1], strides = [1, 1]} : vector<32x3xf32> to vector<32x1xf32>
    %16 = vector.extract_strided_slice %1 {offsets = [0, 0], sizes = [1, 32], strides = [1, 1]} : vector<3x32xf32> to vector<1x32xf32>
    %17 = vector.broadcast %15 : vector<32x1xf32> to vector<32x32xf32>
    %18 = vector.broadcast %16 : vector<1x32xf32> to vector<32x32xf32>
    %19 = arith.mulf %17, %18 : vector<32x32xf32>
    %20 = vector.extract_strided_slice %14 {offsets = [0, 1], sizes = [32, 1], strides = [1, 1]} : vector<32x3xf32> to vector<32x1xf32>
    %21 = vector.extract_strided_slice %1 {offsets = [1, 0], sizes = [1, 32], strides = [1, 1]} : vector<3x32xf32> to vector<1x32xf32>
    %22 = vector.broadcast %20 : vector<32x1xf32> to vector<32x32xf32>
    %23 = vector.broadcast %21 : vector<1x32xf32> to vector<32x32xf32>
    %24 = arith.mulf %22, %23 : vector<32x32xf32>
    %25 = arith.addf %19, %24 : vector<32x32xf32>
    %26 = vector.extract_strided_slice %14 {offsets = [0, 2], sizes = [32, 1], strides = [1, 1]} : vector<32x3xf32> to vector<32x1xf32>
    %27 = vector.extract_strided_slice %1 {offsets = [2, 0], sizes = [1, 32], strides = [1, 1]} : vector<3x32xf32> to vector<1x32xf32>
    %28 = vector.broadcast %26 : vector<32x1xf32> to vector<32x32xf32>
    %29 = vector.broadcast %27 : vector<1x32xf32> to vector<32x32xf32>
    %30 = arith.mulf %28, %29 : vector<32x32xf32>
    %31 = arith.addf %25, %30 : vector<32x32xf32>
    %32 = vector.broadcast %2 : vector<1x32xf32> to vector<32x32xf32>
    %33 = arith.addf %31, %32 : vector<32x32xf32>
    %cst = arith.constant 0.000000e+00 : f32
    %34 = vector.broadcast %cst : f32 to vector<32x32xf32>
    %35 = arith.maximumf %33, %34 : vector<32x32xf32>
    %36 = arith.truncf %35 : vector<32x32xf32> to vector<32x32xbf16>
    %cst_23 = arith.constant dense<0.000000e+00> : vector<32x32xf32>
    %37 = tpu.matmul %36, %3, %cst_23 {dimension_numbers = #tpu.dot_dimension_numbers<[1], [0], [0], [1], [0, 0, 1, 1], [], []>} : vector<32x32xbf16>, vector<32x32xbf16>, vector<32x32xf32> -> vector<32x32xf32>
    %38 = vector.broadcast %4 : vector<1x32xf32> to vector<32x32xf32>
    %39 = arith.addf %37, %38 : vector<32x32xf32>
    %40 = arith.subf %0, %11 : vector<32x32xf32>
    %41 = arith.addf %40, %39 : vector<32x32xf32>
    %42 = arith.truncf %41 : vector<32x32xf32> to vector<32x32xbf16>
    %cst_24 = arith.constant dense<0.000000e+00> : vector<32x32xf32>
    %43 = tpu.matmul %42, %5, %cst_24 {dimension_numbers = #tpu.dot_dimension_numbers<[1], [0], [0], [1], [0, 0, 1, 1], [], []>} : vector<32x32xbf16>, vector<32x32xbf16>, vector<32x32xf32> -> vector<32x32xf32>
    %44 = vector.broadcast %6 : vector<1x32xf32> to vector<32x32xf32>
    %45 = arith.addf %43, %44 : vector<32x32xf32>
    %cst_25 = arith.constant 0.000000e+00 : f32
    %46 = vector.broadcast %cst_25 : f32 to vector<32x32xf32>
    %47 = arith.maximumf %45, %46 : vector<32x32xf32>
    %48 = arith.truncf %47 : vector<32x32xf32> to vector<32x32xbf16>
    %cst_26 = arith.constant dense<0.000000e+00> : vector<32x32xf32>
    %49 = tpu.matmul %48, %7, %cst_26 {dimension_numbers = #tpu.dot_dimension_numbers<[1], [0], [0], [1], [0, 0, 1, 1], [], []>} : vector<32x32xbf16>, vector<32x32xbf16>, vector<32x32xf32> -> vector<32x32xf32>
    %50 = vector.broadcast %8 : vector<1x32xf32> to vector<32x32xf32>
    %51 = arith.addf %49, %50 : vector<32x32xf32>
    %52 = arith.addf %12, %39 : vector<32x32xf32>
    %cst_27 = arith.constant 1.000000e+00 : f32
    %53 = vector.broadcast %cst_27 : f32 to vector<32x32xf32>
    %c1 = arith.constant 1 : index
    %c0_28 = arith.constant 0 : index
    %c0_29 = arith.constant 0 : index
    %54 = vector.load %arg2[%c1, %c0_28, %c0_29] : memref<8x32x64xf32, #tpu.memory_space<vmem>>, vector<1x32x64xf32>
    %55 = vector.shape_cast %54 : vector<1x32x64xf32> to vector<32x64xf32>
    %56 = vector.extract_strided_slice %55 {offsets = [0, 0], sizes = [32, 32], strides = [1, 1]} : vector<32x64xf32> to vector<32x32xf32>
    %57 = vector.extract_strided_slice %55 {offsets = [0, 32], sizes = [32, 32], strides = [1, 1]} : vector<32x64xf32> to vector<32x32xf32>
    %c1_30 = arith.constant 1 : index
    %c0_31 = arith.constant 0 : index
    %c0_32 = arith.constant 0 : index
    %58 = vector.load %arg3[%c1_30, %c0_31, %c0_32] : memref<8x32x3xf32, #tpu.memory_space<vmem>>, vector<1x32x3xf32>
    %59 = vector.shape_cast %58 : vector<1x32x3xf32> to vector<32x3xf32>
    %60 = vector.extract_strided_slice %59 {offsets = [0, 0], sizes = [32, 1], strides = [1, 1]} : vector<32x3xf32> to vector<32x1xf32>
    %61 = vector.extract_strided_slice %1 {offsets = [0, 0], sizes = [1, 32], strides = [1, 1]} : vector<3x32xf32> to vector<1x32xf32>
    %62 = vector.broadcast %60 : vector<32x1xf32> to vector<32x32xf32>
    %63 = vector.broadcast %61 : vector<1x32xf32> to vector<32x32xf32>
    %64 = arith.mulf %62, %63 : vector<32x32xf32>
    %65 = vector.extract_strided_slice %59 {offsets = [0, 1], sizes = [32, 1], strides = [1, 1]} : vector<32x3xf32> to vector<32x1xf32>
    %66 = vector.extract_strided_slice %1 {offsets = [1, 0], sizes = [1, 32], strides = [1, 1]} : vector<3x32xf32> to vector<1x32xf32>
    %67 = vector.broadcast %65 : vector<32x1xf32> to vector<32x32xf32>
    %68 = vector.broadcast %66 : vector<1x32xf32> to vector<32x32xf32>
    %69 = arith.mulf %67, %68 : vector<32x32xf32>
    %70 = arith.addf %64, %69 : vector<32x32xf32>
    %71 = vector.extract_strided_slice %59 {offsets = [0, 2], sizes = [32, 1], strides = [1, 1]} : vector<32x3xf32> to vector<32x1xf32>
    %72 = vector.extract_strided_slice %1 {offsets = [2, 0], sizes = [1, 32], strides = [1, 1]} : vector<3x32xf32> to vector<1x32xf32>
    %73 = vector.broadcast %71 : vector<32x1xf32> to vector<32x32xf32>
    %74 = vector.broadcast %72 : vector<1x32xf32> to vector<32x32xf32>
    %75 = arith.mulf %73, %74 : vector<32x32xf32>
    %76 = arith.addf %70, %75 : vector<32x32xf32>
    %77 = vector.broadcast %2 : vector<1x32xf32> to vector<32x32xf32>
    %78 = arith.addf %76, %77 : vector<32x32xf32>
    %cst_33 = arith.constant 0.000000e+00 : f32
    %79 = vector.broadcast %cst_33 : f32 to vector<32x32xf32>
    %80 = arith.maximumf %78, %79 : vector<32x32xf32>
    %81 = arith.truncf %80 : vector<32x32xf32> to vector<32x32xbf16>
    %cst_34 = arith.constant dense<0.000000e+00> : vector<32x32xf32>
    %82 = tpu.matmul %81, %3, %cst_34 {dimension_numbers = #tpu.dot_dimension_numbers<[1], [0], [0], [1], [0, 0, 1, 1], [], []>} : vector<32x32xbf16>, vector<32x32xbf16>, vector<32x32xf32> -> vector<32x32xf32>
    %83 = vector.broadcast %4 : vector<1x32xf32> to vector<32x32xf32>
    %84 = arith.addf %82, %83 : vector<32x32xf32>
    %85 = arith.subf %0, %56 : vector<32x32xf32>
    %86 = arith.addf %85, %84 : vector<32x32xf32>
    %87 = arith.truncf %86 : vector<32x32xf32> to vector<32x32xbf16>
    %cst_35 = arith.constant dense<0.000000e+00> : vector<32x32xf32>
    %88 = tpu.matmul %87, %5, %cst_35 {dimension_numbers = #tpu.dot_dimension_numbers<[1], [0], [0], [1], [0, 0, 1, 1], [], []>} : vector<32x32xbf16>, vector<32x32xbf16>, vector<32x32xf32> -> vector<32x32xf32>
    %89 = vector.broadcast %6 : vector<1x32xf32> to vector<32x32xf32>
    %90 = arith.addf %88, %89 : vector<32x32xf32>
    %cst_36 = arith.constant 0.000000e+00 : f32
    %91 = vector.broadcast %cst_36 : f32 to vector<32x32xf32>
    %92 = arith.maximumf %90, %91 : vector<32x32xf32>
    %93 = arith.truncf %92 : vector<32x32xf32> to vector<32x32xbf16>
    %cst_37 = arith.constant dense<0.000000e+00> : vector<32x32xf32>
    %94 = tpu.matmul %93, %7, %cst_37 {dimension_numbers = #tpu.dot_dimension_numbers<[1], [0], [0], [1], [0, 0, 1, 1], [], []>} : vector<32x32xbf16>, vector<32x32xbf16>, vector<32x32xf32> -> vector<32x32xf32>
    %95 = vector.broadcast %8 : vector<1x32xf32> to vector<32x32xf32>
    %96 = arith.addf %94, %95 : vector<32x32xf32>
    %97 = arith.addf %57, %84 : vector<32x32xf32>
    %98 = arith.maximumf %51, %96 : vector<32x32xf32>
    %99 = arith.subf %51, %98 : vector<32x32xf32>
    %100 = math.exp %99 : vector<32x32xf32>
    %101 = arith.subf %96, %98 : vector<32x32xf32>
    %102 = math.exp %101 : vector<32x32xf32>
    %103 = arith.mulf %100, %53 : vector<32x32xf32>
    %104 = arith.addf %103, %102 : vector<32x32xf32>
    %105 = arith.mulf %100, %52 : vector<32x32xf32>
    %106 = arith.mulf %102, %97 : vector<32x32xf32>
    %107 = arith.addf %105, %106 : vector<32x32xf32>
    %c2 = arith.constant 2 : index
    %c0_38 = arith.constant 0 : index
    %c0_39 = arith.constant 0 : index
    %108 = vector.load %arg2[%c2, %c0_38, %c0_39] : memref<8x32x64xf32, #tpu.memory_space<vmem>>, vector<1x32x64xf32>
    %109 = vector.shape_cast %108 : vector<1x32x64xf32> to vector<32x64xf32>
    %110 = vector.extract_strided_slice %109 {offsets = [0, 0], sizes = [32, 32], strides = [1, 1]} : vector<32x64xf32> to vector<32x32xf32>
    %111 = vector.extract_strided_slice %109 {offsets = [0, 32], sizes = [32, 32], strides = [1, 1]} : vector<32x64xf32> to vector<32x32xf32>
    %c2_40 = arith.constant 2 : index
    %c0_41 = arith.constant 0 : index
    %c0_42 = arith.constant 0 : index
    %112 = vector.load %arg3[%c2_40, %c0_41, %c0_42] : memref<8x32x3xf32, #tpu.memory_space<vmem>>, vector<1x32x3xf32>
    %113 = vector.shape_cast %112 : vector<1x32x3xf32> to vector<32x3xf32>
    %114 = vector.extract_strided_slice %113 {offsets = [0, 0], sizes = [32, 1], strides = [1, 1]} : vector<32x3xf32> to vector<32x1xf32>
    %115 = vector.extract_strided_slice %1 {offsets = [0, 0], sizes = [1, 32], strides = [1, 1]} : vector<3x32xf32> to vector<1x32xf32>
    %116 = vector.broadcast %114 : vector<32x1xf32> to vector<32x32xf32>
    %117 = vector.broadcast %115 : vector<1x32xf32> to vector<32x32xf32>
    %118 = arith.mulf %116, %117 : vector<32x32xf32>
    %119 = vector.extract_strided_slice %113 {offsets = [0, 1], sizes = [32, 1], strides = [1, 1]} : vector<32x3xf32> to vector<32x1xf32>
    %120 = vector.extract_strided_slice %1 {offsets = [1, 0], sizes = [1, 32], strides = [1, 1]} : vector<3x32xf32> to vector<1x32xf32>
    %121 = vector.broadcast %119 : vector<32x1xf32> to vector<32x32xf32>
    %122 = vector.broadcast %120 : vector<1x32xf32> to vector<32x32xf32>
    %123 = arith.mulf %121, %122 : vector<32x32xf32>
    %124 = arith.addf %118, %123 : vector<32x32xf32>
    %125 = vector.extract_strided_slice %113 {offsets = [0, 2], sizes = [32, 1], strides = [1, 1]} : vector<32x3xf32> to vector<32x1xf32>
    %126 = vector.extract_strided_slice %1 {offsets = [2, 0], sizes = [1, 32], strides = [1, 1]} : vector<3x32xf32> to vector<1x32xf32>
    %127 = vector.broadcast %125 : vector<32x1xf32> to vector<32x32xf32>
    %128 = vector.broadcast %126 : vector<1x32xf32> to vector<32x32xf32>
    %129 = arith.mulf %127, %128 : vector<32x32xf32>
    %130 = arith.addf %124, %129 : vector<32x32xf32>
    %131 = vector.broadcast %2 : vector<1x32xf32> to vector<32x32xf32>
    %132 = arith.addf %130, %131 : vector<32x32xf32>
    %cst_43 = arith.constant 0.000000e+00 : f32
    %133 = vector.broadcast %cst_43 : f32 to vector<32x32xf32>
    %134 = arith.maximumf %132, %133 : vector<32x32xf32>
    %135 = arith.truncf %134 : vector<32x32xf32> to vector<32x32xbf16>
    %cst_44 = arith.constant dense<0.000000e+00> : vector<32x32xf32>
    %136 = tpu.matmul %135, %3, %cst_44 {dimension_numbers = #tpu.dot_dimension_numbers<[1], [0], [0], [1], [0, 0, 1, 1], [], []>} : vector<32x32xbf16>, vector<32x32xbf16>, vector<32x32xf32> -> vector<32x32xf32>
    %137 = vector.broadcast %4 : vector<1x32xf32> to vector<32x32xf32>
    %138 = arith.addf %136, %137 : vector<32x32xf32>
    %139 = arith.subf %0, %110 : vector<32x32xf32>
    %140 = arith.addf %139, %138 : vector<32x32xf32>
    %141 = arith.truncf %140 : vector<32x32xf32> to vector<32x32xbf16>
    %cst_45 = arith.constant dense<0.000000e+00> : vector<32x32xf32>
    %142 = tpu.matmul %141, %5, %cst_45 {dimension_numbers = #tpu.dot_dimension_numbers<[1], [0], [0], [1], [0, 0, 1, 1], [], []>} : vector<32x32xbf16>, vector<32x32xbf16>, vector<32x32xf32> -> vector<32x32xf32>
    %143 = vector.broadcast %6 : vector<1x32xf32> to vector<32x32xf32>
    %144 = arith.addf %142, %143 : vector<32x32xf32>
    %cst_46 = arith.constant 0.000000e+00 : f32
    %145 = vector.broadcast %cst_46 : f32 to vector<32x32xf32>
    %146 = arith.maximumf %144, %145 : vector<32x32xf32>
    %147 = arith.truncf %146 : vector<32x32xf32> to vector<32x32xbf16>
    %cst_47 = arith.constant dense<0.000000e+00> : vector<32x32xf32>
    %148 = tpu.matmul %147, %7, %cst_47 {dimension_numbers = #tpu.dot_dimension_numbers<[1], [0], [0], [1], [0, 0, 1, 1], [], []>} : vector<32x32xbf16>, vector<32x32xbf16>, vector<32x32xf32> -> vector<32x32xf32>
    %149 = vector.broadcast %8 : vector<1x32xf32> to vector<32x32xf32>
    %150 = arith.addf %148, %149 : vector<32x32xf32>
    %151 = arith.addf %111, %138 : vector<32x32xf32>
    %152 = arith.maximumf %98, %150 : vector<32x32xf32>
    %153 = arith.subf %98, %152 : vector<32x32xf32>
    %154 = math.exp %153 : vector<32x32xf32>
    %155 = arith.subf %150, %152 : vector<32x32xf32>
    %156 = math.exp %155 : vector<32x32xf32>
    %157 = arith.mulf %154, %104 : vector<32x32xf32>
    %158 = arith.addf %157, %156 : vector<32x32xf32>
    %159 = arith.mulf %154, %107 : vector<32x32xf32>
    %160 = arith.mulf %156, %151 : vector<32x32xf32>
    %161 = arith.addf %159, %160 : vector<32x32xf32>
    %c3 = arith.constant 3 : index
    %c0_48 = arith.constant 0 : index
    %c0_49 = arith.constant 0 : index
    %162 = vector.load %arg2[%c3, %c0_48, %c0_49] : memref<8x32x64xf32, #tpu.memory_space<vmem>>, vector<1x32x64xf32>
    %163 = vector.shape_cast %162 : vector<1x32x64xf32> to vector<32x64xf32>
    %164 = vector.extract_strided_slice %163 {offsets = [0, 0], sizes = [32, 32], strides = [1, 1]} : vector<32x64xf32> to vector<32x32xf32>
    %165 = vector.extract_strided_slice %163 {offsets = [0, 32], sizes = [32, 32], strides = [1, 1]} : vector<32x64xf32> to vector<32x32xf32>
    %c3_50 = arith.constant 3 : index
    %c0_51 = arith.constant 0 : index
    %c0_52 = arith.constant 0 : index
    %166 = vector.load %arg3[%c3_50, %c0_51, %c0_52] : memref<8x32x3xf32, #tpu.memory_space<vmem>>, vector<1x32x3xf32>
    %167 = vector.shape_cast %166 : vector<1x32x3xf32> to vector<32x3xf32>
    %168 = vector.extract_strided_slice %167 {offsets = [0, 0], sizes = [32, 1], strides = [1, 1]} : vector<32x3xf32> to vector<32x1xf32>
    %169 = vector.extract_strided_slice %1 {offsets = [0, 0], sizes = [1, 32], strides = [1, 1]} : vector<3x32xf32> to vector<1x32xf32>
    %170 = vector.broadcast %168 : vector<32x1xf32> to vector<32x32xf32>
    %171 = vector.broadcast %169 : vector<1x32xf32> to vector<32x32xf32>
    %172 = arith.mulf %170, %171 : vector<32x32xf32>
    %173 = vector.extract_strided_slice %167 {offsets = [0, 1], sizes = [32, 1], strides = [1, 1]} : vector<32x3xf32> to vector<32x1xf32>
    %174 = vector.extract_strided_slice %1 {offsets = [1, 0], sizes = [1, 32], strides = [1, 1]} : vector<3x32xf32> to vector<1x32xf32>
    %175 = vector.broadcast %173 : vector<32x1xf32> to vector<32x32xf32>
    %176 = vector.broadcast %174 : vector<1x32xf32> to vector<32x32xf32>
    %177 = arith.mulf %175, %176 : vector<32x32xf32>
    %178 = arith.addf %172, %177 : vector<32x32xf32>
    %179 = vector.extract_strided_slice %167 {offsets = [0, 2], sizes = [32, 1], strides = [1, 1]} : vector<32x3xf32> to vector<32x1xf32>
    %180 = vector.extract_strided_slice %1 {offsets = [2, 0], sizes = [1, 32], strides = [1, 1]} : vector<3x32xf32> to vector<1x32xf32>
    %181 = vector.broadcast %179 : vector<32x1xf32> to vector<32x32xf32>
    %182 = vector.broadcast %180 : vector<1x32xf32> to vector<32x32xf32>
    %183 = arith.mulf %181, %182 : vector<32x32xf32>
    %184 = arith.addf %178, %183 : vector<32x32xf32>
    %185 = vector.broadcast %2 : vector<1x32xf32> to vector<32x32xf32>
    %186 = arith.addf %184, %185 : vector<32x32xf32>
    %cst_53 = arith.constant 0.000000e+00 : f32
    %187 = vector.broadcast %cst_53 : f32 to vector<32x32xf32>
    %188 = arith.maximumf %186, %187 : vector<32x32xf32>
    %189 = arith.truncf %188 : vector<32x32xf32> to vector<32x32xbf16>
    %cst_54 = arith.constant dense<0.000000e+00> : vector<32x32xf32>
    %190 = tpu.matmul %189, %3, %cst_54 {dimension_numbers = #tpu.dot_dimension_numbers<[1], [0], [0], [1], [0, 0, 1, 1], [], []>} : vector<32x32xbf16>, vector<32x32xbf16>, vector<32x32xf32> -> vector<32x32xf32>
    %191 = vector.broadcast %4 : vector<1x32xf32> to vector<32x32xf32>
    %192 = arith.addf %190, %191 : vector<32x32xf32>
    %193 = arith.subf %0, %164 : vector<32x32xf32>
    %194 = arith.addf %193, %192 : vector<32x32xf32>
    %195 = arith.truncf %194 : vector<32x32xf32> to vector<32x32xbf16>
    %cst_55 = arith.constant dense<0.000000e+00> : vector<32x32xf32>
    %196 = tpu.matmul %195, %5, %cst_55 {dimension_numbers = #tpu.dot_dimension_numbers<[1], [0], [0], [1], [0, 0, 1, 1], [], []>} : vector<32x32xbf16>, vector<32x32xbf16>, vector<32x32xf32> -> vector<32x32xf32>
    %197 = vector.broadcast %6 : vector<1x32xf32> to vector<32x32xf32>
    %198 = arith.addf %196, %197 : vector<32x32xf32>
    %cst_56 = arith.constant 0.000000e+00 : f32
    %199 = vector.broadcast %cst_56 : f32 to vector<32x32xf32>
    %200 = arith.maximumf %198, %199 : vector<32x32xf32>
    %201 = arith.truncf %200 : vector<32x32xf32> to vector<32x32xbf16>
    %cst_57 = arith.constant dense<0.000000e+00> : vector<32x32xf32>
    %202 = tpu.matmul %201, %7, %cst_57 {dimension_numbers = #tpu.dot_dimension_numbers<[1], [0], [0], [1], [0, 0, 1, 1], [], []>} : vector<32x32xbf16>, vector<32x32xbf16>, vector<32x32xf32> -> vector<32x32xf32>
    %203 = vector.broadcast %8 : vector<1x32xf32> to vector<32x32xf32>
    %204 = arith.addf %202, %203 : vector<32x32xf32>
    %205 = arith.addf %165, %192 : vector<32x32xf32>
    %206 = arith.maximumf %152, %204 : vector<32x32xf32>
    %207 = arith.subf %152, %206 : vector<32x32xf32>
    %208 = math.exp %207 : vector<32x32xf32>
    %209 = arith.subf %204, %206 : vector<32x32xf32>
    %210 = math.exp %209 : vector<32x32xf32>
    %211 = arith.mulf %208, %158 : vector<32x32xf32>
    %212 = arith.addf %211, %210 : vector<32x32xf32>
    %213 = arith.mulf %208, %161 : vector<32x32xf32>
    %214 = arith.mulf %210, %205 : vector<32x32xf32>
    %215 = arith.addf %213, %214 : vector<32x32xf32>
    %c4 = arith.constant 4 : index
    %c0_58 = arith.constant 0 : index
    %c0_59 = arith.constant 0 : index
    %216 = vector.load %arg2[%c4, %c0_58, %c0_59] : memref<8x32x64xf32, #tpu.memory_space<vmem>>, vector<1x32x64xf32>
    %217 = vector.shape_cast %216 : vector<1x32x64xf32> to vector<32x64xf32>
    %218 = vector.extract_strided_slice %217 {offsets = [0, 0], sizes = [32, 32], strides = [1, 1]} : vector<32x64xf32> to vector<32x32xf32>
    %219 = vector.extract_strided_slice %217 {offsets = [0, 32], sizes = [32, 32], strides = [1, 1]} : vector<32x64xf32> to vector<32x32xf32>
    %c4_60 = arith.constant 4 : index
    %c0_61 = arith.constant 0 : index
    %c0_62 = arith.constant 0 : index
    %220 = vector.load %arg3[%c4_60, %c0_61, %c0_62] : memref<8x32x3xf32, #tpu.memory_space<vmem>>, vector<1x32x3xf32>
    %221 = vector.shape_cast %220 : vector<1x32x3xf32> to vector<32x3xf32>
    %222 = vector.extract_strided_slice %221 {offsets = [0, 0], sizes = [32, 1], strides = [1, 1]} : vector<32x3xf32> to vector<32x1xf32>
    %223 = vector.extract_strided_slice %1 {offsets = [0, 0], sizes = [1, 32], strides = [1, 1]} : vector<3x32xf32> to vector<1x32xf32>
    %224 = vector.broadcast %222 : vector<32x1xf32> to vector<32x32xf32>
    %225 = vector.broadcast %223 : vector<1x32xf32> to vector<32x32xf32>
    %226 = arith.mulf %224, %225 : vector<32x32xf32>
    %227 = vector.extract_strided_slice %221 {offsets = [0, 1], sizes = [32, 1], strides = [1, 1]} : vector<32x3xf32> to vector<32x1xf32>
    %228 = vector.extract_strided_slice %1 {offsets = [1, 0], sizes = [1, 32], strides = [1, 1]} : vector<3x32xf32> to vector<1x32xf32>
    %229 = vector.broadcast %227 : vector<32x1xf32> to vector<32x32xf32>
    %230 = vector.broadcast %228 : vector<1x32xf32> to vector<32x32xf32>
    %231 = arith.mulf %229, %230 : vector<32x32xf32>
    %232 = arith.addf %226, %231 : vector<32x32xf32>
    %233 = vector.extract_strided_slice %221 {offsets = [0, 2], sizes = [32, 1], strides = [1, 1]} : vector<32x3xf32> to vector<32x1xf32>
    %234 = vector.extract_strided_slice %1 {offsets = [2, 0], sizes = [1, 32], strides = [1, 1]} : vector<3x32xf32> to vector<1x32xf32>
    %235 = vector.broadcast %233 : vector<32x1xf32> to vector<32x32xf32>
    %236 = vector.broadcast %234 : vector<1x32xf32> to vector<32x32xf32>
    %237 = arith.mulf %235, %236 : vector<32x32xf32>
    %238 = arith.addf %232, %237 : vector<32x32xf32>
    %239 = vector.broadcast %2 : vector<1x32xf32> to vector<32x32xf32>
    %240 = arith.addf %238, %239 : vector<32x32xf32>
    %cst_63 = arith.constant 0.000000e+00 : f32
    %241 = vector.broadcast %cst_63 : f32 to vector<32x32xf32>
    %242 = arith.maximumf %240, %241 : vector<32x32xf32>
    %243 = arith.truncf %242 : vector<32x32xf32> to vector<32x32xbf16>
    %cst_64 = arith.constant dense<0.000000e+00> : vector<32x32xf32>
    %244 = tpu.matmul %243, %3, %cst_64 {dimension_numbers = #tpu.dot_dimension_numbers<[1], [0], [0], [1], [0, 0, 1, 1], [], []>} : vector<32x32xbf16>, vector<32x32xbf16>, vector<32x32xf32> -> vector<32x32xf32>
    %245 = vector.broadcast %4 : vector<1x32xf32> to vector<32x32xf32>
    %246 = arith.addf %244, %245 : vector<32x32xf32>
    %247 = arith.subf %0, %218 : vector<32x32xf32>
    %248 = arith.addf %247, %246 : vector<32x32xf32>
    %249 = arith.truncf %248 : vector<32x32xf32> to vector<32x32xbf16>
    %cst_65 = arith.constant dense<0.000000e+00> : vector<32x32xf32>
    %250 = tpu.matmul %249, %5, %cst_65 {dimension_numbers = #tpu.dot_dimension_numbers<[1], [0], [0], [1], [0, 0, 1, 1], [], []>} : vector<32x32xbf16>, vector<32x32xbf16>, vector<32x32xf32> -> vector<32x32xf32>
    %251 = vector.broadcast %6 : vector<1x32xf32> to vector<32x32xf32>
    %252 = arith.addf %250, %251 : vector<32x32xf32>
    %cst_66 = arith.constant 0.000000e+00 : f32
    %253 = vector.broadcast %cst_66 : f32 to vector<32x32xf32>
    %254 = arith.maximumf %252, %253 : vector<32x32xf32>
    %255 = arith.truncf %254 : vector<32x32xf32> to vector<32x32xbf16>
    %cst_67 = arith.constant dense<0.000000e+00> : vector<32x32xf32>
    %256 = tpu.matmul %255, %7, %cst_67 {dimension_numbers = #tpu.dot_dimension_numbers<[1], [0], [0], [1], [0, 0, 1, 1], [], []>} : vector<32x32xbf16>, vector<32x32xbf16>, vector<32x32xf32> -> vector<32x32xf32>
    %257 = vector.broadcast %8 : vector<1x32xf32> to vector<32x32xf32>
    %258 = arith.addf %256, %257 : vector<32x32xf32>
    %259 = arith.addf %219, %246 : vector<32x32xf32>
    %260 = arith.maximumf %206, %258 : vector<32x32xf32>
    %261 = arith.subf %206, %260 : vector<32x32xf32>
    %262 = math.exp %261 : vector<32x32xf32>
    %263 = arith.subf %258, %260 : vector<32x32xf32>
    %264 = math.exp %263 : vector<32x32xf32>
    %265 = arith.mulf %262, %212 : vector<32x32xf32>
    %266 = arith.addf %265, %264 : vector<32x32xf32>
    %267 = arith.mulf %262, %215 : vector<32x32xf32>
    %268 = arith.mulf %264, %259 : vector<32x32xf32>
    %269 = arith.addf %267, %268 : vector<32x32xf32>
    %c5 = arith.constant 5 : index
    %c0_68 = arith.constant 0 : index
    %c0_69 = arith.constant 0 : index
    %270 = vector.load %arg2[%c5, %c0_68, %c0_69] : memref<8x32x64xf32, #tpu.memory_space<vmem>>, vector<1x32x64xf32>
    %271 = vector.shape_cast %270 : vector<1x32x64xf32> to vector<32x64xf32>
    %272 = vector.extract_strided_slice %271 {offsets = [0, 0], sizes = [32, 32], strides = [1, 1]} : vector<32x64xf32> to vector<32x32xf32>
    %273 = vector.extract_strided_slice %271 {offsets = [0, 32], sizes = [32, 32], strides = [1, 1]} : vector<32x64xf32> to vector<32x32xf32>
    %c5_70 = arith.constant 5 : index
    %c0_71 = arith.constant 0 : index
    %c0_72 = arith.constant 0 : index
    %274 = vector.load %arg3[%c5_70, %c0_71, %c0_72] : memref<8x32x3xf32, #tpu.memory_space<vmem>>, vector<1x32x3xf32>
    %275 = vector.shape_cast %274 : vector<1x32x3xf32> to vector<32x3xf32>
    %276 = vector.extract_strided_slice %275 {offsets = [0, 0], sizes = [32, 1], strides = [1, 1]} : vector<32x3xf32> to vector<32x1xf32>
    %277 = vector.extract_strided_slice %1 {offsets = [0, 0], sizes = [1, 32], strides = [1, 1]} : vector<3x32xf32> to vector<1x32xf32>
    %278 = vector.broadcast %276 : vector<32x1xf32> to vector<32x32xf32>
    %279 = vector.broadcast %277 : vector<1x32xf32> to vector<32x32xf32>
    %280 = arith.mulf %278, %279 : vector<32x32xf32>
    %281 = vector.extract_strided_slice %275 {offsets = [0, 1], sizes = [32, 1], strides = [1, 1]} : vector<32x3xf32> to vector<32x1xf32>
    %282 = vector.extract_strided_slice %1 {offsets = [1, 0], sizes = [1, 32], strides = [1, 1]} : vector<3x32xf32> to vector<1x32xf32>
    %283 = vector.broadcast %281 : vector<32x1xf32> to vector<32x32xf32>
    %284 = vector.broadcast %282 : vector<1x32xf32> to vector<32x32xf32>
    %285 = arith.mulf %283, %284 : vector<32x32xf32>
    %286 = arith.addf %280, %285 : vector<32x32xf32>
    %287 = vector.extract_strided_slice %275 {offsets = [0, 2], sizes = [32, 1], strides = [1, 1]} : vector<32x3xf32> to vector<32x1xf32>
    %288 = vector.extract_strided_slice %1 {offsets = [2, 0], sizes = [1, 32], strides = [1, 1]} : vector<3x32xf32> to vector<1x32xf32>
    %289 = vector.broadcast %287 : vector<32x1xf32> to vector<32x32xf32>
    %290 = vector.broadcast %288 : vector<1x32xf32> to vector<32x32xf32>
    %291 = arith.mulf %289, %290 : vector<32x32xf32>
    %292 = arith.addf %286, %291 : vector<32x32xf32>
    %293 = vector.broadcast %2 : vector<1x32xf32> to vector<32x32xf32>
    %294 = arith.addf %292, %293 : vector<32x32xf32>
    %cst_73 = arith.constant 0.000000e+00 : f32
    %295 = vector.broadcast %cst_73 : f32 to vector<32x32xf32>
    %296 = arith.maximumf %294, %295 : vector<32x32xf32>
    %297 = arith.truncf %296 : vector<32x32xf32> to vector<32x32xbf16>
    %cst_74 = arith.constant dense<0.000000e+00> : vector<32x32xf32>
    %298 = tpu.matmul %297, %3, %cst_74 {dimension_numbers = #tpu.dot_dimension_numbers<[1], [0], [0], [1], [0, 0, 1, 1], [], []>} : vector<32x32xbf16>, vector<32x32xbf16>, vector<32x32xf32> -> vector<32x32xf32>
    %299 = vector.broadcast %4 : vector<1x32xf32> to vector<32x32xf32>
    %300 = arith.addf %298, %299 : vector<32x32xf32>
    %301 = arith.subf %0, %272 : vector<32x32xf32>
    %302 = arith.addf %301, %300 : vector<32x32xf32>
    %303 = arith.truncf %302 : vector<32x32xf32> to vector<32x32xbf16>
    %cst_75 = arith.constant dense<0.000000e+00> : vector<32x32xf32>
    %304 = tpu.matmul %303, %5, %cst_75 {dimension_numbers = #tpu.dot_dimension_numbers<[1], [0], [0], [1], [0, 0, 1, 1], [], []>} : vector<32x32xbf16>, vector<32x32xbf16>, vector<32x32xf32> -> vector<32x32xf32>
    %305 = vector.broadcast %6 : vector<1x32xf32> to vector<32x32xf32>
    %306 = arith.addf %304, %305 : vector<32x32xf32>
    %cst_76 = arith.constant 0.000000e+00 : f32
    %307 = vector.broadcast %cst_76 : f32 to vector<32x32xf32>
    %308 = arith.maximumf %306, %307 : vector<32x32xf32>
    %309 = arith.truncf %308 : vector<32x32xf32> to vector<32x32xbf16>
    %cst_77 = arith.constant dense<0.000000e+00> : vector<32x32xf32>
    %310 = tpu.matmul %309, %7, %cst_77 {dimension_numbers = #tpu.dot_dimension_numbers<[1], [0], [0], [1], [0, 0, 1, 1], [], []>} : vector<32x32xbf16>, vector<32x32xbf16>, vector<32x32xf32> -> vector<32x32xf32>
    %311 = vector.broadcast %8 : vector<1x32xf32> to vector<32x32xf32>
    %312 = arith.addf %310, %311 : vector<32x32xf32>
    %313 = arith.addf %273, %300 : vector<32x32xf32>
    %314 = arith.maximumf %260, %312 : vector<32x32xf32>
    %315 = arith.subf %260, %314 : vector<32x32xf32>
    %316 = math.exp %315 : vector<32x32xf32>
    %317 = arith.subf %312, %314 : vector<32x32xf32>
    %318 = math.exp %317 : vector<32x32xf32>
    %319 = arith.mulf %316, %266 : vector<32x32xf32>
    %320 = arith.addf %319, %318 : vector<32x32xf32>
    %321 = arith.mulf %316, %269 : vector<32x32xf32>
    %322 = arith.mulf %318, %313 : vector<32x32xf32>
    %323 = arith.addf %321, %322 : vector<32x32xf32>
    %c6 = arith.constant 6 : index
    %c0_78 = arith.constant 0 : index
    %c0_79 = arith.constant 0 : index
    %324 = vector.load %arg2[%c6, %c0_78, %c0_79] : memref<8x32x64xf32, #tpu.memory_space<vmem>>, vector<1x32x64xf32>
    %325 = vector.shape_cast %324 : vector<1x32x64xf32> to vector<32x64xf32>
    %326 = vector.extract_strided_slice %325 {offsets = [0, 0], sizes = [32, 32], strides = [1, 1]} : vector<32x64xf32> to vector<32x32xf32>
    %327 = vector.extract_strided_slice %325 {offsets = [0, 32], sizes = [32, 32], strides = [1, 1]} : vector<32x64xf32> to vector<32x32xf32>
    %c6_80 = arith.constant 6 : index
    %c0_81 = arith.constant 0 : index
    %c0_82 = arith.constant 0 : index
    %328 = vector.load %arg3[%c6_80, %c0_81, %c0_82] : memref<8x32x3xf32, #tpu.memory_space<vmem>>, vector<1x32x3xf32>
    %329 = vector.shape_cast %328 : vector<1x32x3xf32> to vector<32x3xf32>
    %330 = vector.extract_strided_slice %329 {offsets = [0, 0], sizes = [32, 1], strides = [1, 1]} : vector<32x3xf32> to vector<32x1xf32>
    %331 = vector.extract_strided_slice %1 {offsets = [0, 0], sizes = [1, 32], strides = [1, 1]} : vector<3x32xf32> to vector<1x32xf32>
    %332 = vector.broadcast %330 : vector<32x1xf32> to vector<32x32xf32>
    %333 = vector.broadcast %331 : vector<1x32xf32> to vector<32x32xf32>
    %334 = arith.mulf %332, %333 : vector<32x32xf32>
    %335 = vector.extract_strided_slice %329 {offsets = [0, 1], sizes = [32, 1], strides = [1, 1]} : vector<32x3xf32> to vector<32x1xf32>
    %336 = vector.extract_strided_slice %1 {offsets = [1, 0], sizes = [1, 32], strides = [1, 1]} : vector<3x32xf32> to vector<1x32xf32>
    %337 = vector.broadcast %335 : vector<32x1xf32> to vector<32x32xf32>
    %338 = vector.broadcast %336 : vector<1x32xf32> to vector<32x32xf32>
    %339 = arith.mulf %337, %338 : vector<32x32xf32>
    %340 = arith.addf %334, %339 : vector<32x32xf32>
    %341 = vector.extract_strided_slice %329 {offsets = [0, 2], sizes = [32, 1], strides = [1, 1]} : vector<32x3xf32> to vector<32x1xf32>
    %342 = vector.extract_strided_slice %1 {offsets = [2, 0], sizes = [1, 32], strides = [1, 1]} : vector<3x32xf32> to vector<1x32xf32>
    %343 = vector.broadcast %341 : vector<32x1xf32> to vector<32x32xf32>
    %344 = vector.broadcast %342 : vector<1x32xf32> to vector<32x32xf32>
    %345 = arith.mulf %343, %344 : vector<32x32xf32>
    %346 = arith.addf %340, %345 : vector<32x32xf32>
    %347 = vector.broadcast %2 : vector<1x32xf32> to vector<32x32xf32>
    %348 = arith.addf %346, %347 : vector<32x32xf32>
    %cst_83 = arith.constant 0.000000e+00 : f32
    %349 = vector.broadcast %cst_83 : f32 to vector<32x32xf32>
    %350 = arith.maximumf %348, %349 : vector<32x32xf32>
    %351 = arith.truncf %350 : vector<32x32xf32> to vector<32x32xbf16>
    %cst_84 = arith.constant dense<0.000000e+00> : vector<32x32xf32>
    %352 = tpu.matmul %351, %3, %cst_84 {dimension_numbers = #tpu.dot_dimension_numbers<[1], [0], [0], [1], [0, 0, 1, 1], [], []>} : vector<32x32xbf16>, vector<32x32xbf16>, vector<32x32xf32> -> vector<32x32xf32>
    %353 = vector.broadcast %4 : vector<1x32xf32> to vector<32x32xf32>
    %354 = arith.addf %352, %353 : vector<32x32xf32>
    %355 = arith.subf %0, %326 : vector<32x32xf32>
    %356 = arith.addf %355, %354 : vector<32x32xf32>
    %357 = arith.truncf %356 : vector<32x32xf32> to vector<32x32xbf16>
    %cst_85 = arith.constant dense<0.000000e+00> : vector<32x32xf32>
    %358 = tpu.matmul %357, %5, %cst_85 {dimension_numbers = #tpu.dot_dimension_numbers<[1], [0], [0], [1], [0, 0, 1, 1], [], []>} : vector<32x32xbf16>, vector<32x32xbf16>, vector<32x32xf32> -> vector<32x32xf32>
    %359 = vector.broadcast %6 : vector<1x32xf32> to vector<32x32xf32>
    %360 = arith.addf %358, %359 : vector<32x32xf32>
    %cst_86 = arith.constant 0.000000e+00 : f32
    %361 = vector.broadcast %cst_86 : f32 to vector<32x32xf32>
    %362 = arith.maximumf %360, %361 : vector<32x32xf32>
    %363 = arith.truncf %362 : vector<32x32xf32> to vector<32x32xbf16>
    %cst_87 = arith.constant dense<0.000000e+00> : vector<32x32xf32>
    %364 = tpu.matmul %363, %7, %cst_87 {dimension_numbers = #tpu.dot_dimension_numbers<[1], [0], [0], [1], [0, 0, 1, 1], [], []>} : vector<32x32xbf16>, vector<32x32xbf16>, vector<32x32xf32> -> vector<32x32xf32>
    %365 = vector.broadcast %8 : vector<1x32xf32> to vector<32x32xf32>
    %366 = arith.addf %364, %365 : vector<32x32xf32>
    %367 = arith.addf %327, %354 : vector<32x32xf32>
    %368 = arith.maximumf %314, %366 : vector<32x32xf32>
    %369 = arith.subf %314, %368 : vector<32x32xf32>
    %370 = math.exp %369 : vector<32x32xf32>
    %371 = arith.subf %366, %368 : vector<32x32xf32>
    %372 = math.exp %371 : vector<32x32xf32>
    %373 = arith.mulf %370, %320 : vector<32x32xf32>
    %374 = arith.addf %373, %372 : vector<32x32xf32>
    %375 = arith.mulf %370, %323 : vector<32x32xf32>
    %376 = arith.mulf %372, %367 : vector<32x32xf32>
    %377 = arith.addf %375, %376 : vector<32x32xf32>
    %c7 = arith.constant 7 : index
    %c0_88 = arith.constant 0 : index
    %c0_89 = arith.constant 0 : index
    %378 = vector.load %arg2[%c7, %c0_88, %c0_89] : memref<8x32x64xf32, #tpu.memory_space<vmem>>, vector<1x32x64xf32>
    %379 = vector.shape_cast %378 : vector<1x32x64xf32> to vector<32x64xf32>
    %380 = vector.extract_strided_slice %379 {offsets = [0, 0], sizes = [32, 32], strides = [1, 1]} : vector<32x64xf32> to vector<32x32xf32>
    %381 = vector.extract_strided_slice %379 {offsets = [0, 32], sizes = [32, 32], strides = [1, 1]} : vector<32x64xf32> to vector<32x32xf32>
    %c7_90 = arith.constant 7 : index
    %c0_91 = arith.constant 0 : index
    %c0_92 = arith.constant 0 : index
    %382 = vector.load %arg3[%c7_90, %c0_91, %c0_92] : memref<8x32x3xf32, #tpu.memory_space<vmem>>, vector<1x32x3xf32>
    %383 = vector.shape_cast %382 : vector<1x32x3xf32> to vector<32x3xf32>
    %384 = vector.extract_strided_slice %383 {offsets = [0, 0], sizes = [32, 1], strides = [1, 1]} : vector<32x3xf32> to vector<32x1xf32>
    %385 = vector.extract_strided_slice %1 {offsets = [0, 0], sizes = [1, 32], strides = [1, 1]} : vector<3x32xf32> to vector<1x32xf32>
    %386 = vector.broadcast %384 : vector<32x1xf32> to vector<32x32xf32>
    %387 = vector.broadcast %385 : vector<1x32xf32> to vector<32x32xf32>
    %388 = arith.mulf %386, %387 : vector<32x32xf32>
    %389 = vector.extract_strided_slice %383 {offsets = [0, 1], sizes = [32, 1], strides = [1, 1]} : vector<32x3xf32> to vector<32x1xf32>
    %390 = vector.extract_strided_slice %1 {offsets = [1, 0], sizes = [1, 32], strides = [1, 1]} : vector<3x32xf32> to vector<1x32xf32>
    %391 = vector.broadcast %389 : vector<32x1xf32> to vector<32x32xf32>
    %392 = vector.broadcast %390 : vector<1x32xf32> to vector<32x32xf32>
    %393 = arith.mulf %391, %392 : vector<32x32xf32>
    %394 = arith.addf %388, %393 : vector<32x32xf32>
    %395 = vector.extract_strided_slice %383 {offsets = [0, 2], sizes = [32, 1], strides = [1, 1]} : vector<32x3xf32> to vector<32x1xf32>
    %396 = vector.extract_strided_slice %1 {offsets = [2, 0], sizes = [1, 32], strides = [1, 1]} : vector<3x32xf32> to vector<1x32xf32>
    %397 = vector.broadcast %395 : vector<32x1xf32> to vector<32x32xf32>
    %398 = vector.broadcast %396 : vector<1x32xf32> to vector<32x32xf32>
    %399 = arith.mulf %397, %398 : vector<32x32xf32>
    %400 = arith.addf %394, %399 : vector<32x32xf32>
    %401 = vector.broadcast %2 : vector<1x32xf32> to vector<32x32xf32>
    %402 = arith.addf %400, %401 : vector<32x32xf32>
    %cst_93 = arith.constant 0.000000e+00 : f32
    %403 = vector.broadcast %cst_93 : f32 to vector<32x32xf32>
    %404 = arith.maximumf %402, %403 : vector<32x32xf32>
    %405 = arith.truncf %404 : vector<32x32xf32> to vector<32x32xbf16>
    %cst_94 = arith.constant dense<0.000000e+00> : vector<32x32xf32>
    %406 = tpu.matmul %405, %3, %cst_94 {dimension_numbers = #tpu.dot_dimension_numbers<[1], [0], [0], [1], [0, 0, 1, 1], [], []>} : vector<32x32xbf16>, vector<32x32xbf16>, vector<32x32xf32> -> vector<32x32xf32>
    %407 = vector.broadcast %4 : vector<1x32xf32> to vector<32x32xf32>
    %408 = arith.addf %406, %407 : vector<32x32xf32>
    %409 = arith.subf %0, %380 : vector<32x32xf32>
    %410 = arith.addf %409, %408 : vector<32x32xf32>
    %411 = arith.truncf %410 : vector<32x32xf32> to vector<32x32xbf16>
    %cst_95 = arith.constant dense<0.000000e+00> : vector<32x32xf32>
    %412 = tpu.matmul %411, %5, %cst_95 {dimension_numbers = #tpu.dot_dimension_numbers<[1], [0], [0], [1], [0, 0, 1, 1], [], []>} : vector<32x32xbf16>, vector<32x32xbf16>, vector<32x32xf32> -> vector<32x32xf32>
    %413 = vector.broadcast %6 : vector<1x32xf32> to vector<32x32xf32>
    %414 = arith.addf %412, %413 : vector<32x32xf32>
    %cst_96 = arith.constant 0.000000e+00 : f32
    %415 = vector.broadcast %cst_96 : f32 to vector<32x32xf32>
    %416 = arith.maximumf %414, %415 : vector<32x32xf32>
    %417 = arith.truncf %416 : vector<32x32xf32> to vector<32x32xbf16>
    %cst_97 = arith.constant dense<0.000000e+00> : vector<32x32xf32>
    %418 = tpu.matmul %417, %7, %cst_97 {dimension_numbers = #tpu.dot_dimension_numbers<[1], [0], [0], [1], [0, 0, 1, 1], [], []>} : vector<32x32xbf16>, vector<32x32xbf16>, vector<32x32xf32> -> vector<32x32xf32>
    %419 = vector.broadcast %8 : vector<1x32xf32> to vector<32x32xf32>
    %420 = arith.addf %418, %419 : vector<32x32xf32>
    %421 = arith.addf %381, %408 : vector<32x32xf32>
    %422 = arith.maximumf %368, %420 : vector<32x32xf32>
    %423 = arith.subf %368, %422 : vector<32x32xf32>
    %424 = math.exp %423 : vector<32x32xf32>
    %425 = arith.subf %420, %422 : vector<32x32xf32>
    %426 = math.exp %425 : vector<32x32xf32>
    %427 = arith.mulf %424, %374 : vector<32x32xf32>
    %428 = arith.addf %427, %426 : vector<32x32xf32>
    %429 = arith.mulf %424, %377 : vector<32x32xf32>
    %430 = arith.mulf %426, %421 : vector<32x32xf32>
    %431 = arith.addf %429, %430 : vector<32x32xf32>
    %432 = tpu.reciprocal %428 {approx = true} : vector<32x32xf32> -> vector<32x32xf32>
    %433 = arith.mulf %431, %432 : vector<32x32xf32>
    %434 = arith.truncf %433 : vector<32x32xf32> to vector<32x32xbf16>
    %c0_98 = arith.constant 0 : index
    %c0_99 = arith.constant 0 : index
    %435 = vector.load %arg12[%c0_98, %c0_99] : memref<32x32xbf16, #tpu.memory_space<vmem>>, vector<32x32xbf16>
    %cst_100 = arith.constant dense<0.000000e+00> : vector<32x32xf32>
    %436 = tpu.matmul %434, %435, %cst_100 {dimension_numbers = #tpu.dot_dimension_numbers<[1], [0], [0], [1], [0, 0, 1, 1], [], []>} : vector<32x32xbf16>, vector<32x32xbf16>, vector<32x32xf32> -> vector<32x32xf32>
    %c0_101 = arith.constant 0 : index
    %c0_102 = arith.constant 0 : index
    %437 = vector.load %arg13[%c0_101, %c0_102] : memref<1x32xf32, #tpu.memory_space<vmem>>, vector<1x32xf32>
    %438 = vector.broadcast %437 : vector<1x32xf32> to vector<32x32xf32>
    %439 = arith.addf %436, %438 : vector<32x32xf32>
    %c0_103 = arith.constant 0 : index
    %c0_104 = arith.constant 0 : index
    %440 = vector.load %arg14[%c0_103, %c0_104] : memref<32x32xf32, #tpu.memory_space<vmem>>, vector<32x32xf32>
    %441 = arith.addf %439, %440 : vector<32x32xf32>
    %c0_105 = arith.constant 0 : index
    %c0_106 = arith.constant 0 : index
    %442 = vector.load %arg15[%c0_105, %c0_106] : memref<32x32xf32, #tpu.memory_space<vmem>>, vector<32x32xf32>
    tpu.vector_store %arg15[%c0_105, %c0_106], %441 {strides = array<i32>} : memref<32x32xf32, #tpu.memory_space<vmem>>, vector<32x32xf32>,
    return
  }
  func.func @transform_0(%arg0: i32) -> (i32, i32) {
    %c0_i32 = arith.constant 0 : i32
    %c0_i32_0 = arith.constant 0 : i32
    return %arg0, %c0_i32 : i32, i32
  }
  func.func @transform_1(%arg0: i32) -> (i32, i32, i32) {
    %c0_i32 = arith.constant 0 : i32
    %c0_i32_0 = arith.constant 0 : i32
    %c0_i32_1 = arith.constant 0 : i32
    return %c0_i32, %arg0, %c0_i32_0 : i32, i32, i32
  }
  func.func @transform_2(%arg0: i32) -> (i32, i32, i32) {
    %c0_i32 = arith.constant 0 : i32
    %c0_i32_0 = arith.constant 0 : i32
    %c0_i32_1 = arith.constant 0 : i32
    return %c0_i32, %arg0, %c0_i32_0 : i32, i32, i32
  }
  func.func @transform_3(%arg0: i32) -> (i32, i32) {
    %c0_i32 = arith.constant 0 : i32
    %c0_i32_0 = arith.constant 0 : i32
    %c0_i32_1 = arith.constant 0 : i32
    return %c0_i32, %c0_i32_0 : i32, i32
  }
  func.func @transform_4(%arg0: i32) -> (i32, i32) {
    %c0_i32 = arith.constant 0 : i32
    %c0_i32_0 = arith.constant 0 : i32
    %c0_i32_1 = arith.constant 0 : i32
    return %c0_i32, %c0_i32_0 : i32, i32
  }
  func.func @transform_5(%arg0: i32) -> (i32, i32) {
    %c0_i32 = arith.constant 0 : i32
    %c0_i32_0 = arith.constant 0 : i32
    %c0_i32_1 = arith.constant 0 : i32
    return %c0_i32, %c0_i32_0 : i32, i32
  }
  func.func @transform_6(%arg0: i32) -> (i32, i32) {
    %c0_i32 = arith.constant 0 : i32
    %c0_i32_0 = arith.constant 0 : i32
    %c0_i32_1 = arith.constant 0 : i32
    return %c0_i32, %c0_i32_0 : i32, i32
  }
  func.func @transform_7(%arg0: i32) -> (i32, i32) {
    %c0_i32 = arith.constant 0 : i32
    %c0_i32_0 = arith.constant 0 : i32
    %c0_i32_1 = arith.constant 0 : i32
    return %c0_i32, %c0_i32_0 : i32, i32
  }
  func.func @transform_8(%arg0: i32) -> (i32, i32) {
    %c0_i32 = arith.constant 0 : i32
    %c0_i32_0 = arith.constant 0 : i32
    %c0_i32_1 = arith.constant 0 : i32
    return %c0_i32, %c0_i32_0 : i32, i32
  }
  func.func @transform_9(%arg0: i32) -> (i32, i32) {
    %c0_i32 = arith.constant 0 : i32
    %c0_i32_0 = arith.constant 0 : i32
    %c0_i32_1 = arith.constant 0 : i32
    return %c0_i32, %c0_i32_0 : i32, i32
  }
  func.func @transform_10(%arg0: i32) -> (i32, i32) {
    %c0_i32 = arith.constant 0 : i32
    %c0_i32_0 = arith.constant 0 : i32
    %c0_i32_1 = arith.constant 0 : i32
    return %c0_i32, %c0_i32_0 : i32, i32
  }
  func.func @transform_11(%arg0: i32) -> (i32, i32) {
    %c0_i32 = arith.constant 0 : i32
    %c0_i32_0 = arith.constant 0 : i32
    %c0_i32_1 = arith.constant 0 : i32
    return %c0_i32, %c0_i32_0 : i32, i32
  }
  func.func @transform_12(%arg0: i32) -> (i32, i32) {
    %c0_i32 = arith.constant 0 : i32
    %c0_i32_0 = arith.constant 0 : i32
    %c0_i32_1 = arith.constant 0 : i32
    return %c0_i32, %c0_i32_0 : i32, i32
  }
  func.func @transform_13(%arg0: i32) -> (i32, i32) {
    %c0_i32 = arith.constant 0 : i32
    %c0_i32_0 = arith.constant 0 : i32
    return %arg0, %c0_i32 : i32, i32
  }
  func.func @transform_14(%arg0: i32) -> (i32, i32) {
    %c0_i32 = arith.constant 0 : i32
    %c0_i32_0 = arith.constant 0 : i32
    return %arg0, %c0_i32 : i32, i32
  }
}

module attributes {stable_mosaic.version = 11 : i64} {
  func.func @_mlp2_kernel(%arg0: i32, %arg1: memref<64x35xf32, #tpu.memory_space<vmem>>, %arg2: memref<35x64xbf16, #tpu.memory_space<vmem>>, %arg3: memref<1x64xf32, #tpu.memory_space<vmem>>, %arg4: memref<64x64xbf16, #tpu.memory_space<vmem>>, %arg5: memref<1x64xf32, #tpu.memory_space<vmem>>, %arg6: memref<64x64xf32, #tpu.memory_space<vmem>>) attributes {dimension_semantics = [#tpu.dimension_semantics<parallel>], iteration_bounds = array<i64: 2>, scalar_prefetch = 0 : i64, scratch_operands = 0 : i64, tpu.core_type = #tpu.core_type<tc>, window_params = [{transform_indices = @transform_0, window_bounds = array<i64: 64, 35>}, {pipeline_mode = #tpu.pipeline_mode<synchronous>, transform_indices = @transform_1, window_bounds = array<i64: 35, 64>}, {pipeline_mode = #tpu.pipeline_mode<synchronous>, transform_indices = @transform_2, window_bounds = array<i64: 1, 64>}, {pipeline_mode = #tpu.pipeline_mode<synchronous>, transform_indices = @transform_3, window_bounds = array<i64: 64, 64>}, {pipeline_mode = #tpu.pipeline_mode<synchronous>, transform_indices = @transform_4, window_bounds = array<i64: 1, 64>}, {transform_indices = @transform_5, window_bounds = array<i64: 64, 64>}]} {
    %c0 = arith.constant 0 : index
    %c0_0 = arith.constant 0 : index
    %0 = vector.load %arg1[%c0, %c0_0] : memref<64x35xf32, #tpu.memory_space<vmem>>, vector<64x35xf32>
    %1 = arith.truncf %0 : vector<64x35xf32> to vector<64x35xbf16>
    %c0_1 = arith.constant 0 : index
    %c0_2 = arith.constant 0 : index
    %2 = vector.load %arg2[%c0_1, %c0_2] : memref<35x64xbf16, #tpu.memory_space<vmem>>, vector<35x64xbf16>
    %cst = arith.constant dense<0.000000e+00> : vector<64x64xf32>
    %3 = tpu.matmul %1, %2, %cst {dimension_numbers = #tpu.dot_dimension_numbers<[1], [0], [0], [1], [0, 0, 1, 1], [], []>} : vector<64x35xbf16>, vector<35x64xbf16>, vector<64x64xf32> -> vector<64x64xf32>
    %c0_3 = arith.constant 0 : index
    %c0_4 = arith.constant 0 : index
    %4 = vector.load %arg3[%c0_3, %c0_4] : memref<1x64xf32, #tpu.memory_space<vmem>>, vector<1x64xf32>
    %5 = vector.broadcast %4 : vector<1x64xf32> to vector<64x64xf32>
    %6 = arith.addf %3, %5 : vector<64x64xf32>
    %cst_5 = arith.constant 0.000000e+00 : f32
    %7 = vector.broadcast %cst_5 : f32 to vector<64x64xf32>
    %8 = arith.maximumf %6, %7 : vector<64x64xf32>
    %9 = arith.truncf %8 : vector<64x64xf32> to vector<64x64xbf16>
    %c0_6 = arith.constant 0 : index
    %c0_7 = arith.constant 0 : index
    %10 = vector.load %arg4[%c0_6, %c0_7] : memref<64x64xbf16, #tpu.memory_space<vmem>>, vector<64x64xbf16>
    %cst_8 = arith.constant dense<0.000000e+00> : vector<64x64xf32>
    %11 = tpu.matmul %9, %10, %cst_8 {dimension_numbers = #tpu.dot_dimension_numbers<[1], [0], [0], [1], [0, 0, 1, 1], [], []>} : vector<64x64xbf16>, vector<64x64xbf16>, vector<64x64xf32> -> vector<64x64xf32>
    %c0_9 = arith.constant 0 : index
    %c0_10 = arith.constant 0 : index
    %12 = vector.load %arg5[%c0_9, %c0_10] : memref<1x64xf32, #tpu.memory_space<vmem>>, vector<1x64xf32>
    %13 = vector.broadcast %12 : vector<1x64xf32> to vector<64x64xf32>
    %14 = arith.addf %11, %13 : vector<64x64xf32>
    %cst_11 = arith.constant 0.000000e+00 : f32
    %15 = vector.broadcast %cst_11 : f32 to vector<64x64xf32>
    %16 = arith.maximumf %14, %15 : vector<64x64xf32>
    %c0_12 = arith.constant 0 : index
    %c0_13 = arith.constant 0 : index
    %17 = vector.load %arg6[%c0_12, %c0_13] : memref<64x64xf32, #tpu.memory_space<vmem>>, vector<64x64xf32>
    tpu.vector_store %arg6[%c0_12, %c0_13], %16 {strides = array<i32>} : memref<64x64xf32, #tpu.memory_space<vmem>>, vector<64x64xf32>,
    return
  }
  func.func @transform_0(%arg0: i32) -> (i32, i32) {
    %c0_i32 = arith.constant 0 : i32
    %c0_i32_0 = arith.constant 0 : i32
    return %arg0, %c0_i32 : i32, i32
  }
  func.func @transform_1(%arg0: i32) -> (i32, i32) {
    %c0_i32 = arith.constant 0 : i32
    %c0_i32_0 = arith.constant 0 : i32
    %c0_i32_1 = arith.constant 0 : i32
    return %c0_i32, %c0_i32_0 : i32, i32
  }
  func.func @transform_2(%arg0: i32) -> (i32, i32) {
    %c0_i32 = arith.constant 0 : i32
    %c0_i32_0 = arith.constant 0 : i32
    %c0_i32_1 = arith.constant 0 : i32
    return %c0_i32, %c0_i32_0 : i32, i32
  }
  func.func @transform_3(%arg0: i32) -> (i32, i32) {
    %c0_i32 = arith.constant 0 : i32
    %c0_i32_0 = arith.constant 0 : i32
    %c0_i32_1 = arith.constant 0 : i32
    return %c0_i32, %c0_i32_0 : i32, i32
  }
  func.func @transform_4(%arg0: i32) -> (i32, i32) {
    %c0_i32 = arith.constant 0 : i32
    %c0_i32_0 = arith.constant 0 : i32
    %c0_i32_1 = arith.constant 0 : i32
    return %c0_i32, %c0_i32_0 : i32, i32
  }
  func.func @transform_5(%arg0: i32) -> (i32, i32) {
    %c0_i32 = arith.constant 0 : i32
    %c0_i32_0 = arith.constant 0 : i32
    return %arg0, %c0_i32 : i32, i32
  }
}

module attributes {stable_mosaic.version = 11 : i64} {
  func.func @_mlp2_kernel(%arg0: i32, %arg1: memref<8x64xf32, #tpu.memory_space<vmem>>, %arg2: memref<64x32xbf16, #tpu.memory_space<vmem>>, %arg3: memref<1x32xf32, #tpu.memory_space<vmem>>, %arg4: memref<32x128xbf16, #tpu.memory_space<vmem>>, %arg5: memref<1x128xf32, #tpu.memory_space<vmem>>, %arg6: memref<8x128xf32, #tpu.memory_space<vmem>>) attributes {dimension_semantics = [#tpu.dimension_semantics<parallel>], iteration_bounds = array<i64: 2>, scalar_prefetch = 0 : i64, scratch_operands = 0 : i64, tpu.core_type = #tpu.core_type<tc>, window_params = [{transform_indices = @transform_0, window_bounds = array<i64: 8, 64>}, {pipeline_mode = #tpu.pipeline_mode<synchronous>, transform_indices = @transform_1, window_bounds = array<i64: 64, 32>}, {pipeline_mode = #tpu.pipeline_mode<synchronous>, transform_indices = @transform_2, window_bounds = array<i64: 1, 32>}, {pipeline_mode = #tpu.pipeline_mode<synchronous>, transform_indices = @transform_3, window_bounds = array<i64: 32, 128>}, {pipeline_mode = #tpu.pipeline_mode<synchronous>, transform_indices = @transform_4, window_bounds = array<i64: 1, 128>}, {transform_indices = @transform_5, window_bounds = array<i64: 8, 128>}]} {
    %c0 = arith.constant 0 : index
    %c0_0 = arith.constant 0 : index
    %0 = vector.load %arg1[%c0, %c0_0] : memref<8x64xf32, #tpu.memory_space<vmem>>, vector<8x64xf32>
    %1 = arith.truncf %0 : vector<8x64xf32> to vector<8x64xbf16>
    %c0_1 = arith.constant 0 : index
    %c0_2 = arith.constant 0 : index
    %2 = vector.load %arg2[%c0_1, %c0_2] : memref<64x32xbf16, #tpu.memory_space<vmem>>, vector<64x32xbf16>
    %cst = arith.constant dense<0.000000e+00> : vector<8x32xf32>
    %3 = tpu.matmul %1, %2, %cst {dimension_numbers = #tpu.dot_dimension_numbers<[1], [0], [0], [1], [0, 0, 1, 1], [], []>} : vector<8x64xbf16>, vector<64x32xbf16>, vector<8x32xf32> -> vector<8x32xf32>
    %c0_3 = arith.constant 0 : index
    %c0_4 = arith.constant 0 : index
    %4 = vector.load %arg3[%c0_3, %c0_4] : memref<1x32xf32, #tpu.memory_space<vmem>>, vector<1x32xf32>
    %5 = vector.broadcast %4 : vector<1x32xf32> to vector<8x32xf32>
    %6 = arith.addf %3, %5 : vector<8x32xf32>
    %7 = arith.truncf %6 : vector<8x32xf32> to vector<8x32xbf16>
    %c0_5 = arith.constant 0 : index
    %c0_6 = arith.constant 0 : index
    %8 = vector.load %arg4[%c0_5, %c0_6] : memref<32x128xbf16, #tpu.memory_space<vmem>>, vector<32x128xbf16>
    %cst_7 = arith.constant dense<0.000000e+00> : vector<8x128xf32>
    %9 = tpu.matmul %7, %8, %cst_7 {dimension_numbers = #tpu.dot_dimension_numbers<[1], [0], [0], [1], [0, 0, 1, 1], [], []>} : vector<8x32xbf16>, vector<32x128xbf16>, vector<8x128xf32> -> vector<8x128xf32>
    %c0_8 = arith.constant 0 : index
    %c0_9 = arith.constant 0 : index
    %10 = vector.load %arg5[%c0_8, %c0_9] : memref<1x128xf32, #tpu.memory_space<vmem>>, vector<1x128xf32>
    %11 = vector.broadcast %10 : vector<1x128xf32> to vector<8x128xf32>
    %12 = arith.addf %9, %11 : vector<8x128xf32>
    %c0_10 = arith.constant 0 : index
    %c0_11 = arith.constant 0 : index
    %13 = vector.load %arg6[%c0_10, %c0_11] : memref<8x128xf32, #tpu.memory_space<vmem>>, vector<8x128xf32>
    tpu.vector_store %arg6[%c0_10, %c0_11], %12 {strides = array<i32>} : memref<8x128xf32, #tpu.memory_space<vmem>>, vector<8x128xf32>,
    return
  }
  func.func @transform_0(%arg0: i32) -> (i32, i32) {
    %c0_i32 = arith.constant 0 : i32
    %c0_i32_0 = arith.constant 0 : i32
    return %arg0, %c0_i32 : i32, i32
  }
  func.func @transform_1(%arg0: i32) -> (i32, i32) {
    %c0_i32 = arith.constant 0 : i32
    %c0_i32_0 = arith.constant 0 : i32
    %c0_i32_1 = arith.constant 0 : i32
    return %c0_i32, %c0_i32_0 : i32, i32
  }
  func.func @transform_2(%arg0: i32) -> (i32, i32) {
    %c0_i32 = arith.constant 0 : i32
    %c0_i32_0 = arith.constant 0 : i32
    %c0_i32_1 = arith.constant 0 : i32
    return %c0_i32, %c0_i32_0 : i32, i32
  }
  func.func @transform_3(%arg0: i32) -> (i32, i32) {
    %c0_i32 = arith.constant 0 : i32
    %c0_i32_0 = arith.constant 0 : i32
    %c0_i32_1 = arith.constant 0 : i32
    return %c0_i32, %c0_i32_0 : i32, i32
  }
  func.func @transform_4(%arg0: i32) -> (i32, i32) {
    %c0_i32 = arith.constant 0 : i32
    %c0_i32_0 = arith.constant 0 : i32
    %c0_i32_1 = arith.constant 0 : i32
    return %c0_i32, %c0_i32_0 : i32, i32
  }
  func.func @transform_5(%arg0: i32) -> (i32, i32) {
    %c0_i32 = arith.constant 0 : i32
    %c0_i32_0 = arith.constant 0 : i32
    return %arg0, %c0_i32 : i32, i32
  }
}

module attributes {stable_mosaic.version = 11 : i64} {
  func.func @_pt_attention_kernel(%arg0: i32, %arg1: memref<8x32xf32, #tpu.memory_space<vmem>>, %arg2: memref<8x8x64xf32, #tpu.memory_space<vmem>>, %arg3: memref<8x8x3xf32, #tpu.memory_space<vmem>>, %arg4: memref<3x32xf32, #tpu.memory_space<vmem>>, %arg5: memref<1x32xf32, #tpu.memory_space<vmem>>, %arg6: memref<32x32xbf16, #tpu.memory_space<vmem>>, %arg7: memref<1x32xf32, #tpu.memory_space<vmem>>, %arg8: memref<32x32xbf16, #tpu.memory_space<vmem>>, %arg9: memref<1x32xf32, #tpu.memory_space<vmem>>, %arg10: memref<32x32xbf16, #tpu.memory_space<vmem>>, %arg11: memref<1x32xf32, #tpu.memory_space<vmem>>, %arg12: memref<32x64xbf16, #tpu.memory_space<vmem>>, %arg13: memref<1x64xf32, #tpu.memory_space<vmem>>, %arg14: memref<8x64xf32, #tpu.memory_space<vmem>>, %arg15: memref<8x64xf32, #tpu.memory_space<vmem>>) attributes {dimension_semantics = [#tpu.dimension_semantics<parallel>], iteration_bounds = array<i64: 2>, scalar_prefetch = 0 : i64, scratch_operands = 0 : i64, tpu.core_type = #tpu.core_type<tc>, window_params = [{transform_indices = @transform_0, window_bounds = array<i64: 8, 32>}, {transform_indices = @transform_1, window_bounds = array<i64: 8, 8, 64>}, {transform_indices = @transform_2, window_bounds = array<i64: 8, 8, 3>}, {pipeline_mode = #tpu.pipeline_mode<synchronous>, transform_indices = @transform_3, window_bounds = array<i64: 3, 32>}, {pipeline_mode = #tpu.pipeline_mode<synchronous>, transform_indices = @transform_4, window_bounds = array<i64: 1, 32>}, {pipeline_mode = #tpu.pipeline_mode<synchronous>, transform_indices = @transform_5, window_bounds = array<i64: 32, 32>}, {pipeline_mode = #tpu.pipeline_mode<synchronous>, transform_indices = @transform_6, window_bounds = array<i64: 1, 32>}, {pipeline_mode = #tpu.pipeline_mode<synchronous>, transform_indices = @transform_7, window_bounds = array<i64: 32, 32>}, {pipeline_mode = #tpu.pipeline_mode<synchronous>, transform_indices = @transform_8, window_bounds = array<i64: 1, 32>}, {pipeline_mode = #tpu.pipeline_mode<synchronous>, transform_indices = @transform_9, window_bounds = array<i64: 32, 32>}, {pipeline_mode = #tpu.pipeline_mode<synchronous>, transform_indices = @transform_10, window_bounds = array<i64: 1, 32>}, {pipeline_mode = #tpu.pipeline_mode<synchronous>, transform_indices = @transform_11, window_bounds = array<i64: 32, 64>}, {pipeline_mode = #tpu.pipeline_mode<synchronous>, transform_indices = @transform_12, window_bounds = array<i64: 1, 64>}, {transform_indices = @transform_13, window_bounds = array<i64: 8, 64>}, {transform_indices = @transform_14, window_bounds = array<i64: 8, 64>}]} {
    %c0 = arith.constant 0 : index
    %c0_0 = arith.constant 0 : index
    %0 = vector.load %arg1[%c0, %c0_0] : memref<8x32xf32, #tpu.memory_space<vmem>>, vector<8x32xf32>
    %c0_1 = arith.constant 0 : index
    %c0_2 = arith.constant 0 : index
    %1 = vector.load %arg4[%c0_1, %c0_2] : memref<3x32xf32, #tpu.memory_space<vmem>>, vector<3x32xf32>
    %c0_3 = arith.constant 0 : index
    %c0_4 = arith.constant 0 : index
    %2 = vector.load %arg5[%c0_3, %c0_4] : memref<1x32xf32, #tpu.memory_space<vmem>>, vector<1x32xf32>
    %c0_5 = arith.constant 0 : index
    %c0_6 = arith.constant 0 : index
    %3 = vector.load %arg6[%c0_5, %c0_6] : memref<32x32xbf16, #tpu.memory_space<vmem>>, vector<32x32xbf16>
    %c0_7 = arith.constant 0 : index
    %c0_8 = arith.constant 0 : index
    %4 = vector.load %arg7[%c0_7, %c0_8] : memref<1x32xf32, #tpu.memory_space<vmem>>, vector<1x32xf32>
    %c0_9 = arith.constant 0 : index
    %c0_10 = arith.constant 0 : index
    %5 = vector.load %arg8[%c0_9, %c0_10] : memref<32x32xbf16, #tpu.memory_space<vmem>>, vector<32x32xbf16>
    %c0_11 = arith.constant 0 : index
    %c0_12 = arith.constant 0 : index
    %6 = vector.load %arg9[%c0_11, %c0_12] : memref<1x32xf32, #tpu.memory_space<vmem>>, vector<1x32xf32>
    %c0_13 = arith.constant 0 : index
    %c0_14 = arith.constant 0 : index
    %7 = vector.load %arg10[%c0_13, %c0_14] : memref<32x32xbf16, #tpu.memory_space<vmem>>, vector<32x32xbf16>
    %c0_15 = arith.constant 0 : index
    %c0_16 = arith.constant 0 : index
    %8 = vector.load %arg11[%c0_15, %c0_16] : memref<1x32xf32, #tpu.memory_space<vmem>>, vector<1x32xf32>
    %c0_17 = arith.constant 0 : index
    %c0_18 = arith.constant 0 : index
    %c0_19 = arith.constant 0 : index
    %9 = vector.load %arg2[%c0_17, %c0_18, %c0_19] : memref<8x8x64xf32, #tpu.memory_space<vmem>>, vector<1x8x64xf32>
    %10 = vector.shape_cast %9 : vector<1x8x64xf32> to vector<8x64xf32>
    %11 = vector.extract_strided_slice %10 {offsets = [0, 0], sizes = [8, 32], strides = [1, 1]} : vector<8x64xf32> to vector<8x32xf32>
    %12 = vector.extract_strided_slice %10 {offsets = [0, 32], sizes = [8, 32], strides = [1, 1]} : vector<8x64xf32> to vector<8x32xf32>
    %c0_20 = arith.constant 0 : index
    %c0_21 = arith.constant 0 : index
    %c0_22 = arith.constant 0 : index
    %13 = vector.load %arg3[%c0_20, %c0_21, %c0_22] : memref<8x8x3xf32, #tpu.memory_space<vmem>>, vector<1x8x3xf32>
    %14 = vector.shape_cast %13 : vector<1x8x3xf32> to vector<8x3xf32>
    %15 = vector.extract_strided_slice %14 {offsets = [0, 0], sizes = [8, 1], strides = [1, 1]} : vector<8x3xf32> to vector<8x1xf32>
    %16 = vector.extract_strided_slice %1 {offsets = [0, 0], sizes = [1, 32], strides = [1, 1]} : vector<3x32xf32> to vector<1x32xf32>
    %17 = vector.broadcast %15 : vector<8x1xf32> to vector<8x32xf32>
    %18 = vector.broadcast %16 : vector<1x32xf32> to vector<8x32xf32>
    %19 = arith.mulf %17, %18 : vector<8x32xf32>
    %20 = vector.extract_strided_slice %14 {offsets = [0, 1], sizes = [8, 1], strides = [1, 1]} : vector<8x3xf32> to vector<8x1xf32>
    %21 = vector.extract_strided_slice %1 {offsets = [1, 0], sizes = [1, 32], strides = [1, 1]} : vector<3x32xf32> to vector<1x32xf32>
    %22 = vector.broadcast %20 : vector<8x1xf32> to vector<8x32xf32>
    %23 = vector.broadcast %21 : vector<1x32xf32> to vector<8x32xf32>
    %24 = arith.mulf %22, %23 : vector<8x32xf32>
    %25 = arith.addf %19, %24 : vector<8x32xf32>
    %26 = vector.extract_strided_slice %14 {offsets = [0, 2], sizes = [8, 1], strides = [1, 1]} : vector<8x3xf32> to vector<8x1xf32>
    %27 = vector.extract_strided_slice %1 {offsets = [2, 0], sizes = [1, 32], strides = [1, 1]} : vector<3x32xf32> to vector<1x32xf32>
    %28 = vector.broadcast %26 : vector<8x1xf32> to vector<8x32xf32>
    %29 = vector.broadcast %27 : vector<1x32xf32> to vector<8x32xf32>
    %30 = arith.mulf %28, %29 : vector<8x32xf32>
    %31 = arith.addf %25, %30 : vector<8x32xf32>
    %32 = vector.broadcast %2 : vector<1x32xf32> to vector<8x32xf32>
    %33 = arith.addf %31, %32 : vector<8x32xf32>
    %cst = arith.constant 0.000000e+00 : f32
    %34 = vector.broadcast %cst : f32 to vector<8x32xf32>
    %35 = arith.maximumf %33, %34 : vector<8x32xf32>
    %36 = arith.truncf %35 : vector<8x32xf32> to vector<8x32xbf16>
    %cst_23 = arith.constant dense<0.000000e+00> : vector<8x32xf32>
    %37 = tpu.matmul %36, %3, %cst_23 {dimension_numbers = #tpu.dot_dimension_numbers<[1], [0], [0], [1], [0, 0, 1, 1], [], []>} : vector<8x32xbf16>, vector<32x32xbf16>, vector<8x32xf32> -> vector<8x32xf32>
    %38 = vector.broadcast %4 : vector<1x32xf32> to vector<8x32xf32>
    %39 = arith.addf %37, %38 : vector<8x32xf32>
    %40 = arith.subf %0, %11 : vector<8x32xf32>
    %41 = arith.addf %40, %39 : vector<8x32xf32>
    %42 = arith.truncf %41 : vector<8x32xf32> to vector<8x32xbf16>
    %cst_24 = arith.constant dense<0.000000e+00> : vector<8x32xf32>
    %43 = tpu.matmul %42, %5, %cst_24 {dimension_numbers = #tpu.dot_dimension_numbers<[1], [0], [0], [1], [0, 0, 1, 1], [], []>} : vector<8x32xbf16>, vector<32x32xbf16>, vector<8x32xf32> -> vector<8x32xf32>
    %44 = vector.broadcast %6 : vector<1x32xf32> to vector<8x32xf32>
    %45 = arith.addf %43, %44 : vector<8x32xf32>
    %cst_25 = arith.constant 0.000000e+00 : f32
    %46 = vector.broadcast %cst_25 : f32 to vector<8x32xf32>
    %47 = arith.maximumf %45, %46 : vector<8x32xf32>
    %48 = arith.truncf %47 : vector<8x32xf32> to vector<8x32xbf16>
    %cst_26 = arith.constant dense<0.000000e+00> : vector<8x32xf32>
    %49 = tpu.matmul %48, %7, %cst_26 {dimension_numbers = #tpu.dot_dimension_numbers<[1], [0], [0], [1], [0, 0, 1, 1], [], []>} : vector<8x32xbf16>, vector<32x32xbf16>, vector<8x32xf32> -> vector<8x32xf32>
    %50 = vector.broadcast %8 : vector<1x32xf32> to vector<8x32xf32>
    %51 = arith.addf %49, %50 : vector<8x32xf32>
    %52 = arith.addf %12, %39 : vector<8x32xf32>
    %cst_27 = arith.constant 1.000000e+00 : f32
    %53 = vector.broadcast %cst_27 : f32 to vector<8x32xf32>
    %c1 = arith.constant 1 : index
    %c0_28 = arith.constant 0 : index
    %c0_29 = arith.constant 0 : index
    %54 = vector.load %arg2[%c1, %c0_28, %c0_29] : memref<8x8x64xf32, #tpu.memory_space<vmem>>, vector<1x8x64xf32>
    %55 = vector.shape_cast %54 : vector<1x8x64xf32> to vector<8x64xf32>
    %56 = vector.extract_strided_slice %55 {offsets = [0, 0], sizes = [8, 32], strides = [1, 1]} : vector<8x64xf32> to vector<8x32xf32>
    %57 = vector.extract_strided_slice %55 {offsets = [0, 32], sizes = [8, 32], strides = [1, 1]} : vector<8x64xf32> to vector<8x32xf32>
    %c1_30 = arith.constant 1 : index
    %c0_31 = arith.constant 0 : index
    %c0_32 = arith.constant 0 : index
    %58 = vector.load %arg3[%c1_30, %c0_31, %c0_32] : memref<8x8x3xf32, #tpu.memory_space<vmem>>, vector<1x8x3xf32>
    %59 = vector.shape_cast %58 : vector<1x8x3xf32> to vector<8x3xf32>
    %60 = vector.extract_strided_slice %59 {offsets = [0, 0], sizes = [8, 1], strides = [1, 1]} : vector<8x3xf32> to vector<8x1xf32>
    %61 = vector.extract_strided_slice %1 {offsets = [0, 0], sizes = [1, 32], strides = [1, 1]} : vector<3x32xf32> to vector<1x32xf32>
    %62 = vector.broadcast %60 : vector<8x1xf32> to vector<8x32xf32>
    %63 = vector.broadcast %61 : vector<1x32xf32> to vector<8x32xf32>
    %64 = arith.mulf %62, %63 : vector<8x32xf32>
    %65 = vector.extract_strided_slice %59 {offsets = [0, 1], sizes = [8, 1], strides = [1, 1]} : vector<8x3xf32> to vector<8x1xf32>
    %66 = vector.extract_strided_slice %1 {offsets = [1, 0], sizes = [1, 32], strides = [1, 1]} : vector<3x32xf32> to vector<1x32xf32>
    %67 = vector.broadcast %65 : vector<8x1xf32> to vector<8x32xf32>
    %68 = vector.broadcast %66 : vector<1x32xf32> to vector<8x32xf32>
    %69 = arith.mulf %67, %68 : vector<8x32xf32>
    %70 = arith.addf %64, %69 : vector<8x32xf32>
    %71 = vector.extract_strided_slice %59 {offsets = [0, 2], sizes = [8, 1], strides = [1, 1]} : vector<8x3xf32> to vector<8x1xf32>
    %72 = vector.extract_strided_slice %1 {offsets = [2, 0], sizes = [1, 32], strides = [1, 1]} : vector<3x32xf32> to vector<1x32xf32>
    %73 = vector.broadcast %71 : vector<8x1xf32> to vector<8x32xf32>
    %74 = vector.broadcast %72 : vector<1x32xf32> to vector<8x32xf32>
    %75 = arith.mulf %73, %74 : vector<8x32xf32>
    %76 = arith.addf %70, %75 : vector<8x32xf32>
    %77 = vector.broadcast %2 : vector<1x32xf32> to vector<8x32xf32>
    %78 = arith.addf %76, %77 : vector<8x32xf32>
    %cst_33 = arith.constant 0.000000e+00 : f32
    %79 = vector.broadcast %cst_33 : f32 to vector<8x32xf32>
    %80 = arith.maximumf %78, %79 : vector<8x32xf32>
    %81 = arith.truncf %80 : vector<8x32xf32> to vector<8x32xbf16>
    %cst_34 = arith.constant dense<0.000000e+00> : vector<8x32xf32>
    %82 = tpu.matmul %81, %3, %cst_34 {dimension_numbers = #tpu.dot_dimension_numbers<[1], [0], [0], [1], [0, 0, 1, 1], [], []>} : vector<8x32xbf16>, vector<32x32xbf16>, vector<8x32xf32> -> vector<8x32xf32>
    %83 = vector.broadcast %4 : vector<1x32xf32> to vector<8x32xf32>
    %84 = arith.addf %82, %83 : vector<8x32xf32>
    %85 = arith.subf %0, %56 : vector<8x32xf32>
    %86 = arith.addf %85, %84 : vector<8x32xf32>
    %87 = arith.truncf %86 : vector<8x32xf32> to vector<8x32xbf16>
    %cst_35 = arith.constant dense<0.000000e+00> : vector<8x32xf32>
    %88 = tpu.matmul %87, %5, %cst_35 {dimension_numbers = #tpu.dot_dimension_numbers<[1], [0], [0], [1], [0, 0, 1, 1], [], []>} : vector<8x32xbf16>, vector<32x32xbf16>, vector<8x32xf32> -> vector<8x32xf32>
    %89 = vector.broadcast %6 : vector<1x32xf32> to vector<8x32xf32>
    %90 = arith.addf %88, %89 : vector<8x32xf32>
    %cst_36 = arith.constant 0.000000e+00 : f32
    %91 = vector.broadcast %cst_36 : f32 to vector<8x32xf32>
    %92 = arith.maximumf %90, %91 : vector<8x32xf32>
    %93 = arith.truncf %92 : vector<8x32xf32> to vector<8x32xbf16>
    %cst_37 = arith.constant dense<0.000000e+00> : vector<8x32xf32>
    %94 = tpu.matmul %93, %7, %cst_37 {dimension_numbers = #tpu.dot_dimension_numbers<[1], [0], [0], [1], [0, 0, 1, 1], [], []>} : vector<8x32xbf16>, vector<32x32xbf16>, vector<8x32xf32> -> vector<8x32xf32>
    %95 = vector.broadcast %8 : vector<1x32xf32> to vector<8x32xf32>
    %96 = arith.addf %94, %95 : vector<8x32xf32>
    %97 = arith.addf %57, %84 : vector<8x32xf32>
    %98 = arith.maximumf %51, %96 : vector<8x32xf32>
    %99 = arith.subf %51, %98 : vector<8x32xf32>
    %100 = math.exp %99 : vector<8x32xf32>
    %101 = arith.subf %96, %98 : vector<8x32xf32>
    %102 = math.exp %101 : vector<8x32xf32>
    %103 = arith.mulf %100, %53 : vector<8x32xf32>
    %104 = arith.addf %103, %102 : vector<8x32xf32>
    %105 = arith.mulf %100, %52 : vector<8x32xf32>
    %106 = arith.mulf %102, %97 : vector<8x32xf32>
    %107 = arith.addf %105, %106 : vector<8x32xf32>
    %c2 = arith.constant 2 : index
    %c0_38 = arith.constant 0 : index
    %c0_39 = arith.constant 0 : index
    %108 = vector.load %arg2[%c2, %c0_38, %c0_39] : memref<8x8x64xf32, #tpu.memory_space<vmem>>, vector<1x8x64xf32>
    %109 = vector.shape_cast %108 : vector<1x8x64xf32> to vector<8x64xf32>
    %110 = vector.extract_strided_slice %109 {offsets = [0, 0], sizes = [8, 32], strides = [1, 1]} : vector<8x64xf32> to vector<8x32xf32>
    %111 = vector.extract_strided_slice %109 {offsets = [0, 32], sizes = [8, 32], strides = [1, 1]} : vector<8x64xf32> to vector<8x32xf32>
    %c2_40 = arith.constant 2 : index
    %c0_41 = arith.constant 0 : index
    %c0_42 = arith.constant 0 : index
    %112 = vector.load %arg3[%c2_40, %c0_41, %c0_42] : memref<8x8x3xf32, #tpu.memory_space<vmem>>, vector<1x8x3xf32>
    %113 = vector.shape_cast %112 : vector<1x8x3xf32> to vector<8x3xf32>
    %114 = vector.extract_strided_slice %113 {offsets = [0, 0], sizes = [8, 1], strides = [1, 1]} : vector<8x3xf32> to vector<8x1xf32>
    %115 = vector.extract_strided_slice %1 {offsets = [0, 0], sizes = [1, 32], strides = [1, 1]} : vector<3x32xf32> to vector<1x32xf32>
    %116 = vector.broadcast %114 : vector<8x1xf32> to vector<8x32xf32>
    %117 = vector.broadcast %115 : vector<1x32xf32> to vector<8x32xf32>
    %118 = arith.mulf %116, %117 : vector<8x32xf32>
    %119 = vector.extract_strided_slice %113 {offsets = [0, 1], sizes = [8, 1], strides = [1, 1]} : vector<8x3xf32> to vector<8x1xf32>
    %120 = vector.extract_strided_slice %1 {offsets = [1, 0], sizes = [1, 32], strides = [1, 1]} : vector<3x32xf32> to vector<1x32xf32>
    %121 = vector.broadcast %119 : vector<8x1xf32> to vector<8x32xf32>
    %122 = vector.broadcast %120 : vector<1x32xf32> to vector<8x32xf32>
    %123 = arith.mulf %121, %122 : vector<8x32xf32>
    %124 = arith.addf %118, %123 : vector<8x32xf32>
    %125 = vector.extract_strided_slice %113 {offsets = [0, 2], sizes = [8, 1], strides = [1, 1]} : vector<8x3xf32> to vector<8x1xf32>
    %126 = vector.extract_strided_slice %1 {offsets = [2, 0], sizes = [1, 32], strides = [1, 1]} : vector<3x32xf32> to vector<1x32xf32>
    %127 = vector.broadcast %125 : vector<8x1xf32> to vector<8x32xf32>
    %128 = vector.broadcast %126 : vector<1x32xf32> to vector<8x32xf32>
    %129 = arith.mulf %127, %128 : vector<8x32xf32>
    %130 = arith.addf %124, %129 : vector<8x32xf32>
    %131 = vector.broadcast %2 : vector<1x32xf32> to vector<8x32xf32>
    %132 = arith.addf %130, %131 : vector<8x32xf32>
    %cst_43 = arith.constant 0.000000e+00 : f32
    %133 = vector.broadcast %cst_43 : f32 to vector<8x32xf32>
    %134 = arith.maximumf %132, %133 : vector<8x32xf32>
    %135 = arith.truncf %134 : vector<8x32xf32> to vector<8x32xbf16>
    %cst_44 = arith.constant dense<0.000000e+00> : vector<8x32xf32>
    %136 = tpu.matmul %135, %3, %cst_44 {dimension_numbers = #tpu.dot_dimension_numbers<[1], [0], [0], [1], [0, 0, 1, 1], [], []>} : vector<8x32xbf16>, vector<32x32xbf16>, vector<8x32xf32> -> vector<8x32xf32>
    %137 = vector.broadcast %4 : vector<1x32xf32> to vector<8x32xf32>
    %138 = arith.addf %136, %137 : vector<8x32xf32>
    %139 = arith.subf %0, %110 : vector<8x32xf32>
    %140 = arith.addf %139, %138 : vector<8x32xf32>
    %141 = arith.truncf %140 : vector<8x32xf32> to vector<8x32xbf16>
    %cst_45 = arith.constant dense<0.000000e+00> : vector<8x32xf32>
    %142 = tpu.matmul %141, %5, %cst_45 {dimension_numbers = #tpu.dot_dimension_numbers<[1], [0], [0], [1], [0, 0, 1, 1], [], []>} : vector<8x32xbf16>, vector<32x32xbf16>, vector<8x32xf32> -> vector<8x32xf32>
    %143 = vector.broadcast %6 : vector<1x32xf32> to vector<8x32xf32>
    %144 = arith.addf %142, %143 : vector<8x32xf32>
    %cst_46 = arith.constant 0.000000e+00 : f32
    %145 = vector.broadcast %cst_46 : f32 to vector<8x32xf32>
    %146 = arith.maximumf %144, %145 : vector<8x32xf32>
    %147 = arith.truncf %146 : vector<8x32xf32> to vector<8x32xbf16>
    %cst_47 = arith.constant dense<0.000000e+00> : vector<8x32xf32>
    %148 = tpu.matmul %147, %7, %cst_47 {dimension_numbers = #tpu.dot_dimension_numbers<[1], [0], [0], [1], [0, 0, 1, 1], [], []>} : vector<8x32xbf16>, vector<32x32xbf16>, vector<8x32xf32> -> vector<8x32xf32>
    %149 = vector.broadcast %8 : vector<1x32xf32> to vector<8x32xf32>
    %150 = arith.addf %148, %149 : vector<8x32xf32>
    %151 = arith.addf %111, %138 : vector<8x32xf32>
    %152 = arith.maximumf %98, %150 : vector<8x32xf32>
    %153 = arith.subf %98, %152 : vector<8x32xf32>
    %154 = math.exp %153 : vector<8x32xf32>
    %155 = arith.subf %150, %152 : vector<8x32xf32>
    %156 = math.exp %155 : vector<8x32xf32>
    %157 = arith.mulf %154, %104 : vector<8x32xf32>
    %158 = arith.addf %157, %156 : vector<8x32xf32>
    %159 = arith.mulf %154, %107 : vector<8x32xf32>
    %160 = arith.mulf %156, %151 : vector<8x32xf32>
    %161 = arith.addf %159, %160 : vector<8x32xf32>
    %c3 = arith.constant 3 : index
    %c0_48 = arith.constant 0 : index
    %c0_49 = arith.constant 0 : index
    %162 = vector.load %arg2[%c3, %c0_48, %c0_49] : memref<8x8x64xf32, #tpu.memory_space<vmem>>, vector<1x8x64xf32>
    %163 = vector.shape_cast %162 : vector<1x8x64xf32> to vector<8x64xf32>
    %164 = vector.extract_strided_slice %163 {offsets = [0, 0], sizes = [8, 32], strides = [1, 1]} : vector<8x64xf32> to vector<8x32xf32>
    %165 = vector.extract_strided_slice %163 {offsets = [0, 32], sizes = [8, 32], strides = [1, 1]} : vector<8x64xf32> to vector<8x32xf32>
    %c3_50 = arith.constant 3 : index
    %c0_51 = arith.constant 0 : index
    %c0_52 = arith.constant 0 : index
    %166 = vector.load %arg3[%c3_50, %c0_51, %c0_52] : memref<8x8x3xf32, #tpu.memory_space<vmem>>, vector<1x8x3xf32>
    %167 = vector.shape_cast %166 : vector<1x8x3xf32> to vector<8x3xf32>
    %168 = vector.extract_strided_slice %167 {offsets = [0, 0], sizes = [8, 1], strides = [1, 1]} : vector<8x3xf32> to vector<8x1xf32>
    %169 = vector.extract_strided_slice %1 {offsets = [0, 0], sizes = [1, 32], strides = [1, 1]} : vector<3x32xf32> to vector<1x32xf32>
    %170 = vector.broadcast %168 : vector<8x1xf32> to vector<8x32xf32>
    %171 = vector.broadcast %169 : vector<1x32xf32> to vector<8x32xf32>
    %172 = arith.mulf %170, %171 : vector<8x32xf32>
    %173 = vector.extract_strided_slice %167 {offsets = [0, 1], sizes = [8, 1], strides = [1, 1]} : vector<8x3xf32> to vector<8x1xf32>
    %174 = vector.extract_strided_slice %1 {offsets = [1, 0], sizes = [1, 32], strides = [1, 1]} : vector<3x32xf32> to vector<1x32xf32>
    %175 = vector.broadcast %173 : vector<8x1xf32> to vector<8x32xf32>
    %176 = vector.broadcast %174 : vector<1x32xf32> to vector<8x32xf32>
    %177 = arith.mulf %175, %176 : vector<8x32xf32>
    %178 = arith.addf %172, %177 : vector<8x32xf32>
    %179 = vector.extract_strided_slice %167 {offsets = [0, 2], sizes = [8, 1], strides = [1, 1]} : vector<8x3xf32> to vector<8x1xf32>
    %180 = vector.extract_strided_slice %1 {offsets = [2, 0], sizes = [1, 32], strides = [1, 1]} : vector<3x32xf32> to vector<1x32xf32>
    %181 = vector.broadcast %179 : vector<8x1xf32> to vector<8x32xf32>
    %182 = vector.broadcast %180 : vector<1x32xf32> to vector<8x32xf32>
    %183 = arith.mulf %181, %182 : vector<8x32xf32>
    %184 = arith.addf %178, %183 : vector<8x32xf32>
    %185 = vector.broadcast %2 : vector<1x32xf32> to vector<8x32xf32>
    %186 = arith.addf %184, %185 : vector<8x32xf32>
    %cst_53 = arith.constant 0.000000e+00 : f32
    %187 = vector.broadcast %cst_53 : f32 to vector<8x32xf32>
    %188 = arith.maximumf %186, %187 : vector<8x32xf32>
    %189 = arith.truncf %188 : vector<8x32xf32> to vector<8x32xbf16>
    %cst_54 = arith.constant dense<0.000000e+00> : vector<8x32xf32>
    %190 = tpu.matmul %189, %3, %cst_54 {dimension_numbers = #tpu.dot_dimension_numbers<[1], [0], [0], [1], [0, 0, 1, 1], [], []>} : vector<8x32xbf16>, vector<32x32xbf16>, vector<8x32xf32> -> vector<8x32xf32>
    %191 = vector.broadcast %4 : vector<1x32xf32> to vector<8x32xf32>
    %192 = arith.addf %190, %191 : vector<8x32xf32>
    %193 = arith.subf %0, %164 : vector<8x32xf32>
    %194 = arith.addf %193, %192 : vector<8x32xf32>
    %195 = arith.truncf %194 : vector<8x32xf32> to vector<8x32xbf16>
    %cst_55 = arith.constant dense<0.000000e+00> : vector<8x32xf32>
    %196 = tpu.matmul %195, %5, %cst_55 {dimension_numbers = #tpu.dot_dimension_numbers<[1], [0], [0], [1], [0, 0, 1, 1], [], []>} : vector<8x32xbf16>, vector<32x32xbf16>, vector<8x32xf32> -> vector<8x32xf32>
    %197 = vector.broadcast %6 : vector<1x32xf32> to vector<8x32xf32>
    %198 = arith.addf %196, %197 : vector<8x32xf32>
    %cst_56 = arith.constant 0.000000e+00 : f32
    %199 = vector.broadcast %cst_56 : f32 to vector<8x32xf32>
    %200 = arith.maximumf %198, %199 : vector<8x32xf32>
    %201 = arith.truncf %200 : vector<8x32xf32> to vector<8x32xbf16>
    %cst_57 = arith.constant dense<0.000000e+00> : vector<8x32xf32>
    %202 = tpu.matmul %201, %7, %cst_57 {dimension_numbers = #tpu.dot_dimension_numbers<[1], [0], [0], [1], [0, 0, 1, 1], [], []>} : vector<8x32xbf16>, vector<32x32xbf16>, vector<8x32xf32> -> vector<8x32xf32>
    %203 = vector.broadcast %8 : vector<1x32xf32> to vector<8x32xf32>
    %204 = arith.addf %202, %203 : vector<8x32xf32>
    %205 = arith.addf %165, %192 : vector<8x32xf32>
    %206 = arith.maximumf %152, %204 : vector<8x32xf32>
    %207 = arith.subf %152, %206 : vector<8x32xf32>
    %208 = math.exp %207 : vector<8x32xf32>
    %209 = arith.subf %204, %206 : vector<8x32xf32>
    %210 = math.exp %209 : vector<8x32xf32>
    %211 = arith.mulf %208, %158 : vector<8x32xf32>
    %212 = arith.addf %211, %210 : vector<8x32xf32>
    %213 = arith.mulf %208, %161 : vector<8x32xf32>
    %214 = arith.mulf %210, %205 : vector<8x32xf32>
    %215 = arith.addf %213, %214 : vector<8x32xf32>
    %c4 = arith.constant 4 : index
    %c0_58 = arith.constant 0 : index
    %c0_59 = arith.constant 0 : index
    %216 = vector.load %arg2[%c4, %c0_58, %c0_59] : memref<8x8x64xf32, #tpu.memory_space<vmem>>, vector<1x8x64xf32>
    %217 = vector.shape_cast %216 : vector<1x8x64xf32> to vector<8x64xf32>
    %218 = vector.extract_strided_slice %217 {offsets = [0, 0], sizes = [8, 32], strides = [1, 1]} : vector<8x64xf32> to vector<8x32xf32>
    %219 = vector.extract_strided_slice %217 {offsets = [0, 32], sizes = [8, 32], strides = [1, 1]} : vector<8x64xf32> to vector<8x32xf32>
    %c4_60 = arith.constant 4 : index
    %c0_61 = arith.constant 0 : index
    %c0_62 = arith.constant 0 : index
    %220 = vector.load %arg3[%c4_60, %c0_61, %c0_62] : memref<8x8x3xf32, #tpu.memory_space<vmem>>, vector<1x8x3xf32>
    %221 = vector.shape_cast %220 : vector<1x8x3xf32> to vector<8x3xf32>
    %222 = vector.extract_strided_slice %221 {offsets = [0, 0], sizes = [8, 1], strides = [1, 1]} : vector<8x3xf32> to vector<8x1xf32>
    %223 = vector.extract_strided_slice %1 {offsets = [0, 0], sizes = [1, 32], strides = [1, 1]} : vector<3x32xf32> to vector<1x32xf32>
    %224 = vector.broadcast %222 : vector<8x1xf32> to vector<8x32xf32>
    %225 = vector.broadcast %223 : vector<1x32xf32> to vector<8x32xf32>
    %226 = arith.mulf %224, %225 : vector<8x32xf32>
    %227 = vector.extract_strided_slice %221 {offsets = [0, 1], sizes = [8, 1], strides = [1, 1]} : vector<8x3xf32> to vector<8x1xf32>
    %228 = vector.extract_strided_slice %1 {offsets = [1, 0], sizes = [1, 32], strides = [1, 1]} : vector<3x32xf32> to vector<1x32xf32>
    %229 = vector.broadcast %227 : vector<8x1xf32> to vector<8x32xf32>
    %230 = vector.broadcast %228 : vector<1x32xf32> to vector<8x32xf32>
    %231 = arith.mulf %229, %230 : vector<8x32xf32>
    %232 = arith.addf %226, %231 : vector<8x32xf32>
    %233 = vector.extract_strided_slice %221 {offsets = [0, 2], sizes = [8, 1], strides = [1, 1]} : vector<8x3xf32> to vector<8x1xf32>
    %234 = vector.extract_strided_slice %1 {offsets = [2, 0], sizes = [1, 32], strides = [1, 1]} : vector<3x32xf32> to vector<1x32xf32>
    %235 = vector.broadcast %233 : vector<8x1xf32> to vector<8x32xf32>
    %236 = vector.broadcast %234 : vector<1x32xf32> to vector<8x32xf32>
    %237 = arith.mulf %235, %236 : vector<8x32xf32>
    %238 = arith.addf %232, %237 : vector<8x32xf32>
    %239 = vector.broadcast %2 : vector<1x32xf32> to vector<8x32xf32>
    %240 = arith.addf %238, %239 : vector<8x32xf32>
    %cst_63 = arith.constant 0.000000e+00 : f32
    %241 = vector.broadcast %cst_63 : f32 to vector<8x32xf32>
    %242 = arith.maximumf %240, %241 : vector<8x32xf32>
    %243 = arith.truncf %242 : vector<8x32xf32> to vector<8x32xbf16>
    %cst_64 = arith.constant dense<0.000000e+00> : vector<8x32xf32>
    %244 = tpu.matmul %243, %3, %cst_64 {dimension_numbers = #tpu.dot_dimension_numbers<[1], [0], [0], [1], [0, 0, 1, 1], [], []>} : vector<8x32xbf16>, vector<32x32xbf16>, vector<8x32xf32> -> vector<8x32xf32>
    %245 = vector.broadcast %4 : vector<1x32xf32> to vector<8x32xf32>
    %246 = arith.addf %244, %245 : vector<8x32xf32>
    %247 = arith.subf %0, %218 : vector<8x32xf32>
    %248 = arith.addf %247, %246 : vector<8x32xf32>
    %249 = arith.truncf %248 : vector<8x32xf32> to vector<8x32xbf16>
    %cst_65 = arith.constant dense<0.000000e+00> : vector<8x32xf32>
    %250 = tpu.matmul %249, %5, %cst_65 {dimension_numbers = #tpu.dot_dimension_numbers<[1], [0], [0], [1], [0, 0, 1, 1], [], []>} : vector<8x32xbf16>, vector<32x32xbf16>, vector<8x32xf32> -> vector<8x32xf32>
    %251 = vector.broadcast %6 : vector<1x32xf32> to vector<8x32xf32>
    %252 = arith.addf %250, %251 : vector<8x32xf32>
    %cst_66 = arith.constant 0.000000e+00 : f32
    %253 = vector.broadcast %cst_66 : f32 to vector<8x32xf32>
    %254 = arith.maximumf %252, %253 : vector<8x32xf32>
    %255 = arith.truncf %254 : vector<8x32xf32> to vector<8x32xbf16>
    %cst_67 = arith.constant dense<0.000000e+00> : vector<8x32xf32>
    %256 = tpu.matmul %255, %7, %cst_67 {dimension_numbers = #tpu.dot_dimension_numbers<[1], [0], [0], [1], [0, 0, 1, 1], [], []>} : vector<8x32xbf16>, vector<32x32xbf16>, vector<8x32xf32> -> vector<8x32xf32>
    %257 = vector.broadcast %8 : vector<1x32xf32> to vector<8x32xf32>
    %258 = arith.addf %256, %257 : vector<8x32xf32>
    %259 = arith.addf %219, %246 : vector<8x32xf32>
    %260 = arith.maximumf %206, %258 : vector<8x32xf32>
    %261 = arith.subf %206, %260 : vector<8x32xf32>
    %262 = math.exp %261 : vector<8x32xf32>
    %263 = arith.subf %258, %260 : vector<8x32xf32>
    %264 = math.exp %263 : vector<8x32xf32>
    %265 = arith.mulf %262, %212 : vector<8x32xf32>
    %266 = arith.addf %265, %264 : vector<8x32xf32>
    %267 = arith.mulf %262, %215 : vector<8x32xf32>
    %268 = arith.mulf %264, %259 : vector<8x32xf32>
    %269 = arith.addf %267, %268 : vector<8x32xf32>
    %c5 = arith.constant 5 : index
    %c0_68 = arith.constant 0 : index
    %c0_69 = arith.constant 0 : index
    %270 = vector.load %arg2[%c5, %c0_68, %c0_69] : memref<8x8x64xf32, #tpu.memory_space<vmem>>, vector<1x8x64xf32>
    %271 = vector.shape_cast %270 : vector<1x8x64xf32> to vector<8x64xf32>
    %272 = vector.extract_strided_slice %271 {offsets = [0, 0], sizes = [8, 32], strides = [1, 1]} : vector<8x64xf32> to vector<8x32xf32>
    %273 = vector.extract_strided_slice %271 {offsets = [0, 32], sizes = [8, 32], strides = [1, 1]} : vector<8x64xf32> to vector<8x32xf32>
    %c5_70 = arith.constant 5 : index
    %c0_71 = arith.constant 0 : index
    %c0_72 = arith.constant 0 : index
    %274 = vector.load %arg3[%c5_70, %c0_71, %c0_72] : memref<8x8x3xf32, #tpu.memory_space<vmem>>, vector<1x8x3xf32>
    %275 = vector.shape_cast %274 : vector<1x8x3xf32> to vector<8x3xf32>
    %276 = vector.extract_strided_slice %275 {offsets = [0, 0], sizes = [8, 1], strides = [1, 1]} : vector<8x3xf32> to vector<8x1xf32>
    %277 = vector.extract_strided_slice %1 {offsets = [0, 0], sizes = [1, 32], strides = [1, 1]} : vector<3x32xf32> to vector<1x32xf32>
    %278 = vector.broadcast %276 : vector<8x1xf32> to vector<8x32xf32>
    %279 = vector.broadcast %277 : vector<1x32xf32> to vector<8x32xf32>
    %280 = arith.mulf %278, %279 : vector<8x32xf32>
    %281 = vector.extract_strided_slice %275 {offsets = [0, 1], sizes = [8, 1], strides = [1, 1]} : vector<8x3xf32> to vector<8x1xf32>
    %282 = vector.extract_strided_slice %1 {offsets = [1, 0], sizes = [1, 32], strides = [1, 1]} : vector<3x32xf32> to vector<1x32xf32>
    %283 = vector.broadcast %281 : vector<8x1xf32> to vector<8x32xf32>
    %284 = vector.broadcast %282 : vector<1x32xf32> to vector<8x32xf32>
    %285 = arith.mulf %283, %284 : vector<8x32xf32>
    %286 = arith.addf %280, %285 : vector<8x32xf32>
    %287 = vector.extract_strided_slice %275 {offsets = [0, 2], sizes = [8, 1], strides = [1, 1]} : vector<8x3xf32> to vector<8x1xf32>
    %288 = vector.extract_strided_slice %1 {offsets = [2, 0], sizes = [1, 32], strides = [1, 1]} : vector<3x32xf32> to vector<1x32xf32>
    %289 = vector.broadcast %287 : vector<8x1xf32> to vector<8x32xf32>
    %290 = vector.broadcast %288 : vector<1x32xf32> to vector<8x32xf32>
    %291 = arith.mulf %289, %290 : vector<8x32xf32>
    %292 = arith.addf %286, %291 : vector<8x32xf32>
    %293 = vector.broadcast %2 : vector<1x32xf32> to vector<8x32xf32>
    %294 = arith.addf %292, %293 : vector<8x32xf32>
    %cst_73 = arith.constant 0.000000e+00 : f32
    %295 = vector.broadcast %cst_73 : f32 to vector<8x32xf32>
    %296 = arith.maximumf %294, %295 : vector<8x32xf32>
    %297 = arith.truncf %296 : vector<8x32xf32> to vector<8x32xbf16>
    %cst_74 = arith.constant dense<0.000000e+00> : vector<8x32xf32>
    %298 = tpu.matmul %297, %3, %cst_74 {dimension_numbers = #tpu.dot_dimension_numbers<[1], [0], [0], [1], [0, 0, 1, 1], [], []>} : vector<8x32xbf16>, vector<32x32xbf16>, vector<8x32xf32> -> vector<8x32xf32>
    %299 = vector.broadcast %4 : vector<1x32xf32> to vector<8x32xf32>
    %300 = arith.addf %298, %299 : vector<8x32xf32>
    %301 = arith.subf %0, %272 : vector<8x32xf32>
    %302 = arith.addf %301, %300 : vector<8x32xf32>
    %303 = arith.truncf %302 : vector<8x32xf32> to vector<8x32xbf16>
    %cst_75 = arith.constant dense<0.000000e+00> : vector<8x32xf32>
    %304 = tpu.matmul %303, %5, %cst_75 {dimension_numbers = #tpu.dot_dimension_numbers<[1], [0], [0], [1], [0, 0, 1, 1], [], []>} : vector<8x32xbf16>, vector<32x32xbf16>, vector<8x32xf32> -> vector<8x32xf32>
    %305 = vector.broadcast %6 : vector<1x32xf32> to vector<8x32xf32>
    %306 = arith.addf %304, %305 : vector<8x32xf32>
    %cst_76 = arith.constant 0.000000e+00 : f32
    %307 = vector.broadcast %cst_76 : f32 to vector<8x32xf32>
    %308 = arith.maximumf %306, %307 : vector<8x32xf32>
    %309 = arith.truncf %308 : vector<8x32xf32> to vector<8x32xbf16>
    %cst_77 = arith.constant dense<0.000000e+00> : vector<8x32xf32>
    %310 = tpu.matmul %309, %7, %cst_77 {dimension_numbers = #tpu.dot_dimension_numbers<[1], [0], [0], [1], [0, 0, 1, 1], [], []>} : vector<8x32xbf16>, vector<32x32xbf16>, vector<8x32xf32> -> vector<8x32xf32>
    %311 = vector.broadcast %8 : vector<1x32xf32> to vector<8x32xf32>
    %312 = arith.addf %310, %311 : vector<8x32xf32>
    %313 = arith.addf %273, %300 : vector<8x32xf32>
    %314 = arith.maximumf %260, %312 : vector<8x32xf32>
    %315 = arith.subf %260, %314 : vector<8x32xf32>
    %316 = math.exp %315 : vector<8x32xf32>
    %317 = arith.subf %312, %314 : vector<8x32xf32>
    %318 = math.exp %317 : vector<8x32xf32>
    %319 = arith.mulf %316, %266 : vector<8x32xf32>
    %320 = arith.addf %319, %318 : vector<8x32xf32>
    %321 = arith.mulf %316, %269 : vector<8x32xf32>
    %322 = arith.mulf %318, %313 : vector<8x32xf32>
    %323 = arith.addf %321, %322 : vector<8x32xf32>
    %c6 = arith.constant 6 : index
    %c0_78 = arith.constant 0 : index
    %c0_79 = arith.constant 0 : index
    %324 = vector.load %arg2[%c6, %c0_78, %c0_79] : memref<8x8x64xf32, #tpu.memory_space<vmem>>, vector<1x8x64xf32>
    %325 = vector.shape_cast %324 : vector<1x8x64xf32> to vector<8x64xf32>
    %326 = vector.extract_strided_slice %325 {offsets = [0, 0], sizes = [8, 32], strides = [1, 1]} : vector<8x64xf32> to vector<8x32xf32>
    %327 = vector.extract_strided_slice %325 {offsets = [0, 32], sizes = [8, 32], strides = [1, 1]} : vector<8x64xf32> to vector<8x32xf32>
    %c6_80 = arith.constant 6 : index
    %c0_81 = arith.constant 0 : index
    %c0_82 = arith.constant 0 : index
    %328 = vector.load %arg3[%c6_80, %c0_81, %c0_82] : memref<8x8x3xf32, #tpu.memory_space<vmem>>, vector<1x8x3xf32>
    %329 = vector.shape_cast %328 : vector<1x8x3xf32> to vector<8x3xf32>
    %330 = vector.extract_strided_slice %329 {offsets = [0, 0], sizes = [8, 1], strides = [1, 1]} : vector<8x3xf32> to vector<8x1xf32>
    %331 = vector.extract_strided_slice %1 {offsets = [0, 0], sizes = [1, 32], strides = [1, 1]} : vector<3x32xf32> to vector<1x32xf32>
    %332 = vector.broadcast %330 : vector<8x1xf32> to vector<8x32xf32>
    %333 = vector.broadcast %331 : vector<1x32xf32> to vector<8x32xf32>
    %334 = arith.mulf %332, %333 : vector<8x32xf32>
    %335 = vector.extract_strided_slice %329 {offsets = [0, 1], sizes = [8, 1], strides = [1, 1]} : vector<8x3xf32> to vector<8x1xf32>
    %336 = vector.extract_strided_slice %1 {offsets = [1, 0], sizes = [1, 32], strides = [1, 1]} : vector<3x32xf32> to vector<1x32xf32>
    %337 = vector.broadcast %335 : vector<8x1xf32> to vector<8x32xf32>
    %338 = vector.broadcast %336 : vector<1x32xf32> to vector<8x32xf32>
    %339 = arith.mulf %337, %338 : vector<8x32xf32>
    %340 = arith.addf %334, %339 : vector<8x32xf32>
    %341 = vector.extract_strided_slice %329 {offsets = [0, 2], sizes = [8, 1], strides = [1, 1]} : vector<8x3xf32> to vector<8x1xf32>
    %342 = vector.extract_strided_slice %1 {offsets = [2, 0], sizes = [1, 32], strides = [1, 1]} : vector<3x32xf32> to vector<1x32xf32>
    %343 = vector.broadcast %341 : vector<8x1xf32> to vector<8x32xf32>
    %344 = vector.broadcast %342 : vector<1x32xf32> to vector<8x32xf32>
    %345 = arith.mulf %343, %344 : vector<8x32xf32>
    %346 = arith.addf %340, %345 : vector<8x32xf32>
    %347 = vector.broadcast %2 : vector<1x32xf32> to vector<8x32xf32>
    %348 = arith.addf %346, %347 : vector<8x32xf32>
    %cst_83 = arith.constant 0.000000e+00 : f32
    %349 = vector.broadcast %cst_83 : f32 to vector<8x32xf32>
    %350 = arith.maximumf %348, %349 : vector<8x32xf32>
    %351 = arith.truncf %350 : vector<8x32xf32> to vector<8x32xbf16>
    %cst_84 = arith.constant dense<0.000000e+00> : vector<8x32xf32>
    %352 = tpu.matmul %351, %3, %cst_84 {dimension_numbers = #tpu.dot_dimension_numbers<[1], [0], [0], [1], [0, 0, 1, 1], [], []>} : vector<8x32xbf16>, vector<32x32xbf16>, vector<8x32xf32> -> vector<8x32xf32>
    %353 = vector.broadcast %4 : vector<1x32xf32> to vector<8x32xf32>
    %354 = arith.addf %352, %353 : vector<8x32xf32>
    %355 = arith.subf %0, %326 : vector<8x32xf32>
    %356 = arith.addf %355, %354 : vector<8x32xf32>
    %357 = arith.truncf %356 : vector<8x32xf32> to vector<8x32xbf16>
    %cst_85 = arith.constant dense<0.000000e+00> : vector<8x32xf32>
    %358 = tpu.matmul %357, %5, %cst_85 {dimension_numbers = #tpu.dot_dimension_numbers<[1], [0], [0], [1], [0, 0, 1, 1], [], []>} : vector<8x32xbf16>, vector<32x32xbf16>, vector<8x32xf32> -> vector<8x32xf32>
    %359 = vector.broadcast %6 : vector<1x32xf32> to vector<8x32xf32>
    %360 = arith.addf %358, %359 : vector<8x32xf32>
    %cst_86 = arith.constant 0.000000e+00 : f32
    %361 = vector.broadcast %cst_86 : f32 to vector<8x32xf32>
    %362 = arith.maximumf %360, %361 : vector<8x32xf32>
    %363 = arith.truncf %362 : vector<8x32xf32> to vector<8x32xbf16>
    %cst_87 = arith.constant dense<0.000000e+00> : vector<8x32xf32>
    %364 = tpu.matmul %363, %7, %cst_87 {dimension_numbers = #tpu.dot_dimension_numbers<[1], [0], [0], [1], [0, 0, 1, 1], [], []>} : vector<8x32xbf16>, vector<32x32xbf16>, vector<8x32xf32> -> vector<8x32xf32>
    %365 = vector.broadcast %8 : vector<1x32xf32> to vector<8x32xf32>
    %366 = arith.addf %364, %365 : vector<8x32xf32>
    %367 = arith.addf %327, %354 : vector<8x32xf32>
    %368 = arith.maximumf %314, %366 : vector<8x32xf32>
    %369 = arith.subf %314, %368 : vector<8x32xf32>
    %370 = math.exp %369 : vector<8x32xf32>
    %371 = arith.subf %366, %368 : vector<8x32xf32>
    %372 = math.exp %371 : vector<8x32xf32>
    %373 = arith.mulf %370, %320 : vector<8x32xf32>
    %374 = arith.addf %373, %372 : vector<8x32xf32>
    %375 = arith.mulf %370, %323 : vector<8x32xf32>
    %376 = arith.mulf %372, %367 : vector<8x32xf32>
    %377 = arith.addf %375, %376 : vector<8x32xf32>
    %c7 = arith.constant 7 : index
    %c0_88 = arith.constant 0 : index
    %c0_89 = arith.constant 0 : index
    %378 = vector.load %arg2[%c7, %c0_88, %c0_89] : memref<8x8x64xf32, #tpu.memory_space<vmem>>, vector<1x8x64xf32>
    %379 = vector.shape_cast %378 : vector<1x8x64xf32> to vector<8x64xf32>
    %380 = vector.extract_strided_slice %379 {offsets = [0, 0], sizes = [8, 32], strides = [1, 1]} : vector<8x64xf32> to vector<8x32xf32>
    %381 = vector.extract_strided_slice %379 {offsets = [0, 32], sizes = [8, 32], strides = [1, 1]} : vector<8x64xf32> to vector<8x32xf32>
    %c7_90 = arith.constant 7 : index
    %c0_91 = arith.constant 0 : index
    %c0_92 = arith.constant 0 : index
    %382 = vector.load %arg3[%c7_90, %c0_91, %c0_92] : memref<8x8x3xf32, #tpu.memory_space<vmem>>, vector<1x8x3xf32>
    %383 = vector.shape_cast %382 : vector<1x8x3xf32> to vector<8x3xf32>
    %384 = vector.extract_strided_slice %383 {offsets = [0, 0], sizes = [8, 1], strides = [1, 1]} : vector<8x3xf32> to vector<8x1xf32>
    %385 = vector.extract_strided_slice %1 {offsets = [0, 0], sizes = [1, 32], strides = [1, 1]} : vector<3x32xf32> to vector<1x32xf32>
    %386 = vector.broadcast %384 : vector<8x1xf32> to vector<8x32xf32>
    %387 = vector.broadcast %385 : vector<1x32xf32> to vector<8x32xf32>
    %388 = arith.mulf %386, %387 : vector<8x32xf32>
    %389 = vector.extract_strided_slice %383 {offsets = [0, 1], sizes = [8, 1], strides = [1, 1]} : vector<8x3xf32> to vector<8x1xf32>
    %390 = vector.extract_strided_slice %1 {offsets = [1, 0], sizes = [1, 32], strides = [1, 1]} : vector<3x32xf32> to vector<1x32xf32>
    %391 = vector.broadcast %389 : vector<8x1xf32> to vector<8x32xf32>
    %392 = vector.broadcast %390 : vector<1x32xf32> to vector<8x32xf32>
    %393 = arith.mulf %391, %392 : vector<8x32xf32>
    %394 = arith.addf %388, %393 : vector<8x32xf32>
    %395 = vector.extract_strided_slice %383 {offsets = [0, 2], sizes = [8, 1], strides = [1, 1]} : vector<8x3xf32> to vector<8x1xf32>
    %396 = vector.extract_strided_slice %1 {offsets = [2, 0], sizes = [1, 32], strides = [1, 1]} : vector<3x32xf32> to vector<1x32xf32>
    %397 = vector.broadcast %395 : vector<8x1xf32> to vector<8x32xf32>
    %398 = vector.broadcast %396 : vector<1x32xf32> to vector<8x32xf32>
    %399 = arith.mulf %397, %398 : vector<8x32xf32>
    %400 = arith.addf %394, %399 : vector<8x32xf32>
    %401 = vector.broadcast %2 : vector<1x32xf32> to vector<8x32xf32>
    %402 = arith.addf %400, %401 : vector<8x32xf32>
    %cst_93 = arith.constant 0.000000e+00 : f32
    %403 = vector.broadcast %cst_93 : f32 to vector<8x32xf32>
    %404 = arith.maximumf %402, %403 : vector<8x32xf32>
    %405 = arith.truncf %404 : vector<8x32xf32> to vector<8x32xbf16>
    %cst_94 = arith.constant dense<0.000000e+00> : vector<8x32xf32>
    %406 = tpu.matmul %405, %3, %cst_94 {dimension_numbers = #tpu.dot_dimension_numbers<[1], [0], [0], [1], [0, 0, 1, 1], [], []>} : vector<8x32xbf16>, vector<32x32xbf16>, vector<8x32xf32> -> vector<8x32xf32>
    %407 = vector.broadcast %4 : vector<1x32xf32> to vector<8x32xf32>
    %408 = arith.addf %406, %407 : vector<8x32xf32>
    %409 = arith.subf %0, %380 : vector<8x32xf32>
    %410 = arith.addf %409, %408 : vector<8x32xf32>
    %411 = arith.truncf %410 : vector<8x32xf32> to vector<8x32xbf16>
    %cst_95 = arith.constant dense<0.000000e+00> : vector<8x32xf32>
    %412 = tpu.matmul %411, %5, %cst_95 {dimension_numbers = #tpu.dot_dimension_numbers<[1], [0], [0], [1], [0, 0, 1, 1], [], []>} : vector<8x32xbf16>, vector<32x32xbf16>, vector<8x32xf32> -> vector<8x32xf32>
    %413 = vector.broadcast %6 : vector<1x32xf32> to vector<8x32xf32>
    %414 = arith.addf %412, %413 : vector<8x32xf32>
    %cst_96 = arith.constant 0.000000e+00 : f32
    %415 = vector.broadcast %cst_96 : f32 to vector<8x32xf32>
    %416 = arith.maximumf %414, %415 : vector<8x32xf32>
    %417 = arith.truncf %416 : vector<8x32xf32> to vector<8x32xbf16>
    %cst_97 = arith.constant dense<0.000000e+00> : vector<8x32xf32>
    %418 = tpu.matmul %417, %7, %cst_97 {dimension_numbers = #tpu.dot_dimension_numbers<[1], [0], [0], [1], [0, 0, 1, 1], [], []>} : vector<8x32xbf16>, vector<32x32xbf16>, vector<8x32xf32> -> vector<8x32xf32>
    %419 = vector.broadcast %8 : vector<1x32xf32> to vector<8x32xf32>
    %420 = arith.addf %418, %419 : vector<8x32xf32>
    %421 = arith.addf %381, %408 : vector<8x32xf32>
    %422 = arith.maximumf %368, %420 : vector<8x32xf32>
    %423 = arith.subf %368, %422 : vector<8x32xf32>
    %424 = math.exp %423 : vector<8x32xf32>
    %425 = arith.subf %420, %422 : vector<8x32xf32>
    %426 = math.exp %425 : vector<8x32xf32>
    %427 = arith.mulf %424, %374 : vector<8x32xf32>
    %428 = arith.addf %427, %426 : vector<8x32xf32>
    %429 = arith.mulf %424, %377 : vector<8x32xf32>
    %430 = arith.mulf %426, %421 : vector<8x32xf32>
    %431 = arith.addf %429, %430 : vector<8x32xf32>
    %432 = tpu.reciprocal %428 {approx = true} : vector<8x32xf32> -> vector<8x32xf32>
    %433 = arith.mulf %431, %432 : vector<8x32xf32>
    %434 = arith.truncf %433 : vector<8x32xf32> to vector<8x32xbf16>
    %c0_98 = arith.constant 0 : index
    %c0_99 = arith.constant 0 : index
    %435 = vector.load %arg12[%c0_98, %c0_99] : memref<32x64xbf16, #tpu.memory_space<vmem>>, vector<32x64xbf16>
    %cst_100 = arith.constant dense<0.000000e+00> : vector<8x64xf32>
    %436 = tpu.matmul %434, %435, %cst_100 {dimension_numbers = #tpu.dot_dimension_numbers<[1], [0], [0], [1], [0, 0, 1, 1], [], []>} : vector<8x32xbf16>, vector<32x64xbf16>, vector<8x64xf32> -> vector<8x64xf32>
    %c0_101 = arith.constant 0 : index
    %c0_102 = arith.constant 0 : index
    %437 = vector.load %arg13[%c0_101, %c0_102] : memref<1x64xf32, #tpu.memory_space<vmem>>, vector<1x64xf32>
    %438 = vector.broadcast %437 : vector<1x64xf32> to vector<8x64xf32>
    %439 = arith.addf %436, %438 : vector<8x64xf32>
    %c0_103 = arith.constant 0 : index
    %c0_104 = arith.constant 0 : index
    %440 = vector.load %arg14[%c0_103, %c0_104] : memref<8x64xf32, #tpu.memory_space<vmem>>, vector<8x64xf32>
    %441 = arith.addf %439, %440 : vector<8x64xf32>
    %c0_105 = arith.constant 0 : index
    %c0_106 = arith.constant 0 : index
    %442 = vector.load %arg15[%c0_105, %c0_106] : memref<8x64xf32, #tpu.memory_space<vmem>>, vector<8x64xf32>
    tpu.vector_store %arg15[%c0_105, %c0_106], %441 {strides = array<i32>} : memref<8x64xf32, #tpu.memory_space<vmem>>, vector<8x64xf32>,
    return
  }
  func.func @transform_0(%arg0: i32) -> (i32, i32) {
    %c0_i32 = arith.constant 0 : i32
    %c0_i32_0 = arith.constant 0 : i32
    return %arg0, %c0_i32 : i32, i32
  }
  func.func @transform_1(%arg0: i32) -> (i32, i32, i32) {
    %c0_i32 = arith.constant 0 : i32
    %c0_i32_0 = arith.constant 0 : i32
    %c0_i32_1 = arith.constant 0 : i32
    return %c0_i32, %arg0, %c0_i32_0 : i32, i32, i32
  }
  func.func @transform_2(%arg0: i32) -> (i32, i32, i32) {
    %c0_i32 = arith.constant 0 : i32
    %c0_i32_0 = arith.constant 0 : i32
    %c0_i32_1 = arith.constant 0 : i32
    return %c0_i32, %arg0, %c0_i32_0 : i32, i32, i32
  }
  func.func @transform_3(%arg0: i32) -> (i32, i32) {
    %c0_i32 = arith.constant 0 : i32
    %c0_i32_0 = arith.constant 0 : i32
    %c0_i32_1 = arith.constant 0 : i32
    return %c0_i32, %c0_i32_0 : i32, i32
  }
  func.func @transform_4(%arg0: i32) -> (i32, i32) {
    %c0_i32 = arith.constant 0 : i32
    %c0_i32_0 = arith.constant 0 : i32
    %c0_i32_1 = arith.constant 0 : i32
    return %c0_i32, %c0_i32_0 : i32, i32
  }
  func.func @transform_5(%arg0: i32) -> (i32, i32) {
    %c0_i32 = arith.constant 0 : i32
    %c0_i32_0 = arith.constant 0 : i32
    %c0_i32_1 = arith.constant 0 : i32
    return %c0_i32, %c0_i32_0 : i32, i32
  }
  func.func @transform_6(%arg0: i32) -> (i32, i32) {
    %c0_i32 = arith.constant 0 : i32
    %c0_i32_0 = arith.constant 0 : i32
    %c0_i32_1 = arith.constant 0 : i32
    return %c0_i32, %c0_i32_0 : i32, i32
  }
  func.func @transform_7(%arg0: i32) -> (i32, i32) {
    %c0_i32 = arith.constant 0 : i32
    %c0_i32_0 = arith.constant 0 : i32
    %c0_i32_1 = arith.constant 0 : i32
    return %c0_i32, %c0_i32_0 : i32, i32
  }
  func.func @transform_8(%arg0: i32) -> (i32, i32) {
    %c0_i32 = arith.constant 0 : i32
    %c0_i32_0 = arith.constant 0 : i32
    %c0_i32_1 = arith.constant 0 : i32
    return %c0_i32, %c0_i32_0 : i32, i32
  }
  func.func @transform_9(%arg0: i32) -> (i32, i32) {
    %c0_i32 = arith.constant 0 : i32
    %c0_i32_0 = arith.constant 0 : i32
    %c0_i32_1 = arith.constant 0 : i32
    return %c0_i32, %c0_i32_0 : i32, i32
  }
  func.func @transform_10(%arg0: i32) -> (i32, i32) {
    %c0_i32 = arith.constant 0 : i32
    %c0_i32_0 = arith.constant 0 : i32
    %c0_i32_1 = arith.constant 0 : i32
    return %c0_i32, %c0_i32_0 : i32, i32
  }
  func.func @transform_11(%arg0: i32) -> (i32, i32) {
    %c0_i32 = arith.constant 0 : i32
    %c0_i32_0 = arith.constant 0 : i32
    %c0_i32_1 = arith.constant 0 : i32
    return %c0_i32, %c0_i32_0 : i32, i32
  }
  func.func @transform_12(%arg0: i32) -> (i32, i32) {
    %c0_i32 = arith.constant 0 : i32
    %c0_i32_0 = arith.constant 0 : i32
    %c0_i32_1 = arith.constant 0 : i32
    return %c0_i32, %c0_i32_0 : i32, i32
  }
  func.func @transform_13(%arg0: i32) -> (i32, i32) {
    %c0_i32 = arith.constant 0 : i32
    %c0_i32_0 = arith.constant 0 : i32
    return %arg0, %c0_i32 : i32, i32
  }
  func.func @transform_14(%arg0: i32) -> (i32, i32) {
    %c0_i32 = arith.constant 0 : i32
    %c0_i32_0 = arith.constant 0 : i32
    return %arg0, %c0_i32 : i32, i32
  }
}

</mosaic_0001>

<llo_original>
// kernel: _lambda_.7
$region0: #{_lambda_.7}
  #allocation0 [shape = 'u32[]', space=smem, size = 0x4, offset = 0x4, fixed_abs, tag = 'smem constant byte address 0x4 - core index']
  #allocation1 [shape = 'u32[144,128]{1,0:T(1,128)}', space=vmem, size = 0x12000, scoped, tag = 'internal scratch']
  %s0 = inlined_call_operand.vmem [shape: f32[64,32], index: 0, kind: input, shape index: {}]
  %s1 = inlined_call_operand.vmem [shape: bf16[32,32], index: 1, kind: input, shape index: {}]
  %s2 = inlined_call_operand.vmem [shape: f32[1,32], index: 2, kind: input, shape index: {}]
  %s3 = inlined_call_operand.vmem [shape: bf16[32,128], index: 3, kind: input, shape index: {}]
  %s4 = inlined_call_operand.vmem [shape: f32[1,128], index: 4, kind: input, shape index: {}]
  %s5 = inlined_call_operand.vmem [shape: f32[64,128], index: 5, kind: output, shape index: {}]
  %s6 = sld [smem:[#allocation0]]
  $region53: #{_lambda_.7} parent=0
    _
  %s8 = ssub.s32 1, %s6
  %s9 = scalar_select 0, %s8, %s6
  loop: start=0, step=1, limit=4
  $region2: #{_lambda_.7} parent=0 // loop_pre_header
    _
  $region3: #{_lambda_.7} parent=0 // loop_header
    %s11 = sphi 0, %s15
    %p12 = scmp.ge.s32.totalorder %s11, 4
    %s21 = sphi 0, %s23
    %s24 = sphi 0, %s21
    %s25 = sphi 0, %s24
    %s41 = sphi 0, %s25
    %s45 = sphi 0, %s45
    %s47 = sphi 0, %s45
    %s48 = sphi 0, %s47
    %s62 = sphi 0, %s48
    %s66 = sphi 0, %s66
    %s68 = sphi 0, %s66
    %s69 = sphi 0, %s68
    %s83 = sphi 0, %s69
    %s87 = sphi 0, %s87
    %s89 = sphi 0, %s87
    %s90 = sphi 0, %s89
    %s104 = sphi 0, %s90
    %s108 = sphi 0, %s108
    %s110 = sphi 0, %s108
    %s111 = sphi 0, %s110
    %s125 = sphi 0, %s111
    %s131 = sphi 0, %s133
    %s134 = sphi 0, %s131
    %s135 = sphi 0, %s134
    %s151 = sphi 0, %s135
  $region4: #{_lambda_.7} parent=0 // loop_header_branch
    %14 = sbr.rel (%p12) target = $region8
  $region5: #{_lambda_.7} parent=0 // loop_body
    %s16 = ssub.s32 %s11, 1
    %s17 = ssub.s32 %s11, 2
    %s18 = sadd.s32 %s11, 1
    %s19 = ssub.s32 %s11, %s18
    %p20 = scmp.eq.s32.totalorder %s19, 0
    %s22 = sadd.s32 %s21, 1
    %s23 = scalar_select %p20, %s21, %s22
    %p26 = pneg %p20
    %p27 = scmp.eq.s32.totalorder %s11, 1
    %p28 = por %p26, %p27
    %p29 = scmp.ne.s32.totalorder %s21, %s24
    %p30 = scmp.eq.s32.totalorder %s11, 0
    %p31 = por %p29, %p30
    %p32 = scmp.ne.s32.totalorder %s21, %s24
    %p33 = scmp.eq.s32.totalorder %s16, 1
    %p34 = por %p32, %p33
    %p35 = scmp.ne.s32.totalorder %s24, %s25
    %p36 = scmp.eq.s32.totalorder %s16, 0
    %p37 = por %p35, %p36
    %p38 = scmp.ne.s32.totalorder %s24, %s25
    %p39 = scmp.eq.s32.totalorder %s17, 1
    %p40 = por %p38, %p39
    %p42 = scmp.ne.s32.totalorder %s25, %s41
    %p43 = scmp.eq.s32.totalorder %s17, 0
    %p44 = por %p42, %p43
    %s46 = sadd.s32 %s45, 1
    %p49 = scmp.eq.s32.totalorder %s11, 1
    %p50 = scmp.ne.s32.totalorder %s45, %s47
    %p51 = scmp.eq.s32.totalorder %s11, 0
    %p52 = por %p50, %p51
    %p53 = scmp.ne.s32.totalorder %s45, %s47
    %p54 = scmp.eq.s32.totalorder %s16, 1
    %p55 = por %p53, %p54
    %p56 = scmp.ne.s32.totalorder %s47, %s48
    %p57 = scmp.eq.s32.totalorder %s16, 0
    %p58 = por %p56, %p57
    %p59 = scmp.ne.s32.totalorder %s47, %s48
    %p60 = scmp.eq.s32.totalorder %s17, 1
    %p61 = por %p59, %p60
    %p63 = scmp.ne.s32.totalorder %s48, %s62
    %p64 = scmp.eq.s32.totalorder %s17, 0
    %p65 = por %p63, %p64
    %s67 = sadd.s32 %s66, 1
    %p70 = scmp.eq.s32.totalorder %s11, 1
    %p71 = scmp.ne.s32.totalorder %s66, %s68
    %p72 = scmp.eq.s32.totalorder %s11, 0
    %p73 = por %p71, %p72
    %p74 = scmp.ne.s32.totalorder %s66, %s68
    %p75 = scmp.eq.s32.totalorder %s16, 1
    %p76 = por %p74, %p75
    %p77 = scmp.ne.s32.totalorder %s68, %s69
    %p78 = scmp.eq.s32.totalorder %s16, 0
    %p79 = por %p77, %p78
    %p80 = scmp.ne.s32.totalorder %s68, %s69
    %p81 = scmp.eq.s32.totalorder %s17, 1
    %p82 = por %p80, %p81
    %p84 = scmp.ne.s32.totalorder %s69, %s83
    %p85 = scmp.eq.s32.totalorder %s17, 0
    %p86 = por %p84, %p85
    %s88 = sadd.s32 %s87, 1
    %p91 = scmp.eq.s32.totalorder %s11, 1
    %p92 = scmp.ne.s32.totalorder %s87, %s89
    %p93 = scmp.eq.s32.totalorder %s11, 0
    %p94 = por %p92, %p93
    %p95 = scmp.ne.s32.totalorder %s87, %s89
    %p96 = scmp.eq.s32.totalorder %s16, 1
    %p97 = por %p95, %p96
    %p98 = scmp.ne.s32.totalorder %s89, %s90
    %p99 = scmp.eq.s32.totalorder %s16, 0
    %p100 = por %p98, %p99
    %p101 = scmp.ne.s32.totalorder %s89, %s90
    %p102 = scmp.eq.s32.totalorder %s17, 1
    %p103 = por %p101, %p102
    %p105 = scmp.ne.s32.totalorder %s90, %s104
    %p106 = scmp.eq.s32.totalorder %s17, 0
    %p107 = por %p105, %p106
    %s109 = sadd.s32 %s108, 1
    %p112 = scmp.eq.s32.totalorder %s11, 1
    %p113 = scmp.ne.s32.totalorder %s108, %s110
    %p114 = scmp.eq.s32.totalorder %s11, 0
    %p115 = por %p113, %p114
    %p116 = scmp.ne.s32.totalorder %s108, %s110
    %p117 = scmp.eq.s32.totalorder %s16, 1
    %p118 = por %p116, %p117
    %p119 = scmp.ne.s32.totalorder %s110, %s111
    %p120 = scmp.eq.s32.totalorder %s16, 0
    %p121 = por %p119, %p120
    %p122 = scmp.ne.s32.totalorder %s110, %s111
    %p123 = scmp.eq.s32.totalorder %s17, 1
    %p124 = por %p122, %p123
    %p126 = scmp.ne.s32.totalorder %s111, %s125
    %p127 = scmp.eq.s32.totalorder %s17, 0
    %p128 = por %p126, %p127
    %s129 = ssub.s32 %s11, %s18
    %p130 = scmp.eq.s32.totalorder %s129, 0
    %s132 = sadd.s32 %s131, 1
    %s133 = scalar_select %p130, %s131, %s132
    %p136 = pneg %p130
    %p137 = scmp.eq.s32.totalorder %s11, 1
    %p138 = por %p136, %p137
    %p139 = scmp.ne.s32.totalorder %s131, %s134
    %p140 = scmp.eq.s32.totalorder %s11, 0
    %p141 = por %p139, %p140
    %p142 = scmp.ne.s32.totalorder %s131, %s134
    %p143 = scmp.eq.s32.totalorder %s16, 1
    %p144 = por %p142, %p143
    %p145 = scmp.ne.s32.totalorder %s134, %s135
    %p146 = scmp.eq.s32.totalorder %s16, 0
    %p147 = por %p145, %p146
    %p148 = scmp.ne.s32.totalorder %s134, %s135
    %p149 = scmp.eq.s32.totalorder %s17, 1
    %p150 = por %p148, %p149
    %p152 = scmp.ne.s32.totalorder %s135, %s151
    %p153 = scmp.eq.s32.totalorder %s17, 0
    %p154 = por %p152, %p153
    %p155 = scmp.le.s32.totalorder 1, %s11
    %p156 = scmp.lt.s32.totalorder %s11, 3
    %p157 = pnand %p155, %p156
    %p158 = pneg %p157
    // Predicated region
    $region9: #{_lambda_.7} parent=5 // pred_check
      _
    $region10: #{_lambda_.7} parent=5 // pred_check_branch
      %160 = sbr.rel (%p157) target = $region12
    $region11: #{_lambda_.7} parent=5 // pred_region
      %s161 = ssub.s32 %s11, 1
      // Predicated region
      $region13: #{_lambda_.7} parent=11 // pred_check
        %p162 = pneg %p58
      $region14: #{_lambda_.7} parent=11 // pred_check_branch
        %164 = sbr.rel (%p162) target = $region16
      $region15: #{_lambda_.7} parent=11 // pred_region
        _
      $region16: #{_lambda_.7} parent=11 // pred_fallthru
        _
      // Predicated region
      $region17: #{_lambda_.7} parent=11 // pred_check
        %p165 = pneg %p79
      $region18: #{_lambda_.7} parent=11 // pred_check_branch
        %167 = sbr.rel (%p165) target = $region20
      $region19: #{_lambda_.7} parent=11 // pred_region
        _
      $region20: #{_lambda_.7} parent=11 // pred_fallthru
        _
      // Predicated region
      $region21: #{_lambda_.7} parent=11 // pred_check
        %p168 = pneg %p100
      $region22: #{_lambda_.7} parent=11 // pred_check_branch
        %170 = sbr.rel (%p168) target = $region24
      $region23: #{_lambda_.7} parent=11 // pred_region
        _
      $region24: #{_lambda_.7} parent=11 // pred_fallthru
        _
      // Predicated region
      $region25: #{_lambda_.7} parent=11 // pred_check
        %p171 = pneg %p121
      $region26: #{_lambda_.7} parent=11 // pred_check_branch
        %173 = sbr.rel (%p171) target = $region28
      $region27: #{_lambda_.7} parent=11 // pred_region
        _
      $region28: #{_lambda_.7} parent=11 // pred_fallthru
        _
    $region12: #{_lambda_.7} parent=5 // pred_fallthru
      _
    %p174 = scmp.lt.s32.totalorder %s11, 2
    // Predicated region
    $region29: #{_lambda_.7} parent=5 // pred_check
      %p175 = pneg %p174
    $region30: #{_lambda_.7} parent=5 // pred_check_branch
      %177 = sbr.rel (%p175) target = $region32
    $region31: #{_lambda_.7} parent=5 // pred_region
      // Predicated region
      $region33: #{_lambda_.7} parent=31 // pred_check
        %p178 = pneg %p31
      $region34: #{_lambda_.7} parent=31 // pred_check_branch
        %180 = sbr.rel (%p178) target = $region36
      $region35: #{_lambda_.7} parent=31 // pred_region
        %s181 = smul.u32 4, %s11
        %p182 = scmp.lt.s32.totalorder %s181, 7
        %s183 = scalar_select %p182, %s181, 7
        %s184 = smul.addr %s183, 8
        %s185 = scalar_lea.vmem %s0, %s184
        %s186 = smul.u32 4, %s11
      $region36: #{_lambda_.7} parent=31 // pred_fallthru
        _
    $region32: #{_lambda_.7} parent=5 // pred_fallthru
      _
    %p187 = scmp.le.s32.totalorder 1, %s11
    %p188 = scmp.lt.s32.totalorder %s11, 3
    %p189 = pnand %p187, %p188
    %p190 = pneg %p189
    // Predicated region
    $region37: #{_lambda_.7} parent=5 // pred_check
      _
    $region38: #{_lambda_.7} parent=5 // pred_check_branch
      %192 = sbr.rel (%p189) target = $region40
    $region39: #{_lambda_.7} parent=5 // pred_region
      %s193 = ssub.s32 %s11, 1
      %s194 = smul.u32 4, %s16
      %p195 = scmp.lt.s32.totalorder %s194, 7
      %s196 = scalar_select %p195, %s194, 7
      %s197 = smul.addr %s196, 8
      %s198 = scalar_lea.vmem %s0, %s197
      %p199 = pneg %p37
      %p200 = pneg %p34
      %p201 = pneg %p58
      %p202 = pneg %p55
      %p203 = pneg %p79
      %p204 = pneg %p76
      %p205 = pneg %p100
      %p206 = pneg %p97
      %p207 = pneg %p121
      %p208 = pneg %p118
      %p209 = pneg %p147
      %p210 = pneg %p144
      %s211 = smul.u32 4, %s16
      %p212 = scmp.lt.s32.totalorder %s211, 7
      %s213 = scalar_select %p212, %s211, 7
      %s214 = smul.addr %s213, 8
      %s215 = scalar_lea.vmem %s5, %s214
      %s216 = smul.u32 4, %s16
      %p217 = scmp.lt.s32.totalorder %s216, 7
      %s218 = scalar_select %p217, %s216, 7
      %s219 = smul.addr %s218, 8
      %s220 = scalar_lea.vmem %s0, %s219
      %s221 = smul.u32 4, %s16
      %s222 = smul.u32 4, %s16
      %p223 = scmp.lt.s32.totalorder %s222, 7
      %s224 = scalar_select %p223, %s222, 7
      %s225 = smul.addr %s224, 8
      %s226 = scalar_lea.vmem %s5, %s225
      %s227 = smul.u32 4, %s16
      %v229 = vld [vmem:[%s220] sm:$0xff]
      %v230 = vld [vmem:[%s220 + $0x8] sm:$0xff]
      %v231 = vld [vmem:[%s220 + $0x10] sm:$0xff]
      %v232 = vld [vmem:[%s220 + $0x18] sm:$0xff]
      %v233 = vpack.c.bf16 %v230, %v229
      %v234 = vpack.c.bf16 %v232, %v231
      %v235 = vld [vmem:[%s1] sm:$0xf]
      %v236 = vld [vmem:[%s1 + $0x4] sm:$0xf]
      %v237 = vld [vmem:[%s1 + $0x8] sm:$0xf]
      %v238 = vld [vmem:[%s1 + $0xc] sm:$0xf]
      %v239 = vld [vmem:[%s2] sm:$0x1]
      %v241 = vlaneseq
      %v242 = vshrl.u32 %v241, 7
      %v243 = vsub.s32 0, %v242
      %v244 = vrot.slane %v239, %v243
      %v250 = vunpack.c.l.b16 %v235
      %v251 = vunpack.c.l.b16 %v236
      %v252 = vunpack.c.l.b16 %v237
      %v253 = vunpack.c.l.b16 %v238
      %v254 = vpack.c.b16 %v251, %v250
      %v255 = vpack.c.b16 %v253, %v252
      %vm258 = vcmask 261120
      %v260 = vsel %vm258, %v233, 0
      %v263 = vsel %vm258, %v234, 0
      %265 = vmatprep.subr.bf16.mxu0 0
      %266 = vmatpush1.bf16.msra.mxu0 0
      %267 = vmatprep.subr.bf16.mxu0 0
      %268 = vmatpush1.bf16.msra.mxu0 0
      %269 = vmatprep.subr.bf16.mxu0 0
      %270 = vmatpush1.bf16.msra.mxu0 0
      %271 = vmatprep.subr.bf16.mxu0 0
      %272 = vmatpush1.bf16.msra.mxu0 0
      %273 = vmatprep.subr.bf16.mxu0 0
      %274 = vmatpush1.bf16.msra.mxu0 0
      %275 = vmatprep.subr.bf16.mxu0 0
      %276 = vmatpush1.bf16.msra.mxu0 0
      %277 = vmatprep.subr.bf16.mxu0 0
      %278 = vmatpush1.bf16.msra.mxu0 %v255
      %279 = vmatprep.subr.bf16.mxu0 0
      %280 = vmatpush1.bf16.msra.mxu0 %v254
      %281 = vmatprep.subr.bf16.mxu0 0
      %282 = vmatpush2.bf16.msra.mxu0 0
      %283 = vmatprep.subr.bf16.mxu0 0
      %284 = vmatpush2.bf16.msra.mxu0 0
      %285 = vmatprep.subr.bf16.mxu0 0
      %286 = vmatpush2.bf16.msra.mxu0 0
      %287 = vmatprep.subr.bf16.mxu0 0
      %288 = vmatpush2.bf16.msra.mxu0 0
      %289 = vmatprep.subr.bf16.mxu0 0
      %290 = vmatpush2.bf16.msra.mxu0 0
      %291 = vmatprep.subr.bf16.mxu0 0
      %292 = vmatpush2.bf16.msra.mxu0 0
      %293 = vmatprep.subr.bf16.mxu0 0
      %294 = vmatpush2.bf16.msra.mxu0 0
      %295 = vmatprep.subr.bf16.mxu0 0
      %296 = vmatpush2.bf16.msra.mxu0 0
      %297 = vmatprep.mubr.bf16.mxu0 0
      %298 = vmatmul.mubr.bf16.gmra.mxu0 %v260
      %v299 = vpop.f32.mrf.mxu0
      %v300 = vadd.f32 %v244, %v299
      %v301 = vpop.f32.mrf.mxu0
      %v302 = vpop.f32.mrf.mxu0
      %v303 = vadd.f32 %v244, %v302
      %v304 = vpop.f32.mrf.mxu0
      %305 = vmatprep.mubr.bf16.mxu0 0
      %306 = vmatmul.mubr.bf16.gmra.mxu0 %v263
      %v307 = vpop.f32.mrf.mxu0
      %v308 = vadd.f32 %v244, %v307
      %v309 = vpop.f32.mrf.mxu0
      %v310 = vpop.f32.mrf.mxu0
      %v311 = vadd.f32 %v244, %v310
      %v312 = vpop.f32.mrf.mxu0
      %313 = vdwg.mxu0
      %v314 = vpack.c.bf16 %v303, %v300
      %v315 = vpack.c.bf16 %v311, %v308
      %v316 = vld [vmem:[%s3] sm:$0xf]
      %v317 = vld [vmem:[%s3 + $0x4] sm:$0xf]
      %v318 = vld [vmem:[%s3 + $0x8] sm:$0xf]
      %v319 = vld [vmem:[%s3 + $0xc] sm:$0xf]
      %v320 = vld [vmem:[%s4] sm:$0x1]
      %v322 = vlaneseq
      %v323 = vshrl.u32 %v322, 7
      %v324 = vsub.s32 0, %v323
      %v325 = vrot.slane %v320, %v324
      %v331 = vunpack.c.l.b16 %v316
      %v332 = vunpack.c.l.b16 %v317
      %v333 = vunpack.c.l.b16 %v318
      %v334 = vunpack.c.l.b16 %v319
      %v335 = vpack.c.b16 %v332, %v331
      %v336 = vpack.c.b16 %v334, %v333
      %v340 = vsel %vm258, %v314, 0
      %v343 = vsel %vm258, %v315, 0
      %345 = vmatprep.subr.bf16.mxu0 0
      %346 = vmatpush1.bf16.msra.mxu0 0
      %347 = vmatprep.subr.bf16.mxu0 0
      %348 = vmatpush1.bf16.msra.mxu0 0
      %349 = vmatprep.subr.bf16.mxu0 0
      %350 = vmatpush1.bf16.msra.mxu0 0
      %351 = vmatprep.subr.bf16.mxu0 0
      %352 = vmatpush1.bf16.msra.mxu0 0
      %353 = vmatprep.subr.bf16.mxu0 0
      %354 = vmatpush1.bf16.msra.mxu0 0
      %355 = vmatprep.subr.bf16.mxu0 0
      %356 = vmatpush1.bf16.msra.mxu0 0
      %357 = vmatprep.subr.bf16.mxu0 0
      %358 = vmatpush1.bf16.msra.mxu0 %v336
      %359 = vmatprep.subr.bf16.mxu0 0
      %360 = vmatpush1.bf16.msra.mxu0 %v335
      %361 = vmatprep.subr.bf16.mxu0 0
      %362 = vmatpush2.bf16.msra.mxu0 0
      %363 = vmatprep.subr.bf16.mxu0 0
      %364 = vmatpush2.bf16.msra.mxu0 0
      %365 = vmatprep.subr.bf16.mxu0 0
      %366 = vmatpush2.bf16.msra.mxu0 0
      %367 = vmatprep.subr.bf16.mxu0 0
      %368 = vmatpush2.bf16.msra.mxu0 0
      %369 = vmatprep.subr.bf16.mxu0 0
      %370 = vmatpush2.bf16.msra.mxu0 0
      %371 = vmatprep.subr.bf16.mxu0 0
      %372 = vmatpush2.bf16.msra.mxu0 0
      %373 = vmatprep.subr.bf16.mxu0 0
      %374 = vmatpush2.bf16.msra.mxu0 0
      %375 = vmatprep.subr.bf16.mxu0 0
      %376 = vmatpush2.bf16.msra.mxu0 0
      %377 = vmatprep.mubr.bf16.mxu0 0
      %378 = vmatmul.mubr.bf16.gmra.mxu0 %v340
      %v379 = vpop.f32.mrf.mxu0
      %v380 = vadd.f32 %v325, %v379
      %v381 = vpop.f32.mrf.mxu0
      %v382 = vpop.f32.mrf.mxu0
      %v383 = vadd.f32 %v325, %v382
      %v384 = vpop.f32.mrf.mxu0
      %385 = vmatprep.mubr.bf16.mxu0 0
      %386 = vmatmul.mubr.bf16.gmra.mxu0 %v343
      %v387 = vpop.f32.mrf.mxu0
      %v388 = vadd.f32 %v325, %v387
      %v389 = vpop.f32.mrf.mxu0
      %v390 = vpop.f32.mrf.mxu0
      %v391 = vadd.f32 %v325, %v390
      %v392 = vpop.f32.mrf.mxu0
      %393 = vdwg.mxu0
      %394 = vst [vmem:[%s226] sm:$0xff] %v380
      %395 = vst [vmem:[%s226 + $0x8] sm:$0xff] %v383
      %396 = vst [vmem:[%s226 + $0x10] sm:$0xff] %v388
      %397 = vst [vmem:[%s226 + $0x18] sm:$0xff] %v391
      %s398 = smul.u32 4, %s16
      %p399 = scmp.lt.s32.totalorder %s398, 7
      %s400 = scalar_select %p399, %s398, 7
      %s401 = smul.addr %s400, 8
      %s402 = scalar_lea.vmem %s5, %s401
      // Predicated region
      $region41: #{_lambda_.7} parent=39 // pred_check
        %p403 = pneg %p144
      $region42: #{_lambda_.7} parent=39 // pred_check_branch
        %405 = sbr.rel (%p403) target = $region44
      $region43: #{_lambda_.7} parent=39 // pred_region
        %s406 = smul.u32 4, %s16
      $region44: #{_lambda_.7} parent=39 // pred_fallthru
        _
    $region40: #{_lambda_.7} parent=5 // pred_fallthru
      _
    %p407 = scmp.le.s32.totalorder 2, %s11
    // Predicated region
    $region45: #{_lambda_.7} parent=5 // pred_check
      %p408 = pneg %p407
    $region46: #{_lambda_.7} parent=5 // pred_check_branch
      %410 = sbr.rel (%p408) target = $region48
    $region47: #{_lambda_.7} parent=5 // pred_region
      %s411 = ssub.s32 %s11, 2
      // Predicated region
      $region49: #{_lambda_.7} parent=47 // pred_check
        %p412 = pneg %p150
      $region50: #{_lambda_.7} parent=47 // pred_check_branch
        %414 = sbr.rel (%p412) target = $region52
      $region51: #{_lambda_.7} parent=47 // pred_region
        %s415 = smul.u32 4, %s17
        %p416 = scmp.lt.s32.totalorder %s415, 7
        %s417 = scalar_select %p416, %s415, 7
        %s418 = smul.addr %s417, 8
        %s419 = scalar_lea.vmem %s5, %s418
      $region52: #{_lambda_.7} parent=47 // pred_fallthru
        _
    $region48: #{_lambda_.7} parent=5 // pred_fallthru
      _
  $region6: #{_lambda_.7} parent=0 // loop_footer
    %s15 = sadd.s32 1, %s11
  $region7: #{_lambda_.7} parent=0 // loop_footer_branch
    %10 = sbr.rel target = $region3
  $region8: #{_lambda_.7} parent=0 // loop_exit
    _

// kernel: _lambda_.6
$region0: #{_lambda_.6}
  #allocation0 [shape = 'u32[]', space=smem, size = 0x4, offset = 0x4, fixed_abs, tag = 'smem constant byte address 0x4 - core index']
  #allocation1 [shape = 'u32[144,128]{1,0:T(1,128)}', space=vmem, size = 0x12000, scoped, tag = 'internal scratch']
  %s0 = inlined_call_operand.vmem [shape: f32[64,6], index: 0, kind: input, shape index: {}]
  %s1 = inlined_call_operand.vmem [shape: bf16[6,32], index: 1, kind: input, shape index: {}]
  %s2 = inlined_call_operand.vmem [shape: f32[1,32], index: 2, kind: input, shape index: {}]
  %s3 = inlined_call_operand.vmem [shape: bf16[32,32], index: 3, kind: input, shape index: {}]
  %s4 = inlined_call_operand.vmem [shape: f32[1,32], index: 4, kind: input, shape index: {}]
  %s5 = inlined_call_operand.vmem [shape: f32[64,32], index: 5, kind: output, shape index: {}]
  %s6 = sld [smem:[#allocation0]]
  $region53: #{_lambda_.6} parent=0
    _
  %s8 = ssub.s32 1, %s6
  %s9 = scalar_select 0, %s8, %s6
  loop: start=0, step=1, limit=4
  $region2: #{_lambda_.6} parent=0 // loop_pre_header
    _
  $region3: #{_lambda_.6} parent=0 // loop_header
    %s11 = sphi 0, %s15
    %p12 = scmp.ge.s32.totalorder %s11, 4
    %s21 = sphi 0, %s23
    %s24 = sphi 0, %s21
    %s25 = sphi 0, %s24
    %s41 = sphi 0, %s25
    %s45 = sphi 0, %s45
    %s47 = sphi 0, %s45
    %s48 = sphi 0, %s47
    %s62 = sphi 0, %s48
    %s66 = sphi 0, %s66
    %s68 = sphi 0, %s66
    %s69 = sphi 0, %s68
    %s83 = sphi 0, %s69
    %s87 = sphi 0, %s87
    %s89 = sphi 0, %s87
    %s90 = sphi 0, %s89
    %s104 = sphi 0, %s90
    %s108 = sphi 0, %s108
    %s110 = sphi 0, %s108
    %s111 = sphi 0, %s110
    %s125 = sphi 0, %s111
    %s131 = sphi 0, %s133
    %s134 = sphi 0, %s131
    %s135 = sphi 0, %s134
    %s151 = sphi 0, %s135
  $region4: #{_lambda_.6} parent=0 // loop_header_branch
    %14 = sbr.rel (%p12) target = $region8
  $region5: #{_lambda_.6} parent=0 // loop_body
    %s16 = ssub.s32 %s11, 1
    %s17 = ssub.s32 %s11, 2
    %s18 = sadd.s32 %s11, 1
    %s19 = ssub.s32 %s11, %s18
    %p20 = scmp.eq.s32.totalorder %s19, 0
    %s22 = sadd.s32 %s21, 1
    %s23 = scalar_select %p20, %s21, %s22
    %p26 = pneg %p20
    %p27 = scmp.eq.s32.totalorder %s11, 1
    %p28 = por %p26, %p27
    %p29 = scmp.ne.s32.totalorder %s21, %s24
    %p30 = scmp.eq.s32.totalorder %s11, 0
    %p31 = por %p29, %p30
    %p32 = scmp.ne.s32.totalorder %s21, %s24
    %p33 = scmp.eq.s32.totalorder %s16, 1
    %p34 = por %p32, %p33
    %p35 = scmp.ne.s32.totalorder %s24, %s25
    %p36 = scmp.eq.s32.totalorder %s16, 0
    %p37 = por %p35, %p36
    %p38 = scmp.ne.s32.totalorder %s24, %s25
    %p39 = scmp.eq.s32.totalorder %s17, 1
    %p40 = por %p38, %p39
    %p42 = scmp.ne.s32.totalorder %s25, %s41
    %p43 = scmp.eq.s32.totalorder %s17, 0
    %p44 = por %p42, %p43
    %s46 = sadd.s32 %s45, 1
    %p49 = scmp.eq.s32.totalorder %s11, 1
    %p50 = scmp.ne.s32.totalorder %s45, %s47
    %p51 = scmp.eq.s32.totalorder %s11, 0
    %p52 = por %p50, %p51
    %p53 = scmp.ne.s32.totalorder %s45, %s47
    %p54 = scmp.eq.s32.totalorder %s16, 1
    %p55 = por %p53, %p54
    %p56 = scmp.ne.s32.totalorder %s47, %s48
    %p57 = scmp.eq.s32.totalorder %s16, 0
    %p58 = por %p56, %p57
    %p59 = scmp.ne.s32.totalorder %s47, %s48
    %p60 = scmp.eq.s32.totalorder %s17, 1
    %p61 = por %p59, %p60
    %p63 = scmp.ne.s32.totalorder %s48, %s62
    %p64 = scmp.eq.s32.totalorder %s17, 0
    %p65 = por %p63, %p64
    %s67 = sadd.s32 %s66, 1
    %p70 = scmp.eq.s32.totalorder %s11, 1
    %p71 = scmp.ne.s32.totalorder %s66, %s68
    %p72 = scmp.eq.s32.totalorder %s11, 0
    %p73 = por %p71, %p72
    %p74 = scmp.ne.s32.totalorder %s66, %s68
    %p75 = scmp.eq.s32.totalorder %s16, 1
    %p76 = por %p74, %p75
    %p77 = scmp.ne.s32.totalorder %s68, %s69
    %p78 = scmp.eq.s32.totalorder %s16, 0
    %p79 = por %p77, %p78
    %p80 = scmp.ne.s32.totalorder %s68, %s69
    %p81 = scmp.eq.s32.totalorder %s17, 1
    %p82 = por %p80, %p81
    %p84 = scmp.ne.s32.totalorder %s69, %s83
    %p85 = scmp.eq.s32.totalorder %s17, 0
    %p86 = por %p84, %p85
    %s88 = sadd.s32 %s87, 1
    %p91 = scmp.eq.s32.totalorder %s11, 1
    %p92 = scmp.ne.s32.totalorder %s87, %s89
    %p93 = scmp.eq.s32.totalorder %s11, 0
    %p94 = por %p92, %p93
    %p95 = scmp.ne.s32.totalorder %s87, %s89
    %p96 = scmp.eq.s32.totalorder %s16, 1
    %p97 = por %p95, %p96
    %p98 = scmp.ne.s32.totalorder %s89, %s90
    %p99 = scmp.eq.s32.totalorder %s16, 0
    %p100 = por %p98, %p99
    %p101 = scmp.ne.s32.totalorder %s89, %s90
    %p102 = scmp.eq.s32.totalorder %s17, 1
    %p103 = por %p101, %p102
    %p105 = scmp.ne.s32.totalorder %s90, %s104
    %p106 = scmp.eq.s32.totalorder %s17, 0
    %p107 = por %p105, %p106
    %s109 = sadd.s32 %s108, 1
    %p112 = scmp.eq.s32.totalorder %s11, 1
    %p113 = scmp.ne.s32.totalorder %s108, %s110
    %p114 = scmp.eq.s32.totalorder %s11, 0
    %p115 = por %p113, %p114
    %p116 = scmp.ne.s32.totalorder %s108, %s110
    %p117 = scmp.eq.s32.totalorder %s16, 1
    %p118 = por %p116, %p117
    %p119 = scmp.ne.s32.totalorder %s110, %s111
    %p120 = scmp.eq.s32.totalorder %s16, 0
    %p121 = por %p119, %p120
    %p122 = scmp.ne.s32.totalorder %s110, %s111
    %p123 = scmp.eq.s32.totalorder %s17, 1
    %p124 = por %p122, %p123
    %p126 = scmp.ne.s32.totalorder %s111, %s125
    %p127 = scmp.eq.s32.totalorder %s17, 0
    %p128 = por %p126, %p127
    %s129 = ssub.s32 %s11, %s18
    %p130 = scmp.eq.s32.totalorder %s129, 0
    %s132 = sadd.s32 %s131, 1
    %s133 = scalar_select %p130, %s131, %s132
    %p136 = pneg %p130
    %p137 = scmp.eq.s32.totalorder %s11, 1
    %p138 = por %p136, %p137
    %p139 = scmp.ne.s32.totalorder %s131, %s134
    %p140 = scmp.eq.s32.totalorder %s11, 0
    %p141 = por %p139, %p140
    %p142 = scmp.ne.s32.totalorder %s131, %s134
    %p143 = scmp.eq.s32.totalorder %s16, 1
    %p144 = por %p142, %p143
    %p145 = scmp.ne.s32.totalorder %s134, %s135
    %p146 = scmp.eq.s32.totalorder %s16, 0
    %p147 = por %p145, %p146
    %p148 = scmp.ne.s32.totalorder %s134, %s135
    %p149 = scmp.eq.s32.totalorder %s17, 1
    %p150 = por %p148, %p149
    %p152 = scmp.ne.s32.totalorder %s135, %s151
    %p153 = scmp.eq.s32.totalorder %s17, 0
    %p154 = por %p152, %p153
    %p155 = scmp.le.s32.totalorder 1, %s11
    %p156 = scmp.lt.s32.totalorder %s11, 3
    %p157 = pnand %p155, %p156
    %p158 = pneg %p157
    // Predicated region
    $region9: #{_lambda_.6} parent=5 // pred_check
      _
    $region10: #{_lambda_.6} parent=5 // pred_check_branch
      %160 = sbr.rel (%p157) target = $region12
    $region11: #{_lambda_.6} parent=5 // pred_region
      %s161 = ssub.s32 %s11, 1
      // Predicated region
      $region13: #{_lambda_.6} parent=11 // pred_check
        %p162 = pneg %p58
      $region14: #{_lambda_.6} parent=11 // pred_check_branch
        %164 = sbr.rel (%p162) target = $region16
      $region15: #{_lambda_.6} parent=11 // pred_region
        _
      $region16: #{_lambda_.6} parent=11 // pred_fallthru
        _
      // Predicated region
      $region17: #{_lambda_.6} parent=11 // pred_check
        %p165 = pneg %p79
      $region18: #{_lambda_.6} parent=11 // pred_check_branch
        %167 = sbr.rel (%p165) target = $region20
      $region19: #{_lambda_.6} parent=11 // pred_region
        _
      $region20: #{_lambda_.6} parent=11 // pred_fallthru
        _
      // Predicated region
      $region21: #{_lambda_.6} parent=11 // pred_check
        %p168 = pneg %p100
      $region22: #{_lambda_.6} parent=11 // pred_check_branch
        %170 = sbr.rel (%p168) target = $region24
      $region23: #{_lambda_.6} parent=11 // pred_region
        _
      $region24: #{_lambda_.6} parent=11 // pred_fallthru
        _
      // Predicated region
      $region25: #{_lambda_.6} parent=11 // pred_check
        %p171 = pneg %p121
      $region26: #{_lambda_.6} parent=11 // pred_check_branch
        %173 = sbr.rel (%p171) target = $region28
      $region27: #{_lambda_.6} parent=11 // pred_region
        _
      $region28: #{_lambda_.6} parent=11 // pred_fallthru
        _
    $region12: #{_lambda_.6} parent=5 // pred_fallthru
      _
    %p174 = scmp.lt.s32.totalorder %s11, 2
    // Predicated region
    $region29: #{_lambda_.6} parent=5 // pred_check
      %p175 = pneg %p174
    $region30: #{_lambda_.6} parent=5 // pred_check_branch
      %177 = sbr.rel (%p175) target = $region32
    $region31: #{_lambda_.6} parent=5 // pred_region
      // Predicated region
      $region33: #{_lambda_.6} parent=31 // pred_check
        %p178 = pneg %p31
      $region34: #{_lambda_.6} parent=31 // pred_check_branch
        %180 = sbr.rel (%p178) target = $region36
      $region35: #{_lambda_.6} parent=31 // pred_region
        %s181 = smul.u32 4, %s11
        %p182 = scmp.lt.s32.totalorder %s181, 7
        %s183 = scalar_select %p182, %s181, 7
        %s184 = smul.addr %s183, 8
        %s185 = scalar_lea.vmem %s0, %s184
        %s186 = smul.u32 4, %s11
      $region36: #{_lambda_.6} parent=31 // pred_fallthru
        _
    $region32: #{_lambda_.6} parent=5 // pred_fallthru
      _
    %p187 = scmp.le.s32.totalorder 1, %s11
    %p188 = scmp.lt.s32.totalorder %s11, 3
    %p189 = pnand %p187, %p188
    %p190 = pneg %p189
    // Predicated region
    $region37: #{_lambda_.6} parent=5 // pred_check
      _
    $region38: #{_lambda_.6} parent=5 // pred_check_branch
      %192 = sbr.rel (%p189) target = $region40
    $region39: #{_lambda_.6} parent=5 // pred_region
      %s193 = ssub.s32 %s11, 1
      %s194 = smul.u32 4, %s16
      %p195 = scmp.lt.s32.totalorder %s194, 7
      %s196 = scalar_select %p195, %s194, 7
      %s197 = smul.addr %s196, 8
      %s198 = scalar_lea.vmem %s0, %s197
      %p199 = pneg %p37
      %p200 = pneg %p34
      %p201 = pneg %p58
      %p202 = pneg %p55
      %p203 = pneg %p79
      %p204 = pneg %p76
      %p205 = pneg %p100
      %p206 = pneg %p97
      %p207 = pneg %p121
      %p208 = pneg %p118
      %p209 = pneg %p147
      %p210 = pneg %p144
      %s211 = smul.u32 4, %s16
      %p212 = scmp.lt.s32.totalorder %s211, 7
      %s213 = scalar_select %p212, %s211, 7
      %s214 = smul.addr %s213, 8
      %s215 = scalar_lea.vmem %s5, %s214
      %s216 = smul.u32 4, %s16
      %p217 = scmp.lt.s32.totalorder %s216, 7
      %s218 = scalar_select %p217, %s216, 7
      %s219 = smul.addr %s218, 8
      %s220 = scalar_lea.vmem %s0, %s219
      %s221 = smul.u32 4, %s16
      %s222 = smul.u32 4, %s16
      %p223 = scmp.lt.s32.totalorder %s222, 7
      %s224 = scalar_select %p223, %s222, 7
      %s225 = smul.addr %s224, 8
      %s226 = scalar_lea.vmem %s5, %s225
      %s227 = smul.u32 4, %s16
      %v229 = vld [vmem:[%s220] sm:$0xff]
      %v230 = vld [vmem:[%s220 + $0x8] sm:$0xff]
      %v231 = vld [vmem:[%s220 + $0x10] sm:$0xff]
      %v232 = vld [vmem:[%s220 + $0x18] sm:$0xff]
      %v233 = vpack.c.bf16 %v230, %v229
      %v234 = vpack.c.bf16 %v232, %v231
      %v235 = vld [vmem:[%s1] sm:$0x7]
      %v236 = vld [vmem:[%s2] sm:$0x1]
      %v238 = vlaneseq
      %v239 = vshrl.u32 %v238, 7
      %v240 = vsub.s32 0, %v239
      %v241 = vrot.slane %v236, %v240
      %vm243 = vcmask 48128
      %v245 = vsel %vm243, %v233, 0
      %v248 = vsel %vm243, %v234, 0
      %vm250 = vcmask 1042432
      %v252 = vsel %vm250, %v235, 0
      %254 = vmatprep.subr.bf16.mxu0 0
      %255 = vmatpush1.bf16.msra.mxu0 0
      %256 = vmatprep.subr.bf16.mxu0 0
      %257 = vmatpush1.bf16.msra.mxu0 0
      %258 = vmatprep.subr.bf16.mxu0 0
      %259 = vmatpush1.bf16.msra.mxu0 0
      %260 = vmatprep.subr.bf16.mxu0 0
      %261 = vmatpush1.bf16.msra.mxu0 0
      %262 = vmatprep.subr.bf16.mxu0 0
      %263 = vmatpush1.bf16.msra.mxu0 0
      %264 = vmatprep.subr.bf16.mxu0 0
      %265 = vmatpush1.bf16.msra.mxu0 0
      %266 = vmatprep.subr.bf16.mxu0 0
      %267 = vmatpush1.bf16.msra.mxu0 0
      %268 = vmatprep.subr.bf16.mxu0 0
      %269 = vmatpush1.bf16.msra.mxu0 %v252
      %270 = vmatprep.subr.bf16.mxu0 0
      %271 = vmatpush2.bf16.msra.mxu0 0
      %272 = vmatprep.subr.bf16.mxu0 0
      %273 = vmatpush2.bf16.msra.mxu0 0
      %274 = vmatprep.subr.bf16.mxu0 0
      %275 = vmatpush2.bf16.msra.mxu0 0
      %276 = vmatprep.subr.bf16.mxu0 0
      %277 = vmatpush2.bf16.msra.mxu0 0
      %278 = vmatprep.subr.bf16.mxu0 0
      %279 = vmatpush2.bf16.msra.mxu0 0
      %280 = vmatprep.subr.bf16.mxu0 0
      %281 = vmatpush2.bf16.msra.mxu0 0
      %282 = vmatprep.subr.bf16.mxu0 0
      %283 = vmatpush2.bf16.msra.mxu0 0
      %284 = vmatprep.subr.bf16.mxu0 0
      %285 = vmatpush2.bf16.msra.mxu0 0
      %286 = vmatprep.mubr.bf16.mxu0 0
      %287 = vmatmul.mubr.bf16.gmra.mxu0 %v245
      %v288 = vpop.f32.mrf.mxu0
      %v289 = vadd.f32 %v241, %v288
      %v290 = vpop.f32.mrf.mxu0
      %v291 = vpop.f32.mrf.mxu0
      %v292 = vadd.f32 %v241, %v291
      %v293 = vpop.f32.mrf.mxu0
      %294 = vmatprep.mubr.bf16.mxu0 0
      %295 = vmatmul.mubr.bf16.gmra.mxu0 %v248
      %v296 = vpop.f32.mrf.mxu0
      %v297 = vadd.f32 %v241, %v296
      %v298 = vpop.f32.mrf.mxu0
      %v299 = vpop.f32.mrf.mxu0
      %v300 = vadd.f32 %v241, %v299
      %v301 = vpop.f32.mrf.mxu0
      %302 = vdwg.mxu0
      %v303 = vmax.f32 %v289, 0.0
      %v304 = vmax.f32 %v292, 0.0
      %v305 = vmax.f32 %v297, 0.0
      %v306 = vmax.f32 %v300, 0.0
      %v307 = vpack.c.bf16 %v304, %v303
      %v308 = vpack.c.bf16 %v306, %v305
      %v309 = vld [vmem:[%s3] sm:$0xf]
      %v310 = vld [vmem:[%s3 + $0x4] sm:$0xf]
      %v311 = vld [vmem:[%s3 + $0x8] sm:$0xf]
      %v312 = vld [vmem:[%s3 + $0xc] sm:$0xf]
      %v313 = vld [vmem:[%s4] sm:$0x1]
      %v315 = vlaneseq
      %v316 = vshrl.u32 %v315, 7
      %v317 = vsub.s32 0, %v316
      %v318 = vrot.slane %v313, %v317
      %v324 = vunpack.c.l.b16 %v309
      %v325 = vunpack.c.l.b16 %v310
      %v326 = vunpack.c.l.b16 %v311
      %v327 = vunpack.c.l.b16 %v312
      %v328 = vpack.c.b16 %v325, %v324
      %v329 = vpack.c.b16 %v327, %v326
      %vm332 = vcmask 261120
      %v334 = vsel %vm332, %v307, 0
      %v337 = vsel %vm332, %v308, 0
      %339 = vmatprep.subr.bf16.mxu0 0
      %340 = vmatpush1.bf16.msra.mxu0 0
      %341 = vmatprep.subr.bf16.mxu0 0
      %342 = vmatpush1.bf16.msra.mxu0 0
      %343 = vmatprep.subr.bf16.mxu0 0
      %344 = vmatpush1.bf16.msra.mxu0 0
      %345 = vmatprep.subr.bf16.mxu0 0
      %346 = vmatpush1.bf16.msra.mxu0 0
      %347 = vmatprep.subr.bf16.mxu0 0
      %348 = vmatpush1.bf16.msra.mxu0 0
      %349 = vmatprep.subr.bf16.mxu0 0
      %350 = vmatpush1.bf16.msra.mxu0 0
      %351 = vmatprep.subr.bf16.mxu0 0
      %352 = vmatpush1.bf16.msra.mxu0 %v329
      %353 = vmatprep.subr.bf16.mxu0 0
      %354 = vmatpush1.bf16.msra.mxu0 %v328
      %355 = vmatprep.subr.bf16.mxu0 0
      %356 = vmatpush2.bf16.msra.mxu0 0
      %357 = vmatprep.subr.bf16.mxu0 0
      %358 = vmatpush2.bf16.msra.mxu0 0
      %359 = vmatprep.subr.bf16.mxu0 0
      %360 = vmatpush2.bf16.msra.mxu0 0
      %361 = vmatprep.subr.bf16.mxu0 0
      %362 = vmatpush2.bf16.msra.mxu0 0
      %363 = vmatprep.subr.bf16.mxu0 0
      %364 = vmatpush2.bf16.msra.mxu0 0
      %365 = vmatprep.subr.bf16.mxu0 0
      %366 = vmatpush2.bf16.msra.mxu0 0
      %367 = vmatprep.subr.bf16.mxu0 0
      %368 = vmatpush2.bf16.msra.mxu0 0
      %369 = vmatprep.subr.bf16.mxu0 0
      %370 = vmatpush2.bf16.msra.mxu0 0
      %371 = vmatprep.mubr.bf16.mxu0 0
      %372 = vmatmul.mubr.bf16.gmra.mxu0 %v334
      %v373 = vpop.f32.mrf.mxu0
      %v374 = vadd.f32 %v318, %v373
      %v375 = vpop.f32.mrf.mxu0
      %v376 = vpop.f32.mrf.mxu0
      %v377 = vadd.f32 %v318, %v376
      %v378 = vpop.f32.mrf.mxu0
      %379 = vmatprep.mubr.bf16.mxu0 0
      %380 = vmatmul.mubr.bf16.gmra.mxu0 %v337
      %v381 = vpop.f32.mrf.mxu0
      %v382 = vadd.f32 %v318, %v381
      %v383 = vpop.f32.mrf.mxu0
      %v384 = vpop.f32.mrf.mxu0
      %v385 = vadd.f32 %v318, %v384
      %v386 = vpop.f32.mrf.mxu0
      %387 = vdwg.mxu0
      %388 = vst.msk [vmem:[%s226] sm:$0xff] %vm332, %v374
      %389 = vst.msk [vmem:[%s226 + $0x8] sm:$0xff] %vm332, %v377
      %390 = vst.msk [vmem:[%s226 + $0x10] sm:$0xff] %vm332, %v382
      %391 = vst.msk [vmem:[%s226 + $0x18] sm:$0xff] %vm332, %v385
      %s392 = smul.u32 4, %s16
      %p393 = scmp.lt.s32.totalorder %s392, 7
      %s394 = scalar_select %p393, %s392, 7
      %s395 = smul.addr %s394, 8
      %s396 = scalar_lea.vmem %s5, %s395
      // Predicated region
      $region41: #{_lambda_.6} parent=39 // pred_check
        %p397 = pneg %p144
      $region42: #{_lambda_.6} parent=39 // pred_check_branch
        %399 = sbr.rel (%p397) target = $region44
      $region43: #{_lambda_.6} parent=39 // pred_region
        %s400 = smul.u32 4, %s16
      $region44: #{_lambda_.6} parent=39 // pred_fallthru
        _
    $region40: #{_lambda_.6} parent=5 // pred_fallthru
      _
    %p401 = scmp.le.s32.totalorder 2, %s11
    // Predicated region
    $region45: #{_lambda_.6} parent=5 // pred_check
      %p402 = pneg %p401
    $region46: #{_lambda_.6} parent=5 // pred_check_branch
      %404 = sbr.rel (%p402) target = $region48
    $region47: #{_lambda_.6} parent=5 // pred_region
      %s405 = ssub.s32 %s11, 2
      // Predicated region
      $region49: #{_lambda_.6} parent=47 // pred_check
        %p406 = pneg %p150
      $region50: #{_lambda_.6} parent=47 // pred_check_branch
        %408 = sbr.rel (%p406) target = $region52
      $region51: #{_lambda_.6} parent=47 // pred_region
        %s409 = smul.u32 4, %s17
        %p410 = scmp.lt.s32.totalorder %s409, 7
        %s411 = scalar_select %p410, %s409, 7
        %s412 = smul.addr %s411, 8
        %s413 = scalar_lea.vmem %s5, %s412
      $region52: #{_lambda_.6} parent=47 // pred_fallthru
        _
    $region48: #{_lambda_.6} parent=5 // pred_fallthru
      _
  $region6: #{_lambda_.6} parent=0 // loop_footer
    %s15 = sadd.s32 1, %s11
  $region7: #{_lambda_.6} parent=0 // loop_footer_branch
    %10 = sbr.rel target = $region3
  $region8: #{_lambda_.6} parent=0 // loop_exit
    _

// kernel: custom-call.16
$region0: #{custom-call.16}
  %s0 = inlined_call_operand.vmem [shape: f32[2,32], index: 0, kind: output, shape index: {}]

// kernel: _lambda_.8
$region0: #{_lambda_.8}
  #allocation0 [shape = 'u32[]', space=smem, size = 0x4, offset = 0x4, fixed_abs, tag = 'smem constant byte address 0x4 - core index']
  #allocation1 [shape = 'u32[144,128]{1,0:T(1,128)}', space=vmem, size = 0x12000, scoped, tag = 'internal scratch']
  %s0 = inlined_call_operand.vmem [shape: f32[64,32], index: 0, kind: input, shape index: {}]
  %s1 = inlined_call_operand.vmem [shape: f32[8,64,64], index: 1, kind: input, shape index: {}]
  %s2 = inlined_call_operand.vmem [shape: f32[8,64,3], index: 2, kind: input, shape index: {}]
  %s3 = inlined_call_operand.vmem [shape: f32[3,32], index: 3, kind: input, shape index: {}]
  %s4 = inlined_call_operand.vmem [shape: f32[1,32], index: 4, kind: input, shape index: {}]
  %s5 = inlined_call_operand.vmem [shape: bf16[32,32], index: 5, kind: input, shape index: {}]
  %s6 = inlined_call_operand.vmem [shape: f32[1,32], index: 6, kind: input, shape index: {}]
  %s7 = inlined_call_operand.vmem [shape: bf16[32,32], index: 7, kind: input, shape index: {}]
  %s8 = inlined_call_operand.vmem [shape: f32[1,32], index: 8, kind: input, shape index: {}]
  %s9 = inlined_call_operand.vmem [shape: bf16[32,32], index: 9, kind: input, shape index: {}]
  %s10 = inlined_call_operand.vmem [shape: f32[1,32], index: 10, kind: input, shape index: {}]
  %s11 = inlined_call_operand.vmem [shape: bf16[32,32], index: 11, kind: input, shape index: {}]
  %s12 = inlined_call_operand.vmem [shape: f32[1,32], index: 12, kind: input, shape index: {}]
  %s13 = inlined_call_operand.vmem [shape: f32[64,32], index: 13, kind: input, shape index: {}]
  %s14 = inlined_call_operand.vmem [shape: f32[64,32], index: 14, kind: output, shape index: {}]
  %s15 = sld [smem:[#allocation0]]
  $region165: #{_lambda_.8} parent=0
    _
  %s17 = ssub.s32 1, %s15
  %s18 = scalar_select 0, %s17, %s15
  $region1: #{_lambda_.8} parent=0
    #allocation2 [shape = 'u8[262144]{0}', space=vmem, size = 0x40000, scoped, tag = 'input window, operand 1']
    #allocation3 [shape = 'u8[262144]{0}', space=vmem, size = 0x40000, scoped, tag = 'input window, operand 2']
    loop: start=0, step=1, limit=4
    $region2: #{_lambda_.8} parent=1 // loop_pre_header
      _
    $region3: #{_lambda_.8} parent=1 // loop_header
      %s20 = sphi 0, %s24
      %p21 = scmp.ge.s32.totalorder %s20, 4
      %s30 = sphi 0, %s32
      %s33 = sphi 0, %s30
      %s34 = sphi 0, %s33
      %s50 = sphi 0, %s34
      %s56 = sphi 0, %s58
      %s59 = sphi 0, %s56
      %s60 = sphi 0, %s59
      %s76 = sphi 0, %s60
      %s82 = sphi 0, %s84
      %s85 = sphi 0, %s82
      %s86 = sphi 0, %s85
      %s102 = sphi 0, %s86
      %s106 = sphi 0, %s106
      %s108 = sphi 0, %s106
      %s109 = sphi 0, %s108
      %s123 = sphi 0, %s109
      %s127 = sphi 0, %s127
      %s129 = sphi 0, %s127
      %s130 = sphi 0, %s129
      %s144 = sphi 0, %s130
      %s148 = sphi 0, %s148
      %s150 = sphi 0, %s148
      %s151 = sphi 0, %s150
      %s165 = sphi 0, %s151
      %s169 = sphi 0, %s169
      %s171 = sphi 0, %s169
      %s172 = sphi 0, %s171
      %s186 = sphi 0, %s172
      %s190 = sphi 0, %s190
      %s192 = sphi 0, %s190
      %s193 = sphi 0, %s192
      %s207 = sphi 0, %s193
      %s211 = sphi 0, %s211
      %s213 = sphi 0, %s211
      %s214 = sphi 0, %s213
      %s228 = sphi 0, %s214
      %s232 = sphi 0, %s232
      %s234 = sphi 0, %s232
      %s235 = sphi 0, %s234
      %s249 = sphi 0, %s235
      %s253 = sphi 0, %s253
      %s255 = sphi 0, %s253
      %s256 = sphi 0, %s255
      %s270 = sphi 0, %s256
      %s274 = sphi 0, %s274
      %s276 = sphi 0, %s274
      %s277 = sphi 0, %s276
      %s291 = sphi 0, %s277
      %s295 = sphi 0, %s295
      %s297 = sphi 0, %s295
      %s298 = sphi 0, %s297
      %s312 = sphi 0, %s298
      %s318 = sphi 0, %s320
      %s321 = sphi 0, %s318
      %s322 = sphi 0, %s321
      %s338 = sphi 0, %s322
      %s344 = sphi 0, %s346
      %s347 = sphi 0, %s344
      %s348 = sphi 0, %s347
      %s364 = sphi 0, %s348
    $region4: #{_lambda_.8} parent=1 // loop_header_branch
      %23 = sbr.rel (%p21) target = $region8
    $region5: #{_lambda_.8} parent=1 // loop_body
      %s25 = ssub.s32 %s20, 1
      %s26 = ssub.s32 %s20, 2
      %s27 = sadd.s32 %s20, 1
      %s28 = ssub.s32 %s20, %s27
      %p29 = scmp.eq.s32.totalorder %s28, 0
      %s31 = sadd.s32 %s30, 1
      %s32 = scalar_select %p29, %s30, %s31
      %p35 = pneg %p29
      %p36 = scmp.eq.s32.totalorder %s20, 1
      %p37 = por %p35, %p36
      %p38 = scmp.ne.s32.totalorder %s30, %s33
      %p39 = scmp.eq.s32.totalorder %s20, 0
      %p40 = por %p38, %p39
      %p41 = scmp.ne.s32.totalorder %s30, %s33
      %p42 = scmp.eq.s32.totalorder %s25, 1
      %p43 = por %p41, %p42
      %p44 = scmp.ne.s32.totalorder %s33, %s34
      %p45 = scmp.eq.s32.totalorder %s25, 0
      %p46 = por %p44, %p45
      %p47 = scmp.ne.s32.totalorder %s33, %s34
      %p48 = scmp.eq.s32.totalorder %s26, 1
      %p49 = por %p47, %p48
      %p51 = scmp.ne.s32.totalorder %s34, %s50
      %p52 = scmp.eq.s32.totalorder %s26, 0
      %p53 = por %p51, %p52
      %s54 = ssub.s32 %s20, %s27
      %p55 = scmp.eq.s32.totalorder %s54, 0
      %s57 = sadd.s32 %s56, 1
      %s58 = scalar_select %p55, %s56, %s57
      %p61 = pneg %p55
      %p62 = scmp.eq.s32.totalorder %s20, 1
      %p63 = por %p61, %p62
      %p64 = scmp.ne.s32.totalorder %s56, %s59
      %p65 = scmp.eq.s32.totalorder %s20, 0
      %p66 = por %p64, %p65
      %p67 = scmp.ne.s32.totalorder %s56, %s59
      %p68 = scmp.eq.s32.totalorder %s25, 1
      %p69 = por %p67, %p68
      %p70 = scmp.ne.s32.totalorder %s59, %s60
      %p71 = scmp.eq.s32.totalorder %s25, 0
      %p72 = por %p70, %p71
      %p73 = scmp.ne.s32.totalorder %s59, %s60
      %p74 = scmp.eq.s32.totalorder %s26, 1
      %p75 = por %p73, %p74
      %p77 = scmp.ne.s32.totalorder %s60, %s76
      %p78 = scmp.eq.s32.totalorder %s26, 0
      %p79 = por %p77, %p78
      %s80 = ssub.s32 %s20, %s27
      %p81 = scmp.eq.s32.totalorder %s80, 0
      %s83 = sadd.s32 %s82, 1
      %s84 = scalar_select %p81, %s82, %s83
      %p87 = pneg %p81
      %p88 = scmp.eq.s32.totalorder %s20, 1
      %p89 = por %p87, %p88
      %p90 = scmp.ne.s32.totalorder %s82, %s85
      %p91 = scmp.eq.s32.totalorder %s20, 0
      %p92 = por %p90, %p91
      %p93 = scmp.ne.s32.totalorder %s82, %s85
      %p94 = scmp.eq.s32.totalorder %s25, 1
      %p95 = por %p93, %p94
      %p96 = scmp.ne.s32.totalorder %s85, %s86
      %p97 = scmp.eq.s32.totalorder %s25, 0
      %p98 = por %p96, %p97
      %p99 = scmp.ne.s32.totalorder %s85, %s86
      %p100 = scmp.eq.s32.totalorder %s26, 1
      %p101 = por %p99, %p100
      %p103 = scmp.ne.s32.totalorder %s86, %s102
      %p104 = scmp.eq.s32.totalorder %s26, 0
      %p105 = por %p103, %p104
      %s107 = sadd.s32 %s106, 1
      %p110 = scmp.eq.s32.totalorder %s20, 1
      %p111 = scmp.ne.s32.totalorder %s106, %s108
      %p112 = scmp.eq.s32.totalorder %s20, 0
      %p113 = por %p111, %p112
      %p114 = scmp.ne.s32.totalorder %s106, %s108
      %p115 = scmp.eq.s32.totalorder %s25, 1
      %p116 = por %p114, %p115
      %p117 = scmp.ne.s32.totalorder %s108, %s109
      %p118 = scmp.eq.s32.totalorder %s25, 0
      %p119 = por %p117, %p118
      %p120 = scmp.ne.s32.totalorder %s108, %s109
      %p121 = scmp.eq.s32.totalorder %s26, 1
      %p122 = por %p120, %p121
      %p124 = scmp.ne.s32.totalorder %s109, %s123
      %p125 = scmp.eq.s32.totalorder %s26, 0
      %p126 = por %p124, %p125
      %s128 = sadd.s32 %s127, 1
      %p131 = scmp.eq.s32.totalorder %s20, 1
      %p132 = scmp.ne.s32.totalorder %s127, %s129
      %p133 = scmp.eq.s32.totalorder %s20, 0
      %p134 = por %p132, %p133
      %p135 = scmp.ne.s32.totalorder %s127, %s129
      %p136 = scmp.eq.s32.totalorder %s25, 1
      %p137 = por %p135, %p136
      %p138 = scmp.ne.s32.totalorder %s129, %s130
      %p139 = scmp.eq.s32.totalorder %s25, 0
      %p140 = por %p138, %p139
      %p141 = scmp.ne.s32.totalorder %s129, %s130
      %p142 = scmp.eq.s32.totalorder %s26, 1
      %p143 = por %p141, %p142
      %p145 = scmp.ne.s32.totalorder %s130, %s144
      %p146 = scmp.eq.s32.totalorder %s26, 0
      %p147 = por %p145, %p146
      %s149 = sadd.s32 %s148, 1
      %p152 = scmp.eq.s32.totalorder %s20, 1
      %p153 = scmp.ne.s32.totalorder %s148, %s150
      %p154 = scmp.eq.s32.totalorder %s20, 0
      %p155 = por %p153, %p154
      %p156 = scmp.ne.s32.totalorder %s148, %s150
      %p157 = scmp.eq.s32.totalorder %s25, 1
      %p158 = por %p156, %p157
      %p159 = scmp.ne.s32.totalorder %s150, %s151
      %p160 = scmp.eq.s32.totalorder %s25, 0
      %p161 = por %p159, %p160
      %p162 = scmp.ne.s32.totalorder %s150, %s151
      %p163 = scmp.eq.s32.totalorder %s26, 1
      %p164 = por %p162, %p163
      %p166 = scmp.ne.s32.totalorder %s151, %s165
      %p167 = scmp.eq.s32.totalorder %s26, 0
      %p168 = por %p166, %p167
      %s170 = sadd.s32 %s169, 1
      %p173 = scmp.eq.s32.totalorder %s20, 1
      %p174 = scmp.ne.s32.totalorder %s169, %s171
      %p175 = scmp.eq.s32.totalorder %s20, 0
      %p176 = por %p174, %p175
      %p177 = scmp.ne.s32.totalorder %s169, %s171
      %p178 = scmp.eq.s32.totalorder %s25, 1
      %p179 = por %p177, %p178
      %p180 = scmp.ne.s32.totalorder %s171, %s172
      %p181 = scmp.eq.s32.totalorder %s25, 0
      %p182 = por %p180, %p181
      %p183 = scmp.ne.s32.totalorder %s171, %s172
      %p184 = scmp.eq.s32.totalorder %s26, 1
      %p185 = por %p183, %p184
      %p187 = scmp.ne.s32.totalorder %s172, %s186
      %p188 = scmp.eq.s32.totalorder %s26, 0
      %p189 = por %p187, %p188
      %s191 = sadd.s32 %s190, 1
      %p194 = scmp.eq.s32.totalorder %s20, 1
      %p195 = scmp.ne.s32.totalorder %s190, %s192
      %p196 = scmp.eq.s32.totalorder %s20, 0
      %p197 = por %p195, %p196
      %p198 = scmp.ne.s32.totalorder %s190, %s192
      %p199 = scmp.eq.s32.totalorder %s25, 1
      %p200 = por %p198, %p199
      %p201 = scmp.ne.s32.totalorder %s192, %s193
      %p202 = scmp.eq.s32.totalorder %s25, 0
      %p203 = por %p201, %p202
      %p204 = scmp.ne.s32.totalorder %s192, %s193
      %p205 = scmp.eq.s32.totalorder %s26, 1
      %p206 = por %p204, %p205
      %p208 = scmp.ne.s32.totalorder %s193, %s207
      %p209 = scmp.eq.s32.totalorder %s26, 0
      %p210 = por %p208, %p209
      %s212 = sadd.s32 %s211, 1
      %p215 = scmp.eq.s32.totalorder %s20, 1
      %p216 = scmp.ne.s32.totalorder %s211, %s213
      %p217 = scmp.eq.s32.totalorder %s20, 0
      %p218 = por %p216, %p217
      %p219 = scmp.ne.s32.totalorder %s211, %s213
      %p220 = scmp.eq.s32.totalorder %s25, 1
      %p221 = por %p219, %p220
      %p222 = scmp.ne.s32.totalorder %s213, %s214
      %p223 = scmp.eq.s32.totalorder %s25, 0
      %p224 = por %p222, %p223
      %p225 = scmp.ne.s32.totalorder %s213, %s214
      %p226 = scmp.eq.s32.totalorder %s26, 1
      %p227 = por %p225, %p226
      %p229 = scmp.ne.s32.totalorder %s214, %s228
      %p230 = scmp.eq.s32.totalorder %s26, 0
      %p231 = por %p229, %p230
      %s233 = sadd.s32 %s232, 1
      %p236 = scmp.eq.s32.totalorder %s20, 1
      %p237 = scmp.ne.s32.totalorder %s232, %s234
      %p238 = scmp.eq.s32.totalorder %s20, 0
      %p239 = por %p237, %p238
      %p240 = scmp.ne.s32.totalorder %s232, %s234
      %p241 = scmp.eq.s32.totalorder %s25, 1
      %p242 = por %p240, %p241
      %p243 = scmp.ne.s32.totalorder %s234, %s235
      %p244 = scmp.eq.s32.totalorder %s25, 0
      %p245 = por %p243, %p244
      %p246 = scmp.ne.s32.totalorder %s234, %s235
      %p247 = scmp.eq.s32.totalorder %s26, 1
      %p248 = por %p246, %p247
      %p250 = scmp.ne.s32.totalorder %s235, %s249
      %p251 = scmp.eq.s32.totalorder %s26, 0
      %p252 = por %p250, %p251
      %s254 = sadd.s32 %s253, 1
      %p257 = scmp.eq.s32.totalorder %s20, 1
      %p258 = scmp.ne.s32.totalorder %s253, %s255
      %p259 = scmp.eq.s32.totalorder %s20, 0
      %p260 = por %p258, %p259
      %p261 = scmp.ne.s32.totalorder %s253, %s255
      %p262 = scmp.eq.s32.totalorder %s25, 1
      %p263 = por %p261, %p262
      %p264 = scmp.ne.s32.totalorder %s255, %s256
      %p265 = scmp.eq.s32.totalorder %s25, 0
      %p266 = por %p264, %p265
      %p267 = scmp.ne.s32.totalorder %s255, %s256
      %p268 = scmp.eq.s32.totalorder %s26, 1
      %p269 = por %p267, %p268
      %p271 = scmp.ne.s32.totalorder %s256, %s270
      %p272 = scmp.eq.s32.totalorder %s26, 0
      %p273 = por %p271, %p272
      %s275 = sadd.s32 %s274, 1
      %p278 = scmp.eq.s32.totalorder %s20, 1
      %p279 = scmp.ne.s32.totalorder %s274, %s276
      %p280 = scmp.eq.s32.totalorder %s20, 0
      %p281 = por %p279, %p280
      %p282 = scmp.ne.s32.totalorder %s274, %s276
      %p283 = scmp.eq.s32.totalorder %s25, 1
      %p284 = por %p282, %p283
      %p285 = scmp.ne.s32.totalorder %s276, %s277
      %p286 = scmp.eq.s32.totalorder %s25, 0
      %p287 = por %p285, %p286
      %p288 = scmp.ne.s32.totalorder %s276, %s277
      %p289 = scmp.eq.s32.totalorder %s26, 1
      %p290 = por %p288, %p289
      %p292 = scmp.ne.s32.totalorder %s277, %s291
      %p293 = scmp.eq.s32.totalorder %s26, 0
      %p294 = por %p292, %p293
      %s296 = sadd.s32 %s295, 1
      %p299 = scmp.eq.s32.totalorder %s20, 1
      %p300 = scmp.ne.s32.totalorder %s295, %s297
      %p301 = scmp.eq.s32.totalorder %s20, 0
      %p302 = por %p300, %p301
      %p303 = scmp.ne.s32.totalorder %s295, %s297
      %p304 = scmp.eq.s32.totalorder %s25, 1
      %p305 = por %p303, %p304
      %p306 = scmp.ne.s32.totalorder %s297, %s298
      %p307 = scmp.eq.s32.totalorder %s25, 0
      %p308 = por %p306, %p307
      %p309 = scmp.ne.s32.totalorder %s297, %s298
      %p310 = scmp.eq.s32.totalorder %s26, 1
      %p311 = por %p309, %p310
      %p313 = scmp.ne.s32.totalorder %s298, %s312
      %p314 = scmp.eq.s32.totalorder %s26, 0
      %p315 = por %p313, %p314
      %s316 = ssub.s32 %s20, %s27
      %p317 = scmp.eq.s32.totalorder %s316, 0
      %s319 = sadd.s32 %s318, 1
      %s320 = scalar_select %p317, %s318, %s319
      %p323 = pneg %p317
      %p324 = scmp.eq.s32.totalorder %s20, 1
      %p325 = por %p323, %p324
      %p326 = scmp.ne.s32.totalorder %s318, %s321
      %p327 = scmp.eq.s32.totalorder %s20, 0
      %p328 = por %p326, %p327
      %p329 = scmp.ne.s32.totalorder %s318, %s321
      %p330 = scmp.eq.s32.totalorder %s25, 1
      %p331 = por %p329, %p330
      %p332 = scmp.ne.s32.totalorder %s321, %s322
      %p333 = scmp.eq.s32.totalorder %s25, 0
      %p334 = por %p332, %p333
      %p335 = scmp.ne.s32.totalorder %s321, %s322
      %p336 = scmp.eq.s32.totalorder %s26, 1
      %p337 = por %p335, %p336
      %p339 = scmp.ne.s32.totalorder %s322, %s338
      %p340 = scmp.eq.s32.totalorder %s26, 0
      %p341 = por %p339, %p340
      %s342 = ssub.s32 %s20, %s27
      %p343 = scmp.eq.s32.totalorder %s342, 0
      %s345 = sadd.s32 %s344, 1
      %s346 = scalar_select %p343, %s344, %s345
      %p349 = pneg %p343
      %p350 = scmp.eq.s32.totalorder %s20, 1
      %p351 = por %p349, %p350
      %p352 = scmp.ne.s32.totalorder %s344, %s347
      %p353 = scmp.eq.s32.totalorder %s20, 0
      %p354 = por %p352, %p353
      %p355 = scmp.ne.s32.totalorder %s344, %s347
      %p356 = scmp.eq.s32.totalorder %s25, 1
      %p357 = por %p355, %p356
      %p358 = scmp.ne.s32.totalorder %s347, %s348
      %p359 = scmp.eq.s32.totalorder %s25, 0
      %p360 = por %p358, %p359
      %p361 = scmp.ne.s32.totalorder %s347, %s348
      %p362 = scmp.eq.s32.totalorder %s26, 1
      %p363 = por %p361, %p362
      %p365 = scmp.ne.s32.totalorder %s348, %s364
      %p366 = scmp.eq.s32.totalorder %s26, 0
      %p367 = por %p365, %p366
      %p368 = scmp.le.s32.totalorder 1, %s20
      %p369 = scmp.lt.s32.totalorder %s20, 3
      %p370 = pnand %p368, %p369
      %p371 = pneg %p370
      // Predicated region
      $region9: #{_lambda_.8} parent=5 // pred_check
        _
      $region10: #{_lambda_.8} parent=5 // pred_check_branch
        %373 = sbr.rel (%p370) target = $region12
      $region11: #{_lambda_.8} parent=5 // pred_region
        %s374 = ssub.s32 %s20, 1
        // Predicated region
        $region13: #{_lambda_.8} parent=11 // pred_check
          %p375 = pneg %p119
        $region14: #{_lambda_.8} parent=11 // pred_check_branch
          %377 = sbr.rel (%p375) target = $region16
        $region15: #{_lambda_.8} parent=11 // pred_region
          _
        $region16: #{_lambda_.8} parent=11 // pred_fallthru
          _
        // Predicated region
        $region17: #{_lambda_.8} parent=11 // pred_check
          %p378 = pneg %p140
        $region18: #{_lambda_.8} parent=11 // pred_check_branch
          %380 = sbr.rel (%p378) target = $region20
        $region19: #{_lambda_.8} parent=11 // pred_region
          _
        $region20: #{_lambda_.8} parent=11 // pred_fallthru
          _
        // Predicated region
        $region21: #{_lambda_.8} parent=11 // pred_check
          %p381 = pneg %p161
        $region22: #{_lambda_.8} parent=11 // pred_check_branch
          %383 = sbr.rel (%p381) target = $region24
        $region23: #{_lambda_.8} parent=11 // pred_region
          _
        $region24: #{_lambda_.8} parent=11 // pred_fallthru
          _
        // Predicated region
        $region25: #{_lambda_.8} parent=11 // pred_check
          %p384 = pneg %p182
        $region26: #{_lambda_.8} parent=11 // pred_check_branch
          %386 = sbr.rel (%p384) target = $region28
        $region27: #{_lambda_.8} parent=11 // pred_region
          _
        $region28: #{_lambda_.8} parent=11 // pred_fallthru
          _
        // Predicated region
        $region29: #{_lambda_.8} parent=11 // pred_check
          %p387 = pneg %p203
        $region30: #{_lambda_.8} parent=11 // pred_check_branch
          %389 = sbr.rel (%p387) target = $region32
        $region31: #{_lambda_.8} parent=11 // pred_region
          _
        $region32: #{_lambda_.8} parent=11 // pred_fallthru
          _
        // Predicated region
        $region33: #{_lambda_.8} parent=11 // pred_check
          %p390 = pneg %p224
        $region34: #{_lambda_.8} parent=11 // pred_check_branch
          %392 = sbr.rel (%p390) target = $region36
        $region35: #{_lambda_.8} parent=11 // pred_region
          _
        $region36: #{_lambda_.8} parent=11 // pred_fallthru
          _
        // Predicated region
        $region37: #{_lambda_.8} parent=11 // pred_check
          %p393 = pneg %p245
        $region38: #{_lambda_.8} parent=11 // pred_check_branch
          %395 = sbr.rel (%p393) target = $region40
        $region39: #{_lambda_.8} parent=11 // pred_region
          _
        $region40: #{_lambda_.8} parent=11 // pred_fallthru
          _
        // Predicated region
        $region41: #{_lambda_.8} parent=11 // pred_check
          %p396 = pneg %p266
        $region42: #{_lambda_.8} parent=11 // pred_check_branch
          %398 = sbr.rel (%p396) target = $region44
        $region43: #{_lambda_.8} parent=11 // pred_region
          _
        $region44: #{_lambda_.8} parent=11 // pred_fallthru
          _
        // Predicated region
        $region45: #{_lambda_.8} parent=11 // pred_check
          %p399 = pneg %p287
        $region46: #{_lambda_.8} parent=11 // pred_check_branch
          %401 = sbr.rel (%p399) target = $region48
        $region47: #{_lambda_.8} parent=11 // pred_region
          _
        $region48: #{_lambda_.8} parent=11 // pred_fallthru
          _
        // Predicated region
        $region49: #{_lambda_.8} parent=11 // pred_check
          %p402 = pneg %p308
        $region50: #{_lambda_.8} parent=11 // pred_check_branch
          %404 = sbr.rel (%p402) target = $region52
        $region51: #{_lambda_.8} parent=11 // pred_region
          _
        $region52: #{_lambda_.8} parent=11 // pred_fallthru
          _
      $region12: #{_lambda_.8} parent=5 // pred_fallthru
        _
      %p405 = scmp.lt.s32.totalorder %s20, 2
      // Predicated region
      $region53: #{_lambda_.8} parent=5 // pred_check
        %p406 = pneg %p405
      $region54: #{_lambda_.8} parent=5 // pred_check_branch
        %408 = sbr.rel (%p406) target = $region56
      $region55: #{_lambda_.8} parent=5 // pred_region
        // Predicated region
        $region57: #{_lambda_.8} parent=55 // pred_check
          %p409 = pneg %p40
        $region58: #{_lambda_.8} parent=55 // pred_check_branch
          %411 = sbr.rel (%p409) target = $region60
        $region59: #{_lambda_.8} parent=55 // pred_region
          %s412 = smul.u32 4, %s20
          %p413 = scmp.lt.s32.totalorder %s412, 7
          %s414 = scalar_select %p413, %s412, 7
          %s415 = smul.addr %s414, 8
          %s416 = scalar_lea.vmem %s0, %s415
          %s417 = smul.u32 4, %s20
        $region60: #{_lambda_.8} parent=55 // pred_fallthru
          _
        // Predicated region
        $region61: #{_lambda_.8} parent=55 // pred_check
          %p418 = pneg %p66
        $region62: #{_lambda_.8} parent=55 // pred_check_branch
          %420 = sbr.rel (%p418) target = $region64
        $region63: #{_lambda_.8} parent=55 // pred_region
          %s421 = sand.u32 %s56, 1
          %s422 = sand.u32 %s56, 1
          %s423 = smul.addr %s422, 256
          %s424 = scalar_lea.vmem [#allocation2], %s423
          %s425 = smul.u32 4, %s20
          %s426 = smul.addr %s425, 8
          %s427 = scalar_lea.vmem %s1, %s426
          // Predicated region
          $region65: #{_lambda_.8} parent=63 // pred_check
            _
          $region66: #{_lambda_.8} parent=63 // pred_check_branch
            %429 = sbr.rel (0) target = $region68
          $region67: #{_lambda_.8} parent=63 // pred_region
            // Predicated region
            $region69: #{_lambda_.8} parent=67 // pred_check
              _
            $region70: #{_lambda_.8} parent=67 // pred_check_branch
              %431 = sbr.rel (0) target = $region72
            $region71: #{_lambda_.8} parent=67 // pred_region
              // Predicated region
              $region84: #{_lambda_.8} parent=71 // pred_check
                _
              $region85: #{_lambda_.8} parent=71 // pred_check_branch
                %509 = sbr.rel (0) target = $region87
              $region86: #{_lambda_.8} parent=71 // pred_region
                loop: start=0, step=1, limit=1
                $region88: #{_lambda_.8} parent=86 // loop_pre_header
                  _
                $region89: #{_lambda_.8} parent=86 // loop_header
                  %s511 = sphi 0, %s515
                  %p512 = scmp.ge.s32.totalorder %s511, 1
                  %s516 = sphi %s427, %s427
                  %s517 = sphi %s424, %s424
                $region90: #{_lambda_.8} parent=86 // loop_header_branch
                  %514 = sbr.rel (%p512) target = $region94
                $region91: #{_lambda_.8} parent=86 // loop_body
                  %v518 = vld [vmem:[%s516] sm:$0xff]
                  %519 = vst [vmem:[%s517] sm:$0xff] %v518
                  %v520 = vld [vmem:[%s516 + $0x8] sm:$0xff]
                  %521 = vst [vmem:[%s517 + $0x8] sm:$0xff] %v520
                  %v522 = vld [vmem:[%s516 + $0x10] sm:$0xff]
                  %523 = vst [vmem:[%s517 + $0x10] sm:$0xff] %v522
                  %v524 = vld [vmem:[%s516 + $0x18] sm:$0xff]
                  %525 = vst [vmem:[%s517 + $0x18] sm:$0xff] %v524
                  %v526 = vld [vmem:[%s516 + $0x40] sm:$0xff]
                  %527 = vst [vmem:[%s517 + $0x20] sm:$0xff] %v526
                  %v528 = vld [vmem:[%s516 + $0x48] sm:$0xff]
                  %529 = vst [vmem:[%s517 + $0x28] sm:$0xff] %v528
                  %v530 = vld [vmem:[%s516 + $0x50] sm:$0xff]
                  %531 = vst [vmem:[%s517 + $0x30] sm:$0xff] %v530
                  %v532 = vld [vmem:[%s516 + $0x58] sm:$0xff]
                  %533 = vst [vmem:[%s517 + $0x38] sm:$0xff] %v532
                  %v534 = vld [vmem:[%s516 + $0x80] sm:$0xff]
                  %535 = vst [vmem:[%s517 + $0x40] sm:$0xff] %v534
                  %v536 = vld [vmem:[%s516 + $0x88] sm:$0xff]
                  %537 = vst [vmem:[%s517 + $0x48] sm:$0xff] %v536
                  %v538 = vld [vmem:[%s516 + $0x90] sm:$0xff]
                  %539 = vst [vmem:[%s517 + $0x50] sm:$0xff] %v538
                  %v540 = vld [vmem:[%s516 + $0x98] sm:$0xff]
                  %541 = vst [vmem:[%s517 + $0x58] sm:$0xff] %v540
                  %v542 = vld [vmem:[%s516 + $0xc0] sm:$0xff]
                  %543 = vst [vmem:[%s517 + $0x60] sm:$0xff] %v542
                  %v544 = vld [vmem:[%s516 + $0xc8] sm:$0xff]
                  %545 = vst [vmem:[%s517 + $0x68] sm:$0xff] %v544
                  %v546 = vld [vmem:[%s516 + $0xd0] sm:$0xff]
                  %547 = vst [vmem:[%s517 + $0x70] sm:$0xff] %v546
                  %v548 = vld [vmem:[%s516 + $0xd8] sm:$0xff]
                  %549 = vst [vmem:[%s517 + $0x78] sm:$0xff] %v548
                  %v550 = vld [vmem:[%s516 + $0x100] sm:$0xff]
                  %551 = vst [vmem:[%s517 + $0x80] sm:$0xff] %v550
                  %v552 = vld [vmem:[%s516 + $0x108] sm:$0xff]
                  %553 = vst [vmem:[%s517 + $0x88] sm:$0xff] %v552
                  %v554 = vld [vmem:[%s516 + $0x110] sm:$0xff]
                  %555 = vst [vmem:[%s517 + $0x90] sm:$0xff] %v554
                  %v556 = vld [vmem:[%s516 + $0x118] sm:$0xff]
                  %557 = vst [vmem:[%s517 + $0x98] sm:$0xff] %v556
                  %v558 = vld [vmem:[%s516 + $0x140] sm:$0xff]
                  %559 = vst [vmem:[%s517 + $0xa0] sm:$0xff] %v558
                  %v560 = vld [vmem:[%s516 + $0x148] sm:$0xff]
                  %561 = vst [vmem:[%s517 + $0xa8] sm:$0xff] %v560
                  %v562 = vld [vmem:[%s516 + $0x150] sm:$0xff]
                  %563 = vst [vmem:[%s517 + $0xb0] sm:$0xff] %v562
                  %v564 = vld [vmem:[%s516 + $0x158] sm:$0xff]
                  %565 = vst [vmem:[%s517 + $0xb8] sm:$0xff] %v564
                  %v566 = vld [vmem:[%s516 + $0x180] sm:$0xff]
                  %567 = vst [vmem:[%s517 + $0xc0] sm:$0xff] %v566
                  %v568 = vld [vmem:[%s516 + $0x188] sm:$0xff]
                  %569 = vst [vmem:[%s517 + $0xc8] sm:$0xff] %v568
                  %v570 = vld [vmem:[%s516 + $0x190] sm:$0xff]
                  %571 = vst [vmem:[%s517 + $0xd0] sm:$0xff] %v570
                  %v572 = vld [vmem:[%s516 + $0x198] sm:$0xff]
                  %573 = vst [vmem:[%s517 + $0xd8] sm:$0xff] %v572
                  %v574 = vld [vmem:[%s516 + $0x1c0] sm:$0xff]
                  %575 = vst [vmem:[%s517 + $0xe0] sm:$0xff] %v574
                  %v576 = vld [vmem:[%s516 + $0x1c8] sm:$0xff]
                  %577 = vst [vmem:[%s517 + $0xe8] sm:$0xff] %v576
                  %v578 = vld [vmem:[%s516 + $0x1d0] sm:$0xff]
                  %579 = vst [vmem:[%s517 + $0xf0] sm:$0xff] %v578
                  %v580 = vld [vmem:[%s516 + $0x1d8] sm:$0xff]
                  %581 = vst [vmem:[%s517 + $0xf8] sm:$0xff] %v580
                $region92: #{_lambda_.8} parent=86 // loop_footer
                  %s515 = sadd.s32 1, %s511
                $region93: #{_lambda_.8} parent=86 // loop_footer_branch
                  %510 = sbr.rel target = $region89
                $region94: #{_lambda_.8} parent=86 // loop_exit
                  _
              $region87: #{_lambda_.8} parent=71 // pred_fallthru
                _
              // Predicated region
              $region95: #{_lambda_.8} parent=71 // pred_check
                _
              $region96: #{_lambda_.8} parent=71 // pred_check_branch
                %583 = sbr.rel target = $region98
              $region97: #{_lambda_.8} parent=71 // pred_region
                _
              $region98: #{_lambda_.8} parent=71 // pred_fallthru
                _
            $region72: #{_lambda_.8} parent=67 // pred_fallthru
              _
            // Predicated region
            $region73: #{_lambda_.8} parent=67 // pred_check
              _
            $region74: #{_lambda_.8} parent=67 // pred_check_branch
              %433 = sbr.rel target = $region76
            $region75: #{_lambda_.8} parent=67 // pred_region
              %s435 = ssub.s32 256, 1
              loop: start=0, step=1, limit=1
              $region77: #{_lambda_.8} parent=75 // loop_pre_header
                _
              $region78: #{_lambda_.8} parent=75 // loop_header
                %s437 = sphi 0, %s441
                %p438 = scmp.ge.s32.totalorder %s437, 1
                %s442 = sphi %s427, %s427
                %s443 = sphi %s424, %s424
              $region79: #{_lambda_.8} parent=75 // loop_header_branch
                %440 = sbr.rel (%p438) target = $region83
              $region80: #{_lambda_.8} parent=75 // loop_body
                %v444 = vld [vmem:[%s442] sm:%s435]
                %445 = vst [vmem:[%s443] sm:%s435] %v444
                %v446 = vld [vmem:[%s442 + $0x8] sm:%s435]
                %447 = vst [vmem:[%s443 + $0x8] sm:%s435] %v446
                %v448 = vld [vmem:[%s442 + $0x10] sm:%s435]
                %449 = vst [vmem:[%s443 + $0x10] sm:%s435] %v448
                %v450 = vld [vmem:[%s442 + $0x18] sm:%s435]
                %451 = vst [vmem:[%s443 + $0x18] sm:%s435] %v450
                %v452 = vld [vmem:[%s442 + $0x40] sm:%s435]
                %453 = vst [vmem:[%s443 + $0x20] sm:%s435] %v452
                %v454 = vld [vmem:[%s442 + $0x48] sm:%s435]
                %455 = vst [vmem:[%s443 + $0x28] sm:%s435] %v454
                %v456 = vld [vmem:[%s442 + $0x50] sm:%s435]
                %457 = vst [vmem:[%s443 + $0x30] sm:%s435] %v456
                %v458 = vld [vmem:[%s442 + $0x58] sm:%s435]
                %459 = vst [vmem:[%s443 + $0x38] sm:%s435] %v458
                %v460 = vld [vmem:[%s442 + $0x80] sm:%s435]
                %461 = vst [vmem:[%s443 + $0x40] sm:%s435] %v460
                %v462 = vld [vmem:[%s442 + $0x88] sm:%s435]
                %463 = vst [vmem:[%s443 + $0x48] sm:%s435] %v462
                %v464 = vld [vmem:[%s442 + $0x90] sm:%s435]
                %465 = vst [vmem:[%s443 + $0x50] sm:%s435] %v464
                %v466 = vld [vmem:[%s442 + $0x98] sm:%s435]
                %467 = vst [vmem:[%s443 + $0x58] sm:%s435] %v466
                %v468 = vld [vmem:[%s442 + $0xc0] sm:%s435]
                %469 = vst [vmem:[%s443 + $0x60] sm:%s435] %v468
                %v470 = vld [vmem:[%s442 + $0xc8] sm:%s435]
                %471 = vst [vmem:[%s443 + $0x68] sm:%s435] %v470
                %v472 = vld [vmem:[%s442 + $0xd0] sm:%s435]
                %473 = vst [vmem:[%s443 + $0x70] sm:%s435] %v472
                %v474 = vld [vmem:[%s442 + $0xd8] sm:%s435]
                %475 = vst [vmem:[%s443 + $0x78] sm:%s435] %v474
                %v476 = vld [vmem:[%s442 + $0x100] sm:%s435]
                %477 = vst [vmem:[%s443 + $0x80] sm:%s435] %v476
                %v478 = vld [vmem:[%s442 + $0x108] sm:%s435]
                %479 = vst [vmem:[%s443 + $0x88] sm:%s435] %v478
                %v480 = vld [vmem:[%s442 + $0x110] sm:%s435]
                %481 = vst [vmem:[%s443 + $0x90] sm:%s435] %v480
                %v482 = vld [vmem:[%s442 + $0x118] sm:%s435]
                %483 = vst [vmem:[%s443 + $0x98] sm:%s435] %v482
                %v484 = vld [vmem:[%s442 + $0x140] sm:%s435]
                %485 = vst [vmem:[%s443 + $0xa0] sm:%s435] %v484
                %v486 = vld [vmem:[%s442 + $0x148] sm:%s435]
                %487 = vst [vmem:[%s443 + $0xa8] sm:%s435] %v486
                %v488 = vld [vmem:[%s442 + $0x150] sm:%s435]
                %489 = vst [vmem:[%s443 + $0xb0] sm:%s435] %v488
                %v490 = vld [vmem:[%s442 + $0x158] sm:%s435]
                %491 = vst [vmem:[%s443 + $0xb8] sm:%s435] %v490
                %v492 = vld [vmem:[%s442 + $0x180] sm:%s435]
                %493 = vst [vmem:[%s443 + $0xc0] sm:%s435] %v492
                %v494 = vld [vmem:[%s442 + $0x188] sm:%s435]
                %495 = vst [vmem:[%s443 + $0xc8] sm:%s435] %v494
                %v496 = vld [vmem:[%s442 + $0x190] sm:%s435]
                %497 = vst [vmem:[%s443 + $0xd0] sm:%s435] %v496
                %v498 = vld [vmem:[%s442 + $0x198] sm:%s435]
                %499 = vst [vmem:[%s443 + $0xd8] sm:%s435] %v498
                %v500 = vld [vmem:[%s442 + $0x1c0] sm:%s435]
                %501 = vst [vmem:[%s443 + $0xe0] sm:%s435] %v500
                %v502 = vld [vmem:[%s442 + $0x1c8] sm:%s435]
                %503 = vst [vmem:[%s443 + $0xe8] sm:%s435] %v502
                %v504 = vld [vmem:[%s442 + $0x1d0] sm:%s435]
                %505 = vst [vmem:[%s443 + $0xf0] sm:%s435] %v504
                %v506 = vld [vmem:[%s442 + $0x1d8] sm:%s435]
                %507 = vst [vmem:[%s443 + $0xf8] sm:%s435] %v506
              $region81: #{_lambda_.8} parent=75 // loop_footer
                %s441 = sadd.s32 1, %s437
              $region82: #{_lambda_.8} parent=75 // loop_footer_branch
                %436 = sbr.rel target = $region78
              $region83: #{_lambda_.8} parent=75 // loop_exit
                _
            $region76: #{_lambda_.8} parent=67 // pred_fallthru
              _
          $region68: #{_lambda_.8} parent=63 // pred_fallthru
            _
          %584 = vnop
        $region64: #{_lambda_.8} parent=55 // pred_fallthru
          _
        // Predicated region
        $region99: #{_lambda_.8} parent=55 // pred_check
          %p585 = pneg %p92
        $region100: #{_lambda_.8} parent=55 // pred_check_branch
          %587 = sbr.rel (%p585) target = $region102
        $region101: #{_lambda_.8} parent=55 // pred_region
          %s588 = sand.u32 %s82, 1
          %s589 = sand.u32 %s82, 1
          %s590 = smul.addr %s589, 256
          %s591 = scalar_lea.vmem [#allocation3], %s590
          %s592 = smul.u32 4, %s20
          %s593 = smul.addr %s592, 8
          %s594 = scalar_lea.vmem %s2, %s593
          // Predicated region
          $region103: #{_lambda_.8} parent=101 // pred_check
            _
          $region104: #{_lambda_.8} parent=101 // pred_check_branch
            %596 = sbr.rel (0) target = $region106
          $region105: #{_lambda_.8} parent=101 // pred_region
            // Predicated region
            $region107: #{_lambda_.8} parent=105 // pred_check
              _
            $region108: #{_lambda_.8} parent=105 // pred_check_branch
              %598 = sbr.rel (0) target = $region110
            $region109: #{_lambda_.8} parent=105 // pred_region
              // Predicated region
              $region122: #{_lambda_.8} parent=109 // pred_check
                _
              $region123: #{_lambda_.8} parent=109 // pred_check_branch
                %676 = sbr.rel (0) target = $region125
              $region124: #{_lambda_.8} parent=109 // pred_region
                loop: start=0, step=1, limit=1
                $region126: #{_lambda_.8} parent=124 // loop_pre_header
                  _
                $region127: #{_lambda_.8} parent=124 // loop_header
                  %s678 = sphi 0, %s682
                  %p679 = scmp.ge.s32.totalorder %s678, 1
                  %s683 = sphi %s594, %s594
                  %s684 = sphi %s591, %s591
                $region128: #{_lambda_.8} parent=124 // loop_header_branch
                  %681 = sbr.rel (%p679) target = $region132
                $region129: #{_lambda_.8} parent=124 // loop_body
                  %v685 = vld [vmem:[%s683] sm:$0xff]
                  %686 = vst [vmem:[%s684] sm:$0xff] %v685
                  %v687 = vld [vmem:[%s683 + $0x8] sm:$0xff]
                  %688 = vst [vmem:[%s684 + $0x8] sm:$0xff] %v687
                  %v689 = vld [vmem:[%s683 + $0x10] sm:$0xff]
                  %690 = vst [vmem:[%s684 + $0x10] sm:$0xff] %v689
                  %v691 = vld [vmem:[%s683 + $0x18] sm:$0xff]
                  %692 = vst [vmem:[%s684 + $0x18] sm:$0xff] %v691
                  %v693 = vld [vmem:[%s683 + $0x40] sm:$0xff]
                  %694 = vst [vmem:[%s684 + $0x20] sm:$0xff] %v693
                  %v695 = vld [vmem:[%s683 + $0x48] sm:$0xff]
                  %696 = vst [vmem:[%s684 + $0x28] sm:$0xff] %v695
                  %v697 = vld [vmem:[%s683 + $0x50] sm:$0xff]
                  %698 = vst [vmem:[%s684 + $0x30] sm:$0xff] %v697
                  %v699 = vld [vmem:[%s683 + $0x58] sm:$0xff]
                  %700 = vst [vmem:[%s684 + $0x38] sm:$0xff] %v699
                  %v701 = vld [vmem:[%s683 + $0x80] sm:$0xff]
                  %702 = vst [vmem:[%s684 + $0x40] sm:$0xff] %v701
                  %v703 = vld [vmem:[%s683 + $0x88] sm:$0xff]
                  %704 = vst [vmem:[%s684 + $0x48] sm:$0xff] %v703
                  %v705 = vld [vmem:[%s683 + $0x90] sm:$0xff]
                  %706 = vst [vmem:[%s684 + $0x50] sm:$0xff] %v705
                  %v707 = vld [vmem:[%s683 + $0x98] sm:$0xff]
                  %708 = vst [vmem:[%s684 + $0x58] sm:$0xff] %v707
                  %v709 = vld [vmem:[%s683 + $0xc0] sm:$0xff]
                  %710 = vst [vmem:[%s684 + $0x60] sm:$0xff] %v709
                  %v711 = vld [vmem:[%s683 + $0xc8] sm:$0xff]
                  %712 = vst [vmem:[%s684 + $0x68] sm:$0xff] %v711
                  %v713 = vld [vmem:[%s683 + $0xd0] sm:$0xff]
                  %714 = vst [vmem:[%s684 + $0x70] sm:$0xff] %v713
                  %v715 = vld [vmem:[%s683 + $0xd8] sm:$0xff]
                  %716 = vst [vmem:[%s684 + $0x78] sm:$0xff] %v715
                  %v717 = vld [vmem:[%s683 + $0x100] sm:$0xff]
                  %718 = vst [vmem:[%s684 + $0x80] sm:$0xff] %v717
                  %v719 = vld [vmem:[%s683 + $0x108] sm:$0xff]
                  %720 = vst [vmem:[%s684 + $0x88] sm:$0xff] %v719
                  %v721 = vld [vmem:[%s683 + $0x110] sm:$0xff]
                  %722 = vst [vmem:[%s684 + $0x90] sm:$0xff] %v721
                  %v723 = vld [vmem:[%s683 + $0x118] sm:$0xff]
                  %724 = vst [vmem:[%s684 + $0x98] sm:$0xff] %v723
                  %v725 = vld [vmem:[%s683 + $0x140] sm:$0xff]
                  %726 = vst [vmem:[%s684 + $0xa0] sm:$0xff] %v725
                  %v727 = vld [vmem:[%s683 + $0x148] sm:$0xff]
                  %728 = vst [vmem:[%s684 + $0xa8] sm:$0xff] %v727
                  %v729 = vld [vmem:[%s683 + $0x150] sm:$0xff]
                  %730 = vst [vmem:[%s684 + $0xb0] sm:$0xff] %v729
                  %v731 = vld [vmem:[%s683 + $0x158] sm:$0xff]
                  %732 = vst [vmem:[%s684 + $0xb8] sm:$0xff] %v731
                  %v733 = vld [vmem:[%s683 + $0x180] sm:$0xff]
                  %734 = vst [vmem:[%s684 + $0xc0] sm:$0xff] %v733
                  %v735 = vld [vmem:[%s683 + $0x188] sm:$0xff]
                  %736 = vst [vmem:[%s684 + $0xc8] sm:$0xff] %v735
                  %v737 = vld [vmem:[%s683 + $0x190] sm:$0xff]
                  %738 = vst [vmem:[%s684 + $0xd0] sm:$0xff] %v737
                  %v739 = vld [vmem:[%s683 + $0x198] sm:$0xff]
                  %740 = vst [vmem:[%s684 + $0xd8] sm:$0xff] %v739
                  %v741 = vld [vmem:[%s683 + $0x1c0] sm:$0xff]
                  %742 = vst [vmem:[%s684 + $0xe0] sm:$0xff] %v741
                  %v743 = vld [vmem:[%s683 + $0x1c8] sm:$0xff]
                  %744 = vst [vmem:[%s684 + $0xe8] sm:$0xff] %v743
                  %v745 = vld [vmem:[%s683 + $0x1d0] sm:$0xff]
                  %746 = vst [vmem:[%s684 + $0xf0] sm:$0xff] %v745
                  %v747 = vld [vmem:[%s683 + $0x1d8] sm:$0xff]
                  %748 = vst [vmem:[%s684 + $0xf8] sm:$0xff] %v747
                $region130: #{_lambda_.8} parent=124 // loop_footer
                  %s682 = sadd.s32 1, %s678
                $region131: #{_lambda_.8} parent=124 // loop_footer_branch
                  %677 = sbr.rel target = $region127
                $region132: #{_lambda_.8} parent=124 // loop_exit
                  _
              $region125: #{_lambda_.8} parent=109 // pred_fallthru
                _
              // Predicated region
              $region133: #{_lambda_.8} parent=109 // pred_check
                _
              $region134: #{_lambda_.8} parent=109 // pred_check_branch
                %750 = sbr.rel target = $region136
              $region135: #{_lambda_.8} parent=109 // pred_region
                _
              $region136: #{_lambda_.8} parent=109 // pred_fallthru
                _
            $region110: #{_lambda_.8} parent=105 // pred_fallthru
              _
            // Predicated region
            $region111: #{_lambda_.8} parent=105 // pred_check
              _
            $region112: #{_lambda_.8} parent=105 // pred_check_branch
              %600 = sbr.rel target = $region114
            $region113: #{_lambda_.8} parent=105 // pred_region
              %s602 = ssub.s32 256, 1
              loop: start=0, step=1, limit=1
              $region115: #{_lambda_.8} parent=113 // loop_pre_header
                _
              $region116: #{_lambda_.8} parent=113 // loop_header
                %s604 = sphi 0, %s608
                %p605 = scmp.ge.s32.totalorder %s604, 1
                %s609 = sphi %s594, %s594
                %s610 = sphi %s591, %s591
              $region117: #{_lambda_.8} parent=113 // loop_header_branch
                %607 = sbr.rel (%p605) target = $region121
              $region118: #{_lambda_.8} parent=113 // loop_body
                %v611 = vld [vmem:[%s609] sm:%s602]
                %612 = vst [vmem:[%s610] sm:%s602] %v611
                %v613 = vld [vmem:[%s609 + $0x8] sm:%s602]
                %614 = vst [vmem:[%s610 + $0x8] sm:%s602] %v613
                %v615 = vld [vmem:[%s609 + $0x10] sm:%s602]
                %616 = vst [vmem:[%s610 + $0x10] sm:%s602] %v615
                %v617 = vld [vmem:[%s609 + $0x18] sm:%s602]
                %618 = vst [vmem:[%s610 + $0x18] sm:%s602] %v617
                %v619 = vld [vmem:[%s609 + $0x40] sm:%s602]
                %620 = vst [vmem:[%s610 + $0x20] sm:%s602] %v619
                %v621 = vld [vmem:[%s609 + $0x48] sm:%s602]
                %622 = vst [vmem:[%s610 + $0x28] sm:%s602] %v621
                %v623 = vld [vmem:[%s609 + $0x50] sm:%s602]
                %624 = vst [vmem:[%s610 + $0x30] sm:%s602] %v623
                %v625 = vld [vmem:[%s609 + $0x58] sm:%s602]
                %626 = vst [vmem:[%s610 + $0x38] sm:%s602] %v625
                %v627 = vld [vmem:[%s609 + $0x80] sm:%s602]
                %628 = vst [vmem:[%s610 + $0x40] sm:%s602] %v627
                %v629 = vld [vmem:[%s609 + $0x88] sm:%s602]
                %630 = vst [vmem:[%s610 + $0x48] sm:%s602] %v629
                %v631 = vld [vmem:[%s609 + $0x90] sm:%s602]
                %632 = vst [vmem:[%s610 + $0x50] sm:%s602] %v631
                %v633 = vld [vmem:[%s609 + $0x98] sm:%s602]
                %634 = vst [vmem:[%s610 + $0x58] sm:%s602] %v633
                %v635 = vld [vmem:[%s609 + $0xc0] sm:%s602]
                %636 = vst [vmem:[%s610 + $0x60] sm:%s602] %v635
                %v637 = vld [vmem:[%s609 + $0xc8] sm:%s602]
                %638 = vst [vmem:[%s610 + $0x68] sm:%s602] %v637
                %v639 = vld [vmem:[%s609 + $0xd0] sm:%s602]
                %640 = vst [vmem:[%s610 + $0x70] sm:%s602] %v639
                %v641 = vld [vmem:[%s609 + $0xd8] sm:%s602]
                %642 = vst [vmem:[%s610 + $0x78] sm:%s602] %v641
                %v643 = vld [vmem:[%s609 + $0x100] sm:%s602]
                %644 = vst [vmem:[%s610 + $0x80] sm:%s602] %v643
                %v645 = vld [vmem:[%s609 + $0x108] sm:%s602]
                %646 = vst [vmem:[%s610 + $0x88] sm:%s602] %v645
                %v647 = vld [vmem:[%s609 + $0x110] sm:%s602]
                %648 = vst [vmem:[%s610 + $0x90] sm:%s602] %v647
                %v649 = vld [vmem:[%s609 + $0x118] sm:%s602]
                %650 = vst [vmem:[%s610 + $0x98] sm:%s602] %v649
                %v651 = vld [vmem:[%s609 + $0x140] sm:%s602]
                %652 = vst [vmem:[%s610 + $0xa0] sm:%s602] %v651
                %v653 = vld [vmem:[%s609 + $0x148] sm:%s602]
                %654 = vst [vmem:[%s610 + $0xa8] sm:%s602] %v653
                %v655 = vld [vmem:[%s609 + $0x150] sm:%s602]
                %656 = vst [vmem:[%s610 + $0xb0] sm:%s602] %v655
                %v657 = vld [vmem:[%s609 + $0x158] sm:%s602]
                %658 = vst [vmem:[%s610 + $0xb8] sm:%s602] %v657
                %v659 = vld [vmem:[%s609 + $0x180] sm:%s602]
                %660 = vst [vmem:[%s610 + $0xc0] sm:%s602] %v659
                %v661 = vld [vmem:[%s609 + $0x188] sm:%s602]
                %662 = vst [vmem:[%s610 + $0xc8] sm:%s602] %v661
                %v663 = vld [vmem:[%s609 + $0x190] sm:%s602]
                %664 = vst [vmem:[%s610 + $0xd0] sm:%s602] %v663
                %v665 = vld [vmem:[%s609 + $0x198] sm:%s602]
                %666 = vst [vmem:[%s610 + $0xd8] sm:%s602] %v665
                %v667 = vld [vmem:[%s609 + $0x1c0] sm:%s602]
                %668 = vst [vmem:[%s610 + $0xe0] sm:%s602] %v667
                %v669 = vld [vmem:[%s609 + $0x1c8] sm:%s602]
                %670 = vst [vmem:[%s610 + $0xe8] sm:%s602] %v669
                %v671 = vld [vmem:[%s609 + $0x1d0] sm:%s602]
                %672 = vst [vmem:[%s610 + $0xf0] sm:%s602] %v671
                %v673 = vld [vmem:[%s609 + $0x1d8] sm:%s602]
                %674 = vst [vmem:[%s610 + $0xf8] sm:%s602] %v673
              $region119: #{_lambda_.8} parent=113 // loop_footer
                %s608 = sadd.s32 1, %s604
              $region120: #{_lambda_.8} parent=113 // loop_footer_branch
                %603 = sbr.rel target = $region116
              $region121: #{_lambda_.8} parent=113 // loop_exit
                _
            $region114: #{_lambda_.8} parent=105 // pred_fallthru
              _
          $region106: #{_lambda_.8} parent=101 // pred_fallthru
            _
          %751 = vnop
        $region102: #{_lambda_.8} parent=55 // pred_fallthru
          _
        // Predicated region
        $region137: #{_lambda_.8} parent=55 // pred_check
          %p752 = pneg %p328
        $region138: #{_lambda_.8} parent=55 // pred_check_branch
          %754 = sbr.rel (%p752) target = $region140
        $region139: #{_lambda_.8} parent=55 // pred_region
          %s755 = smul.u32 4, %s20
          %p756 = scmp.lt.s32.totalorder %s755, 7
          %s757 = scalar_select %p756, %s755, 7
          %s758 = smul.addr %s757, 8
          %s759 = scalar_lea.vmem %s13, %s758
          %s760 = smul.u32 4, %s20
        $region140: #{_lambda_.8} parent=55 // pred_fallthru
          _
      $region56: #{_lambda_.8} parent=5 // pred_fallthru
        _
      %p761 = scmp.le.s32.totalorder 1, %s20
      %p762 = scmp.lt.s32.totalorder %s20, 3
      %p763 = pnand %p761, %p762
      %p764 = pneg %p763
      // Predicated region
      $region141: #{_lambda_.8} parent=5 // pred_check
        _
      $region142: #{_lambda_.8} parent=5 // pred_check_branch
        %766 = sbr.rel (%p763) target = $region144
      $region143: #{_lambda_.8} parent=5 // pred_region
        %s767 = ssub.s32 %s20, 1
        %s768 = sand.u32 %s59, 1
        %s769 = sand.u32 %s59, 1
        %s770 = smul.addr %s769, 256
        %s771 = scalar_lea.vmem [#allocation2], %s770
        // Predicated region
        $region145: #{_lambda_.8} parent=143 // pred_check
          %p772 = pneg %p72
        $region146: #{_lambda_.8} parent=143 // pred_check_branch
          %774 = sbr.rel (%p772) target = $region148
        $region147: #{_lambda_.8} parent=143 // pred_region
          _
        $region148: #{_lambda_.8} parent=143 // pred_fallthru
          _
        %s775 = sand.u32 %s85, 1
        %s776 = sand.u32 %s85, 1
        %s777 = smul.addr %s776, 256
        %s778 = scalar_lea.vmem [#allocation3], %s777
        // Predicated region
        $region149: #{_lambda_.8} parent=143 // pred_check
          %p779 = pneg %p98
        $region150: #{_lambda_.8} parent=143 // pred_check_branch
          %781 = sbr.rel (%p779) target = $region152
        $region151: #{_lambda_.8} parent=143 // pred_region
          _
        $region152: #{_lambda_.8} parent=143 // pred_fallthru
          _
        %s782 = smul.u32 4, %s25
        %p783 = scmp.lt.s32.totalorder %s782, 7
        %s784 = scalar_select %p783, %s782, 7
        %s785 = smul.addr %s784, 8
        %s786 = scalar_lea.vmem %s0, %s785
        %p787 = pneg %p46
        %p788 = pneg %p43
        %s789 = sand.u32 %s59, 1
        %s790 = sand.u32 %s59, 1
        %s791 = smul.addr %s790, 256
        %s792 = scalar_lea.vmem [#allocation2], %s791
        %p793 = pneg %p72
        %p794 = pneg %p69
        %s795 = sand.u32 %s85, 1
        %s796 = sand.u32 %s85, 1
        %s797 = smul.addr %s796, 256
        %s798 = scalar_lea.vmem [#allocation3], %s797
        %p799 = pneg %p98
        %p800 = pneg %p95
        %p801 = pneg %p119
        %p802 = pneg %p116
        %p803 = pneg %p140
        %p804 = pneg %p137
        %p805 = pneg %p161
        %p806 = pneg %p158
        %p807 = pneg %p182
        %p808 = pneg %p179
        %p809 = pneg %p203
        %p810 = pneg %p200
        %p811 = pneg %p224
        %p812 = pneg %p221
        %p813 = pneg %p245
        %p814 = pneg %p242
        %p815 = pneg %p266
        %p816 = pneg %p263
        %p817 = pneg %p287
        %p818 = pneg %p284
        %p819 = pneg %p308
        %p820 = pneg %p305
        %s821 = smul.u32 4, %s25
        %p822 = scmp.lt.s32.totalorder %s821, 7
        %s823 = scalar_select %p822, %s821, 7
        %s824 = smul.addr %s823, 8
        %s825 = scalar_lea.vmem %s13, %s824
        %p826 = pneg %p334
        %p827 = pneg %p331
        %p828 = pneg %p360
        %p829 = pneg %p357
        %s830 = smul.u32 4, %s25
        %p831 = scmp.lt.s32.totalorder %s830, 7
        %s832 = scalar_select %p831, %s830, 7
        %s833 = smul.addr %s832, 8
        %s834 = scalar_lea.vmem %s14, %s833
        %s835 = smul.u32 4, %s25
        %p836 = scmp.lt.s32.totalorder %s835, 7
        %s837 = scalar_select %p836, %s835, 7
        %s838 = smul.addr %s837, 8
        %s839 = scalar_lea.vmem %s0, %s838
        %s840 = smul.u32 4, %s25
        %s841 = smul.u32 4, %s25
        %s842 = smul.u32 4, %s25
        %s843 = smul.u32 4, %s25
        %p844 = scmp.lt.s32.totalorder %s843, 7
        %s845 = scalar_select %p844, %s843, 7
        %s846 = smul.addr %s845, 8
        %s847 = scalar_lea.vmem %s13, %s846
        %s848 = smul.u32 4, %s25
        %s849 = smul.u32 4, %s25
        %p850 = scmp.lt.s32.totalorder %s849, 7
        %s851 = scalar_select %p850, %s849, 7
        %s852 = smul.addr %s851, 8
        %s853 = scalar_lea.vmem %s14, %s852
        %s854 = smul.u32 4, %s25
        %v856 = vld [vmem:[%s839] sm:$0xff]
        %v857 = vld [vmem:[%s839 + $0x8] sm:$0xff]
        %v858 = vld [vmem:[%s839 + $0x10] sm:$0xff]
        %v859 = vld [vmem:[%s839 + $0x18] sm:$0xff]
        %v860 = vld [vmem:[%s3] sm:$0x7]
        %v861 = vld [vmem:[%s4] sm:$0x1]
        %v862 = vld [vmem:[%s5] sm:$0xf]
        %v863 = vld [vmem:[%s5 + $0x4] sm:$0xf]
        %v864 = vld [vmem:[%s5 + $0x8] sm:$0xf]
        %v865 = vld [vmem:[%s5 + $0xc] sm:$0xf]
        %v866 = vld [vmem:[%s6] sm:$0x1]
        %v867 = vld [vmem:[%s7] sm:$0xf]
        %v868 = vld [vmem:[%s7 + $0x4] sm:$0xf]
        %v869 = vld [vmem:[%s7 + $0x8] sm:$0xf]
        %v870 = vld [vmem:[%s7 + $0xc] sm:$0xf]
        %v871 = vld [vmem:[%s8] sm:$0x1]
        %v872 = vld [vmem:[%s9] sm:$0xf]
        %v873 = vld [vmem:[%s9 + $0x4] sm:$0xf]
        %v874 = vld [vmem:[%s9 + $0x8] sm:$0xf]
        %v875 = vld [vmem:[%s9 + $0xc] sm:$0xf]
        %v876 = vld [vmem:[%s10] sm:$0x1]
        %v877 = vld [vmem:[%s771] sm:$0xff]
        %v878 = vld [vmem:[%s771 + $0x8] sm:$0xff]
        %v879 = vld [vmem:[%s771 + $0x10] sm:$0xff]
        %v880 = vld [vmem:[%s771 + $0x18] sm:$0xff]
        %v881 = vld [vmem:[%s778] sm:$0xff]
        %v882 = vld [vmem:[%s778 + $0x8] sm:$0xff]
        %v883 = vld [vmem:[%s778 + $0x10] sm:$0xff]
        %v884 = vld [vmem:[%s778 + $0x18] sm:$0xff]
        %886 = vset.pattern.permute.xlu0 0
        %887 = vperm.xlu0 %886, %v881
        %v888 = vpop.permute.xlu0 %887
        %891 = vset.pattern.permute.xlu0 0
        %892 = vperm.xlu0 %891, %v882
        %v893 = vpop.permute.xlu0 %892
        %896 = vset.pattern.permute.xlu0 0
        %897 = vperm.xlu0 %896, %v883
        %v898 = vpop.permute.xlu0 %897
        %901 = vset.pattern.permute.xlu0 0
        %902 = vperm.xlu0 %901, %v884
        %v903 = vpop.permute.xlu0 %902
        %v905 = vlaneseq
        %v906 = vshrl.u32 %v905, 7
        %v907 = vsub.s32 0, %v906
        %v908 = vrot.slane %v860, %v907
        %v909 = vmul.f32 %v888, %v908
        %v910 = vmul.f32 %v893, %v908
        %v911 = vmul.f32 %v898, %v908
        %v912 = vmul.f32 %v903, %v908
        %913 = vset.pattern.permute.xlu0 1
        %914 = vperm.xlu0 %913, %v881
        %v915 = vpop.permute.xlu0 %914
        %917 = vset.pattern.permute.xlu0 1
        %918 = vperm.xlu0 %917, %v882
        %v919 = vpop.permute.xlu0 %918
        %921 = vset.pattern.permute.xlu0 1
        %922 = vperm.xlu0 %921, %v883
        %v923 = vpop.permute.xlu0 %922
        %925 = vset.pattern.permute.xlu0 1
        %926 = vperm.xlu0 %925, %v884
        %v927 = vpop.permute.xlu0 %926
        %v929 = vlaneseq
        %v930 = vshrl.u32 %v929, 7
        %v931 = vsub.s32 1, %v930
        %v932 = vrot.slane %v860, %v931
        %v933 = vmul.f32 %v915, %v932
        %v934 = vmul.f32 %v919, %v932
        %v935 = vmul.f32 %v923, %v932
        %v936 = vmul.f32 %v927, %v932
        %v937 = vadd.f32 %v909, %v933
        %v938 = vadd.f32 %v910, %v934
        %v939 = vadd.f32 %v911, %v935
        %v940 = vadd.f32 %v912, %v936
        %941 = vset.pattern.permute.xlu0 2
        %942 = vperm.xlu0 %941, %v881
        %v943 = vpop.permute.xlu0 %942
        %945 = vset.pattern.permute.xlu0 2
        %946 = vperm.xlu0 %945, %v882
        %v947 = vpop.permute.xlu0 %946
        %949 = vset.pattern.permute.xlu0 2
        %950 = vperm.xlu0 %949, %v883
        %v951 = vpop.permute.xlu0 %950
        %953 = vset.pattern.permute.xlu0 2
        %954 = vperm.xlu0 %953, %v884
        %v955 = vpop.permute.xlu0 %954
        %v957 = vlaneseq
        %v958 = vshrl.u32 %v957, 7
        %v959 = vsub.s32 2, %v958
        %v960 = vrot.slane %v860, %v959
        %v961 = vmul.f32 %v943, %v960
        %v962 = vmul.f32 %v947, %v960
        %v963 = vmul.f32 %v951, %v960
        %v964 = vmul.f32 %v955, %v960
        %v965 = vadd.f32 %v937, %v961
        %v966 = vadd.f32 %v938, %v962
        %v967 = vadd.f32 %v939, %v963
        %v968 = vadd.f32 %v940, %v964
        %v970 = vlaneseq
        %v971 = vshrl.u32 %v970, 7
        %v972 = vsub.s32 0, %v971
        %v973 = vrot.slane %v861, %v972
        %v975 = vadd.f32 %v965, %v973
        %v976 = vadd.f32 %v966, %v973
        %v977 = vadd.f32 %v967, %v973
        %v978 = vadd.f32 %v968, %v973
        %v979 = vmax.f32 %v975, 0.0
        %v980 = vmax.f32 %v976, 0.0
        %v981 = vmax.f32 %v977, 0.0
        %v982 = vmax.f32 %v978, 0.0
        %v983 = vpack.c.bf16 %v980, %v979
        %v984 = vpack.c.bf16 %v982, %v981
        %v986 = vlaneseq
        %v987 = vshrl.u32 %v986, 7
        %v988 = vsub.s32 0, %v987
        %v989 = vrot.slane %v866, %v988
        %v995 = vunpack.c.l.b16 %v862
        %v996 = vunpack.c.l.b16 %v863
        %v997 = vunpack.c.l.b16 %v864
        %v998 = vunpack.c.l.b16 %v865
        %v999 = vpack.c.b16 %v996, %v995
        %v1000 = vpack.c.b16 %v998, %v997
        %vm1003 = vcmask 261120
        %v1005 = vsel %vm1003, %v983, 0
        %v1008 = vsel %vm1003, %v984, 0
        %1010 = vmatprep.subr.bf16.mxu0 0
        %1011 = vmatpush1.bf16.msra.mxu0 0
        %1012 = vmatprep.subr.bf16.mxu0 0
        %1013 = vmatpush1.bf16.msra.mxu0 0
        %1014 = vmatprep.subr.bf16.mxu0 0
        %1015 = vmatpush1.bf16.msra.mxu0 0
        %1016 = vmatprep.subr.bf16.mxu0 0
        %1017 = vmatpush1.bf16.msra.mxu0 0
        %1018 = vmatprep.subr.bf16.mxu0 0
        %1019 = vmatpush1.bf16.msra.mxu0 0
        %1020 = vmatprep.subr.bf16.mxu0 0
        %1021 = vmatpush1.bf16.msra.mxu0 0
        %1022 = vmatprep.subr.bf16.mxu0 0
        %1023 = vmatpush1.bf16.msra.mxu0 %v1000
        %1024 = vmatprep.subr.bf16.mxu0 0
        %1025 = vmatpush1.bf16.msra.mxu0 %v999
        %1026 = vmatprep.subr.bf16.mxu0 0
        %1027 = vmatpush2.bf16.msra.mxu0 0
        %1028 = vmatprep.subr.bf16.mxu0 0
        %1029 = vmatpush2.bf16.msra.mxu0 0
        %1030 = vmatprep.subr.bf16.mxu0 0
        %1031 = vmatpush2.bf16.msra.mxu0 0
        %1032 = vmatprep.subr.bf16.mxu0 0
        %1033 = vmatpush2.bf16.msra.mxu0 0
        %1034 = vmatprep.subr.bf16.mxu0 0
        %1035 = vmatpush2.bf16.msra.mxu0 0
        %1036 = vmatprep.subr.bf16.mxu0 0
        %1037 = vmatpush2.bf16.msra.mxu0 0
        %1038 = vmatprep.subr.bf16.mxu0 0
        %1039 = vmatpush2.bf16.msra.mxu0 0
        %1040 = vmatprep.subr.bf16.mxu0 0
        %1041 = vmatpush2.bf16.msra.mxu0 0
        %1042 = vmatprep.mubr.bf16.mxu0 0
        %1043 = vmatmul.mubr.bf16.gmra.mxu0 %v1005
        %v1044 = vpop.f32.mrf.mxu0
        %v1045 = vadd.f32 %v989, %v1044
        %v1046 = vpop.f32.mrf.mxu0
        %v1047 = vpop.f32.mrf.mxu0
        %v1048 = vadd.f32 %v989, %v1047
        %v1049 = vpop.f32.mrf.mxu0
        %1050 = vmatprep.mubr.bf16.mxu0 0
        %1051 = vmatmul.mubr.bf16.gmra.mxu0 %v1008
        %v1052 = vpop.f32.mrf.mxu0
        %v1053 = vadd.f32 %v989, %v1052
        %v1054 = vpop.f32.mrf.mxu0
        %v1055 = vpop.f32.mrf.mxu0
        %v1056 = vadd.f32 %v989, %v1055
        %v1057 = vpop.f32.mrf.mxu0
        %1058 = vdwg.mxu0
        %v1059 = vsub.f32 %v856, %v877
        %v1060 = vsub.f32 %v857, %v878
        %v1061 = vsub.f32 %v858, %v879
        %v1062 = vsub.f32 %v859, %v880
        %v1063 = vadd.f32 %v1059, %v1045
        %v1064 = vadd.f32 %v1060, %v1048
        %v1065 = vadd.f32 %v1061, %v1053
        %v1066 = vadd.f32 %v1062, %v1056
        %v1067 = vpack.c.bf16 %v1064, %v1063
        %v1068 = vpack.c.bf16 %v1066, %v1065
        %v1070 = vlaneseq
        %v1071 = vshrl.u32 %v1070, 7
        %v1072 = vsub.s32 0, %v1071
        %v1073 = vrot.slane %v871, %v1072
        %v1079 = vunpack.c.l.b16 %v867
        %v1080 = vunpack.c.l.b16 %v868
        %v1081 = vunpack.c.l.b16 %v869
        %v1082 = vunpack.c.l.b16 %v870
        %v1083 = vpack.c.b16 %v1080, %v1079
        %v1084 = vpack.c.b16 %v1082, %v1081
        %v1088 = vsel %vm1003, %v1067, 0
        %v1091 = vsel %vm1003, %v1068, 0
        %1093 = vmatprep.subr.bf16.mxu0 0
        %1094 = vmatpush1.bf16.msra.mxu0 0
        %1095 = vmatprep.subr.bf16.mxu0 0
        %1096 = vmatpush1.bf16.msra.mxu0 0
        %1097 = vmatprep.subr.bf16.mxu0 0
        %1098 = vmatpush1.bf16.msra.mxu0 0
        %1099 = vmatprep.subr.bf16.mxu0 0
        %1100 = vmatpush1.bf16.msra.mxu0 0
        %1101 = vmatprep.subr.bf16.mxu0 0
        %1102 = vmatpush1.bf16.msra.mxu0 0
        %1103 = vmatprep.subr.bf16.mxu0 0
        %1104 = vmatpush1.bf16.msra.mxu0 0
        %1105 = vmatprep.subr.bf16.mxu0 0
        %1106 = vmatpush1.bf16.msra.mxu0 %v1084
        %1107 = vmatprep.subr.bf16.mxu0 0
        %1108 = vmatpush1.bf16.msra.mxu0 %v1083
        %1109 = vmatprep.subr.bf16.mxu0 0
        %1110 = vmatpush2.bf16.msra.mxu0 0
        %1111 = vmatprep.subr.bf16.mxu0 0
        %1112 = vmatpush2.bf16.msra.mxu0 0
        %1113 = vmatprep.subr.bf16.mxu0 0
        %1114 = vmatpush2.bf16.msra.mxu0 0
        %1115 = vmatprep.subr.bf16.mxu0 0
        %1116 = vmatpush2.bf16.msra.mxu0 0
        %1117 = vmatprep.subr.bf16.mxu0 0
        %1118 = vmatpush2.bf16.msra.mxu0 0
        %1119 = vmatprep.subr.bf16.mxu0 0
        %1120 = vmatpush2.bf16.msra.mxu0 0
        %1121 = vmatprep.subr.bf16.mxu0 0
        %1122 = vmatpush2.bf16.msra.mxu0 0
        %1123 = vmatprep.subr.bf16.mxu0 0
        %1124 = vmatpush2.bf16.msra.mxu0 0
        %1125 = vmatprep.mubr.bf16.mxu0 0
        %1126 = vmatmul.mubr.bf16.gmra.mxu0 %v1088
        %v1127 = vpop.f32.mrf.mxu0
        %v1128 = vadd.f32 %v1073, %v1127
        %v1129 = vpop.f32.mrf.mxu0
        %v1130 = vpop.f32.mrf.mxu0
        %v1131 = vadd.f32 %v1073, %v1130
        %v1132 = vpop.f32.mrf.mxu0
        %1133 = vmatprep.mubr.bf16.mxu0 0
        %1134 = vmatmul.mubr.bf16.gmra.mxu0 %v1091
        %v1135 = vpop.f32.mrf.mxu0
        %v1136 = vadd.f32 %v1073, %v1135
        %v1137 = vpop.f32.mrf.mxu0
        %v1138 = vpop.f32.mrf.mxu0
        %v1139 = vadd.f32 %v1073, %v1138
        %v1140 = vpop.f32.mrf.mxu0
        %1141 = vdwg.mxu0
        %v1142 = vmax.f32 %v1128, 0.0
        %v1143 = vmax.f32 %v1131, 0.0
        %v1144 = vmax.f32 %v1136, 0.0
        %v1145 = vmax.f32 %v1139, 0.0
        %v1146 = vpack.c.bf16 %v1143, %v1142
        %v1147 = vpack.c.bf16 %v1145, %v1144
        %v1149 = vlaneseq
        %v1150 = vshrl.u32 %v1149, 7
        %v1151 = vsub.s32 0, %v1150
        %v1152 = vrot.slane %v876, %v1151
        %v1158 = vunpack.c.l.b16 %v872
        %v1159 = vunpack.c.l.b16 %v873
        %v1160 = vunpack.c.l.b16 %v874
        %v1161 = vunpack.c.l.b16 %v875
        %v1162 = vpack.c.b16 %v1159, %v1158
        %v1163 = vpack.c.b16 %v1161, %v1160
        %v1167 = vsel %vm1003, %v1146, 0
        %v1170 = vsel %vm1003, %v1147, 0
        %1172 = vmatprep.subr.bf16.mxu0 0
        %1173 = vmatpush1.bf16.msra.mxu0 0
        %1174 = vmatprep.subr.bf16.mxu0 0
        %1175 = vmatpush1.bf16.msra.mxu0 0
        %1176 = vmatprep.subr.bf16.mxu0 0
        %1177 = vmatpush1.bf16.msra.mxu0 0
        %1178 = vmatprep.subr.bf16.mxu0 0
        %1179 = vmatpush1.bf16.msra.mxu0 0
        %1180 = vmatprep.subr.bf16.mxu0 0
        %1181 = vmatpush1.bf16.msra.mxu0 0
        %1182 = vmatprep.subr.bf16.mxu0 0
        %1183 = vmatpush1.bf16.msra.mxu0 0
        %1184 = vmatprep.subr.bf16.mxu0 0
        %1185 = vmatpush1.bf16.msra.mxu0 %v1163
        %1186 = vmatprep.subr.bf16.mxu0 0
        %1187 = vmatpush1.bf16.msra.mxu0 %v1162
        %1188 = vmatprep.subr.bf16.mxu0 0
        %1189 = vmatpush2.bf16.msra.mxu0 0
        %1190 = vmatprep.subr.bf16.mxu0 0
        %1191 = vmatpush2.bf16.msra.mxu0 0
        %1192 = vmatprep.subr.bf16.mxu0 0
        %1193 = vmatpush2.bf16.msra.mxu0 0
        %1194 = vmatprep.subr.bf16.mxu0 0
        %1195 = vmatpush2.bf16.msra.mxu0 0
        %1196 = vmatprep.subr.bf16.mxu0 0
        %1197 = vmatpush2.bf16.msra.mxu0 0
        %1198 = vmatprep.subr.bf16.mxu0 0
        %1199 = vmatpush2.bf16.msra.mxu0 0
        %1200 = vmatprep.subr.bf16.mxu0 0
        %1201 = vmatpush2.bf16.msra.mxu0 0
        %1202 = vmatprep.subr.bf16.mxu0 0
        %1203 = vmatpush2.bf16.msra.mxu0 0
        %1204 = vmatprep.mubr.bf16.mxu0 0
        %1205 = vmatmul.mubr.bf16.gmra.mxu0 %v1167
        %v1206 = vpop.f32.mrf.mxu0
        %v1207 = vadd.f32 %v1152, %v1206
        %v1208 = vpop.f32.mrf.mxu0
        %v1209 = vpop.f32.mrf.mxu0
        %v1210 = vadd.f32 %v1152, %v1209
        %v1211 = vpop.f32.mrf.mxu0
        %1212 = vmatprep.mubr.bf16.mxu0 0
        %1213 = vmatmul.mubr.bf16.gmra.mxu0 %v1170
        %v1214 = vpop.f32.mrf.mxu0
        %v1215 = vadd.f32 %v1152, %v1214
        %v1216 = vpop.f32.mrf.mxu0
        %v1217 = vpop.f32.mrf.mxu0
        %v1218 = vadd.f32 %v1152, %v1217
        %v1219 = vpop.f32.mrf.mxu0
        %1220 = vdwg.mxu0
        %1225 = vrot.lane.b32.xlu0 %v1045, 32
        %v1226 = vpop.permute.xlu0 %1225
        %1227 = vrot.lane.b32.xlu0 %v1048, 32
        %v1228 = vpop.permute.xlu0 %1227
        %1229 = vrot.lane.b32.xlu0 %v1053, 32
        %v1230 = vpop.permute.xlu0 %1229
        %1231 = vrot.lane.b32.xlu0 %v1056, 32
        %v1232 = vpop.permute.xlu0 %1231
        %v1237 = vadd.f32 %v877, %v1226
        %v1238 = vadd.f32 %v878, %v1228
        %v1239 = vadd.f32 %v879, %v1230
        %v1240 = vadd.f32 %v880, %v1232
        %s1241 = scalar_lea.vmem %s771, 32 [#allocation2]
        %v1242 = vld [vmem:[%s1241] sm:$0xff]
        %v1243 = vld [vmem:[%s1241 + $0x8] sm:$0xff]
        %v1244 = vld [vmem:[%s1241 + $0x10] sm:$0xff]
        %v1245 = vld [vmem:[%s1241 + $0x18] sm:$0xff]
        %s1246 = scalar_lea.vmem %s778, 32 [#allocation3]
        %v1247 = vld [vmem:[%s1246] sm:$0xff]
        %v1248 = vld [vmem:[%s1246 + $0x8] sm:$0xff]
        %v1249 = vld [vmem:[%s1246 + $0x10] sm:$0xff]
        %v1250 = vld [vmem:[%s1246 + $0x18] sm:$0xff]
        %1252 = vset.pattern.permute.xlu0 0
        %1253 = vperm.xlu0 %1252, %v1247
        %v1254 = vpop.permute.xlu0 %1253
        %1257 = vset.pattern.permute.xlu0 0
        %1258 = vperm.xlu0 %1257, %v1248
        %v1259 = vpop.permute.xlu0 %1258
        %1262 = vset.pattern.permute.xlu0 0
        %1263 = vperm.xlu0 %1262, %v1249
        %v1264 = vpop.permute.xlu0 %1263
        %1267 = vset.pattern.permute.xlu0 0
        %1268 = vperm.xlu0 %1267, %v1250
        %v1269 = vpop.permute.xlu0 %1268
        %v1271 = vmul.f32 %v1254, %v908
        %v1272 = vmul.f32 %v1259, %v908
        %v1273 = vmul.f32 %v1264, %v908
        %v1274 = vmul.f32 %v1269, %v908
        %1275 = vset.pattern.permute.xlu0 1
        %1276 = vperm.xlu0 %1275, %v1247
        %v1277 = vpop.permute.xlu0 %1276
        %1279 = vset.pattern.permute.xlu0 1
        %1280 = vperm.xlu0 %1279, %v1248
        %v1281 = vpop.permute.xlu0 %1280
        %1283 = vset.pattern.permute.xlu0 1
        %1284 = vperm.xlu0 %1283, %v1249
        %v1285 = vpop.permute.xlu0 %1284
        %1287 = vset.pattern.permute.xlu0 1
        %1288 = vperm.xlu0 %1287, %v1250
        %v1289 = vpop.permute.xlu0 %1288
        %v1291 = vmul.f32 %v1277, %v932
        %v1292 = vmul.f32 %v1281, %v932
        %v1293 = vmul.f32 %v1285, %v932
        %v1294 = vmul.f32 %v1289, %v932
        %v1295 = vadd.f32 %v1271, %v1291
        %v1296 = vadd.f32 %v1272, %v1292
        %v1297 = vadd.f32 %v1273, %v1293
        %v1298 = vadd.f32 %v1274, %v1294
        %1299 = vset.pattern.permute.xlu0 2
        %1300 = vperm.xlu0 %1299, %v1247
        %v1301 = vpop.permute.xlu0 %1300
        %1303 = vset.pattern.permute.xlu0 2
        %1304 = vperm.xlu0 %1303, %v1248
        %v1305 = vpop.permute.xlu0 %1304
        %1307 = vset.pattern.permute.xlu0 2
        %1308 = vperm.xlu0 %1307, %v1249
        %v1309 = vpop.permute.xlu0 %1308
        %1311 = vset.pattern.permute.xlu0 2
        %1312 = vperm.xlu0 %1311, %v1250
        %v1313 = vpop.permute.xlu0 %1312
        %v1315 = vmul.f32 %v1301, %v960
        %v1316 = vmul.f32 %v1305, %v960
        %v1317 = vmul.f32 %v1309, %v960
        %v1318 = vmul.f32 %v1313, %v960
        %v1319 = vadd.f32 %v1295, %v1315
        %v1320 = vadd.f32 %v1296, %v1316
        %v1321 = vadd.f32 %v1297, %v1317
        %v1322 = vadd.f32 %v1298, %v1318
        %v1323 = vadd.f32 %v1319, %v973
        %v1324 = vadd.f32 %v1320, %v973
        %v1325 = vadd.f32 %v1321, %v973
        %v1326 = vadd.f32 %v1322, %v973
        %v1327 = vmax.f32 %v1323, 0.0
        %v1328 = vmax.f32 %v1324, 0.0
        %v1329 = vmax.f32 %v1325, 0.0
        %v1330 = vmax.f32 %v1326, 0.0
        %v1331 = vpack.c.bf16 %v1328, %v1327
        %v1332 = vpack.c.bf16 %v1330, %v1329
        %v1334 = vsel %vm1003, %v1331, 0
        %v1337 = vsel %vm1003, %v1332, 0
        %1339 = vmatprep.subr.bf16.mxu0 0
        %1340 = vmatpush1.bf16.msra.mxu0 0
        %1341 = vmatprep.subr.bf16.mxu0 0
        %1342 = vmatpush1.bf16.msra.mxu0 0
        %1343 = vmatprep.subr.bf16.mxu0 0
        %1344 = vmatpush1.bf16.msra.mxu0 0
        %1345 = vmatprep.subr.bf16.mxu0 0
        %1346 = vmatpush1.bf16.msra.mxu0 0
        %1347 = vmatprep.subr.bf16.mxu0 0
        %1348 = vmatpush1.bf16.msra.mxu0 0
        %1349 = vmatprep.subr.bf16.mxu0 0
        %1350 = vmatpush1.bf16.msra.mxu0 0
        %1351 = vmatprep.subr.bf16.mxu0 0
        %1352 = vmatpush1.bf16.msra.mxu0 %v1000
        %1353 = vmatprep.subr.bf16.mxu0 0
        %1354 = vmatpush1.bf16.msra.mxu0 %v999
        %1355 = vmatprep.subr.bf16.mxu0 0
        %1356 = vmatpush2.bf16.msra.mxu0 0
        %1357 = vmatprep.subr.bf16.mxu0 0
        %1358 = vmatpush2.bf16.msra.mxu0 0
        %1359 = vmatprep.subr.bf16.mxu0 0
        %1360 = vmatpush2.bf16.msra.mxu0 0
        %1361 = vmatprep.subr.bf16.mxu0 0
        %1362 = vmatpush2.bf16.msra.mxu0 0
        %1363 = vmatprep.subr.bf16.mxu0 0
        %1364 = vmatpush2.bf16.msra.mxu0 0
        %1365 = vmatprep.subr.bf16.mxu0 0
        %1366 = vmatpush2.bf16.msra.mxu0 0
        %1367 = vmatprep.subr.bf16.mxu0 0
        %1368 = vmatpush2.bf16.msra.mxu0 0
        %1369 = vmatprep.subr.bf16.mxu0 0
        %1370 = vmatpush2.bf16.msra.mxu0 0
        %1371 = vmatprep.mubr.bf16.mxu0 0
        %1372 = vmatmul.mubr.bf16.gmra.mxu0 %v1334
        %v1373 = vpop.f32.mrf.mxu0
        %v1374 = vadd.f32 %v989, %v1373
        %v1375 = vpop.f32.mrf.mxu0
        %v1376 = vpop.f32.mrf.mxu0
        %v1377 = vadd.f32 %v989, %v1376
        %v1378 = vpop.f32.mrf.mxu0
        %1379 = vmatprep.mubr.bf16.mxu0 0
        %1380 = vmatmul.mubr.bf16.gmra.mxu0 %v1337
        %v1381 = vpop.f32.mrf.mxu0
        %v1382 = vadd.f32 %v989, %v1381
        %v1383 = vpop.f32.mrf.mxu0
        %v1384 = vpop.f32.mrf.mxu0
        %v1385 = vadd.f32 %v989, %v1384
        %v1386 = vpop.f32.mrf.mxu0
        %1387 = vdwg.mxu0
        %v1388 = vsub.f32 %v856, %v1242
        %v1389 = vsub.f32 %v857, %v1243
        %v1390 = vsub.f32 %v858, %v1244
        %v1391 = vsub.f32 %v859, %v1245
        %v1392 = vadd.f32 %v1388, %v1374
        %v1393 = vadd.f32 %v1389, %v1377
        %v1394 = vadd.f32 %v1390, %v1382
        %v1395 = vadd.f32 %v1391, %v1385
        %v1396 = vpack.c.bf16 %v1393, %v1392
        %v1397 = vpack.c.bf16 %v1395, %v1394
        %v1399 = vsel %vm1003, %v1396, 0
        %v1402 = vsel %vm1003, %v1397, 0
        %1404 = vmatprep.subr.bf16.mxu0 0
        %1405 = vmatpush1.bf16.msra.mxu0 0
        %1406 = vmatprep.subr.bf16.mxu0 0
        %1407 = vmatpush1.bf16.msra.mxu0 0
        %1408 = vmatprep.subr.bf16.mxu0 0
        %1409 = vmatpush1.bf16.msra.mxu0 0
        %1410 = vmatprep.subr.bf16.mxu0 0
        %1411 = vmatpush1.bf16.msra.mxu0 0
        %1412 = vmatprep.subr.bf16.mxu0 0
        %1413 = vmatpush1.bf16.msra.mxu0 0
        %1414 = vmatprep.subr.bf16.mxu0 0
        %1415 = vmatpush1.bf16.msra.mxu0 0
        %1416 = vmatprep.subr.bf16.mxu0 0
        %1417 = vmatpush1.bf16.msra.mxu0 %v1084
        %1418 = vmatprep.subr.bf16.mxu0 0
        %1419 = vmatpush1.bf16.msra.mxu0 %v1083
        %1420 = vmatprep.subr.bf16.mxu0 0
        %1421 = vmatpush2.bf16.msra.mxu0 0
        %1422 = vmatprep.subr.bf16.mxu0 0
        %1423 = vmatpush2.bf16.msra.mxu0 0
        %1424 = vmatprep.subr.bf16.mxu0 0
        %1425 = vmatpush2.bf16.msra.mxu0 0
        %1426 = vmatprep.subr.bf16.mxu0 0
        %1427 = vmatpush2.bf16.msra.mxu0 0
        %1428 = vmatprep.subr.bf16.mxu0 0
        %1429 = vmatpush2.bf16.msra.mxu0 0
        %1430 = vmatprep.subr.bf16.mxu0 0
        %1431 = vmatpush2.bf16.msra.mxu0 0
        %1432 = vmatprep.subr.bf16.mxu0 0
        %1433 = vmatpush2.bf16.msra.mxu0 0
        %1434 = vmatprep.subr.bf16.mxu0 0
        %1435 = vmatpush2.bf16.msra.mxu0 0
        %1436 = vmatprep.mubr.bf16.mxu0 0
        %1437 = vmatmul.mubr.bf16.gmra.mxu0 %v1399
        %v1438 = vpop.f32.mrf.mxu0
        %v1439 = vadd.f32 %v1073, %v1438
        %v1440 = vpop.f32.mrf.mxu0
        %v1441 = vpop.f32.mrf.mxu0
        %v1442 = vadd.f32 %v1073, %v1441
        %v1443 = vpop.f32.mrf.mxu0
        %1444 = vmatprep.mubr.bf16.mxu0 0
        %1445 = vmatmul.mubr.bf16.gmra.mxu0 %v1402
        %v1446 = vpop.f32.mrf.mxu0
        %v1447 = vadd.f32 %v1073, %v1446
        %v1448 = vpop.f32.mrf.mxu0
        %v1449 = vpop.f32.mrf.mxu0
        %v1450 = vadd.f32 %v1073, %v1449
        %v1451 = vpop.f32.mrf.mxu0
        %1452 = vdwg.mxu0
        %v1453 = vmax.f32 %v1439, 0.0
        %v1454 = vmax.f32 %v1442, 0.0
        %v1455 = vmax.f32 %v1447, 0.0
        %v1456 = vmax.f32 %v1450, 0.0
        %v1457 = vpack.c.bf16 %v1454, %v1453
        %v1458 = vpack.c.bf16 %v1456, %v1455
        %v1460 = vsel %vm1003, %v1457, 0
        %v1463 = vsel %vm1003, %v1458, 0
        %1465 = vmatprep.subr.bf16.mxu0 0
        %1466 = vmatpush1.bf16.msra.mxu0 0
        %1467 = vmatprep.subr.bf16.mxu0 0
        %1468 = vmatpush1.bf16.msra.mxu0 0
        %1469 = vmatprep.subr.bf16.mxu0 0
        %1470 = vmatpush1.bf16.msra.mxu0 0
        %1471 = vmatprep.subr.bf16.mxu0 0
        %1472 = vmatpush1.bf16.msra.mxu0 0
        %1473 = vmatprep.subr.bf16.mxu0 0
        %1474 = vmatpush1.bf16.msra.mxu0 0
        %1475 = vmatprep.subr.bf16.mxu0 0
        %1476 = vmatpush1.bf16.msra.mxu0 0
        %1477 = vmatprep.subr.bf16.mxu0 0
        %1478 = vmatpush1.bf16.msra.mxu0 %v1163
        %1479 = vmatprep.subr.bf16.mxu0 0
        %1480 = vmatpush1.bf16.msra.mxu0 %v1162
        %1481 = vmatprep.subr.bf16.mxu0 0
        %1482 = vmatpush2.bf16.msra.mxu0 0
        %1483 = vmatprep.subr.bf16.mxu0 0
        %1484 = vmatpush2.bf16.msra.mxu0 0
        %1485 = vmatprep.subr.bf16.mxu0 0
        %1486 = vmatpush2.bf16.msra.mxu0 0
        %1487 = vmatprep.subr.bf16.mxu0 0
        %1488 = vmatpush2.bf16.msra.mxu0 0
        %1489 = vmatprep.subr.bf16.mxu0 0
        %1490 = vmatpush2.bf16.msra.mxu0 0
        %1491 = vmatprep.subr.bf16.mxu0 0
        %1492 = vmatpush2.bf16.msra.mxu0 0
        %1493 = vmatprep.subr.bf16.mxu0 0
        %1494 = vmatpush2.bf16.msra.mxu0 0
        %1495 = vmatprep.subr.bf16.mxu0 0
        %1496 = vmatpush2.bf16.msra.mxu0 0
        %1497 = vmatprep.mubr.bf16.mxu0 0
        %1498 = vmatmul.mubr.bf16.gmra.mxu0 %v1460
        %v1499 = vpop.f32.mrf.mxu0
        %v1500 = vadd.f32 %v1152, %v1499
        %v1501 = vpop.f32.mrf.mxu0
        %v1502 = vpop.f32.mrf.mxu0
        %v1503 = vadd.f32 %v1152, %v1502
        %v1504 = vpop.f32.mrf.mxu0
        %1505 = vmatprep.mubr.bf16.mxu0 0
        %1506 = vmatmul.mubr.bf16.gmra.mxu0 %v1463
        %v1507 = vpop.f32.mrf.mxu0
        %v1508 = vadd.f32 %v1152, %v1507
        %v1509 = vpop.f32.mrf.mxu0
        %v1510 = vpop.f32.mrf.mxu0
        %v1511 = vadd.f32 %v1152, %v1510
        %v1512 = vpop.f32.mrf.mxu0
        %1513 = vdwg.mxu0
        %1518 = vrot.lane.b32.xlu0 %v1374, 32
        %v1519 = vpop.permute.xlu0 %1518
        %1520 = vrot.lane.b32.xlu0 %v1377, 32
        %v1521 = vpop.permute.xlu0 %1520
        %1522 = vrot.lane.b32.xlu0 %v1382, 32
        %v1523 = vpop.permute.xlu0 %1522
        %1524 = vrot.lane.b32.xlu0 %v1385, 32
        %v1525 = vpop.permute.xlu0 %1524
        %v1530 = vadd.f32 %v1242, %v1519
        %v1531 = vadd.f32 %v1243, %v1521
        %v1532 = vadd.f32 %v1244, %v1523
        %v1533 = vadd.f32 %v1245, %v1525
        %v1534 = vmax.f32 %v1207, %v1500
        %v1535 = vmax.f32 %v1210, %v1503
        %v1536 = vmax.f32 %v1215, %v1508
        %v1537 = vmax.f32 %v1218, %v1511
        %v1538 = vsub.f32 %v1207, %v1534
        %v1539 = vsub.f32 %v1210, %v1535
        %v1540 = vsub.f32 %v1215, %v1536
        %v1541 = vsub.f32 %v1218, %v1537
        %v1542 = vmul.f32 %v1538, 1.442695
        %v1543 = vpow.pop %v1542
        %v1544 = vmul.f32 %v1539, 1.442695
        %v1545 = vpow.pop %v1544
        %v1546 = vmul.f32 %v1540, 1.442695
        %v1547 = vpow.pop %v1546
        %v1548 = vmul.f32 %v1541, 1.442695
        %v1549 = vpow.pop %v1548
        %v1550 = vsub.f32 %v1500, %v1534
        %v1551 = vsub.f32 %v1503, %v1535
        %v1552 = vsub.f32 %v1508, %v1536
        %v1553 = vsub.f32 %v1511, %v1537
        %v1554 = vmul.f32 %v1550, 1.442695
        %v1555 = vpow.pop %v1554
        %v1556 = vmul.f32 %v1551, 1.442695
        %v1557 = vpow.pop %v1556
        %v1558 = vmul.f32 %v1552, 1.442695
        %v1559 = vpow.pop %v1558
        %v1560 = vmul.f32 %v1553, 1.442695
        %v1561 = vpow.pop %v1560
        %v1562 = vadd.f32 %v1543, %v1555
        %v1563 = vadd.f32 %v1545, %v1557
        %v1564 = vadd.f32 %v1547, %v1559
        %v1565 = vadd.f32 %v1549, %v1561
        %1570 = vrot.lane.b32.xlu0 %v1237, 96
        %v1571 = vpop.permute.xlu0 %1570
        %1572 = vrot.lane.b32.xlu0 %v1238, 96
        %v1573 = vpop.permute.xlu0 %1572
        %1574 = vrot.lane.b32.xlu0 %v1239, 96
        %v1575 = vpop.permute.xlu0 %1574
        %1576 = vrot.lane.b32.xlu0 %v1240, 96
        %v1577 = vpop.permute.xlu0 %1576
        %v1582 = vmul.f32 %v1543, %v1571
        %v1583 = vmul.f32 %v1545, %v1573
        %v1584 = vmul.f32 %v1547, %v1575
        %v1585 = vmul.f32 %v1549, %v1577
        %1590 = vrot.lane.b32.xlu0 %v1530, 96
        %v1591 = vpop.permute.xlu0 %1590
        %1592 = vrot.lane.b32.xlu0 %v1531, 96
        %v1593 = vpop.permute.xlu0 %1592
        %1594 = vrot.lane.b32.xlu0 %v1532, 96
        %v1595 = vpop.permute.xlu0 %1594
        %1596 = vrot.lane.b32.xlu0 %v1533, 96
        %v1597 = vpop.permute.xlu0 %1596
        %v1602 = vmul.f32 %v1555, %v1591
        %v1603 = vmul.f32 %v1557, %v1593
        %v1604 = vmul.f32 %v1559, %v1595
        %v1605 = vmul.f32 %v1561, %v1597
        %v1606 = vadd.f32 %v1582, %v1602
        %v1607 = vadd.f32 %v1583, %v1603
        %v1608 = vadd.f32 %v1584, %v1604
        %v1609 = vadd.f32 %v1585, %v1605
        %s1610 = scalar_lea.vmem %s771, 64 [#allocation2]
        %v1611 = vld [vmem:[%s1610] sm:$0xff]
        %v1612 = vld [vmem:[%s1610 + $0x8] sm:$0xff]
        %v1613 = vld [vmem:[%s1610 + $0x10] sm:$0xff]
        %v1614 = vld [vmem:[%s1610 + $0x18] sm:$0xff]
        %s1615 = scalar_lea.vmem %s778, 64 [#allocation3]
        %v1616 = vld [vmem:[%s1615] sm:$0xff]
        %v1617 = vld [vmem:[%s1615 + $0x8] sm:$0xff]
        %v1618 = vld [vmem:[%s1615 + $0x10] sm:$0xff]
        %v1619 = vld [vmem:[%s1615 + $0x18] sm:$0xff]
        %1621 = vset.pattern.permute.xlu0 0
        %1622 = vperm.xlu0 %1621, %v1616
        %v1623 = vpop.permute.xlu0 %1622
        %1626 = vset.pattern.permute.xlu0 0
        %1627 = vperm.xlu0 %1626, %v1617
        %v1628 = vpop.permute.xlu0 %1627
        %1631 = vset.pattern.permute.xlu0 0
        %1632 = vperm.xlu0 %1631, %v1618
        %v1633 = vpop.permute.xlu0 %1632
        %1636 = vset.pattern.permute.xlu0 0
        %1637 = vperm.xlu0 %1636, %v1619
        %v1638 = vpop.permute.xlu0 %1637
        %v1640 = vmul.f32 %v1623, %v908
        %v1641 = vmul.f32 %v1628, %v908
        %v1642 = vmul.f32 %v1633, %v908
        %v1643 = vmul.f32 %v1638, %v908
        %1644 = vset.pattern.permute.xlu0 1
        %1645 = vperm.xlu0 %1644, %v1616
        %v1646 = vpop.permute.xlu0 %1645
        %1648 = vset.pattern.permute.xlu0 1
        %1649 = vperm.xlu0 %1648, %v1617
        %v1650 = vpop.permute.xlu0 %1649
        %1652 = vset.pattern.permute.xlu0 1
        %1653 = vperm.xlu0 %1652, %v1618
        %v1654 = vpop.permute.xlu0 %1653
        %1656 = vset.pattern.permute.xlu0 1
        %1657 = vperm.xlu0 %1656, %v1619
        %v1658 = vpop.permute.xlu0 %1657
        %v1660 = vmul.f32 %v1646, %v932
        %v1661 = vmul.f32 %v1650, %v932
        %v1662 = vmul.f32 %v1654, %v932
        %v1663 = vmul.f32 %v1658, %v932
        %v1664 = vadd.f32 %v1640, %v1660
        %v1665 = vadd.f32 %v1641, %v1661
        %v1666 = vadd.f32 %v1642, %v1662
        %v1667 = vadd.f32 %v1643, %v1663
        %1668 = vset.pattern.permute.xlu0 2
        %1669 = vperm.xlu0 %1668, %v1616
        %v1670 = vpop.permute.xlu0 %1669
        %1672 = vset.pattern.permute.xlu0 2
        %1673 = vperm.xlu0 %1672, %v1617
        %v1674 = vpop.permute.xlu0 %1673
        %1676 = vset.pattern.permute.xlu0 2
        %1677 = vperm.xlu0 %1676, %v1618
        %v1678 = vpop.permute.xlu0 %1677
        %1680 = vset.pattern.permute.xlu0 2
        %1681 = vperm.xlu0 %1680, %v1619
        %v1682 = vpop.permute.xlu0 %1681
        %v1684 = vmul.f32 %v1670, %v960
        %v1685 = vmul.f32 %v1674, %v960
        %v1686 = vmul.f32 %v1678, %v960
        %v1687 = vmul.f32 %v1682, %v960
        %v1688 = vadd.f32 %v1664, %v1684
        %v1689 = vadd.f32 %v1665, %v1685
        %v1690 = vadd.f32 %v1666, %v1686
        %v1691 = vadd.f32 %v1667, %v1687
        %v1692 = vadd.f32 %v1688, %v973
        %v1693 = vadd.f32 %v1689, %v973
        %v1694 = vadd.f32 %v1690, %v973
        %v1695 = vadd.f32 %v1691, %v973
        %v1696 = vmax.f32 %v1692, 0.0
        %v1697 = vmax.f32 %v1693, 0.0
        %v1698 = vmax.f32 %v1694, 0.0
        %v1699 = vmax.f32 %v1695, 0.0
        %v1700 = vpack.c.bf16 %v1697, %v1696
        %v1701 = vpack.c.bf16 %v1699, %v1698
        %v1703 = vsel %vm1003, %v1700, 0
        %v1706 = vsel %vm1003, %v1701, 0
        %1708 = vmatprep.subr.bf16.mxu0 0
        %1709 = vmatpush1.bf16.msra.mxu0 0
        %1710 = vmatprep.subr.bf16.mxu0 0
        %1711 = vmatpush1.bf16.msra.mxu0 0
        %1712 = vmatprep.subr.bf16.mxu0 0
        %1713 = vmatpush1.bf16.msra.mxu0 0
        %1714 = vmatprep.subr.bf16.mxu0 0
        %1715 = vmatpush1.bf16.msra.mxu0 0
        %1716 = vmatprep.subr.bf16.mxu0 0
        %1717 = vmatpush1.bf16.msra.mxu0 0
        %1718 = vmatprep.subr.bf16.mxu0 0
        %1719 = vmatpush1.bf16.msra.mxu0 0
        %1720 = vmatprep.subr.bf16.mxu0 0
        %1721 = vmatpush1.bf16.msra.mxu0 %v1000
        %1722 = vmatprep.subr.bf16.mxu0 0
        %1723 = vmatpush1.bf16.msra.mxu0 %v999
        %1724 = vmatprep.subr.bf16.mxu0 0
        %1725 = vmatpush2.bf16.msra.mxu0 0
        %1726 = vmatprep.subr.bf16.mxu0 0
        %1727 = vmatpush2.bf16.msra.mxu0 0
        %1728 = vmatprep.subr.bf16.mxu0 0
        %1729 = vmatpush2.bf16.msra.mxu0 0
        %1730 = vmatprep.subr.bf16.mxu0 0
        %1731 = vmatpush2.bf16.msra.mxu0 0
        %1732 = vmatprep.subr.bf16.mxu0 0
        %1733 = vmatpush2.bf16.msra.mxu0 0
        %1734 = vmatprep.subr.bf16.mxu0 0
        %1735 = vmatpush2.bf16.msra.mxu0 0
        %1736 = vmatprep.subr.bf16.mxu0 0
        %1737 = vmatpush2.bf16.msra.mxu0 0
        %1738 = vmatprep.subr.bf16.mxu0 0
        %1739 = vmatpush2.bf16.msra.mxu0 0
        %1740 = vmatprep.mubr.bf16.mxu0 0
        %1741 = vmatmul.mubr.bf16.gmra.mxu0 %v1703
        %v1742 = vpop.f32.mrf.mxu0
        %v1743 = vadd.f32 %v989, %v1742
        %v1744 = vpop.f32.mrf.mxu0
        %v1745 = vpop.f32.mrf.mxu0
        %v1746 = vadd.f32 %v989, %v1745
        %v1747 = vpop.f32.mrf.mxu0
        %1748 = vmatprep.mubr.bf16.mxu0 0
        %1749 = vmatmul.mubr.bf16.gmra.mxu0 %v1706
        %v1750 = vpop.f32.mrf.mxu0
        %v1751 = vadd.f32 %v989, %v1750
        %v1752 = vpop.f32.mrf.mxu0
        %v1753 = vpop.f32.mrf.mxu0
        %v1754 = vadd.f32 %v989, %v1753
        %v1755 = vpop.f32.mrf.mxu0
        %1756 = vdwg.mxu0
        %v1757 = vsub.f32 %v856, %v1611
        %v1758 = vsub.f32 %v857, %v1612
        %v1759 = vsub.f32 %v858, %v1613
        %v1760 = vsub.f32 %v859, %v1614
        %v1761 = vadd.f32 %v1757, %v1743
        %v1762 = vadd.f32 %v1758, %v1746
        %v1763 = vadd.f32 %v1759, %v1751
        %v1764 = vadd.f32 %v1760, %v1754
        %v1765 = vpack.c.bf16 %v1762, %v1761
        %v1766 = vpack.c.bf16 %v1764, %v1763
        %v1768 = vsel %vm1003, %v1765, 0
        %v1771 = vsel %vm1003, %v1766, 0
        %1773 = vmatprep.subr.bf16.mxu0 0
        %1774 = vmatpush1.bf16.msra.mxu0 0
        %1775 = vmatprep.subr.bf16.mxu0 0
        %1776 = vmatpush1.bf16.msra.mxu0 0
        %1777 = vmatprep.subr.bf16.mxu0 0
        %1778 = vmatpush1.bf16.msra.mxu0 0
        %1779 = vmatprep.subr.bf16.mxu0 0
        %1780 = vmatpush1.bf16.msra.mxu0 0
        %1781 = vmatprep.subr.bf16.mxu0 0
        %1782 = vmatpush1.bf16.msra.mxu0 0
        %1783 = vmatprep.subr.bf16.mxu0 0
        %1784 = vmatpush1.bf16.msra.mxu0 0
        %1785 = vmatprep.subr.bf16.mxu0 0
        %1786 = vmatpush1.bf16.msra.mxu0 %v1084
        %1787 = vmatprep.subr.bf16.mxu0 0
        %1788 = vmatpush1.bf16.msra.mxu0 %v1083
        %1789 = vmatprep.subr.bf16.mxu0 0
        %1790 = vmatpush2.bf16.msra.mxu0 0
        %1791 = vmatprep.subr.bf16.mxu0 0
        %1792 = vmatpush2.bf16.msra.mxu0 0
        %1793 = vmatprep.subr.bf16.mxu0 0
        %1794 = vmatpush2.bf16.msra.mxu0 0
        %1795 = vmatprep.subr.bf16.mxu0 0
        %1796 = vmatpush2.bf16.msra.mxu0 0
        %1797 = vmatprep.subr.bf16.mxu0 0
        %1798 = vmatpush2.bf16.msra.mxu0 0
        %1799 = vmatprep.subr.bf16.mxu0 0
        %1800 = vmatpush2.bf16.msra.mxu0 0
        %1801 = vmatprep.subr.bf16.mxu0 0
        %1802 = vmatpush2.bf16.msra.mxu0 0
        %1803 = vmatprep.subr.bf16.mxu0 0
        %1804 = vmatpush2.bf16.msra.mxu0 0
        %1805 = vmatprep.mubr.bf16.mxu0 0
        %1806 = vmatmul.mubr.bf16.gmra.mxu0 %v1768
        %v1807 = vpop.f32.mrf.mxu0
        %v1808 = vadd.f32 %v1073, %v1807
        %v1809 = vpop.f32.mrf.mxu0
        %v1810 = vpop.f32.mrf.mxu0
        %v1811 = vadd.f32 %v1073, %v1810
        %v1812 = vpop.f32.mrf.mxu0
        %1813 = vmatprep.mubr.bf16.mxu0 0
        %1814 = vmatmul.mubr.bf16.gmra.mxu0 %v1771
        %v1815 = vpop.f32.mrf.mxu0
        %v1816 = vadd.f32 %v1073, %v1815
        %v1817 = vpop.f32.mrf.mxu0
        %v1818 = vpop.f32.mrf.mxu0
        %v1819 = vadd.f32 %v1073, %v1818
        %v1820 = vpop.f32.mrf.mxu0
        %1821 = vdwg.mxu0
        %v1822 = vmax.f32 %v1808, 0.0
        %v1823 = vmax.f32 %v1811, 0.0
        %v1824 = vmax.f32 %v1816, 0.0
        %v1825 = vmax.f32 %v1819, 0.0
        %v1826 = vpack.c.bf16 %v1823, %v1822
        %v1827 = vpack.c.bf16 %v1825, %v1824
        %v1829 = vsel %vm1003, %v1826, 0
        %v1832 = vsel %vm1003, %v1827, 0
        %1834 = vmatprep.subr.bf16.mxu0 0
        %1835 = vmatpush1.bf16.msra.mxu0 0
        %1836 = vmatprep.subr.bf16.mxu0 0
        %1837 = vmatpush1.bf16.msra.mxu0 0
        %1838 = vmatprep.subr.bf16.mxu0 0
        %1839 = vmatpush1.bf16.msra.mxu0 0
        %1840 = vmatprep.subr.bf16.mxu0 0
        %1841 = vmatpush1.bf16.msra.mxu0 0
        %1842 = vmatprep.subr.bf16.mxu0 0
        %1843 = vmatpush1.bf16.msra.mxu0 0
        %1844 = vmatprep.subr.bf16.mxu0 0
        %1845 = vmatpush1.bf16.msra.mxu0 0
        %1846 = vmatprep.subr.bf16.mxu0 0
        %1847 = vmatpush1.bf16.msra.mxu0 %v1163
        %1848 = vmatprep.subr.bf16.mxu0 0
        %1849 = vmatpush1.bf16.msra.mxu0 %v1162
        %1850 = vmatprep.subr.bf16.mxu0 0
        %1851 = vmatpush2.bf16.msra.mxu0 0
        %1852 = vmatprep.subr.bf16.mxu0 0
        %1853 = vmatpush2.bf16.msra.mxu0 0
        %1854 = vmatprep.subr.bf16.mxu0 0
        %1855 = vmatpush2.bf16.msra.mxu0 0
        %1856 = vmatprep.subr.bf16.mxu0 0
        %1857 = vmatpush2.bf16.msra.mxu0 0
        %1858 = vmatprep.subr.bf16.mxu0 0
        %1859 = vmatpush2.bf16.msra.mxu0 0
        %1860 = vmatprep.subr.bf16.mxu0 0
        %1861 = vmatpush2.bf16.msra.mxu0 0
        %1862 = vmatprep.subr.bf16.mxu0 0
        %1863 = vmatpush2.bf16.msra.mxu0 0
        %1864 = vmatprep.subr.bf16.mxu0 0
        %1865 = vmatpush2.bf16.msra.mxu0 0
        %1866 = vmatprep.mubr.bf16.mxu0 0
        %1867 = vmatmul.mubr.bf16.gmra.mxu0 %v1829
        %v1868 = vpop.f32.mrf.mxu0
        %v1869 = vadd.f32 %v1152, %v1868
        %v1870 = vpop.f32.mrf.mxu0
        %v1871 = vpop.f32.mrf.mxu0
        %v1872 = vadd.f32 %v1152, %v1871
        %v1873 = vpop.f32.mrf.mxu0
        %1874 = vmatprep.mubr.bf16.mxu0 0
        %1875 = vmatmul.mubr.bf16.gmra.mxu0 %v1832
        %v1876 = vpop.f32.mrf.mxu0
        %v1877 = vadd.f32 %v1152, %v1876
        %v1878 = vpop.f32.mrf.mxu0
        %v1879 = vpop.f32.mrf.mxu0
        %v1880 = vadd.f32 %v1152, %v1879
        %v1881 = vpop.f32.mrf.mxu0
        %1882 = vdwg.mxu0
        %1887 = vrot.lane.b32.xlu0 %v1743, 32
        %v1888 = vpop.permute.xlu0 %1887
        %1889 = vrot.lane.b32.xlu0 %v1746, 32
        %v1890 = vpop.permute.xlu0 %1889
        %1891 = vrot.lane.b32.xlu0 %v1751, 32
        %v1892 = vpop.permute.xlu0 %1891
        %1893 = vrot.lane.b32.xlu0 %v1754, 32
        %v1894 = vpop.permute.xlu0 %1893
        %v1899 = vadd.f32 %v1611, %v1888
        %v1900 = vadd.f32 %v1612, %v1890
        %v1901 = vadd.f32 %v1613, %v1892
        %v1902 = vadd.f32 %v1614, %v1894
        %v1903 = vmax.f32 %v1534, %v1869
        %v1904 = vmax.f32 %v1535, %v1872
        %v1905 = vmax.f32 %v1536, %v1877
        %v1906 = vmax.f32 %v1537, %v1880
        %v1907 = vsub.f32 %v1534, %v1903
        %v1908 = vsub.f32 %v1535, %v1904
        %v1909 = vsub.f32 %v1536, %v1905
        %v1910 = vsub.f32 %v1537, %v1906
        %v1911 = vmul.f32 %v1907, 1.442695
        %v1912 = vpow.pop %v1911
        %v1913 = vmul.f32 %v1908, 1.442695
        %v1914 = vpow.pop %v1913
        %v1915 = vmul.f32 %v1909, 1.442695
        %v1916 = vpow.pop %v1915
        %v1917 = vmul.f32 %v1910, 1.442695
        %v1918 = vpow.pop %v1917
        %v1919 = vsub.f32 %v1869, %v1903
        %v1920 = vsub.f32 %v1872, %v1904
        %v1921 = vsub.f32 %v1877, %v1905
        %v1922 = vsub.f32 %v1880, %v1906
        %v1923 = vmul.f32 %v1919, 1.442695
        %v1924 = vpow.pop %v1923
        %v1925 = vmul.f32 %v1920, 1.442695
        %v1926 = vpow.pop %v1925
        %v1927 = vmul.f32 %v1921, 1.442695
        %v1928 = vpow.pop %v1927
        %v1929 = vmul.f32 %v1922, 1.442695
        %v1930 = vpow.pop %v1929
        %v1931 = vmul.f32 %v1912, %v1562
        %v1932 = vmul.f32 %v1914, %v1563
        %v1933 = vmul.f32 %v1916, %v1564
        %v1934 = vmul.f32 %v1918, %v1565
        %v1935 = vadd.f32 %v1931, %v1924
        %v1936 = vadd.f32 %v1932, %v1926
        %v1937 = vadd.f32 %v1933, %v1928
        %v1938 = vadd.f32 %v1934, %v1930
        %v1939 = vmul.f32 %v1912, %v1606
        %v1940 = vmul.f32 %v1914, %v1607
        %v1941 = vmul.f32 %v1916, %v1608
        %v1942 = vmul.f32 %v1918, %v1609
        %1947 = vrot.lane.b32.xlu0 %v1899, 96
        %v1948 = vpop.permute.xlu0 %1947
        %1949 = vrot.lane.b32.xlu0 %v1900, 96
        %v1950 = vpop.permute.xlu0 %1949
        %1951 = vrot.lane.b32.xlu0 %v1901, 96
        %v1952 = vpop.permute.xlu0 %1951
        %1953 = vrot.lane.b32.xlu0 %v1902, 96
        %v1954 = vpop.permute.xlu0 %1953
        %v1959 = vmul.f32 %v1924, %v1948
        %v1960 = vmul.f32 %v1926, %v1950
        %v1961 = vmul.f32 %v1928, %v1952
        %v1962 = vmul.f32 %v1930, %v1954
        %v1963 = vadd.f32 %v1939, %v1959
        %v1964 = vadd.f32 %v1940, %v1960
        %v1965 = vadd.f32 %v1941, %v1961
        %v1966 = vadd.f32 %v1942, %v1962
        %s1967 = scalar_lea.vmem %s771, 96 [#allocation2]
        %v1968 = vld [vmem:[%s1967] sm:$0xff]
        %v1969 = vld [vmem:[%s1967 + $0x8] sm:$0xff]
        %v1970 = vld [vmem:[%s1967 + $0x10] sm:$0xff]
        %v1971 = vld [vmem:[%s1967 + $0x18] sm:$0xff]
        %s1972 = scalar_lea.vmem %s778, 96 [#allocation3]
        %v1973 = vld [vmem:[%s1972] sm:$0xff]
        %v1974 = vld [vmem:[%s1972 + $0x8] sm:$0xff]
        %v1975 = vld [vmem:[%s1972 + $0x10] sm:$0xff]
        %v1976 = vld [vmem:[%s1972 + $0x18] sm:$0xff]
        %1978 = vset.pattern.permute.xlu0 0
        %1979 = vperm.xlu0 %1978, %v1973
        %v1980 = vpop.permute.xlu0 %1979
        %1983 = vset.pattern.permute.xlu0 0
        %1984 = vperm.xlu0 %1983, %v1974
        %v1985 = vpop.permute.xlu0 %1984
        %1988 = vset.pattern.permute.xlu0 0
        %1989 = vperm.xlu0 %1988, %v1975
        %v1990 = vpop.permute.xlu0 %1989
        %1993 = vset.pattern.permute.xlu0 0
        %1994 = vperm.xlu0 %1993, %v1976
        %v1995 = vpop.permute.xlu0 %1994
        %v1997 = vmul.f32 %v1980, %v908
        %v1998 = vmul.f32 %v1985, %v908
        %v1999 = vmul.f32 %v1990, %v908
        %v2000 = vmul.f32 %v1995, %v908
        %2001 = vset.pattern.permute.xlu0 1
        %2002 = vperm.xlu0 %2001, %v1973
        %v2003 = vpop.permute.xlu0 %2002
        %2005 = vset.pattern.permute.xlu0 1
        %2006 = vperm.xlu0 %2005, %v1974
        %v2007 = vpop.permute.xlu0 %2006
        %2009 = vset.pattern.permute.xlu0 1
        %2010 = vperm.xlu0 %2009, %v1975
        %v2011 = vpop.permute.xlu0 %2010
        %2013 = vset.pattern.permute.xlu0 1
        %2014 = vperm.xlu0 %2013, %v1976
        %v2015 = vpop.permute.xlu0 %2014
        %v2017 = vmul.f32 %v2003, %v932
        %v2018 = vmul.f32 %v2007, %v932
        %v2019 = vmul.f32 %v2011, %v932
        %v2020 = vmul.f32 %v2015, %v932
        %v2021 = vadd.f32 %v1997, %v2017
        %v2022 = vadd.f32 %v1998, %v2018
        %v2023 = vadd.f32 %v1999, %v2019
        %v2024 = vadd.f32 %v2000, %v2020
        %2025 = vset.pattern.permute.xlu0 2
        %2026 = vperm.xlu0 %2025, %v1973
        %v2027 = vpop.permute.xlu0 %2026
        %2029 = vset.pattern.permute.xlu0 2
        %2030 = vperm.xlu0 %2029, %v1974
        %v2031 = vpop.permute.xlu0 %2030
        %2033 = vset.pattern.permute.xlu0 2
        %2034 = vperm.xlu0 %2033, %v1975
        %v2035 = vpop.permute.xlu0 %2034
        %2037 = vset.pattern.permute.xlu0 2
        %2038 = vperm.xlu0 %2037, %v1976
        %v2039 = vpop.permute.xlu0 %2038
        %v2041 = vmul.f32 %v2027, %v960
        %v2042 = vmul.f32 %v2031, %v960
        %v2043 = vmul.f32 %v2035, %v960
        %v2044 = vmul.f32 %v2039, %v960
        %v2045 = vadd.f32 %v2021, %v2041
        %v2046 = vadd.f32 %v2022, %v2042
        %v2047 = vadd.f32 %v2023, %v2043
        %v2048 = vadd.f32 %v2024, %v2044
        %v2049 = vadd.f32 %v2045, %v973
        %v2050 = vadd.f32 %v2046, %v973
        %v2051 = vadd.f32 %v2047, %v973
        %v2052 = vadd.f32 %v2048, %v973
        %v2053 = vmax.f32 %v2049, 0.0
        %v2054 = vmax.f32 %v2050, 0.0
        %v2055 = vmax.f32 %v2051, 0.0
        %v2056 = vmax.f32 %v2052, 0.0
        %v2057 = vpack.c.bf16 %v2054, %v2053
        %v2058 = vpack.c.bf16 %v2056, %v2055
        %v2060 = vsel %vm1003, %v2057, 0
        %v2063 = vsel %vm1003, %v2058, 0
        %2065 = vmatprep.subr.bf16.mxu0 0
        %2066 = vmatpush1.bf16.msra.mxu0 0
        %2067 = vmatprep.subr.bf16.mxu0 0
        %2068 = vmatpush1.bf16.msra.mxu0 0
        %2069 = vmatprep.subr.bf16.mxu0 0
        %2070 = vmatpush1.bf16.msra.mxu0 0
        %2071 = vmatprep.subr.bf16.mxu0 0
        %2072 = vmatpush1.bf16.msra.mxu0 0
        %2073 = vmatprep.subr.bf16.mxu0 0
        %2074 = vmatpush1.bf16.msra.mxu0 0
        %2075 = vmatprep.subr.bf16.mxu0 0
        %2076 = vmatpush1.bf16.msra.mxu0 0
        %2077 = vmatprep.subr.bf16.mxu0 0
        %2078 = vmatpush1.bf16.msra.mxu0 %v1000
        %2079 = vmatprep.subr.bf16.mxu0 0
        %2080 = vmatpush1.bf16.msra.mxu0 %v999
        %2081 = vmatprep.subr.bf16.mxu0 0
        %2082 = vmatpush2.bf16.msra.mxu0 0
        %2083 = vmatprep.subr.bf16.mxu0 0
        %2084 = vmatpush2.bf16.msra.mxu0 0
        %2085 = vmatprep.subr.bf16.mxu0 0
        %2086 = vmatpush2.bf16.msra.mxu0 0
        %2087 = vmatprep.subr.bf16.mxu0 0
        %2088 = vmatpush2.bf16.msra.mxu0 0
        %2089 = vmatprep.subr.bf16.mxu0 0
        %2090 = vmatpush2.bf16.msra.mxu0 0
        %2091 = vmatprep.subr.bf16.mxu0 0
        %2092 = vmatpush2.bf16.msra.mxu0 0
        %2093 = vmatprep.subr.bf16.mxu0 0
        %2094 = vmatpush2.bf16.msra.mxu0 0
        %2095 = vmatprep.subr.bf16.mxu0 0
        %2096 = vmatpush2.bf16.msra.mxu0 0
        %2097 = vmatprep.mubr.bf16.mxu0 0
        %2098 = vmatmul.mubr.bf16.gmra.mxu0 %v2060
        %v2099 = vpop.f32.mrf.mxu0
        %v2100 = vadd.f32 %v989, %v2099
        %v2101 = vpop.f32.mrf.mxu0
        %v2102 = vpop.f32.mrf.mxu0
        %v2103 = vadd.f32 %v989, %v2102
        %v2104 = vpop.f32.mrf.mxu0
        %2105 = vmatprep.mubr.bf16.mxu0 0
        %2106 = vmatmul.mubr.bf16.gmra.mxu0 %v2063
        %v2107 = vpop.f32.mrf.mxu0
        %v2108 = vadd.f32 %v989, %v2107
        %v2109 = vpop.f32.mrf.mxu0
        %v2110 = vpop.f32.mrf.mxu0
        %v2111 = vadd.f32 %v989, %v2110
        %v2112 = vpop.f32.mrf.mxu0
        %2113 = vdwg.mxu0
        %v2114 = vsub.f32 %v856, %v1968
        %v2115 = vsub.f32 %v857, %v1969
        %v2116 = vsub.f32 %v858, %v1970
        %v2117 = vsub.f32 %v859, %v1971
        %v2118 = vadd.f32 %v2114, %v2100
        %v2119 = vadd.f32 %v2115, %v2103
        %v2120 = vadd.f32 %v2116, %v2108
        %v2121 = vadd.f32 %v2117, %v2111
        %v2122 = vpack.c.bf16 %v2119, %v2118
        %v2123 = vpack.c.bf16 %v2121, %v2120
        %v2125 = vsel %vm1003, %v2122, 0
        %v2128 = vsel %vm1003, %v2123, 0
        %2130 = vmatprep.subr.bf16.mxu0 0
        %2131 = vmatpush1.bf16.msra.mxu0 0
        %2132 = vmatprep.subr.bf16.mxu0 0
        %2133 = vmatpush1.bf16.msra.mxu0 0
        %2134 = vmatprep.subr.bf16.mxu0 0
        %2135 = vmatpush1.bf16.msra.mxu0 0
        %2136 = vmatprep.subr.bf16.mxu0 0
        %2137 = vmatpush1.bf16.msra.mxu0 0
        %2138 = vmatprep.subr.bf16.mxu0 0
        %2139 = vmatpush1.bf16.msra.mxu0 0
        %2140 = vmatprep.subr.bf16.mxu0 0
        %2141 = vmatpush1.bf16.msra.mxu0 0
        %2142 = vmatprep.subr.bf16.mxu0 0
        %2143 = vmatpush1.bf16.msra.mxu0 %v1084
        %2144 = vmatprep.subr.bf16.mxu0 0
        %2145 = vmatpush1.bf16.msra.mxu0 %v1083
        %2146 = vmatprep.subr.bf16.mxu0 0
        %2147 = vmatpush2.bf16.msra.mxu0 0
        %2148 = vmatprep.subr.bf16.mxu0 0
        %2149 = vmatpush2.bf16.msra.mxu0 0
        %2150 = vmatprep.subr.bf16.mxu0 0
        %2151 = vmatpush2.bf16.msra.mxu0 0
        %2152 = vmatprep.subr.bf16.mxu0 0
        %2153 = vmatpush2.bf16.msra.mxu0 0
        %2154 = vmatprep.subr.bf16.mxu0 0
        %2155 = vmatpush2.bf16.msra.mxu0 0
        %2156 = vmatprep.subr.bf16.mxu0 0
        %2157 = vmatpush2.bf16.msra.mxu0 0
        %2158 = vmatprep.subr.bf16.mxu0 0
        %2159 = vmatpush2.bf16.msra.mxu0 0
        %2160 = vmatprep.subr.bf16.mxu0 0
        %2161 = vmatpush2.bf16.msra.mxu0 0
        %2162 = vmatprep.mubr.bf16.mxu0 0
        %2163 = vmatmul.mubr.bf16.gmra.mxu0 %v2125
        %v2164 = vpop.f32.mrf.mxu0
        %v2165 = vadd.f32 %v1073, %v2164
        %v2166 = vpop.f32.mrf.mxu0
        %v2167 = vpop.f32.mrf.mxu0
        %v2168 = vadd.f32 %v1073, %v2167
        %v2169 = vpop.f32.mrf.mxu0
        %2170 = vmatprep.mubr.bf16.mxu0 0
        %2171 = vmatmul.mubr.bf16.gmra.mxu0 %v2128
        %v2172 = vpop.f32.mrf.mxu0
        %v2173 = vadd.f32 %v1073, %v2172
        %v2174 = vpop.f32.mrf.mxu0
        %v2175 = vpop.f32.mrf.mxu0
        %v2176 = vadd.f32 %v1073, %v2175
        %v2177 = vpop.f32.mrf.mxu0
        %2178 = vdwg.mxu0
        %v2179 = vmax.f32 %v2165, 0.0
        %v2180 = vmax.f32 %v2168, 0.0
        %v2181 = vmax.f32 %v2173, 0.0
        %v2182 = vmax.f32 %v2176, 0.0
        %v2183 = vpack.c.bf16 %v2180, %v2179
        %v2184 = vpack.c.bf16 %v2182, %v2181
        %v2186 = vsel %vm1003, %v2183, 0
        %v2189 = vsel %vm1003, %v2184, 0
        %2191 = vmatprep.subr.bf16.mxu0 0
        %2192 = vmatpush1.bf16.msra.mxu0 0
        %2193 = vmatprep.subr.bf16.mxu0 0
        %2194 = vmatpush1.bf16.msra.mxu0 0
        %2195 = vmatprep.subr.bf16.mxu0 0
        %2196 = vmatpush1.bf16.msra.mxu0 0
        %2197 = vmatprep.subr.bf16.mxu0 0
        %2198 = vmatpush1.bf16.msra.mxu0 0
        %2199 = vmatprep.subr.bf16.mxu0 0
        %2200 = vmatpush1.bf16.msra.mxu0 0
        %2201 = vmatprep.subr.bf16.mxu0 0
        %2202 = vmatpush1.bf16.msra.mxu0 0
        %2203 = vmatprep.subr.bf16.mxu0 0
        %2204 = vmatpush1.bf16.msra.mxu0 %v1163
        %2205 = vmatprep.subr.bf16.mxu0 0
        %2206 = vmatpush1.bf16.msra.mxu0 %v1162
        %2207 = vmatprep.subr.bf16.mxu0 0
        %2208 = vmatpush2.bf16.msra.mxu0 0
        %2209 = vmatprep.subr.bf16.mxu0 0
        %2210 = vmatpush2.bf16.msra.mxu0 0
        %2211 = vmatprep.subr.bf16.mxu0 0
        %2212 = vmatpush2.bf16.msra.mxu0 0
        %2213 = vmatprep.subr.bf16.mxu0 0
        %2214 = vmatpush2.bf16.msra.mxu0 0
        %2215 = vmatprep.subr.bf16.mxu0 0
        %2216 = vmatpush2.bf16.msra.mxu0 0
        %2217 = vmatprep.subr.bf16.mxu0 0
        %2218 = vmatpush2.bf16.msra.mxu0 0
        %2219 = vmatprep.subr.bf16.mxu0 0
        %2220 = vmatpush2.bf16.msra.mxu0 0
        %2221 = vmatprep.subr.bf16.mxu0 0
        %2222 = vmatpush2.bf16.msra.mxu0 0
        %2223 = vmatprep.mubr.bf16.mxu0 0
        %2224 = vmatmul.mubr.bf16.gmra.mxu0 %v2186
        %v2225 = vpop.f32.mrf.mxu0
        %v2226 = vadd.f32 %v1152, %v2225
        %v2227 = vpop.f32.mrf.mxu0
        %v2228 = vpop.f32.mrf.mxu0
        %v2229 = vadd.f32 %v1152, %v2228
        %v2230 = vpop.f32.mrf.mxu0
        %2231 = vmatprep.mubr.bf16.mxu0 0
        %2232 = vmatmul.mubr.bf16.gmra.mxu0 %v2189
        %v2233 = vpop.f32.mrf.mxu0
        %v2234 = vadd.f32 %v1152, %v2233
        %v2235 = vpop.f32.mrf.mxu0
        %v2236 = vpop.f32.mrf.mxu0
        %v2237 = vadd.f32 %v1152, %v2236
        %v2238 = vpop.f32.mrf.mxu0
        %2239 = vdwg.mxu0
        %2244 = vrot.lane.b32.xlu0 %v2100, 32
        %v2245 = vpop.permute.xlu0 %2244
        %2246 = vrot.lane.b32.xlu0 %v2103, 32
        %v2247 = vpop.permute.xlu0 %2246
        %2248 = vrot.lane.b32.xlu0 %v2108, 32
        %v2249 = vpop.permute.xlu0 %2248
        %2250 = vrot.lane.b32.xlu0 %v2111, 32
        %v2251 = vpop.permute.xlu0 %2250
        %v2256 = vadd.f32 %v1968, %v2245
        %v2257 = vadd.f32 %v1969, %v2247
        %v2258 = vadd.f32 %v1970, %v2249
        %v2259 = vadd.f32 %v1971, %v2251
        %v2260 = vmax.f32 %v1903, %v2226
        %v2261 = vmax.f32 %v1904, %v2229
        %v2262 = vmax.f32 %v1905, %v2234
        %v2263 = vmax.f32 %v1906, %v2237
        %v2264 = vsub.f32 %v1903, %v2260
        %v2265 = vsub.f32 %v1904, %v2261
        %v2266 = vsub.f32 %v1905, %v2262
        %v2267 = vsub.f32 %v1906, %v2263
        %v2268 = vmul.f32 %v2264, 1.442695
        %v2269 = vpow.pop %v2268
        %v2270 = vmul.f32 %v2265, 1.442695
        %v2271 = vpow.pop %v2270
        %v2272 = vmul.f32 %v2266, 1.442695
        %v2273 = vpow.pop %v2272
        %v2274 = vmul.f32 %v2267, 1.442695
        %v2275 = vpow.pop %v2274
        %v2276 = vsub.f32 %v2226, %v2260
        %v2277 = vsub.f32 %v2229, %v2261
        %v2278 = vsub.f32 %v2234, %v2262
        %v2279 = vsub.f32 %v2237, %v2263
        %v2280 = vmul.f32 %v2276, 1.442695
        %v2281 = vpow.pop %v2280
        %v2282 = vmul.f32 %v2277, 1.442695
        %v2283 = vpow.pop %v2282
        %v2284 = vmul.f32 %v2278, 1.442695
        %v2285 = vpow.pop %v2284
        %v2286 = vmul.f32 %v2279, 1.442695
        %v2287 = vpow.pop %v2286
        %v2288 = vmul.f32 %v2269, %v1935
        %v2289 = vmul.f32 %v2271, %v1936
        %v2290 = vmul.f32 %v2273, %v1937
        %v2291 = vmul.f32 %v2275, %v1938
        %v2292 = vadd.f32 %v2288, %v2281
        %v2293 = vadd.f32 %v2289, %v2283
        %v2294 = vadd.f32 %v2290, %v2285
        %v2295 = vadd.f32 %v2291, %v2287
        %v2296 = vmul.f32 %v2269, %v1963
        %v2297 = vmul.f32 %v2271, %v1964
        %v2298 = vmul.f32 %v2273, %v1965
        %v2299 = vmul.f32 %v2275, %v1966
        %2304 = vrot.lane.b32.xlu0 %v2256, 96
        %v2305 = vpop.permute.xlu0 %2304
        %2306 = vrot.lane.b32.xlu0 %v2257, 96
        %v2307 = vpop.permute.xlu0 %2306
        %2308 = vrot.lane.b32.xlu0 %v2258, 96
        %v2309 = vpop.permute.xlu0 %2308
        %2310 = vrot.lane.b32.xlu0 %v2259, 96
        %v2311 = vpop.permute.xlu0 %2310
        %v2316 = vmul.f32 %v2281, %v2305
        %v2317 = vmul.f32 %v2283, %v2307
        %v2318 = vmul.f32 %v2285, %v2309
        %v2319 = vmul.f32 %v2287, %v2311
        %v2320 = vadd.f32 %v2296, %v2316
        %v2321 = vadd.f32 %v2297, %v2317
        %v2322 = vadd.f32 %v2298, %v2318
        %v2323 = vadd.f32 %v2299, %v2319
        %s2324 = scalar_lea.vmem %s771, 128 [#allocation2]
        %v2325 = vld [vmem:[%s2324] sm:$0xff]
        %v2326 = vld [vmem:[%s2324 + $0x8] sm:$0xff]
        %v2327 = vld [vmem:[%s2324 + $0x10] sm:$0xff]
        %v2328 = vld [vmem:[%s2324 + $0x18] sm:$0xff]
        %s2329 = scalar_lea.vmem %s778, 128 [#allocation3]
        %v2330 = vld [vmem:[%s2329] sm:$0xff]
        %v2331 = vld [vmem:[%s2329 + $0x8] sm:$0xff]
        %v2332 = vld [vmem:[%s2329 + $0x10] sm:$0xff]
        %v2333 = vld [vmem:[%s2329 + $0x18] sm:$0xff]
        %2335 = vset.pattern.permute.xlu0 0
        %2336 = vperm.xlu0 %2335, %v2330
        %v2337 = vpop.permute.xlu0 %2336
        %2340 = vset.pattern.permute.xlu0 0
        %2341 = vperm.xlu0 %2340, %v2331
        %v2342 = vpop.permute.xlu0 %2341
        %2345 = vset.pattern.permute.xlu0 0
        %2346 = vperm.xlu0 %2345, %v2332
        %v2347 = vpop.permute.xlu0 %2346
        %2350 = vset.pattern.permute.xlu0 0
        %2351 = vperm.xlu0 %2350, %v2333
        %v2352 = vpop.permute.xlu0 %2351
        %v2354 = vmul.f32 %v2337, %v908
        %v2355 = vmul.f32 %v2342, %v908
        %v2356 = vmul.f32 %v2347, %v908
        %v2357 = vmul.f32 %v2352, %v908
        %2358 = vset.pattern.permute.xlu0 1
        %2359 = vperm.xlu0 %2358, %v2330
        %v2360 = vpop.permute.xlu0 %2359
        %2362 = vset.pattern.permute.xlu0 1
        %2363 = vperm.xlu0 %2362, %v2331
        %v2364 = vpop.permute.xlu0 %2363
        %2366 = vset.pattern.permute.xlu0 1
        %2367 = vperm.xlu0 %2366, %v2332
        %v2368 = vpop.permute.xlu0 %2367
        %2370 = vset.pattern.permute.xlu0 1
        %2371 = vperm.xlu0 %2370, %v2333
        %v2372 = vpop.permute.xlu0 %2371
        %v2374 = vmul.f32 %v2360, %v932
        %v2375 = vmul.f32 %v2364, %v932
        %v2376 = vmul.f32 %v2368, %v932
        %v2377 = vmul.f32 %v2372, %v932
        %v2378 = vadd.f32 %v2354, %v2374
        %v2379 = vadd.f32 %v2355, %v2375
        %v2380 = vadd.f32 %v2356, %v2376
        %v2381 = vadd.f32 %v2357, %v2377
        %2382 = vset.pattern.permute.xlu0 2
        %2383 = vperm.xlu0 %2382, %v2330
        %v2384 = vpop.permute.xlu0 %2383
        %2386 = vset.pattern.permute.xlu0 2
        %2387 = vperm.xlu0 %2386, %v2331
        %v2388 = vpop.permute.xlu0 %2387
        %2390 = vset.pattern.permute.xlu0 2
        %2391 = vperm.xlu0 %2390, %v2332
        %v2392 = vpop.permute.xlu0 %2391
        %2394 = vset.pattern.permute.xlu0 2
        %2395 = vperm.xlu0 %2394, %v2333
        %v2396 = vpop.permute.xlu0 %2395
        %v2398 = vmul.f32 %v2384, %v960
        %v2399 = vmul.f32 %v2388, %v960
        %v2400 = vmul.f32 %v2392, %v960
        %v2401 = vmul.f32 %v2396, %v960
        %v2402 = vadd.f32 %v2378, %v2398
        %v2403 = vadd.f32 %v2379, %v2399
        %v2404 = vadd.f32 %v2380, %v2400
        %v2405 = vadd.f32 %v2381, %v2401
        %v2406 = vadd.f32 %v2402, %v973
        %v2407 = vadd.f32 %v2403, %v973
        %v2408 = vadd.f32 %v2404, %v973
        %v2409 = vadd.f32 %v2405, %v973
        %v2410 = vmax.f32 %v2406, 0.0
        %v2411 = vmax.f32 %v2407, 0.0
        %v2412 = vmax.f32 %v2408, 0.0
        %v2413 = vmax.f32 %v2409, 0.0
        %v2414 = vpack.c.bf16 %v2411, %v2410
        %v2415 = vpack.c.bf16 %v2413, %v2412
        %v2417 = vsel %vm1003, %v2414, 0
        %v2420 = vsel %vm1003, %v2415, 0
        %2422 = vmatprep.subr.bf16.mxu0 0
        %2423 = vmatpush1.bf16.msra.mxu0 0
        %2424 = vmatprep.subr.bf16.mxu0 0
        %2425 = vmatpush1.bf16.msra.mxu0 0
        %2426 = vmatprep.subr.bf16.mxu0 0
        %2427 = vmatpush1.bf16.msra.mxu0 0
        %2428 = vmatprep.subr.bf16.mxu0 0
        %2429 = vmatpush1.bf16.msra.mxu0 0
        %2430 = vmatprep.subr.bf16.mxu0 0
        %2431 = vmatpush1.bf16.msra.mxu0 0
        %2432 = vmatprep.subr.bf16.mxu0 0
        %2433 = vmatpush1.bf16.msra.mxu0 0
        %2434 = vmatprep.subr.bf16.mxu0 0
        %2435 = vmatpush1.bf16.msra.mxu0 %v1000
        %2436 = vmatprep.subr.bf16.mxu0 0
        %2437 = vmatpush1.bf16.msra.mxu0 %v999
        %2438 = vmatprep.subr.bf16.mxu0 0
        %2439 = vmatpush2.bf16.msra.mxu0 0
        %2440 = vmatprep.subr.bf16.mxu0 0
        %2441 = vmatpush2.bf16.msra.mxu0 0
        %2442 = vmatprep.subr.bf16.mxu0 0
        %2443 = vmatpush2.bf16.msra.mxu0 0
        %2444 = vmatprep.subr.bf16.mxu0 0
        %2445 = vmatpush2.bf16.msra.mxu0 0
        %2446 = vmatprep.subr.bf16.mxu0 0
        %2447 = vmatpush2.bf16.msra.mxu0 0
        %2448 = vmatprep.subr.bf16.mxu0 0
        %2449 = vmatpush2.bf16.msra.mxu0 0
        %2450 = vmatprep.subr.bf16.mxu0 0
        %2451 = vmatpush2.bf16.msra.mxu0 0
        %2452 = vmatprep.subr.bf16.mxu0 0
        %2453 = vmatpush2.bf16.msra.mxu0 0
        %2454 = vmatprep.mubr.bf16.mxu0 0
        %2455 = vmatmul.mubr.bf16.gmra.mxu0 %v2417
        %v2456 = vpop.f32.mrf.mxu0
        %v2457 = vadd.f32 %v989, %v2456
        %v2458 = vpop.f32.mrf.mxu0
        %v2459 = vpop.f32.mrf.mxu0
        %v2460 = vadd.f32 %v989, %v2459
        %v2461 = vpop.f32.mrf.mxu0
        %2462 = vmatprep.mubr.bf16.mxu0 0
        %2463 = vmatmul.mubr.bf16.gmra.mxu0 %v2420
        %v2464 = vpop.f32.mrf.mxu0
        %v2465 = vadd.f32 %v989, %v2464
        %v2466 = vpop.f32.mrf.mxu0
        %v2467 = vpop.f32.mrf.mxu0
        %v2468 = vadd.f32 %v989, %v2467
        %v2469 = vpop.f32.mrf.mxu0
        %2470 = vdwg.mxu0
        %v2471 = vsub.f32 %v856, %v2325
        %v2472 = vsub.f32 %v857, %v2326
        %v2473 = vsub.f32 %v858, %v2327
        %v2474 = vsub.f32 %v859, %v2328
        %v2475 = vadd.f32 %v2471, %v2457
        %v2476 = vadd.f32 %v2472, %v2460
        %v2477 = vadd.f32 %v2473, %v2465
        %v2478 = vadd.f32 %v2474, %v2468
        %v2479 = vpack.c.bf16 %v2476, %v2475
        %v2480 = vpack.c.bf16 %v2478, %v2477
        %v2482 = vsel %vm1003, %v2479, 0
        %v2485 = vsel %vm1003, %v2480, 0
        %2487 = vmatprep.subr.bf16.mxu0 0
        %2488 = vmatpush1.bf16.msra.mxu0 0
        %2489 = vmatprep.subr.bf16.mxu0 0
        %2490 = vmatpush1.bf16.msra.mxu0 0
        %2491 = vmatprep.subr.bf16.mxu0 0
        %2492 = vmatpush1.bf16.msra.mxu0 0
        %2493 = vmatprep.subr.bf16.mxu0 0
        %2494 = vmatpush1.bf16.msra.mxu0 0
        %2495 = vmatprep.subr.bf16.mxu0 0
        %2496 = vmatpush1.bf16.msra.mxu0 0
        %2497 = vmatprep.subr.bf16.mxu0 0
        %2498 = vmatpush1.bf16.msra.mxu0 0
        %2499 = vmatprep.subr.bf16.mxu0 0
        %2500 = vmatpush1.bf16.msra.mxu0 %v1084
        %2501 = vmatprep.subr.bf16.mxu0 0
        %2502 = vmatpush1.bf16.msra.mxu0 %v1083
        %2503 = vmatprep.subr.bf16.mxu0 0
        %2504 = vmatpush2.bf16.msra.mxu0 0
        %2505 = vmatprep.subr.bf16.mxu0 0
        %2506 = vmatpush2.bf16.msra.mxu0 0
        %2507 = vmatprep.subr.bf16.mxu0 0
        %2508 = vmatpush2.bf16.msra.mxu0 0
        %2509 = vmatprep.subr.bf16.mxu0 0
        %2510 = vmatpush2.bf16.msra.mxu0 0
        %2511 = vmatprep.subr.bf16.mxu0 0
        %2512 = vmatpush2.bf16.msra.mxu0 0
        %2513 = vmatprep.subr.bf16.mxu0 0
        %2514 = vmatpush2.bf16.msra.mxu0 0
        %2515 = vmatprep.subr.bf16.mxu0 0
        %2516 = vmatpush2.bf16.msra.mxu0 0
        %2517 = vmatprep.subr.bf16.mxu0 0
        %2518 = vmatpush2.bf16.msra.mxu0 0
        %2519 = vmatprep.mubr.bf16.mxu0 0
        %2520 = vmatmul.mubr.bf16.gmra.mxu0 %v2482
        %v2521 = vpop.f32.mrf.mxu0
        %v2522 = vadd.f32 %v1073, %v2521
        %v2523 = vpop.f32.mrf.mxu0
        %v2524 = vpop.f32.mrf.mxu0
        %v2525 = vadd.f32 %v1073, %v2524
        %v2526 = vpop.f32.mrf.mxu0
        %2527 = vmatprep.mubr.bf16.mxu0 0
        %2528 = vmatmul.mubr.bf16.gmra.mxu0 %v2485
        %v2529 = vpop.f32.mrf.mxu0
        %v2530 = vadd.f32 %v1073, %v2529
        %v2531 = vpop.f32.mrf.mxu0
        %v2532 = vpop.f32.mrf.mxu0
        %v2533 = vadd.f32 %v1073, %v2532
        %v2534 = vpop.f32.mrf.mxu0
        %2535 = vdwg.mxu0
        %v2536 = vmax.f32 %v2522, 0.0
        %v2537 = vmax.f32 %v2525, 0.0
        %v2538 = vmax.f32 %v2530, 0.0
        %v2539 = vmax.f32 %v2533, 0.0
        %v2540 = vpack.c.bf16 %v2537, %v2536
        %v2541 = vpack.c.bf16 %v2539, %v2538
        %v2543 = vsel %vm1003, %v2540, 0
        %v2546 = vsel %vm1003, %v2541, 0
        %2548 = vmatprep.subr.bf16.mxu0 0
        %2549 = vmatpush1.bf16.msra.mxu0 0
        %2550 = vmatprep.subr.bf16.mxu0 0
        %2551 = vmatpush1.bf16.msra.mxu0 0
        %2552 = vmatprep.subr.bf16.mxu0 0
        %2553 = vmatpush1.bf16.msra.mxu0 0
        %2554 = vmatprep.subr.bf16.mxu0 0
        %2555 = vmatpush1.bf16.msra.mxu0 0
        %2556 = vmatprep.subr.bf16.mxu0 0
        %2557 = vmatpush1.bf16.msra.mxu0 0
        %2558 = vmatprep.subr.bf16.mxu0 0
        %2559 = vmatpush1.bf16.msra.mxu0 0
        %2560 = vmatprep.subr.bf16.mxu0 0
        %2561 = vmatpush1.bf16.msra.mxu0 %v1163
        %2562 = vmatprep.subr.bf16.mxu0 0
        %2563 = vmatpush1.bf16.msra.mxu0 %v1162
        %2564 = vmatprep.subr.bf16.mxu0 0
        %2565 = vmatpush2.bf16.msra.mxu0 0
        %2566 = vmatprep.subr.bf16.mxu0 0
        %2567 = vmatpush2.bf16.msra.mxu0 0
        %2568 = vmatprep.subr.bf16.mxu0 0
        %2569 = vmatpush2.bf16.msra.mxu0 0
        %2570 = vmatprep.subr.bf16.mxu0 0
        %2571 = vmatpush2.bf16.msra.mxu0 0
        %2572 = vmatprep.subr.bf16.mxu0 0
        %2573 = vmatpush2.bf16.msra.mxu0 0
        %2574 = vmatprep.subr.bf16.mxu0 0
        %2575 = vmatpush2.bf16.msra.mxu0 0
        %2576 = vmatprep.subr.bf16.mxu0 0
        %2577 = vmatpush2.bf16.msra.mxu0 0
        %2578 = vmatprep.subr.bf16.mxu0 0
        %2579 = vmatpush2.bf16.msra.mxu0 0
        %2580 = vmatprep.mubr.bf16.mxu0 0
        %2581 = vmatmul.mubr.bf16.gmra.mxu0 %v2543
        %v2582 = vpop.f32.mrf.mxu0
        %v2583 = vadd.f32 %v1152, %v2582
        %v2584 = vpop.f32.mrf.mxu0
        %v2585 = vpop.f32.mrf.mxu0
        %v2586 = vadd.f32 %v1152, %v2585
        %v2587 = vpop.f32.mrf.mxu0
        %2588 = vmatprep.mubr.bf16.mxu0 0
        %2589 = vmatmul.mubr.bf16.gmra.mxu0 %v2546
        %v2590 = vpop.f32.mrf.mxu0
        %v2591 = vadd.f32 %v1152, %v2590
        %v2592 = vpop.f32.mrf.mxu0
        %v2593 = vpop.f32.mrf.mxu0
        %v2594 = vadd.f32 %v1152, %v2593
        %v2595 = vpop.f32.mrf.mxu0
        %2596 = vdwg.mxu0
        %2601 = vrot.lane.b32.xlu0 %v2457, 32
        %v2602 = vpop.permute.xlu0 %2601
        %2603 = vrot.lane.b32.xlu0 %v2460, 32
        %v2604 = vpop.permute.xlu0 %2603
        %2605 = vrot.lane.b32.xlu0 %v2465, 32
        %v2606 = vpop.permute.xlu0 %2605
        %2607 = vrot.lane.b32.xlu0 %v2468, 32
        %v2608 = vpop.permute.xlu0 %2607
        %v2613 = vadd.f32 %v2325, %v2602
        %v2614 = vadd.f32 %v2326, %v2604
        %v2615 = vadd.f32 %v2327, %v2606
        %v2616 = vadd.f32 %v2328, %v2608
        %v2617 = vmax.f32 %v2260, %v2583
        %v2618 = vmax.f32 %v2261, %v2586
        %v2619 = vmax.f32 %v2262, %v2591
        %v2620 = vmax.f32 %v2263, %v2594
        %v2621 = vsub.f32 %v2260, %v2617
        %v2622 = vsub.f32 %v2261, %v2618
        %v2623 = vsub.f32 %v2262, %v2619
        %v2624 = vsub.f32 %v2263, %v2620
        %v2625 = vmul.f32 %v2621, 1.442695
        %v2626 = vpow.pop %v2625
        %v2627 = vmul.f32 %v2622, 1.442695
        %v2628 = vpow.pop %v2627
        %v2629 = vmul.f32 %v2623, 1.442695
        %v2630 = vpow.pop %v2629
        %v2631 = vmul.f32 %v2624, 1.442695
        %v2632 = vpow.pop %v2631
        %v2633 = vsub.f32 %v2583, %v2617
        %v2634 = vsub.f32 %v2586, %v2618
        %v2635 = vsub.f32 %v2591, %v2619
        %v2636 = vsub.f32 %v2594, %v2620
        %v2637 = vmul.f32 %v2633, 1.442695
        %v2638 = vpow.pop %v2637
        %v2639 = vmul.f32 %v2634, 1.442695
        %v2640 = vpow.pop %v2639
        %v2641 = vmul.f32 %v2635, 1.442695
        %v2642 = vpow.pop %v2641
        %v2643 = vmul.f32 %v2636, 1.442695
        %v2644 = vpow.pop %v2643
        %v2645 = vmul.f32 %v2626, %v2292
        %v2646 = vmul.f32 %v2628, %v2293
        %v2647 = vmul.f32 %v2630, %v2294
        %v2648 = vmul.f32 %v2632, %v2295
        %v2649 = vadd.f32 %v2645, %v2638
        %v2650 = vadd.f32 %v2646, %v2640
        %v2651 = vadd.f32 %v2647, %v2642
        %v2652 = vadd.f32 %v2648, %v2644
        %v2653 = vmul.f32 %v2626, %v2320
        %v2654 = vmul.f32 %v2628, %v2321
        %v2655 = vmul.f32 %v2630, %v2322
        %v2656 = vmul.f32 %v2632, %v2323
        %2661 = vrot.lane.b32.xlu0 %v2613, 96
        %v2662 = vpop.permute.xlu0 %2661
        %2663 = vrot.lane.b32.xlu0 %v2614, 96
        %v2664 = vpop.permute.xlu0 %2663
        %2665 = vrot.lane.b32.xlu0 %v2615, 96
        %v2666 = vpop.permute.xlu0 %2665
        %2667 = vrot.lane.b32.xlu0 %v2616, 96
        %v2668 = vpop.permute.xlu0 %2667
        %v2673 = vmul.f32 %v2638, %v2662
        %v2674 = vmul.f32 %v2640, %v2664
        %v2675 = vmul.f32 %v2642, %v2666
        %v2676 = vmul.f32 %v2644, %v2668
        %v2677 = vadd.f32 %v2653, %v2673
        %v2678 = vadd.f32 %v2654, %v2674
        %v2679 = vadd.f32 %v2655, %v2675
        %v2680 = vadd.f32 %v2656, %v2676
        %s2681 = scalar_lea.vmem %s771, 160 [#allocation2]
        %v2682 = vld [vmem:[%s2681] sm:$0xff]
        %v2683 = vld [vmem:[%s2681 + $0x8] sm:$0xff]
        %v2684 = vld [vmem:[%s2681 + $0x10] sm:$0xff]
        %v2685 = vld [vmem:[%s2681 + $0x18] sm:$0xff]
        %s2686 = scalar_lea.vmem %s778, 160 [#allocation3]
        %v2687 = vld [vmem:[%s2686] sm:$0xff]
        %v2688 = vld [vmem:[%s2686 + $0x8] sm:$0xff]
        %v2689 = vld [vmem:[%s2686 + $0x10] sm:$0xff]
        %v2690 = vld [vmem:[%s2686 + $0x18] sm:$0xff]
        %2692 = vset.pattern.permute.xlu0 0
        %2693 = vperm.xlu0 %2692, %v2687
        %v2694 = vpop.permute.xlu0 %2693
        %2697 = vset.pattern.permute.xlu0 0
        %2698 = vperm.xlu0 %2697, %v2688
        %v2699 = vpop.permute.xlu0 %2698
        %2702 = vset.pattern.permute.xlu0 0
        %2703 = vperm.xlu0 %2702, %v2689
        %v2704 = vpop.permute.xlu0 %2703
        %2707 = vset.pattern.permute.xlu0 0
        %2708 = vperm.xlu0 %2707, %v2690
        %v2709 = vpop.permute.xlu0 %2708
        %v2711 = vmul.f32 %v2694, %v908
        %v2712 = vmul.f32 %v2699, %v908
        %v2713 = vmul.f32 %v2704, %v908
        %v2714 = vmul.f32 %v2709, %v908
        %2715 = vset.pattern.permute.xlu0 1
        %2716 = vperm.xlu0 %2715, %v2687
        %v2717 = vpop.permute.xlu0 %2716
        %2719 = vset.pattern.permute.xlu0 1
        %2720 = vperm.xlu0 %2719, %v2688
        %v2721 = vpop.permute.xlu0 %2720
        %2723 = vset.pattern.permute.xlu0 1
        %2724 = vperm.xlu0 %2723, %v2689
        %v2725 = vpop.permute.xlu0 %2724
        %2727 = vset.pattern.permute.xlu0 1
        %2728 = vperm.xlu0 %2727, %v2690
        %v2729 = vpop.permute.xlu0 %2728
        %v2731 = vmul.f32 %v2717, %v932
        %v2732 = vmul.f32 %v2721, %v932
        %v2733 = vmul.f32 %v2725, %v932
        %v2734 = vmul.f32 %v2729, %v932
        %v2735 = vadd.f32 %v2711, %v2731
        %v2736 = vadd.f32 %v2712, %v2732
        %v2737 = vadd.f32 %v2713, %v2733
        %v2738 = vadd.f32 %v2714, %v2734
        %2739 = vset.pattern.permute.xlu0 2
        %2740 = vperm.xlu0 %2739, %v2687
        %v2741 = vpop.permute.xlu0 %2740
        %2743 = vset.pattern.permute.xlu0 2
        %2744 = vperm.xlu0 %2743, %v2688
        %v2745 = vpop.permute.xlu0 %2744
        %2747 = vset.pattern.permute.xlu0 2
        %2748 = vperm.xlu0 %2747, %v2689
        %v2749 = vpop.permute.xlu0 %2748
        %2751 = vset.pattern.permute.xlu0 2
        %2752 = vperm.xlu0 %2751, %v2690
        %v2753 = vpop.permute.xlu0 %2752
        %v2755 = vmul.f32 %v2741, %v960
        %v2756 = vmul.f32 %v2745, %v960
        %v2757 = vmul.f32 %v2749, %v960
        %v2758 = vmul.f32 %v2753, %v960
        %v2759 = vadd.f32 %v2735, %v2755
        %v2760 = vadd.f32 %v2736, %v2756
        %v2761 = vadd.f32 %v2737, %v2757
        %v2762 = vadd.f32 %v2738, %v2758
        %v2763 = vadd.f32 %v2759, %v973
        %v2764 = vadd.f32 %v2760, %v973
        %v2765 = vadd.f32 %v2761, %v973
        %v2766 = vadd.f32 %v2762, %v973
        %v2767 = vmax.f32 %v2763, 0.0
        %v2768 = vmax.f32 %v2764, 0.0
        %v2769 = vmax.f32 %v2765, 0.0
        %v2770 = vmax.f32 %v2766, 0.0
        %v2771 = vpack.c.bf16 %v2768, %v2767
        %v2772 = vpack.c.bf16 %v2770, %v2769
        %v2774 = vsel %vm1003, %v2771, 0
        %v2777 = vsel %vm1003, %v2772, 0
        %2779 = vmatprep.subr.bf16.mxu0 0
        %2780 = vmatpush1.bf16.msra.mxu0 0
        %2781 = vmatprep.subr.bf16.mxu0 0
        %2782 = vmatpush1.bf16.msra.mxu0 0
        %2783 = vmatprep.subr.bf16.mxu0 0
        %2784 = vmatpush1.bf16.msra.mxu0 0
        %2785 = vmatprep.subr.bf16.mxu0 0
        %2786 = vmatpush1.bf16.msra.mxu0 0
        %2787 = vmatprep.subr.bf16.mxu0 0
        %2788 = vmatpush1.bf16.msra.mxu0 0
        %2789 = vmatprep.subr.bf16.mxu0 0
        %2790 = vmatpush1.bf16.msra.mxu0 0
        %2791 = vmatprep.subr.bf16.mxu0 0
        %2792 = vmatpush1.bf16.msra.mxu0 %v1000
        %2793 = vmatprep.subr.bf16.mxu0 0
        %2794 = vmatpush1.bf16.msra.mxu0 %v999
        %2795 = vmatprep.subr.bf16.mxu0 0
        %2796 = vmatpush2.bf16.msra.mxu0 0
        %2797 = vmatprep.subr.bf16.mxu0 0
        %2798 = vmatpush2.bf16.msra.mxu0 0
        %2799 = vmatprep.subr.bf16.mxu0 0
        %2800 = vmatpush2.bf16.msra.mxu0 0
        %2801 = vmatprep.subr.bf16.mxu0 0
        %2802 = vmatpush2.bf16.msra.mxu0 0
        %2803 = vmatprep.subr.bf16.mxu0 0
        %2804 = vmatpush2.bf16.msra.mxu0 0
        %2805 = vmatprep.subr.bf16.mxu0 0
        %2806 = vmatpush2.bf16.msra.mxu0 0
        %2807 = vmatprep.subr.bf16.mxu0 0
        %2808 = vmatpush2.bf16.msra.mxu0 0
        %2809 = vmatprep.subr.bf16.mxu0 0
        %2810 = vmatpush2.bf16.msra.mxu0 0
        %2811 = vmatprep.mubr.bf16.mxu0 0
        %2812 = vmatmul.mubr.bf16.gmra.mxu0 %v2774
        %v2813 = vpop.f32.mrf.mxu0
        %v2814 = vadd.f32 %v989, %v2813
        %v2815 = vpop.f32.mrf.mxu0
        %v2816 = vpop.f32.mrf.mxu0
        %v2817 = vadd.f32 %v989, %v2816
        %v2818 = vpop.f32.mrf.mxu0
        %2819 = vmatprep.mubr.bf16.mxu0 0
        %2820 = vmatmul.mubr.bf16.gmra.mxu0 %v2777
        %v2821 = vpop.f32.mrf.mxu0
        %v2822 = vadd.f32 %v989, %v2821
        %v2823 = vpop.f32.mrf.mxu0
        %v2824 = vpop.f32.mrf.mxu0
        %v2825 = vadd.f32 %v989, %v2824
        %v2826 = vpop.f32.mrf.mxu0
        %2827 = vdwg.mxu0
        %v2828 = vsub.f32 %v856, %v2682
        %v2829 = vsub.f32 %v857, %v2683
        %v2830 = vsub.f32 %v858, %v2684
        %v2831 = vsub.f32 %v859, %v2685
        %v2832 = vadd.f32 %v2828, %v2814
        %v2833 = vadd.f32 %v2829, %v2817
        %v2834 = vadd.f32 %v2830, %v2822
        %v2835 = vadd.f32 %v2831, %v2825
        %v2836 = vpack.c.bf16 %v2833, %v2832
        %v2837 = vpack.c.bf16 %v2835, %v2834
        %v2839 = vsel %vm1003, %v2836, 0
        %v2842 = vsel %vm1003, %v2837, 0
        %2844 = vmatprep.subr.bf16.mxu0 0
        %2845 = vmatpush1.bf16.msra.mxu0 0
        %2846 = vmatprep.subr.bf16.mxu0 0
        %2847 = vmatpush1.bf16.msra.mxu0 0
        %2848 = vmatprep.subr.bf16.mxu0 0
        %2849 = vmatpush1.bf16.msra.mxu0 0
        %2850 = vmatprep.subr.bf16.mxu0 0
        %2851 = vmatpush1.bf16.msra.mxu0 0
        %2852 = vmatprep.subr.bf16.mxu0 0
        %2853 = vmatpush1.bf16.msra.mxu0 0
        %2854 = vmatprep.subr.bf16.mxu0 0
        %2855 = vmatpush1.bf16.msra.mxu0 0
        %2856 = vmatprep.subr.bf16.mxu0 0
        %2857 = vmatpush1.bf16.msra.mxu0 %v1084
        %2858 = vmatprep.subr.bf16.mxu0 0
        %2859 = vmatpush1.bf16.msra.mxu0 %v1083
        %2860 = vmatprep.subr.bf16.mxu0 0
        %2861 = vmatpush2.bf16.msra.mxu0 0
        %2862 = vmatprep.subr.bf16.mxu0 0
        %2863 = vmatpush2.bf16.msra.mxu0 0
        %2864 = vmatprep.subr.bf16.mxu0 0
        %2865 = vmatpush2.bf16.msra.mxu0 0
        %2866 = vmatprep.subr.bf16.mxu0 0
        %2867 = vmatpush2.bf16.msra.mxu0 0
        %2868 = vmatprep.subr.bf16.mxu0 0
        %2869 = vmatpush2.bf16.msra.mxu0 0
        %2870 = vmatprep.subr.bf16.mxu0 0
        %2871 = vmatpush2.bf16.msra.mxu0 0
        %2872 = vmatprep.subr.bf16.mxu0 0
        %2873 = vmatpush2.bf16.msra.mxu0 0
        %2874 = vmatprep.subr.bf16.mxu0 0
        %2875 = vmatpush2.bf16.msra.mxu0 0
        %2876 = vmatprep.mubr.bf16.mxu0 0
        %2877 = vmatmul.mubr.bf16.gmra.mxu0 %v2839
        %v2878 = vpop.f32.mrf.mxu0
        %v2879 = vadd.f32 %v1073, %v2878
        %v2880 = vpop.f32.mrf.mxu0
        %v2881 = vpop.f32.mrf.mxu0
        %v2882 = vadd.f32 %v1073, %v2881
        %v2883 = vpop.f32.mrf.mxu0
        %2884 = vmatprep.mubr.bf16.mxu0 0
        %2885 = vmatmul.mubr.bf16.gmra.mxu0 %v2842
        %v2886 = vpop.f32.mrf.mxu0
        %v2887 = vadd.f32 %v1073, %v2886
        %v2888 = vpop.f32.mrf.mxu0
        %v2889 = vpop.f32.mrf.mxu0
        %v2890 = vadd.f32 %v1073, %v2889
        %v2891 = vpop.f32.mrf.mxu0
        %2892 = vdwg.mxu0
        %v2893 = vmax.f32 %v2879, 0.0
        %v2894 = vmax.f32 %v2882, 0.0
        %v2895 = vmax.f32 %v2887, 0.0
        %v2896 = vmax.f32 %v2890, 0.0
        %v2897 = vpack.c.bf16 %v2894, %v2893
        %v2898 = vpack.c.bf16 %v2896, %v2895
        %v2900 = vsel %vm1003, %v2897, 0
        %v2903 = vsel %vm1003, %v2898, 0
        %2905 = vmatprep.subr.bf16.mxu0 0
        %2906 = vmatpush1.bf16.msra.mxu0 0
        %2907 = vmatprep.subr.bf16.mxu0 0
        %2908 = vmatpush1.bf16.msra.mxu0 0
        %2909 = vmatprep.subr.bf16.mxu0 0
        %2910 = vmatpush1.bf16.msra.mxu0 0
        %2911 = vmatprep.subr.bf16.mxu0 0
        %2912 = vmatpush1.bf16.msra.mxu0 0
        %2913 = vmatprep.subr.bf16.mxu0 0
        %2914 = vmatpush1.bf16.msra.mxu0 0
        %2915 = vmatprep.subr.bf16.mxu0 0
        %2916 = vmatpush1.bf16.msra.mxu0 0
        %2917 = vmatprep.subr.bf16.mxu0 0
        %2918 = vmatpush1.bf16.msra.mxu0 %v1163
        %2919 = vmatprep.subr.bf16.mxu0 0
        %2920 = vmatpush1.bf16.msra.mxu0 %v1162
        %2921 = vmatprep.subr.bf16.mxu0 0
        %2922 = vmatpush2.bf16.msra.mxu0 0
        %2923 = vmatprep.subr.bf16.mxu0 0
        %2924 = vmatpush2.bf16.msra.mxu0 0
        %2925 = vmatprep.subr.bf16.mxu0 0
        %2926 = vmatpush2.bf16.msra.mxu0 0
        %2927 = vmatprep.subr.bf16.mxu0 0
        %2928 = vmatpush2.bf16.msra.mxu0 0
        %2929 = vmatprep.subr.bf16.mxu0 0
        %2930 = vmatpush2.bf16.msra.mxu0 0
        %2931 = vmatprep.subr.bf16.mxu0 0
        %2932 = vmatpush2.bf16.msra.mxu0 0
        %2933 = vmatprep.subr.bf16.mxu0 0
        %2934 = vmatpush2.bf16.msra.mxu0 0
        %2935 = vmatprep.subr.bf16.mxu0 0
        %2936 = vmatpush2.bf16.msra.mxu0 0
        %2937 = vmatprep.mubr.bf16.mxu0 0
        %2938 = vmatmul.mubr.bf16.gmra.mxu0 %v2900
        %v2939 = vpop.f32.mrf.mxu0
        %v2940 = vadd.f32 %v1152, %v2939
        %v2941 = vpop.f32.mrf.mxu0
        %v2942 = vpop.f32.mrf.mxu0
        %v2943 = vadd.f32 %v1152, %v2942
        %v2944 = vpop.f32.mrf.mxu0
        %2945 = vmatprep.mubr.bf16.mxu0 0
        %2946 = vmatmul.mubr.bf16.gmra.mxu0 %v2903
        %v2947 = vpop.f32.mrf.mxu0
        %v2948 = vadd.f32 %v1152, %v2947
        %v2949 = vpop.f32.mrf.mxu0
        %v2950 = vpop.f32.mrf.mxu0
        %v2951 = vadd.f32 %v1152, %v2950
        %v2952 = vpop.f32.mrf.mxu0
        %2953 = vdwg.mxu0
        %2958 = vrot.lane.b32.xlu0 %v2814, 32
        %v2959 = vpop.permute.xlu0 %2958
        %2960 = vrot.lane.b32.xlu0 %v2817, 32
        %v2961 = vpop.permute.xlu0 %2960
        %2962 = vrot.lane.b32.xlu0 %v2822, 32
        %v2963 = vpop.permute.xlu0 %2962
        %2964 = vrot.lane.b32.xlu0 %v2825, 32
        %v2965 = vpop.permute.xlu0 %2964
        %v2970 = vadd.f32 %v2682, %v2959
        %v2971 = vadd.f32 %v2683, %v2961
        %v2972 = vadd.f32 %v2684, %v2963
        %v2973 = vadd.f32 %v2685, %v2965
        %v2974 = vmax.f32 %v2617, %v2940
        %v2975 = vmax.f32 %v2618, %v2943
        %v2976 = vmax.f32 %v2619, %v2948
        %v2977 = vmax.f32 %v2620, %v2951
        %v2978 = vsub.f32 %v2617, %v2974
        %v2979 = vsub.f32 %v2618, %v2975
        %v2980 = vsub.f32 %v2619, %v2976
        %v2981 = vsub.f32 %v2620, %v2977
        %v2982 = vmul.f32 %v2978, 1.442695
        %v2983 = vpow.pop %v2982
        %v2984 = vmul.f32 %v2979, 1.442695
        %v2985 = vpow.pop %v2984
        %v2986 = vmul.f32 %v2980, 1.442695
        %v2987 = vpow.pop %v2986
        %v2988 = vmul.f32 %v2981, 1.442695
        %v2989 = vpow.pop %v2988
        %v2990 = vsub.f32 %v2940, %v2974
        %v2991 = vsub.f32 %v2943, %v2975
        %v2992 = vsub.f32 %v2948, %v2976
        %v2993 = vsub.f32 %v2951, %v2977
        %v2994 = vmul.f32 %v2990, 1.442695
        %v2995 = vpow.pop %v2994
        %v2996 = vmul.f32 %v2991, 1.442695
        %v2997 = vpow.pop %v2996
        %v2998 = vmul.f32 %v2992, 1.442695
        %v2999 = vpow.pop %v2998
        %v3000 = vmul.f32 %v2993, 1.442695
        %v3001 = vpow.pop %v3000
        %v3002 = vmul.f32 %v2983, %v2649
        %v3003 = vmul.f32 %v2985, %v2650
        %v3004 = vmul.f32 %v2987, %v2651
        %v3005 = vmul.f32 %v2989, %v2652
        %v3006 = vadd.f32 %v3002, %v2995
        %v3007 = vadd.f32 %v3003, %v2997
        %v3008 = vadd.f32 %v3004, %v2999
        %v3009 = vadd.f32 %v3005, %v3001
        %v3010 = vmul.f32 %v2983, %v2677
        %v3011 = vmul.f32 %v2985, %v2678
        %v3012 = vmul.f32 %v2987, %v2679
        %v3013 = vmul.f32 %v2989, %v2680
        %3018 = vrot.lane.b32.xlu0 %v2970, 96
        %v3019 = vpop.permute.xlu0 %3018
        %3020 = vrot.lane.b32.xlu0 %v2971, 96
        %v3021 = vpop.permute.xlu0 %3020
        %3022 = vrot.lane.b32.xlu0 %v2972, 96
        %v3023 = vpop.permute.xlu0 %3022
        %3024 = vrot.lane.b32.xlu0 %v2973, 96
        %v3025 = vpop.permute.xlu0 %3024
        %v3030 = vmul.f32 %v2995, %v3019
        %v3031 = vmul.f32 %v2997, %v3021
        %v3032 = vmul.f32 %v2999, %v3023
        %v3033 = vmul.f32 %v3001, %v3025
        %v3034 = vadd.f32 %v3010, %v3030
        %v3035 = vadd.f32 %v3011, %v3031
        %v3036 = vadd.f32 %v3012, %v3032
        %v3037 = vadd.f32 %v3013, %v3033
        %s3038 = scalar_lea.vmem %s771, 192 [#allocation2]
        %v3039 = vld [vmem:[%s3038] sm:$0xff]
        %v3040 = vld [vmem:[%s3038 + $0x8] sm:$0xff]
        %v3041 = vld [vmem:[%s3038 + $0x10] sm:$0xff]
        %v3042 = vld [vmem:[%s3038 + $0x18] sm:$0xff]
        %s3043 = scalar_lea.vmem %s778, 192 [#allocation3]
        %v3044 = vld [vmem:[%s3043] sm:$0xff]
        %v3045 = vld [vmem:[%s3043 + $0x8] sm:$0xff]
        %v3046 = vld [vmem:[%s3043 + $0x10] sm:$0xff]
        %v3047 = vld [vmem:[%s3043 + $0x18] sm:$0xff]
        %3049 = vset.pattern.permute.xlu0 0
        %3050 = vperm.xlu0 %3049, %v3044
        %v3051 = vpop.permute.xlu0 %3050
        %3054 = vset.pattern.permute.xlu0 0
        %3055 = vperm.xlu0 %3054, %v3045
        %v3056 = vpop.permute.xlu0 %3055
        %3059 = vset.pattern.permute.xlu0 0
        %3060 = vperm.xlu0 %3059, %v3046
        %v3061 = vpop.permute.xlu0 %3060
        %3064 = vset.pattern.permute.xlu0 0
        %3065 = vperm.xlu0 %3064, %v3047
        %v3066 = vpop.permute.xlu0 %3065
        %v3068 = vmul.f32 %v3051, %v908
        %v3069 = vmul.f32 %v3056, %v908
        %v3070 = vmul.f32 %v3061, %v908
        %v3071 = vmul.f32 %v3066, %v908
        %3072 = vset.pattern.permute.xlu0 1
        %3073 = vperm.xlu0 %3072, %v3044
        %v3074 = vpop.permute.xlu0 %3073
        %3076 = vset.pattern.permute.xlu0 1
        %3077 = vperm.xlu0 %3076, %v3045
        %v3078 = vpop.permute.xlu0 %3077
        %3080 = vset.pattern.permute.xlu0 1
        %3081 = vperm.xlu0 %3080, %v3046
        %v3082 = vpop.permute.xlu0 %3081
        %3084 = vset.pattern.permute.xlu0 1
        %3085 = vperm.xlu0 %3084, %v3047
        %v3086 = vpop.permute.xlu0 %3085
        %v3088 = vmul.f32 %v3074, %v932
        %v3089 = vmul.f32 %v3078, %v932
        %v3090 = vmul.f32 %v3082, %v932
        %v3091 = vmul.f32 %v3086, %v932
        %v3092 = vadd.f32 %v3068, %v3088
        %v3093 = vadd.f32 %v3069, %v3089
        %v3094 = vadd.f32 %v3070, %v3090
        %v3095 = vadd.f32 %v3071, %v3091
        %3096 = vset.pattern.permute.xlu0 2
        %3097 = vperm.xlu0 %3096, %v3044
        %v3098 = vpop.permute.xlu0 %3097
        %3100 = vset.pattern.permute.xlu0 2
        %3101 = vperm.xlu0 %3100, %v3045
        %v3102 = vpop.permute.xlu0 %3101
        %3104 = vset.pattern.permute.xlu0 2
        %3105 = vperm.xlu0 %3104, %v3046
        %v3106 = vpop.permute.xlu0 %3105
        %3108 = vset.pattern.permute.xlu0 2
        %3109 = vperm.xlu0 %3108, %v3047
        %v3110 = vpop.permute.xlu0 %3109
        %v3112 = vmul.f32 %v3098, %v960
        %v3113 = vmul.f32 %v3102, %v960
        %v3114 = vmul.f32 %v3106, %v960
        %v3115 = vmul.f32 %v3110, %v960
        %v3116 = vadd.f32 %v3092, %v3112
        %v3117 = vadd.f32 %v3093, %v3113
        %v3118 = vadd.f32 %v3094, %v3114
        %v3119 = vadd.f32 %v3095, %v3115
        %v3120 = vadd.f32 %v3116, %v973
        %v3121 = vadd.f32 %v3117, %v973
        %v3122 = vadd.f32 %v3118, %v973
        %v3123 = vadd.f32 %v3119, %v973
        %v3124 = vmax.f32 %v3120, 0.0
        %v3125 = vmax.f32 %v3121, 0.0
        %v3126 = vmax.f32 %v3122, 0.0
        %v3127 = vmax.f32 %v3123, 0.0
        %v3128 = vpack.c.bf16 %v3125, %v3124
        %v3129 = vpack.c.bf16 %v3127, %v3126
        %v3131 = vsel %vm1003, %v3128, 0
        %v3134 = vsel %vm1003, %v3129, 0
        %3136 = vmatprep.subr.bf16.mxu0 0
        %3137 = vmatpush1.bf16.msra.mxu0 0
        %3138 = vmatprep.subr.bf16.mxu0 0
        %3139 = vmatpush1.bf16.msra.mxu0 0
        %3140 = vmatprep.subr.bf16.mxu0 0
        %3141 = vmatpush1.bf16.msra.mxu0 0
        %3142 = vmatprep.subr.bf16.mxu0 0
        %3143 = vmatpush1.bf16.msra.mxu0 0
        %3144 = vmatprep.subr.bf16.mxu0 0
        %3145 = vmatpush1.bf16.msra.mxu0 0
        %3146 = vmatprep.subr.bf16.mxu0 0
        %3147 = vmatpush1.bf16.msra.mxu0 0
        %3148 = vmatprep.subr.bf16.mxu0 0
        %3149 = vmatpush1.bf16.msra.mxu0 %v1000
        %3150 = vmatprep.subr.bf16.mxu0 0
        %3151 = vmatpush1.bf16.msra.mxu0 %v999
        %3152 = vmatprep.subr.bf16.mxu0 0
        %3153 = vmatpush2.bf16.msra.mxu0 0
        %3154 = vmatprep.subr.bf16.mxu0 0
        %3155 = vmatpush2.bf16.msra.mxu0 0
        %3156 = vmatprep.subr.bf16.mxu0 0
        %3157 = vmatpush2.bf16.msra.mxu0 0
        %3158 = vmatprep.subr.bf16.mxu0 0
        %3159 = vmatpush2.bf16.msra.mxu0 0
        %3160 = vmatprep.subr.bf16.mxu0 0
        %3161 = vmatpush2.bf16.msra.mxu0 0
        %3162 = vmatprep.subr.bf16.mxu0 0
        %3163 = vmatpush2.bf16.msra.mxu0 0
        %3164 = vmatprep.subr.bf16.mxu0 0
        %3165 = vmatpush2.bf16.msra.mxu0 0
        %3166 = vmatprep.subr.bf16.mxu0 0
        %3167 = vmatpush2.bf16.msra.mxu0 0
        %3168 = vmatprep.mubr.bf16.mxu0 0
        %3169 = vmatmul.mubr.bf16.gmra.mxu0 %v3131
        %v3170 = vpop.f32.mrf.mxu0
        %v3171 = vadd.f32 %v989, %v3170
        %v3172 = vpop.f32.mrf.mxu0
        %v3173 = vpop.f32.mrf.mxu0
        %v3174 = vadd.f32 %v989, %v3173
        %v3175 = vpop.f32.mrf.mxu0
        %3176 = vmatprep.mubr.bf16.mxu0 0
        %3177 = vmatmul.mubr.bf16.gmra.mxu0 %v3134
        %v3178 = vpop.f32.mrf.mxu0
        %v3179 = vadd.f32 %v989, %v3178
        %v3180 = vpop.f32.mrf.mxu0
        %v3181 = vpop.f32.mrf.mxu0
        %v3182 = vadd.f32 %v989, %v3181
        %v3183 = vpop.f32.mrf.mxu0
        %3184 = vdwg.mxu0
        %v3185 = vsub.f32 %v856, %v3039
        %v3186 = vsub.f32 %v857, %v3040
        %v3187 = vsub.f32 %v858, %v3041
        %v3188 = vsub.f32 %v859, %v3042
        %v3189 = vadd.f32 %v3185, %v3171
        %v3190 = vadd.f32 %v3186, %v3174
        %v3191 = vadd.f32 %v3187, %v3179
        %v3192 = vadd.f32 %v3188, %v3182
        %v3193 = vpack.c.bf16 %v3190, %v3189
        %v3194 = vpack.c.bf16 %v3192, %v3191
        %v3196 = vsel %vm1003, %v3193, 0
        %v3199 = vsel %vm1003, %v3194, 0
        %3201 = vmatprep.subr.bf16.mxu0 0
        %3202 = vmatpush1.bf16.msra.mxu0 0
        %3203 = vmatprep.subr.bf16.mxu0 0
        %3204 = vmatpush1.bf16.msra.mxu0 0
        %3205 = vmatprep.subr.bf16.mxu0 0
        %3206 = vmatpush1.bf16.msra.mxu0 0
        %3207 = vmatprep.subr.bf16.mxu0 0
        %3208 = vmatpush1.bf16.msra.mxu0 0
        %3209 = vmatprep.subr.bf16.mxu0 0
        %3210 = vmatpush1.bf16.msra.mxu0 0
        %3211 = vmatprep.subr.bf16.mxu0 0
        %3212 = vmatpush1.bf16.msra.mxu0 0
        %3213 = vmatprep.subr.bf16.mxu0 0
        %3214 = vmatpush1.bf16.msra.mxu0 %v1084
        %3215 = vmatprep.subr.bf16.mxu0 0
        %3216 = vmatpush1.bf16.msra.mxu0 %v1083
        %3217 = vmatprep.subr.bf16.mxu0 0
        %3218 = vmatpush2.bf16.msra.mxu0 0
        %3219 = vmatprep.subr.bf16.mxu0 0
        %3220 = vmatpush2.bf16.msra.mxu0 0
        %3221 = vmatprep.subr.bf16.mxu0 0
        %3222 = vmatpush2.bf16.msra.mxu0 0
        %3223 = vmatprep.subr.bf16.mxu0 0
        %3224 = vmatpush2.bf16.msra.mxu0 0
        %3225 = vmatprep.subr.bf16.mxu0 0
        %3226 = vmatpush2.bf16.msra.mxu0 0
        %3227 = vmatprep.subr.bf16.mxu0 0
        %3228 = vmatpush2.bf16.msra.mxu0 0
        %3229 = vmatprep.subr.bf16.mxu0 0
        %3230 = vmatpush2.bf16.msra.mxu0 0
        %3231 = vmatprep.subr.bf16.mxu0 0
        %3232 = vmatpush2.bf16.msra.mxu0 0
        %3233 = vmatprep.mubr.bf16.mxu0 0
        %3234 = vmatmul.mubr.bf16.gmra.mxu0 %v3196
        %v3235 = vpop.f32.mrf.mxu0
        %v3236 = vadd.f32 %v1073, %v3235
        %v3237 = vpop.f32.mrf.mxu0
        %v3238 = vpop.f32.mrf.mxu0
        %v3239 = vadd.f32 %v1073, %v3238
        %v3240 = vpop.f32.mrf.mxu0
        %3241 = vmatprep.mubr.bf16.mxu0 0
        %3242 = vmatmul.mubr.bf16.gmra.mxu0 %v3199
        %v3243 = vpop.f32.mrf.mxu0
        %v3244 = vadd.f32 %v1073, %v3243
        %v3245 = vpop.f32.mrf.mxu0
        %v3246 = vpop.f32.mrf.mxu0
        %v3247 = vadd.f32 %v1073, %v3246
        %v3248 = vpop.f32.mrf.mxu0
        %3249 = vdwg.mxu0
        %v3250 = vmax.f32 %v3236, 0.0
        %v3251 = vmax.f32 %v3239, 0.0
        %v3252 = vmax.f32 %v3244, 0.0
        %v3253 = vmax.f32 %v3247, 0.0
        %v3254 = vpack.c.bf16 %v3251, %v3250
        %v3255 = vpack.c.bf16 %v3253, %v3252
        %v3257 = vsel %vm1003, %v3254, 0
        %v3260 = vsel %vm1003, %v3255, 0
        %3262 = vmatprep.subr.bf16.mxu0 0
        %3263 = vmatpush1.bf16.msra.mxu0 0
        %3264 = vmatprep.subr.bf16.mxu0 0
        %3265 = vmatpush1.bf16.msra.mxu0 0
        %3266 = vmatprep.subr.bf16.mxu0 0
        %3267 = vmatpush1.bf16.msra.mxu0 0
        %3268 = vmatprep.subr.bf16.mxu0 0
        %3269 = vmatpush1.bf16.msra.mxu0 0
        %3270 = vmatprep.subr.bf16.mxu0 0
        %3271 = vmatpush1.bf16.msra.mxu0 0
        %3272 = vmatprep.subr.bf16.mxu0 0
        %3273 = vmatpush1.bf16.msra.mxu0 0
        %3274 = vmatprep.subr.bf16.mxu0 0
        %3275 = vmatpush1.bf16.msra.mxu0 %v1163
        %3276 = vmatprep.subr.bf16.mxu0 0
        %3277 = vmatpush1.bf16.msra.mxu0 %v1162
        %3278 = vmatprep.subr.bf16.mxu0 0
        %3279 = vmatpush2.bf16.msra.mxu0 0
        %3280 = vmatprep.subr.bf16.mxu0 0
        %3281 = vmatpush2.bf16.msra.mxu0 0
        %3282 = vmatprep.subr.bf16.mxu0 0
        %3283 = vmatpush2.bf16.msra.mxu0 0
        %3284 = vmatprep.subr.bf16.mxu0 0
        %3285 = vmatpush2.bf16.msra.mxu0 0
        %3286 = vmatprep.subr.bf16.mxu0 0
        %3287 = vmatpush2.bf16.msra.mxu0 0
        %3288 = vmatprep.subr.bf16.mxu0 0
        %3289 = vmatpush2.bf16.msra.mxu0 0
        %3290 = vmatprep.subr.bf16.mxu0 0
        %3291 = vmatpush2.bf16.msra.mxu0 0
        %3292 = vmatprep.subr.bf16.mxu0 0
        %3293 = vmatpush2.bf16.msra.mxu0 0
        %3294 = vmatprep.mubr.bf16.mxu0 0
        %3295 = vmatmul.mubr.bf16.gmra.mxu0 %v3257
        %v3296 = vpop.f32.mrf.mxu0
        %v3297 = vadd.f32 %v1152, %v3296
        %v3298 = vpop.f32.mrf.mxu0
        %v3299 = vpop.f32.mrf.mxu0
        %v3300 = vadd.f32 %v1152, %v3299
        %v3301 = vpop.f32.mrf.mxu0
        %3302 = vmatprep.mubr.bf16.mxu0 0
        %3303 = vmatmul.mubr.bf16.gmra.mxu0 %v3260
        %v3304 = vpop.f32.mrf.mxu0
        %v3305 = vadd.f32 %v1152, %v3304
        %v3306 = vpop.f32.mrf.mxu0
        %v3307 = vpop.f32.mrf.mxu0
        %v3308 = vadd.f32 %v1152, %v3307
        %v3309 = vpop.f32.mrf.mxu0
        %3310 = vdwg.mxu0
        %3315 = vrot.lane.b32.xlu0 %v3171, 32
        %v3316 = vpop.permute.xlu0 %3315
        %3317 = vrot.lane.b32.xlu0 %v3174, 32
        %v3318 = vpop.permute.xlu0 %3317
        %3319 = vrot.lane.b32.xlu0 %v3179, 32
        %v3320 = vpop.permute.xlu0 %3319
        %3321 = vrot.lane.b32.xlu0 %v3182, 32
        %v3322 = vpop.permute.xlu0 %3321
        %v3327 = vadd.f32 %v3039, %v3316
        %v3328 = vadd.f32 %v3040, %v3318
        %v3329 = vadd.f32 %v3041, %v3320
        %v3330 = vadd.f32 %v3042, %v3322
        %v3331 = vmax.f32 %v2974, %v3297
        %v3332 = vmax.f32 %v2975, %v3300
        %v3333 = vmax.f32 %v2976, %v3305
        %v3334 = vmax.f32 %v2977, %v3308
        %v3335 = vsub.f32 %v2974, %v3331
        %v3336 = vsub.f32 %v2975, %v3332
        %v3337 = vsub.f32 %v2976, %v3333
        %v3338 = vsub.f32 %v2977, %v3334
        %v3339 = vmul.f32 %v3335, 1.442695
        %v3340 = vpow.pop %v3339
        %v3341 = vmul.f32 %v3336, 1.442695
        %v3342 = vpow.pop %v3341
        %v3343 = vmul.f32 %v3337, 1.442695
        %v3344 = vpow.pop %v3343
        %v3345 = vmul.f32 %v3338, 1.442695
        %v3346 = vpow.pop %v3345
        %v3347 = vsub.f32 %v3297, %v3331
        %v3348 = vsub.f32 %v3300, %v3332
        %v3349 = vsub.f32 %v3305, %v3333
        %v3350 = vsub.f32 %v3308, %v3334
        %v3351 = vmul.f32 %v3347, 1.442695
        %v3352 = vpow.pop %v3351
        %v3353 = vmul.f32 %v3348, 1.442695
        %v3354 = vpow.pop %v3353
        %v3355 = vmul.f32 %v3349, 1.442695
        %v3356 = vpow.pop %v3355
        %v3357 = vmul.f32 %v3350, 1.442695
        %v3358 = vpow.pop %v3357
        %v3359 = vmul.f32 %v3340, %v3006
        %v3360 = vmul.f32 %v3342, %v3007
        %v3361 = vmul.f32 %v3344, %v3008
        %v3362 = vmul.f32 %v3346, %v3009
        %v3363 = vadd.f32 %v3359, %v3352
        %v3364 = vadd.f32 %v3360, %v3354
        %v3365 = vadd.f32 %v3361, %v3356
        %v3366 = vadd.f32 %v3362, %v3358
        %v3367 = vmul.f32 %v3340, %v3034
        %v3368 = vmul.f32 %v3342, %v3035
        %v3369 = vmul.f32 %v3344, %v3036
        %v3370 = vmul.f32 %v3346, %v3037
        %3375 = vrot.lane.b32.xlu0 %v3327, 96
        %v3376 = vpop.permute.xlu0 %3375
        %3377 = vrot.lane.b32.xlu0 %v3328, 96
        %v3378 = vpop.permute.xlu0 %3377
        %3379 = vrot.lane.b32.xlu0 %v3329, 96
        %v3380 = vpop.permute.xlu0 %3379
        %3381 = vrot.lane.b32.xlu0 %v3330, 96
        %v3382 = vpop.permute.xlu0 %3381
        %v3387 = vmul.f32 %v3352, %v3376
        %v3388 = vmul.f32 %v3354, %v3378
        %v3389 = vmul.f32 %v3356, %v3380
        %v3390 = vmul.f32 %v3358, %v3382
        %v3391 = vadd.f32 %v3367, %v3387
        %v3392 = vadd.f32 %v3368, %v3388
        %v3393 = vadd.f32 %v3369, %v3389
        %v3394 = vadd.f32 %v3370, %v3390
        %s3395 = scalar_lea.vmem %s771, 224 [#allocation2]
        %v3396 = vld [vmem:[%s3395] sm:$0xff]
        %v3397 = vld [vmem:[%s3395 + $0x8] sm:$0xff]
        %v3398 = vld [vmem:[%s3395 + $0x10] sm:$0xff]
        %v3399 = vld [vmem:[%s3395 + $0x18] sm:$0xff]
        %s3400 = scalar_lea.vmem %s778, 224 [#allocation3]
        %v3401 = vld [vmem:[%s3400] sm:$0xff]
        %v3402 = vld [vmem:[%s3400 + $0x8] sm:$0xff]
        %v3403 = vld [vmem:[%s3400 + $0x10] sm:$0xff]
        %v3404 = vld [vmem:[%s3400 + $0x18] sm:$0xff]
        %3406 = vset.pattern.permute.xlu0 0
        %3407 = vperm.xlu0 %3406, %v3401
        %v3408 = vpop.permute.xlu0 %3407
        %3411 = vset.pattern.permute.xlu0 0
        %3412 = vperm.xlu0 %3411, %v3402
        %v3413 = vpop.permute.xlu0 %3412
        %3416 = vset.pattern.permute.xlu0 0
        %3417 = vperm.xlu0 %3416, %v3403
        %v3418 = vpop.permute.xlu0 %3417
        %3421 = vset.pattern.permute.xlu0 0
        %3422 = vperm.xlu0 %3421, %v3404
        %v3423 = vpop.permute.xlu0 %3422
        %v3425 = vmul.f32 %v3408, %v908
        %v3426 = vmul.f32 %v3413, %v908
        %v3427 = vmul.f32 %v3418, %v908
        %v3428 = vmul.f32 %v3423, %v908
        %3429 = vset.pattern.permute.xlu0 1
        %3430 = vperm.xlu0 %3429, %v3401
        %v3431 = vpop.permute.xlu0 %3430
        %3433 = vset.pattern.permute.xlu0 1
        %3434 = vperm.xlu0 %3433, %v3402
        %v3435 = vpop.permute.xlu0 %3434
        %3437 = vset.pattern.permute.xlu0 1
        %3438 = vperm.xlu0 %3437, %v3403
        %v3439 = vpop.permute.xlu0 %3438
        %3441 = vset.pattern.permute.xlu0 1
        %3442 = vperm.xlu0 %3441, %v3404
        %v3443 = vpop.permute.xlu0 %3442
        %v3445 = vmul.f32 %v3431, %v932
        %v3446 = vmul.f32 %v3435, %v932
        %v3447 = vmul.f32 %v3439, %v932
        %v3448 = vmul.f32 %v3443, %v932
        %v3449 = vadd.f32 %v3425, %v3445
        %v3450 = vadd.f32 %v3426, %v3446
        %v3451 = vadd.f32 %v3427, %v3447
        %v3452 = vadd.f32 %v3428, %v3448
        %3453 = vset.pattern.permute.xlu0 2
        %3454 = vperm.xlu0 %3453, %v3401
        %v3455 = vpop.permute.xlu0 %3454
        %3457 = vset.pattern.permute.xlu0 2
        %3458 = vperm.xlu0 %3457, %v3402
        %v3459 = vpop.permute.xlu0 %3458
        %3461 = vset.pattern.permute.xlu0 2
        %3462 = vperm.xlu0 %3461, %v3403
        %v3463 = vpop.permute.xlu0 %3462
        %3465 = vset.pattern.permute.xlu0 2
        %3466 = vperm.xlu0 %3465, %v3404
        %v3467 = vpop.permute.xlu0 %3466
        %v3469 = vmul.f32 %v3455, %v960
        %v3470 = vmul.f32 %v3459, %v960
        %v3471 = vmul.f32 %v3463, %v960
        %v3472 = vmul.f32 %v3467, %v960
        %v3473 = vadd.f32 %v3449, %v3469
        %v3474 = vadd.f32 %v3450, %v3470
        %v3475 = vadd.f32 %v3451, %v3471
        %v3476 = vadd.f32 %v3452, %v3472
        %v3477 = vadd.f32 %v3473, %v973
        %v3478 = vadd.f32 %v3474, %v973
        %v3479 = vadd.f32 %v3475, %v973
        %v3480 = vadd.f32 %v3476, %v973
        %v3481 = vmax.f32 %v3477, 0.0
        %v3482 = vmax.f32 %v3478, 0.0
        %v3483 = vmax.f32 %v3479, 0.0
        %v3484 = vmax.f32 %v3480, 0.0
        %v3485 = vpack.c.bf16 %v3482, %v3481
        %v3486 = vpack.c.bf16 %v3484, %v3483
        %v3488 = vsel %vm1003, %v3485, 0
        %v3491 = vsel %vm1003, %v3486, 0
        %3493 = vmatprep.subr.bf16.mxu0 0
        %3494 = vmatpush1.bf16.msra.mxu0 0
        %3495 = vmatprep.subr.bf16.mxu0 0
        %3496 = vmatpush1.bf16.msra.mxu0 0
        %3497 = vmatprep.subr.bf16.mxu0 0
        %3498 = vmatpush1.bf16.msra.mxu0 0
        %3499 = vmatprep.subr.bf16.mxu0 0
        %3500 = vmatpush1.bf16.msra.mxu0 0
        %3501 = vmatprep.subr.bf16.mxu0 0
        %3502 = vmatpush1.bf16.msra.mxu0 0
        %3503 = vmatprep.subr.bf16.mxu0 0
        %3504 = vmatpush1.bf16.msra.mxu0 0
        %3505 = vmatprep.subr.bf16.mxu0 0
        %3506 = vmatpush1.bf16.msra.mxu0 %v1000
        %3507 = vmatprep.subr.bf16.mxu0 0
        %3508 = vmatpush1.bf16.msra.mxu0 %v999
        %3509 = vmatprep.subr.bf16.mxu0 0
        %3510 = vmatpush2.bf16.msra.mxu0 0
        %3511 = vmatprep.subr.bf16.mxu0 0
        %3512 = vmatpush2.bf16.msra.mxu0 0
        %3513 = vmatprep.subr.bf16.mxu0 0
        %3514 = vmatpush2.bf16.msra.mxu0 0
        %3515 = vmatprep.subr.bf16.mxu0 0
        %3516 = vmatpush2.bf16.msra.mxu0 0
        %3517 = vmatprep.subr.bf16.mxu0 0
        %3518 = vmatpush2.bf16.msra.mxu0 0
        %3519 = vmatprep.subr.bf16.mxu0 0
        %3520 = vmatpush2.bf16.msra.mxu0 0
        %3521 = vmatprep.subr.bf16.mxu0 0
        %3522 = vmatpush2.bf16.msra.mxu0 0
        %3523 = vmatprep.subr.bf16.mxu0 0
        %3524 = vmatpush2.bf16.msra.mxu0 0
        %3525 = vmatprep.mubr.bf16.mxu0 0
        %3526 = vmatmul.mubr.bf16.gmra.mxu0 %v3488
        %v3527 = vpop.f32.mrf.mxu0
        %v3528 = vadd.f32 %v989, %v3527
        %v3529 = vpop.f32.mrf.mxu0
        %v3530 = vpop.f32.mrf.mxu0
        %v3531 = vadd.f32 %v989, %v3530
        %v3532 = vpop.f32.mrf.mxu0
        %3533 = vmatprep.mubr.bf16.mxu0 0
        %3534 = vmatmul.mubr.bf16.gmra.mxu0 %v3491
        %v3535 = vpop.f32.mrf.mxu0
        %v3536 = vadd.f32 %v989, %v3535
        %v3537 = vpop.f32.mrf.mxu0
        %v3538 = vpop.f32.mrf.mxu0
        %v3539 = vadd.f32 %v989, %v3538
        %v3540 = vpop.f32.mrf.mxu0
        %3541 = vdwg.mxu0
        %v3542 = vsub.f32 %v856, %v3396
        %v3543 = vsub.f32 %v857, %v3397
        %v3544 = vsub.f32 %v858, %v3398
        %v3545 = vsub.f32 %v859, %v3399
        %v3546 = vadd.f32 %v3542, %v3528
        %v3547 = vadd.f32 %v3543, %v3531
        %v3548 = vadd.f32 %v3544, %v3536
        %v3549 = vadd.f32 %v3545, %v3539
        %v3550 = vpack.c.bf16 %v3547, %v3546
        %v3551 = vpack.c.bf16 %v3549, %v3548
        %v3553 = vsel %vm1003, %v3550, 0
        %v3556 = vsel %vm1003, %v3551, 0
        %3558 = vmatprep.subr.bf16.mxu0 0
        %3559 = vmatpush1.bf16.msra.mxu0 0
        %3560 = vmatprep.subr.bf16.mxu0 0
        %3561 = vmatpush1.bf16.msra.mxu0 0
        %3562 = vmatprep.subr.bf16.mxu0 0
        %3563 = vmatpush1.bf16.msra.mxu0 0
        %3564 = vmatprep.subr.bf16.mxu0 0
        %3565 = vmatpush1.bf16.msra.mxu0 0
        %3566 = vmatprep.subr.bf16.mxu0 0
        %3567 = vmatpush1.bf16.msra.mxu0 0
        %3568 = vmatprep.subr.bf16.mxu0 0
        %3569 = vmatpush1.bf16.msra.mxu0 0
        %3570 = vmatprep.subr.bf16.mxu0 0
        %3571 = vmatpush1.bf16.msra.mxu0 %v1084
        %3572 = vmatprep.subr.bf16.mxu0 0
        %3573 = vmatpush1.bf16.msra.mxu0 %v1083
        %3574 = vmatprep.subr.bf16.mxu0 0
        %3575 = vmatpush2.bf16.msra.mxu0 0
        %3576 = vmatprep.subr.bf16.mxu0 0
        %3577 = vmatpush2.bf16.msra.mxu0 0
        %3578 = vmatprep.subr.bf16.mxu0 0
        %3579 = vmatpush2.bf16.msra.mxu0 0
        %3580 = vmatprep.subr.bf16.mxu0 0
        %3581 = vmatpush2.bf16.msra.mxu0 0
        %3582 = vmatprep.subr.bf16.mxu0 0
        %3583 = vmatpush2.bf16.msra.mxu0 0
        %3584 = vmatprep.subr.bf16.mxu0 0
        %3585 = vmatpush2.bf16.msra.mxu0 0
        %3586 = vmatprep.subr.bf16.mxu0 0
        %3587 = vmatpush2.bf16.msra.mxu0 0
        %3588 = vmatprep.subr.bf16.mxu0 0
        %3589 = vmatpush2.bf16.msra.mxu0 0
        %3590 = vmatprep.mubr.bf16.mxu0 0
        %3591 = vmatmul.mubr.bf16.gmra.mxu0 %v3553
        %v3592 = vpop.f32.mrf.mxu0
        %v3593 = vadd.f32 %v1073, %v3592
        %v3594 = vpop.f32.mrf.mxu0
        %v3595 = vpop.f32.mrf.mxu0
        %v3596 = vadd.f32 %v1073, %v3595
        %v3597 = vpop.f32.mrf.mxu0
        %3598 = vmatprep.mubr.bf16.mxu0 0
        %3599 = vmatmul.mubr.bf16.gmra.mxu0 %v3556
        %v3600 = vpop.f32.mrf.mxu0
        %v3601 = vadd.f32 %v1073, %v3600
        %v3602 = vpop.f32.mrf.mxu0
        %v3603 = vpop.f32.mrf.mxu0
        %v3604 = vadd.f32 %v1073, %v3603
        %v3605 = vpop.f32.mrf.mxu0
        %3606 = vdwg.mxu0
        %v3607 = vmax.f32 %v3593, 0.0
        %v3608 = vmax.f32 %v3596, 0.0
        %v3609 = vmax.f32 %v3601, 0.0
        %v3610 = vmax.f32 %v3604, 0.0
        %v3611 = vpack.c.bf16 %v3608, %v3607
        %v3612 = vpack.c.bf16 %v3610, %v3609
        %v3614 = vsel %vm1003, %v3611, 0
        %v3617 = vsel %vm1003, %v3612, 0
        %3619 = vmatprep.subr.bf16.mxu0 0
        %3620 = vmatpush1.bf16.msra.mxu0 0
        %3621 = vmatprep.subr.bf16.mxu0 0
        %3622 = vmatpush1.bf16.msra.mxu0 0
        %3623 = vmatprep.subr.bf16.mxu0 0
        %3624 = vmatpush1.bf16.msra.mxu0 0
        %3625 = vmatprep.subr.bf16.mxu0 0
        %3626 = vmatpush1.bf16.msra.mxu0 0
        %3627 = vmatprep.subr.bf16.mxu0 0
        %3628 = vmatpush1.bf16.msra.mxu0 0
        %3629 = vmatprep.subr.bf16.mxu0 0
        %3630 = vmatpush1.bf16.msra.mxu0 0
        %3631 = vmatprep.subr.bf16.mxu0 0
        %3632 = vmatpush1.bf16.msra.mxu0 %v1163
        %3633 = vmatprep.subr.bf16.mxu0 0
        %3634 = vmatpush1.bf16.msra.mxu0 %v1162
        %3635 = vmatprep.subr.bf16.mxu0 0
        %3636 = vmatpush2.bf16.msra.mxu0 0
        %3637 = vmatprep.subr.bf16.mxu0 0
        %3638 = vmatpush2.bf16.msra.mxu0 0
        %3639 = vmatprep.subr.bf16.mxu0 0
        %3640 = vmatpush2.bf16.msra.mxu0 0
        %3641 = vmatprep.subr.bf16.mxu0 0
        %3642 = vmatpush2.bf16.msra.mxu0 0
        %3643 = vmatprep.subr.bf16.mxu0 0
        %3644 = vmatpush2.bf16.msra.mxu0 0
        %3645 = vmatprep.subr.bf16.mxu0 0
        %3646 = vmatpush2.bf16.msra.mxu0 0
        %3647 = vmatprep.subr.bf16.mxu0 0
        %3648 = vmatpush2.bf16.msra.mxu0 0
        %3649 = vmatprep.subr.bf16.mxu0 0
        %3650 = vmatpush2.bf16.msra.mxu0 0
        %3651 = vmatprep.mubr.bf16.mxu0 0
        %3652 = vmatmul.mubr.bf16.gmra.mxu0 %v3614
        %v3653 = vpop.f32.mrf.mxu0
        %v3654 = vadd.f32 %v1152, %v3653
        %v3655 = vpop.f32.mrf.mxu0
        %v3656 = vpop.f32.mrf.mxu0
        %v3657 = vadd.f32 %v1152, %v3656
        %v3658 = vpop.f32.mrf.mxu0
        %3659 = vmatprep.mubr.bf16.mxu0 0
        %3660 = vmatmul.mubr.bf16.gmra.mxu0 %v3617
        %v3661 = vpop.f32.mrf.mxu0
        %v3662 = vadd.f32 %v1152, %v3661
        %v3663 = vpop.f32.mrf.mxu0
        %v3664 = vpop.f32.mrf.mxu0
        %v3665 = vadd.f32 %v1152, %v3664
        %v3666 = vpop.f32.mrf.mxu0
        %3667 = vdwg.mxu0
        %3672 = vrot.lane.b32.xlu0 %v3528, 32
        %v3673 = vpop.permute.xlu0 %3672
        %3674 = vrot.lane.b32.xlu0 %v3531, 32
        %v3675 = vpop.permute.xlu0 %3674
        %3676 = vrot.lane.b32.xlu0 %v3536, 32
        %v3677 = vpop.permute.xlu0 %3676
        %3678 = vrot.lane.b32.xlu0 %v3539, 32
        %v3679 = vpop.permute.xlu0 %3678
        %v3684 = vadd.f32 %v3396, %v3673
        %v3685 = vadd.f32 %v3397, %v3675
        %v3686 = vadd.f32 %v3398, %v3677
        %v3687 = vadd.f32 %v3399, %v3679
        %v3688 = vmax.f32 %v3331, %v3654
        %v3689 = vmax.f32 %v3332, %v3657
        %v3690 = vmax.f32 %v3333, %v3662
        %v3691 = vmax.f32 %v3334, %v3665
        %v3692 = vsub.f32 %v3331, %v3688
        %v3693 = vsub.f32 %v3332, %v3689
        %v3694 = vsub.f32 %v3333, %v3690
        %v3695 = vsub.f32 %v3334, %v3691
        %v3696 = vmul.f32 %v3692, 1.442695
        %v3697 = vpow.pop %v3696
        %v3698 = vmul.f32 %v3693, 1.442695
        %v3699 = vpow.pop %v3698
        %v3700 = vmul.f32 %v3694, 1.442695
        %v3701 = vpow.pop %v3700
        %v3702 = vmul.f32 %v3695, 1.442695
        %v3703 = vpow.pop %v3702
        %v3704 = vsub.f32 %v3654, %v3688
        %v3705 = vsub.f32 %v3657, %v3689
        %v3706 = vsub.f32 %v3662, %v3690
        %v3707 = vsub.f32 %v3665, %v3691
        %v3708 = vmul.f32 %v3704, 1.442695
        %v3709 = vpow.pop %v3708
        %v3710 = vmul.f32 %v3705, 1.442695
        %v3711 = vpow.pop %v3710
        %v3712 = vmul.f32 %v3706, 1.442695
        %v3713 = vpow.pop %v3712
        %v3714 = vmul.f32 %v3707, 1.442695
        %v3715 = vpow.pop %v3714
        %v3716 = vmul.f32 %v3697, %v3363
        %v3717 = vmul.f32 %v3699, %v3364
        %v3718 = vmul.f32 %v3701, %v3365
        %v3719 = vmul.f32 %v3703, %v3366
        %v3720 = vadd.f32 %v3716, %v3709
        %v3721 = vadd.f32 %v3717, %v3711
        %v3722 = vadd.f32 %v3718, %v3713
        %v3723 = vadd.f32 %v3719, %v3715
        %v3724 = vmul.f32 %v3697, %v3391
        %v3725 = vmul.f32 %v3699, %v3392
        %v3726 = vmul.f32 %v3701, %v3393
        %v3727 = vmul.f32 %v3703, %v3394
        %3732 = vrot.lane.b32.xlu0 %v3684, 96
        %v3733 = vpop.permute.xlu0 %3732
        %3734 = vrot.lane.b32.xlu0 %v3685, 96
        %v3735 = vpop.permute.xlu0 %3734
        %3736 = vrot.lane.b32.xlu0 %v3686, 96
        %v3737 = vpop.permute.xlu0 %3736
        %3738 = vrot.lane.b32.xlu0 %v3687, 96
        %v3739 = vpop.permute.xlu0 %3738
        %v3744 = vmul.f32 %v3709, %v3733
        %v3745 = vmul.f32 %v3711, %v3735
        %v3746 = vmul.f32 %v3713, %v3737
        %v3747 = vmul.f32 %v3715, %v3739
        %v3748 = vadd.f32 %v3724, %v3744
        %v3749 = vadd.f32 %v3725, %v3745
        %v3750 = vadd.f32 %v3726, %v3746
        %v3751 = vadd.f32 %v3727, %v3747
        %v3752 = vrcp.pop %v3720
        %v3753 = vrcp.pop %v3721
        %v3754 = vrcp.pop %v3722
        %v3755 = vrcp.pop %v3723
        %v3756 = vmul.f32 %v3748, %v3752
        %v3757 = vmul.f32 %v3749, %v3753
        %v3758 = vmul.f32 %v3750, %v3754
        %v3759 = vmul.f32 %v3751, %v3755
        %v3760 = vpack.c.bf16 %v3757, %v3756
        %v3761 = vpack.c.bf16 %v3759, %v3758
        %v3762 = vld [vmem:[%s11] sm:$0xf]
        %v3763 = vld [vmem:[%s11 + $0x4] sm:$0xf]
        %v3764 = vld [vmem:[%s11 + $0x8] sm:$0xf]
        %v3765 = vld [vmem:[%s11 + $0xc] sm:$0xf]
        %v3766 = vld [vmem:[%s12] sm:$0x1]
        %v3768 = vlaneseq
        %v3769 = vshrl.u32 %v3768, 7
        %v3770 = vsub.s32 0, %v3769
        %v3771 = vrot.slane %v3766, %v3770
        %v3777 = vunpack.c.l.b16 %v3762
        %v3778 = vunpack.c.l.b16 %v3763
        %v3779 = vunpack.c.l.b16 %v3764
        %v3780 = vunpack.c.l.b16 %v3765
        %v3781 = vpack.c.b16 %v3778, %v3777
        %v3782 = vpack.c.b16 %v3780, %v3779
        %v3786 = vsel %vm1003, %v3760, 0
        %v3789 = vsel %vm1003, %v3761, 0
        %3791 = vmatprep.subr.bf16.mxu0 0
        %3792 = vmatpush1.bf16.msra.mxu0 0
        %3793 = vmatprep.subr.bf16.mxu0 0
        %3794 = vmatpush1.bf16.msra.mxu0 0
        %3795 = vmatprep.subr.bf16.mxu0 0
        %3796 = vmatpush1.bf16.msra.mxu0 0
        %3797 = vmatprep.subr.bf16.mxu0 0
        %3798 = vmatpush1.bf16.msra.mxu0 0
        %3799 = vmatprep.subr.bf16.mxu0 0
        %3800 = vmatpush1.bf16.msra.mxu0 0
        %3801 = vmatprep.subr.bf16.mxu0 0
        %3802 = vmatpush1.bf16.msra.mxu0 0
        %3803 = vmatprep.subr.bf16.mxu0 0
        %3804 = vmatpush1.bf16.msra.mxu0 %v3782
        %3805 = vmatprep.subr.bf16.mxu0 0
        %3806 = vmatpush1.bf16.msra.mxu0 %v3781
        %3807 = vmatprep.subr.bf16.mxu0 0
        %3808 = vmatpush2.bf16.msra.mxu0 0
        %3809 = vmatprep.subr.bf16.mxu0 0
        %3810 = vmatpush2.bf16.msra.mxu0 0
        %3811 = vmatprep.subr.bf16.mxu0 0
        %3812 = vmatpush2.bf16.msra.mxu0 0
        %3813 = vmatprep.subr.bf16.mxu0 0
        %3814 = vmatpush2.bf16.msra.mxu0 0
        %3815 = vmatprep.subr.bf16.mxu0 0
        %3816 = vmatpush2.bf16.msra.mxu0 0
        %3817 = vmatprep.subr.bf16.mxu0 0
        %3818 = vmatpush2.bf16.msra.mxu0 0
        %3819 = vmatprep.subr.bf16.mxu0 0
        %3820 = vmatpush2.bf16.msra.mxu0 0
        %3821 = vmatprep.subr.bf16.mxu0 0
        %3822 = vmatpush2.bf16.msra.mxu0 0
        %3823 = vmatprep.mubr.bf16.mxu0 0
        %3824 = vmatmul.mubr.bf16.gmra.mxu0 %v3786
        %v3825 = vpop.f32.mrf.mxu0
        %v3826 = vadd.f32 %v3771, %v3825
        %v3827 = vpop.f32.mrf.mxu0
        %v3828 = vpop.f32.mrf.mxu0
        %v3829 = vadd.f32 %v3771, %v3828
        %v3830 = vpop.f32.mrf.mxu0
        %3831 = vmatprep.mubr.bf16.mxu0 0
        %3832 = vmatmul.mubr.bf16.gmra.mxu0 %v3789
        %v3833 = vpop.f32.mrf.mxu0
        %v3834 = vadd.f32 %v3771, %v3833
        %v3835 = vpop.f32.mrf.mxu0
        %v3836 = vpop.f32.mrf.mxu0
        %v3837 = vadd.f32 %v3771, %v3836
        %v3838 = vpop.f32.mrf.mxu0
        %3839 = vdwg.mxu0
        %v3840 = vld [vmem:[%s847] sm:$0xff]
        %v3841 = vld [vmem:[%s847 + $0x8] sm:$0xff]
        %v3842 = vld [vmem:[%s847 + $0x10] sm:$0xff]
        %v3843 = vld [vmem:[%s847 + $0x18] sm:$0xff]
        %v3844 = vadd.f32 %v3826, %v3840
        %v3845 = vadd.f32 %v3829, %v3841
        %v3846 = vadd.f32 %v3834, %v3842
        %v3847 = vadd.f32 %v3837, %v3843
        %3848 = vst.msk [vmem:[%s853] sm:$0xff] %vm1003, %v3844
        %3849 = vst.msk [vmem:[%s853 + $0x8] sm:$0xff] %vm1003, %v3845
        %3850 = vst.msk [vmem:[%s853 + $0x10] sm:$0xff] %vm1003, %v3846
        %3851 = vst.msk [vmem:[%s853 + $0x18] sm:$0xff] %vm1003, %v3847
        %s3852 = smul.u32 4, %s25
        %p3853 = scmp.lt.s32.totalorder %s3852, 7
        %s3854 = scalar_select %p3853, %s3852, 7
        %s3855 = smul.addr %s3854, 8
        %s3856 = scalar_lea.vmem %s14, %s3855
        // Predicated region
        $region153: #{_lambda_.8} parent=143 // pred_check
          %p3857 = pneg %p357
        $region154: #{_lambda_.8} parent=143 // pred_check_branch
          %3859 = sbr.rel (%p3857) target = $region156
        $region155: #{_lambda_.8} parent=143 // pred_region
          %s3860 = smul.u32 4, %s25
        $region156: #{_lambda_.8} parent=143 // pred_fallthru
          _
      $region144: #{_lambda_.8} parent=5 // pred_fallthru
        _
      %p3861 = scmp.le.s32.totalorder 2, %s20
      // Predicated region
      $region157: #{_lambda_.8} parent=5 // pred_check
        %p3862 = pneg %p3861
      $region158: #{_lambda_.8} parent=5 // pred_check_branch
        %3864 = sbr.rel (%p3862) target = $region160
      $region159: #{_lambda_.8} parent=5 // pred_region
        %s3865 = ssub.s32 %s20, 2
        // Predicated region
        $region161: #{_lambda_.8} parent=159 // pred_check
          %p3866 = pneg %p363
        $region162: #{_lambda_.8} parent=159 // pred_check_branch
          %3868 = sbr.rel (%p3866) target = $region164
        $region163: #{_lambda_.8} parent=159 // pred_region
          %s3869 = smul.u32 4, %s26
          %p3870 = scmp.lt.s32.totalorder %s3869, 7
          %s3871 = scalar_select %p3870, %s3869, 7
          %s3872 = smul.addr %s3871, 8
          %s3873 = scalar_lea.vmem %s14, %s3872
        $region164: #{_lambda_.8} parent=159 // pred_fallthru
          _
      $region160: #{_lambda_.8} parent=5 // pred_fallthru
        _
    $region6: #{_lambda_.8} parent=1 // loop_footer
      %s24 = sadd.s32 1, %s20
    $region7: #{_lambda_.8} parent=1 // loop_footer_branch
      %19 = sbr.rel target = $region3
    $region8: #{_lambda_.8} parent=1 // loop_exit
      _

// kernel: _lambda_.9
$region0: #{_lambda_.9}
  #allocation0 [shape = 'u32[]', space=smem, size = 0x4, offset = 0x4, fixed_abs, tag = 'smem constant byte address 0x4 - core index']
  #allocation1 [shape = 'u32[144,128]{1,0:T(1,128)}', space=vmem, size = 0x12000, scoped, tag = 'internal scratch']
  %s0 = inlined_call_operand.vmem [shape: f32[128,35], index: 0, kind: input, shape index: {}]
  %s1 = inlined_call_operand.vmem [shape: bf16[35,64], index: 1, kind: input, shape index: {}]
  %s2 = inlined_call_operand.vmem [shape: f32[1,64], index: 2, kind: input, shape index: {}]
  %s3 = inlined_call_operand.vmem [shape: bf16[64,64], index: 3, kind: input, shape index: {}]
  %s4 = inlined_call_operand.vmem [shape: f32[1,64], index: 4, kind: input, shape index: {}]
  %s5 = inlined_call_operand.vmem [shape: f32[128,64], index: 5, kind: output, shape index: {}]
  %s6 = sld [smem:[#allocation0]]
  $region53: #{_lambda_.9} parent=0
    _
  %s8 = ssub.s32 1, %s6
  %s9 = scalar_select 0, %s8, %s6
  loop: start=0, step=1, limit=4
  $region2: #{_lambda_.9} parent=0 // loop_pre_header
    _
  $region3: #{_lambda_.9} parent=0 // loop_header
    %s11 = sphi 0, %s15
    %p12 = scmp.ge.s32.totalorder %s11, 4
    %s21 = sphi 0, %s23
    %s24 = sphi 0, %s21
    %s25 = sphi 0, %s24
    %s41 = sphi 0, %s25
    %s45 = sphi 0, %s45
    %s47 = sphi 0, %s45
    %s48 = sphi 0, %s47
    %s62 = sphi 0, %s48
    %s66 = sphi 0, %s66
    %s68 = sphi 0, %s66
    %s69 = sphi 0, %s68
    %s83 = sphi 0, %s69
    %s87 = sphi 0, %s87
    %s89 = sphi 0, %s87
    %s90 = sphi 0, %s89
    %s104 = sphi 0, %s90
    %s108 = sphi 0, %s108
    %s110 = sphi 0, %s108
    %s111 = sphi 0, %s110
    %s125 = sphi 0, %s111
    %s131 = sphi 0, %s133
    %s134 = sphi 0, %s131
    %s135 = sphi 0, %s134
    %s151 = sphi 0, %s135
  $region4: #{_lambda_.9} parent=0 // loop_header_branch
    %14 = sbr.rel (%p12) target = $region8
  $region5: #{_lambda_.9} parent=0 // loop_body
    %s16 = ssub.s32 %s11, 1
    %s17 = ssub.s32 %s11, 2
    %s18 = sadd.s32 %s11, 1
    %s19 = ssub.s32 %s11, %s18
    %p20 = scmp.eq.s32.totalorder %s19, 0
    %s22 = sadd.s32 %s21, 1
    %s23 = scalar_select %p20, %s21, %s22
    %p26 = pneg %p20
    %p27 = scmp.eq.s32.totalorder %s11, 1
    %p28 = por %p26, %p27
    %p29 = scmp.ne.s32.totalorder %s21, %s24
    %p30 = scmp.eq.s32.totalorder %s11, 0
    %p31 = por %p29, %p30
    %p32 = scmp.ne.s32.totalorder %s21, %s24
    %p33 = scmp.eq.s32.totalorder %s16, 1
    %p34 = por %p32, %p33
    %p35 = scmp.ne.s32.totalorder %s24, %s25
    %p36 = scmp.eq.s32.totalorder %s16, 0
    %p37 = por %p35, %p36
    %p38 = scmp.ne.s32.totalorder %s24, %s25
    %p39 = scmp.eq.s32.totalorder %s17, 1
    %p40 = por %p38, %p39
    %p42 = scmp.ne.s32.totalorder %s25, %s41
    %p43 = scmp.eq.s32.totalorder %s17, 0
    %p44 = por %p42, %p43
    %s46 = sadd.s32 %s45, 1
    %p49 = scmp.eq.s32.totalorder %s11, 1
    %p50 = scmp.ne.s32.totalorder %s45, %s47
    %p51 = scmp.eq.s32.totalorder %s11, 0
    %p52 = por %p50, %p51
    %p53 = scmp.ne.s32.totalorder %s45, %s47
    %p54 = scmp.eq.s32.totalorder %s16, 1
    %p55 = por %p53, %p54
    %p56 = scmp.ne.s32.totalorder %s47, %s48
    %p57 = scmp.eq.s32.totalorder %s16, 0
    %p58 = por %p56, %p57
    %p59 = scmp.ne.s32.totalorder %s47, %s48
    %p60 = scmp.eq.s32.totalorder %s17, 1
    %p61 = por %p59, %p60
    %p63 = scmp.ne.s32.totalorder %s48, %s62
    %p64 = scmp.eq.s32.totalorder %s17, 0
    %p65 = por %p63, %p64
    %s67 = sadd.s32 %s66, 1
    %p70 = scmp.eq.s32.totalorder %s11, 1
    %p71 = scmp.ne.s32.totalorder %s66, %s68
    %p72 = scmp.eq.s32.totalorder %s11, 0
    %p73 = por %p71, %p72
    %p74 = scmp.ne.s32.totalorder %s66, %s68
    %p75 = scmp.eq.s32.totalorder %s16, 1
    %p76 = por %p74, %p75
    %p77 = scmp.ne.s32.totalorder %s68, %s69
    %p78 = scmp.eq.s32.totalorder %s16, 0
    %p79 = por %p77, %p78
    %p80 = scmp.ne.s32.totalorder %s68, %s69
    %p81 = scmp.eq.s32.totalorder %s17, 1
    %p82 = por %p80, %p81
    %p84 = scmp.ne.s32.totalorder %s69, %s83
    %p85 = scmp.eq.s32.totalorder %s17, 0
    %p86 = por %p84, %p85
    %s88 = sadd.s32 %s87, 1
    %p91 = scmp.eq.s32.totalorder %s11, 1
    %p92 = scmp.ne.s32.totalorder %s87, %s89
    %p93 = scmp.eq.s32.totalorder %s11, 0
    %p94 = por %p92, %p93
    %p95 = scmp.ne.s32.totalorder %s87, %s89
    %p96 = scmp.eq.s32.totalorder %s16, 1
    %p97 = por %p95, %p96
    %p98 = scmp.ne.s32.totalorder %s89, %s90
    %p99 = scmp.eq.s32.totalorder %s16, 0
    %p100 = por %p98, %p99
    %p101 = scmp.ne.s32.totalorder %s89, %s90
    %p102 = scmp.eq.s32.totalorder %s17, 1
    %p103 = por %p101, %p102
    %p105 = scmp.ne.s32.totalorder %s90, %s104
    %p106 = scmp.eq.s32.totalorder %s17, 0
    %p107 = por %p105, %p106
    %s109 = sadd.s32 %s108, 1
    %p112 = scmp.eq.s32.totalorder %s11, 1
    %p113 = scmp.ne.s32.totalorder %s108, %s110
    %p114 = scmp.eq.s32.totalorder %s11, 0
    %p115 = por %p113, %p114
    %p116 = scmp.ne.s32.totalorder %s108, %s110
    %p117 = scmp.eq.s32.totalorder %s16, 1
    %p118 = por %p116, %p117
    %p119 = scmp.ne.s32.totalorder %s110, %s111
    %p120 = scmp.eq.s32.totalorder %s16, 0
    %p121 = por %p119, %p120
    %p122 = scmp.ne.s32.totalorder %s110, %s111
    %p123 = scmp.eq.s32.totalorder %s17, 1
    %p124 = por %p122, %p123
    %p126 = scmp.ne.s32.totalorder %s111, %s125
    %p127 = scmp.eq.s32.totalorder %s17, 0
    %p128 = por %p126, %p127
    %s129 = ssub.s32 %s11, %s18
    %p130 = scmp.eq.s32.totalorder %s129, 0
    %s132 = sadd.s32 %s131, 1
    %s133 = scalar_select %p130, %s131, %s132
    %p136 = pneg %p130
    %p137 = scmp.eq.s32.totalorder %s11, 1
    %p138 = por %p136, %p137
    %p139 = scmp.ne.s32.totalorder %s131, %s134
    %p140 = scmp.eq.s32.totalorder %s11, 0
    %p141 = por %p139, %p140
    %p142 = scmp.ne.s32.totalorder %s131, %s134
    %p143 = scmp.eq.s32.totalorder %s16, 1
    %p144 = por %p142, %p143
    %p145 = scmp.ne.s32.totalorder %s134, %s135
    %p146 = scmp.eq.s32.totalorder %s16, 0
    %p147 = por %p145, %p146
    %p148 = scmp.ne.s32.totalorder %s134, %s135
    %p149 = scmp.eq.s32.totalorder %s17, 1
    %p150 = por %p148, %p149
    %p152 = scmp.ne.s32.totalorder %s135, %s151
    %p153 = scmp.eq.s32.totalorder %s17, 0
    %p154 = por %p152, %p153
    %p155 = scmp.le.s32.totalorder 1, %s11
    %p156 = scmp.lt.s32.totalorder %s11, 3
    %p157 = pnand %p155, %p156
    %p158 = pneg %p157
    // Predicated region
    $region9: #{_lambda_.9} parent=5 // pred_check
      _
    $region10: #{_lambda_.9} parent=5 // pred_check_branch
      %160 = sbr.rel (%p157) target = $region12
    $region11: #{_lambda_.9} parent=5 // pred_region
      %s161 = ssub.s32 %s11, 1
      // Predicated region
      $region13: #{_lambda_.9} parent=11 // pred_check
        %p162 = pneg %p58
      $region14: #{_lambda_.9} parent=11 // pred_check_branch
        %164 = sbr.rel (%p162) target = $region16
      $region15: #{_lambda_.9} parent=11 // pred_region
        _
      $region16: #{_lambda_.9} parent=11 // pred_fallthru
        _
      // Predicated region
      $region17: #{_lambda_.9} parent=11 // pred_check
        %p165 = pneg %p79
      $region18: #{_lambda_.9} parent=11 // pred_check_branch
        %167 = sbr.rel (%p165) target = $region20
      $region19: #{_lambda_.9} parent=11 // pred_region
        _
      $region20: #{_lambda_.9} parent=11 // pred_fallthru
        _
      // Predicated region
      $region21: #{_lambda_.9} parent=11 // pred_check
        %p168 = pneg %p100
      $region22: #{_lambda_.9} parent=11 // pred_check_branch
        %170 = sbr.rel (%p168) target = $region24
      $region23: #{_lambda_.9} parent=11 // pred_region
        _
      $region24: #{_lambda_.9} parent=11 // pred_fallthru
        _
      // Predicated region
      $region25: #{_lambda_.9} parent=11 // pred_check
        %p171 = pneg %p121
      $region26: #{_lambda_.9} parent=11 // pred_check_branch
        %173 = sbr.rel (%p171) target = $region28
      $region27: #{_lambda_.9} parent=11 // pred_region
        _
      $region28: #{_lambda_.9} parent=11 // pred_fallthru
        _
    $region12: #{_lambda_.9} parent=5 // pred_fallthru
      _
    %p174 = scmp.lt.s32.totalorder %s11, 2
    // Predicated region
    $region29: #{_lambda_.9} parent=5 // pred_check
      %p175 = pneg %p174
    $region30: #{_lambda_.9} parent=5 // pred_check_branch
      %177 = sbr.rel (%p175) target = $region32
    $region31: #{_lambda_.9} parent=5 // pred_region
      // Predicated region
      $region33: #{_lambda_.9} parent=31 // pred_check
        %p178 = pneg %p31
      $region34: #{_lambda_.9} parent=31 // pred_check_branch
        %180 = sbr.rel (%p178) target = $region36
      $region35: #{_lambda_.9} parent=31 // pred_region
        %s181 = smul.u32 8, %s11
        %p182 = scmp.lt.s32.totalorder %s181, 15
        %s183 = scalar_select %p182, %s181, 15
        %s184 = smul.addr %s183, 8
        %s185 = scalar_lea.vmem %s0, %s184
        %s186 = smul.u32 8, %s11
      $region36: #{_lambda_.9} parent=31 // pred_fallthru
        _
    $region32: #{_lambda_.9} parent=5 // pred_fallthru
      _
    %p187 = scmp.le.s32.totalorder 1, %s11
    %p188 = scmp.lt.s32.totalorder %s11, 3
    %p189 = pnand %p187, %p188
    %p190 = pneg %p189
    // Predicated region
    $region37: #{_lambda_.9} parent=5 // pred_check
      _
    $region38: #{_lambda_.9} parent=5 // pred_check_branch
      %192 = sbr.rel (%p189) target = $region40
    $region39: #{_lambda_.9} parent=5 // pred_region
      %s193 = ssub.s32 %s11, 1
      %s194 = smul.u32 8, %s16
      %p195 = scmp.lt.s32.totalorder %s194, 15
      %s196 = scalar_select %p195, %s194, 15
      %s197 = smul.addr %s196, 8
      %s198 = scalar_lea.vmem %s0, %s197
      %p199 = pneg %p37
      %p200 = pneg %p34
      %p201 = pneg %p58
      %p202 = pneg %p55
      %p203 = pneg %p79
      %p204 = pneg %p76
      %p205 = pneg %p100
      %p206 = pneg %p97
      %p207 = pneg %p121
      %p208 = pneg %p118
      %p209 = pneg %p147
      %p210 = pneg %p144
      %s211 = smul.u32 8, %s16
      %p212 = scmp.lt.s32.totalorder %s211, 15
      %s213 = scalar_select %p212, %s211, 15
      %s214 = smul.addr %s213, 8
      %s215 = scalar_lea.vmem %s5, %s214
      %s216 = smul.u32 8, %s16
      %p217 = scmp.lt.s32.totalorder %s216, 15
      %s218 = scalar_select %p217, %s216, 15
      %s219 = smul.addr %s218, 8
      %s220 = scalar_lea.vmem %s0, %s219
      %s221 = smul.u32 8, %s16
      %s222 = smul.u32 8, %s16
      %p223 = scmp.lt.s32.totalorder %s222, 15
      %s224 = scalar_select %p223, %s222, 15
      %s225 = smul.addr %s224, 8
      %s226 = scalar_lea.vmem %s5, %s225
      %s227 = smul.u32 8, %s16
      %v229 = vld [vmem:[%s220] sm:$0xff]
      %v230 = vld [vmem:[%s220 + $0x8] sm:$0xff]
      %v231 = vld [vmem:[%s220 + $0x10] sm:$0xff]
      %v232 = vld [vmem:[%s220 + $0x18] sm:$0xff]
      %v233 = vld [vmem:[%s220 + $0x20] sm:$0xff]
      %v234 = vld [vmem:[%s220 + $0x28] sm:$0xff]
      %v235 = vld [vmem:[%s220 + $0x30] sm:$0xff]
      %v236 = vld [vmem:[%s220 + $0x38] sm:$0xff]
      %v237 = vpack.c.bf16 %v230, %v229
      %v238 = vpack.c.bf16 %v232, %v231
      %v239 = vpack.c.bf16 %v234, %v233
      %v240 = vpack.c.bf16 %v236, %v235
      %v241 = vld [vmem:[%s1] sm:$0xf]
      %v242 = vld [vmem:[%s1 + $0x4] sm:$0xf]
      %v243 = vld [vmem:[%s1 + $0x8] sm:$0xf]
      %v244 = vld [vmem:[%s1 + $0xc] sm:$0xf]
      %v245 = vld [vmem:[%s1 + $0x10] sm:$0x3]
      %v246 = vld [vmem:[%s2] sm:$0x1]
      %v248 = vlaneseq
      %v249 = vshrl.u32 %v248, 7
      %v250 = vsub.s32 0, %v249
      %v251 = vrot.slane %v246, %v250
      %v258 = vunpack.c.l.b16 %v241
      %v259 = vunpack.c.l.b16 %v242
      %v260 = vunpack.c.l.b16 %v243
      %v261 = vunpack.c.l.b16 %v244
      %v262 = vunpack.c.l.b16 %v245
      %v263 = vpack.c.b16 %v259, %v258
      %v264 = vpack.c.b16 %v261, %v260
      %v265 = vpack.c.b16 %v262, %v262
      %vm268 = vcmask 285696
      %v270 = vsel %vm268, %v237, 0
      %v273 = vsel %vm268, %v238, 0
      %v276 = vsel %vm268, %v239, 0
      %v279 = vsel %vm268, %v240, 0
      %vm281 = vcmask 1040384
      %vm282 = vcmask 1041408
      %v283 = vsel %vm281, 4294967295, 65535
      %v284 = vsel %vm282, %v283, 0
      %v286 = vand.u32 %v265, %v284
      %288 = vmatprep.subr.bf16.mxu0 0
      %289 = vmatpush1.bf16.msra.mxu0 0
      %290 = vmatprep.subr.bf16.mxu0 0
      %291 = vmatpush1.bf16.msra.mxu0 0
      %292 = vmatprep.subr.bf16.mxu0 0
      %293 = vmatpush1.bf16.msra.mxu0 0
      %294 = vmatprep.subr.bf16.mxu0 0
      %295 = vmatpush1.bf16.msra.mxu0 0
      %296 = vmatprep.subr.bf16.mxu0 0
      %297 = vmatpush1.bf16.msra.mxu0 0
      %298 = vmatprep.subr.bf16.mxu0 0
      %299 = vmatpush1.bf16.msra.mxu0 %v286
      %300 = vmatprep.subr.bf16.mxu0 0
      %301 = vmatpush1.bf16.msra.mxu0 %v264
      %302 = vmatprep.subr.bf16.mxu0 0
      %303 = vmatpush1.bf16.msra.mxu0 %v263
      %304 = vmatprep.subr.bf16.mxu0 0
      %305 = vmatpush2.bf16.msra.mxu0 0
      %306 = vmatprep.subr.bf16.mxu0 0
      %307 = vmatpush2.bf16.msra.mxu0 0
      %308 = vmatprep.subr.bf16.mxu0 0
      %309 = vmatpush2.bf16.msra.mxu0 0
      %310 = vmatprep.subr.bf16.mxu0 0
      %311 = vmatpush2.bf16.msra.mxu0 0
      %312 = vmatprep.subr.bf16.mxu0 0
      %313 = vmatpush2.bf16.msra.mxu0 0
      %314 = vmatprep.subr.bf16.mxu0 0
      %315 = vmatpush2.bf16.msra.mxu0 0
      %316 = vmatprep.subr.bf16.mxu0 0
      %317 = vmatpush2.bf16.msra.mxu0 0
      %318 = vmatprep.subr.bf16.mxu0 0
      %319 = vmatpush2.bf16.msra.mxu0 0
      %320 = vmatprep.mubr.bf16.mxu0 0
      %321 = vmatmul.mubr.bf16.gmra.mxu0 %v270
      %v322 = vpop.f32.mrf.mxu0
      %v323 = vadd.f32 %v251, %v322
      %v324 = vpop.f32.mrf.mxu0
      %v325 = vpop.f32.mrf.mxu0
      %v326 = vadd.f32 %v251, %v325
      %v327 = vpop.f32.mrf.mxu0
      %328 = vmatprep.mubr.bf16.mxu0 0
      %329 = vmatmul.mubr.bf16.gmra.mxu0 %v273
      %v330 = vpop.f32.mrf.mxu0
      %v331 = vadd.f32 %v251, %v330
      %v332 = vpop.f32.mrf.mxu0
      %v333 = vpop.f32.mrf.mxu0
      %v334 = vadd.f32 %v251, %v333
      %v335 = vpop.f32.mrf.mxu0
      %336 = vmatprep.mubr.bf16.mxu0 0
      %337 = vmatmul.mubr.bf16.gmra.mxu0 %v276
      %v338 = vpop.f32.mrf.mxu0
      %v339 = vadd.f32 %v251, %v338
      %v340 = vpop.f32.mrf.mxu0
      %v341 = vpop.f32.mrf.mxu0
      %v342 = vadd.f32 %v251, %v341
      %v343 = vpop.f32.mrf.mxu0
      %344 = vmatprep.mubr.bf16.mxu0 0
      %345 = vmatmul.mubr.bf16.gmra.mxu0 %v279
      %v346 = vpop.f32.mrf.mxu0
      %v347 = vadd.f32 %v251, %v346
      %v348 = vpop.f32.mrf.mxu0
      %v349 = vpop.f32.mrf.mxu0
      %v350 = vadd.f32 %v251, %v349
      %v351 = vpop.f32.mrf.mxu0
      %352 = vdwg.mxu0
      %v353 = vmax.f32 %v323, 0.0
      %v354 = vmax.f32 %v326, 0.0
      %v355 = vmax.f32 %v331, 0.0
      %v356 = vmax.f32 %v334, 0.0
      %v357 = vmax.f32 %v339, 0.0
      %v358 = vmax.f32 %v342, 0.0
      %v359 = vmax.f32 %v347, 0.0
      %v360 = vmax.f32 %v350, 0.0
      %v361 = vpack.c.bf16 %v354, %v353
      %v362 = vpack.c.bf16 %v356, %v355
      %v363 = vpack.c.bf16 %v358, %v357
      %v364 = vpack.c.bf16 %v360, %v359
      %v365 = vld [vmem:[%s3] sm:$0xf]
      %v366 = vld [vmem:[%s3 + $0x4] sm:$0xf]
      %v367 = vld [vmem:[%s3 + $0x8] sm:$0xf]
      %v368 = vld [vmem:[%s3 + $0xc] sm:$0xf]
      %v369 = vld [vmem:[%s3 + $0x10] sm:$0xf]
      %v370 = vld [vmem:[%s3 + $0x14] sm:$0xf]
      %v371 = vld [vmem:[%s3 + $0x18] sm:$0xf]
      %v372 = vld [vmem:[%s3 + $0x1c] sm:$0xf]
      %v373 = vld [vmem:[%s4] sm:$0x1]
      %v375 = vlaneseq
      %v376 = vshrl.u32 %v375, 7
      %v377 = vsub.s32 0, %v376
      %v378 = vrot.slane %v373, %v377
      %v388 = vunpack.c.l.b16 %v365
      %v389 = vunpack.c.l.b16 %v366
      %v390 = vunpack.c.l.b16 %v367
      %v391 = vunpack.c.l.b16 %v368
      %v392 = vunpack.c.l.b16 %v369
      %v393 = vunpack.c.l.b16 %v370
      %v394 = vunpack.c.l.b16 %v371
      %v395 = vunpack.c.l.b16 %v372
      %v396 = vpack.c.b16 %v389, %v388
      %v397 = vpack.c.b16 %v391, %v390
      %v398 = vpack.c.b16 %v393, %v392
      %v399 = vpack.c.b16 %v395, %v394
      %vm404 = vcmask 523264
      %v406 = vsel %vm404, %v361, 0
      %v409 = vsel %vm404, %v362, 0
      %v412 = vsel %vm404, %v363, 0
      %v415 = vsel %vm404, %v364, 0
      %417 = vmatprep.subr.bf16.mxu0 0
      %418 = vmatpush1.bf16.msra.mxu0 0
      %419 = vmatprep.subr.bf16.mxu0 0
      %420 = vmatpush1.bf16.msra.mxu0 0
      %421 = vmatprep.subr.bf16.mxu0 0
      %422 = vmatpush1.bf16.msra.mxu0 0
      %423 = vmatprep.subr.bf16.mxu0 0
      %424 = vmatpush1.bf16.msra.mxu0 0
      %425 = vmatprep.subr.bf16.mxu0 0
      %426 = vmatpush1.bf16.msra.mxu0 %v399
      %427 = vmatprep.subr.bf16.mxu0 0
      %428 = vmatpush1.bf16.msra.mxu0 %v398
      %429 = vmatprep.subr.bf16.mxu0 0
      %430 = vmatpush1.bf16.msra.mxu0 %v397
      %431 = vmatprep.subr.bf16.mxu0 0
      %432 = vmatpush1.bf16.msra.mxu0 %v396
      %433 = vmatprep.subr.bf16.mxu0 0
      %434 = vmatpush2.bf16.msra.mxu0 0
      %435 = vmatprep.subr.bf16.mxu0 0
      %436 = vmatpush2.bf16.msra.mxu0 0
      %437 = vmatprep.subr.bf16.mxu0 0
      %438 = vmatpush2.bf16.msra.mxu0 0
      %439 = vmatprep.subr.bf16.mxu0 0
      %440 = vmatpush2.bf16.msra.mxu0 0
      %441 = vmatprep.subr.bf16.mxu0 0
      %442 = vmatpush2.bf16.msra.mxu0 0
      %443 = vmatprep.subr.bf16.mxu0 0
      %444 = vmatpush2.bf16.msra.mxu0 0
      %445 = vmatprep.subr.bf16.mxu0 0
      %446 = vmatpush2.bf16.msra.mxu0 0
      %447 = vmatprep.subr.bf16.mxu0 0
      %448 = vmatpush2.bf16.msra.mxu0 0
      %449 = vmatprep.mubr.bf16.mxu0 0
      %450 = vmatmul.mubr.bf16.gmra.mxu0 %v406
      %v451 = vpop.f32.mrf.mxu0
      %v452 = vadd.f32 %v378, %v451
      %v453 = vpop.f32.mrf.mxu0
      %v454 = vpop.f32.mrf.mxu0
      %v455 = vadd.f32 %v378, %v454
      %v456 = vpop.f32.mrf.mxu0
      %457 = vmatprep.mubr.bf16.mxu0 0
      %458 = vmatmul.mubr.bf16.gmra.mxu0 %v409
      %v459 = vpop.f32.mrf.mxu0
      %v460 = vadd.f32 %v378, %v459
      %v461 = vpop.f32.mrf.mxu0
      %v462 = vpop.f32.mrf.mxu0
      %v463 = vadd.f32 %v378, %v462
      %v464 = vpop.f32.mrf.mxu0
      %465 = vmatprep.mubr.bf16.mxu0 0
      %466 = vmatmul.mubr.bf16.gmra.mxu0 %v412
      %v467 = vpop.f32.mrf.mxu0
      %v468 = vadd.f32 %v378, %v467
      %v469 = vpop.f32.mrf.mxu0
      %v470 = vpop.f32.mrf.mxu0
      %v471 = vadd.f32 %v378, %v470
      %v472 = vpop.f32.mrf.mxu0
      %473 = vmatprep.mubr.bf16.mxu0 0
      %474 = vmatmul.mubr.bf16.gmra.mxu0 %v415
      %v475 = vpop.f32.mrf.mxu0
      %v476 = vadd.f32 %v378, %v475
      %v477 = vpop.f32.mrf.mxu0
      %v478 = vpop.f32.mrf.mxu0
      %v479 = vadd.f32 %v378, %v478
      %v480 = vpop.f32.mrf.mxu0
      %481 = vdwg.mxu0
      %v482 = vmax.f32 %v452, 0.0
      %v483 = vmax.f32 %v455, 0.0
      %v484 = vmax.f32 %v460, 0.0
      %v485 = vmax.f32 %v463, 0.0
      %v486 = vmax.f32 %v468, 0.0
      %v487 = vmax.f32 %v471, 0.0
      %v488 = vmax.f32 %v476, 0.0
      %v489 = vmax.f32 %v479, 0.0
      %490 = vst.msk [vmem:[%s226] sm:$0xff] %vm404, %v482
      %491 = vst.msk [vmem:[%s226 + $0x8] sm:$0xff] %vm404, %v483
      %492 = vst.msk [vmem:[%s226 + $0x10] sm:$0xff] %vm404, %v484
      %493 = vst.msk [vmem:[%s226 + $0x18] sm:$0xff] %vm404, %v485
      %494 = vst.msk [vmem:[%s226 + $0x20] sm:$0xff] %vm404, %v486
      %495 = vst.msk [vmem:[%s226 + $0x28] sm:$0xff] %vm404, %v487
      %496 = vst.msk [vmem:[%s226 + $0x30] sm:$0xff] %vm404, %v488
      %497 = vst.msk [vmem:[%s226 + $0x38] sm:$0xff] %vm404, %v489
      %s498 = smul.u32 8, %s16
      %p499 = scmp.lt.s32.totalorder %s498, 15
      %s500 = scalar_select %p499, %s498, 15
      %s501 = smul.addr %s500, 8
      %s502 = scalar_lea.vmem %s5, %s501
      // Predicated region
      $region41: #{_lambda_.9} parent=39 // pred_check
        %p503 = pneg %p144
      $region42: #{_lambda_.9} parent=39 // pred_check_branch
        %505 = sbr.rel (%p503) target = $region44
      $region43: #{_lambda_.9} parent=39 // pred_region
        %s506 = smul.u32 8, %s16
      $region44: #{_lambda_.9} parent=39 // pred_fallthru
        _
    $region40: #{_lambda_.9} parent=5 // pred_fallthru
      _
    %p507 = scmp.le.s32.totalorder 2, %s11
    // Predicated region
    $region45: #{_lambda_.9} parent=5 // pred_check
      %p508 = pneg %p507
    $region46: #{_lambda_.9} parent=5 // pred_check_branch
      %510 = sbr.rel (%p508) target = $region48
    $region47: #{_lambda_.9} parent=5 // pred_region
      %s511 = ssub.s32 %s11, 2
      // Predicated region
      $region49: #{_lambda_.9} parent=47 // pred_check
        %p512 = pneg %p150
      $region50: #{_lambda_.9} parent=47 // pred_check_branch
        %514 = sbr.rel (%p512) target = $region52
      $region51: #{_lambda_.9} parent=47 // pred_region
        %s515 = smul.u32 8, %s17
        %p516 = scmp.lt.s32.totalorder %s515, 15
        %s517 = scalar_select %p516, %s515, 15
        %s518 = smul.addr %s517, 8
        %s519 = scalar_lea.vmem %s5, %s518
      $region52: #{_lambda_.9} parent=47 // pred_fallthru
        _
    $region48: #{_lambda_.9} parent=5 // pred_fallthru
      _
  $region6: #{_lambda_.9} parent=0 // loop_footer
    %s15 = sadd.s32 1, %s11
  $region7: #{_lambda_.9} parent=0 // loop_footer_branch
    %10 = sbr.rel target = $region3
  $region8: #{_lambda_.9} parent=0 // loop_exit
    _

// kernel: _lambda_.10
$region0: #{_lambda_.10}
  #allocation0 [shape = 'u32[]', space=smem, size = 0x4, offset = 0x4, fixed_abs, tag = 'smem constant byte address 0x4 - core index']
  #allocation1 [shape = 'u32[144,128]{1,0:T(1,128)}', space=vmem, size = 0x12000, scoped, tag = 'internal scratch']
  %s0 = inlined_call_operand.vmem [shape: f32[16,64], index: 0, kind: input, shape index: {}]
  %s1 = inlined_call_operand.vmem [shape: bf16[64,32], index: 1, kind: input, shape index: {}]
  %s2 = inlined_call_operand.vmem [shape: f32[1,32], index: 2, kind: input, shape index: {}]
  %s3 = inlined_call_operand.vmem [shape: bf16[32,128], index: 3, kind: input, shape index: {}]
  %s4 = inlined_call_operand.vmem [shape: f32[1,128], index: 4, kind: input, shape index: {}]
  %s5 = inlined_call_operand.vmem [shape: f32[16,128], index: 5, kind: output, shape index: {}]
  %s6 = sld [smem:[#allocation0]]
  $region53: #{_lambda_.10} parent=0
    _
  %s8 = ssub.s32 1, %s6
  %s9 = scalar_select 0, %s8, %s6
  loop: start=0, step=1, limit=4
  $region2: #{_lambda_.10} parent=0 // loop_pre_header
    _
  $region3: #{_lambda_.10} parent=0 // loop_header
    %s11 = sphi 0, %s15
    %p12 = scmp.ge.s32.totalorder %s11, 4
    %s21 = sphi 0, %s23
    %s24 = sphi 0, %s21
    %s25 = sphi 0, %s24
    %s41 = sphi 0, %s25
    %s45 = sphi 0, %s45
    %s47 = sphi 0, %s45
    %s48 = sphi 0, %s47
    %s62 = sphi 0, %s48
    %s66 = sphi 0, %s66
    %s68 = sphi 0, %s66
    %s69 = sphi 0, %s68
    %s83 = sphi 0, %s69
    %s87 = sphi 0, %s87
    %s89 = sphi 0, %s87
    %s90 = sphi 0, %s89
    %s104 = sphi 0, %s90
    %s108 = sphi 0, %s108
    %s110 = sphi 0, %s108
    %s111 = sphi 0, %s110
    %s125 = sphi 0, %s111
    %s131 = sphi 0, %s133
    %s134 = sphi 0, %s131
    %s135 = sphi 0, %s134
    %s151 = sphi 0, %s135
  $region4: #{_lambda_.10} parent=0 // loop_header_branch
    %14 = sbr.rel (%p12) target = $region8
  $region5: #{_lambda_.10} parent=0 // loop_body
    %s16 = ssub.s32 %s11, 1
    %s17 = ssub.s32 %s11, 2
    %s18 = sadd.s32 %s11, 1
    %s19 = ssub.s32 %s11, %s18
    %p20 = scmp.eq.s32.totalorder %s19, 0
    %s22 = sadd.s32 %s21, 1
    %s23 = scalar_select %p20, %s21, %s22
    %p26 = pneg %p20
    %p27 = scmp.eq.s32.totalorder %s11, 1
    %p28 = por %p26, %p27
    %p29 = scmp.ne.s32.totalorder %s21, %s24
    %p30 = scmp.eq.s32.totalorder %s11, 0
    %p31 = por %p29, %p30
    %p32 = scmp.ne.s32.totalorder %s21, %s24
    %p33 = scmp.eq.s32.totalorder %s16, 1
    %p34 = por %p32, %p33
    %p35 = scmp.ne.s32.totalorder %s24, %s25
    %p36 = scmp.eq.s32.totalorder %s16, 0
    %p37 = por %p35, %p36
    %p38 = scmp.ne.s32.totalorder %s24, %s25
    %p39 = scmp.eq.s32.totalorder %s17, 1
    %p40 = por %p38, %p39
    %p42 = scmp.ne.s32.totalorder %s25, %s41
    %p43 = scmp.eq.s32.totalorder %s17, 0
    %p44 = por %p42, %p43
    %s46 = sadd.s32 %s45, 1
    %p49 = scmp.eq.s32.totalorder %s11, 1
    %p50 = scmp.ne.s32.totalorder %s45, %s47
    %p51 = scmp.eq.s32.totalorder %s11, 0
    %p52 = por %p50, %p51
    %p53 = scmp.ne.s32.totalorder %s45, %s47
    %p54 = scmp.eq.s32.totalorder %s16, 1
    %p55 = por %p53, %p54
    %p56 = scmp.ne.s32.totalorder %s47, %s48
    %p57 = scmp.eq.s32.totalorder %s16, 0
    %p58 = por %p56, %p57
    %p59 = scmp.ne.s32.totalorder %s47, %s48
    %p60 = scmp.eq.s32.totalorder %s17, 1
    %p61 = por %p59, %p60
    %p63 = scmp.ne.s32.totalorder %s48, %s62
    %p64 = scmp.eq.s32.totalorder %s17, 0
    %p65 = por %p63, %p64
    %s67 = sadd.s32 %s66, 1
    %p70 = scmp.eq.s32.totalorder %s11, 1
    %p71 = scmp.ne.s32.totalorder %s66, %s68
    %p72 = scmp.eq.s32.totalorder %s11, 0
    %p73 = por %p71, %p72
    %p74 = scmp.ne.s32.totalorder %s66, %s68
    %p75 = scmp.eq.s32.totalorder %s16, 1
    %p76 = por %p74, %p75
    %p77 = scmp.ne.s32.totalorder %s68, %s69
    %p78 = scmp.eq.s32.totalorder %s16, 0
    %p79 = por %p77, %p78
    %p80 = scmp.ne.s32.totalorder %s68, %s69
    %p81 = scmp.eq.s32.totalorder %s17, 1
    %p82 = por %p80, %p81
    %p84 = scmp.ne.s32.totalorder %s69, %s83
    %p85 = scmp.eq.s32.totalorder %s17, 0
    %p86 = por %p84, %p85
    %s88 = sadd.s32 %s87, 1
    %p91 = scmp.eq.s32.totalorder %s11, 1
    %p92 = scmp.ne.s32.totalorder %s87, %s89
    %p93 = scmp.eq.s32.totalorder %s11, 0
    %p94 = por %p92, %p93
    %p95 = scmp.ne.s32.totalorder %s87, %s89
    %p96 = scmp.eq.s32.totalorder %s16, 1
    %p97 = por %p95, %p96
    %p98 = scmp.ne.s32.totalorder %s89, %s90
    %p99 = scmp.eq.s32.totalorder %s16, 0
    %p100 = por %p98, %p99
    %p101 = scmp.ne.s32.totalorder %s89, %s90
    %p102 = scmp.eq.s32.totalorder %s17, 1
    %p103 = por %p101, %p102
    %p105 = scmp.ne.s32.totalorder %s90, %s104
    %p106 = scmp.eq.s32.totalorder %s17, 0
    %p107 = por %p105, %p106
    %s109 = sadd.s32 %s108, 1
    %p112 = scmp.eq.s32.totalorder %s11, 1
    %p113 = scmp.ne.s32.totalorder %s108, %s110
    %p114 = scmp.eq.s32.totalorder %s11, 0
    %p115 = por %p113, %p114
    %p116 = scmp.ne.s32.totalorder %s108, %s110
    %p117 = scmp.eq.s32.totalorder %s16, 1
    %p118 = por %p116, %p117
    %p119 = scmp.ne.s32.totalorder %s110, %s111
    %p120 = scmp.eq.s32.totalorder %s16, 0
    %p121 = por %p119, %p120
    %p122 = scmp.ne.s32.totalorder %s110, %s111
    %p123 = scmp.eq.s32.totalorder %s17, 1
    %p124 = por %p122, %p123
    %p126 = scmp.ne.s32.totalorder %s111, %s125
    %p127 = scmp.eq.s32.totalorder %s17, 0
    %p128 = por %p126, %p127
    %s129 = ssub.s32 %s11, %s18
    %p130 = scmp.eq.s32.totalorder %s129, 0
    %s132 = sadd.s32 %s131, 1
    %s133 = scalar_select %p130, %s131, %s132
    %p136 = pneg %p130
    %p137 = scmp.eq.s32.totalorder %s11, 1
    %p138 = por %p136, %p137
    %p139 = scmp.ne.s32.totalorder %s131, %s134
    %p140 = scmp.eq.s32.totalorder %s11, 0
    %p141 = por %p139, %p140
    %p142 = scmp.ne.s32.totalorder %s131, %s134
    %p143 = scmp.eq.s32.totalorder %s16, 1
    %p144 = por %p142, %p143
    %p145 = scmp.ne.s32.totalorder %s134, %s135
    %p146 = scmp.eq.s32.totalorder %s16, 0
    %p147 = por %p145, %p146
    %p148 = scmp.ne.s32.totalorder %s134, %s135
    %p149 = scmp.eq.s32.totalorder %s17, 1
    %p150 = por %p148, %p149
    %p152 = scmp.ne.s32.totalorder %s135, %s151
    %p153 = scmp.eq.s32.totalorder %s17, 0
    %p154 = por %p152, %p153
    %p155 = scmp.le.s32.totalorder 1, %s11
    %p156 = scmp.lt.s32.totalorder %s11, 3
    %p157 = pnand %p155, %p156
    %p158 = pneg %p157
    // Predicated region
    $region9: #{_lambda_.10} parent=5 // pred_check
      _
    $region10: #{_lambda_.10} parent=5 // pred_check_branch
      %160 = sbr.rel (%p157) target = $region12
    $region11: #{_lambda_.10} parent=5 // pred_region
      %s161 = ssub.s32 %s11, 1
      // Predicated region
      $region13: #{_lambda_.10} parent=11 // pred_check
        %p162 = pneg %p58
      $region14: #{_lambda_.10} parent=11 // pred_check_branch
        %164 = sbr.rel (%p162) target = $region16
      $region15: #{_lambda_.10} parent=11 // pred_region
        _
      $region16: #{_lambda_.10} parent=11 // pred_fallthru
        _
      // Predicated region
      $region17: #{_lambda_.10} parent=11 // pred_check
        %p165 = pneg %p79
      $region18: #{_lambda_.10} parent=11 // pred_check_branch
        %167 = sbr.rel (%p165) target = $region20
      $region19: #{_lambda_.10} parent=11 // pred_region
        _
      $region20: #{_lambda_.10} parent=11 // pred_fallthru
        _
      // Predicated region
      $region21: #{_lambda_.10} parent=11 // pred_check
        %p168 = pneg %p100
      $region22: #{_lambda_.10} parent=11 // pred_check_branch
        %170 = sbr.rel (%p168) target = $region24
      $region23: #{_lambda_.10} parent=11 // pred_region
        _
      $region24: #{_lambda_.10} parent=11 // pred_fallthru
        _
      // Predicated region
      $region25: #{_lambda_.10} parent=11 // pred_check
        %p171 = pneg %p121
      $region26: #{_lambda_.10} parent=11 // pred_check_branch
        %173 = sbr.rel (%p171) target = $region28
      $region27: #{_lambda_.10} parent=11 // pred_region
        _
      $region28: #{_lambda_.10} parent=11 // pred_fallthru
        _
    $region12: #{_lambda_.10} parent=5 // pred_fallthru
      _
    %p174 = scmp.lt.s32.totalorder %s11, 2
    // Predicated region
    $region29: #{_lambda_.10} parent=5 // pred_check
      %p175 = pneg %p174
    $region30: #{_lambda_.10} parent=5 // pred_check_branch
      %177 = sbr.rel (%p175) target = $region32
    $region31: #{_lambda_.10} parent=5 // pred_region
      // Predicated region
      $region33: #{_lambda_.10} parent=31 // pred_check
        %p178 = pneg %p31
      $region34: #{_lambda_.10} parent=31 // pred_check_branch
        %180 = sbr.rel (%p178) target = $region36
      $region35: #{_lambda_.10} parent=31 // pred_region
        %p181 = scmp.lt.s32.totalorder %s11, 1
        %s182 = scalar_select %p181, %s11, 1
        %s183 = smul.addr %s182, 8
        %s184 = scalar_lea.vmem %s0, %s183
      $region36: #{_lambda_.10} parent=31 // pred_fallthru
        _
    $region32: #{_lambda_.10} parent=5 // pred_fallthru
      _
    %p185 = scmp.le.s32.totalorder 1, %s11
    %p186 = scmp.lt.s32.totalorder %s11, 3
    %p187 = pnand %p185, %p186
    %p188 = pneg %p187
    // Predicated region
    $region37: #{_lambda_.10} parent=5 // pred_check
      _
    $region38: #{_lambda_.10} parent=5 // pred_check_branch
      %190 = sbr.rel (%p187) target = $region40
    $region39: #{_lambda_.10} parent=5 // pred_region
      %s191 = ssub.s32 %s11, 1
      %p192 = scmp.lt.s32.totalorder %s16, 1
      %s193 = scalar_select %p192, %s16, 1
      %s194 = smul.addr %s193, 8
      %s195 = scalar_lea.vmem %s0, %s194
      %p196 = pneg %p37
      %p197 = pneg %p34
      %p198 = pneg %p58
      %p199 = pneg %p55
      %p200 = pneg %p79
      %p201 = pneg %p76
      %p202 = pneg %p100
      %p203 = pneg %p97
      %p204 = pneg %p121
      %p205 = pneg %p118
      %p206 = pneg %p147
      %p207 = pneg %p144
      %p208 = scmp.lt.s32.totalorder %s16, 1
      %s209 = scalar_select %p208, %s16, 1
      %s210 = smul.addr %s209, 8
      %s211 = scalar_lea.vmem %s5, %s210
      %p212 = scmp.lt.s32.totalorder %s16, 1
      %s213 = scalar_select %p212, %s16, 1
      %s214 = smul.addr %s213, 8
      %s215 = scalar_lea.vmem %s0, %s214
      %p216 = scmp.lt.s32.totalorder %s16, 1
      %s217 = scalar_select %p216, %s16, 1
      %s218 = smul.addr %s217, 8
      %s219 = scalar_lea.vmem %s5, %s218
      %v221 = vld [vmem:[%s215] sm:$0xff]
      %v222 = vpack.c.bf16 %v221, %v221
      %v223 = vld [vmem:[%s1] sm:$0xf]
      %v224 = vld [vmem:[%s1 + $0x4] sm:$0xf]
      %v225 = vld [vmem:[%s1 + $0x8] sm:$0xf]
      %v226 = vld [vmem:[%s1 + $0xc] sm:$0xf]
      %v227 = vld [vmem:[%s1 + $0x10] sm:$0xf]
      %v228 = vld [vmem:[%s1 + $0x14] sm:$0xf]
      %v229 = vld [vmem:[%s1 + $0x18] sm:$0xf]
      %v230 = vld [vmem:[%s1 + $0x1c] sm:$0xf]
      %v231 = vld [vmem:[%s2] sm:$0x1]
      %v233 = vlaneseq
      %v234 = vshrl.u32 %v233, 7
      %v235 = vsub.s32 0, %v234
      %v236 = vrot.slane %v231, %v235
      %v246 = vunpack.c.l.b16 %v223
      %v247 = vunpack.c.l.b16 %v224
      %v248 = vunpack.c.l.b16 %v225
      %v249 = vunpack.c.l.b16 %v226
      %v250 = vunpack.c.l.b16 %v227
      %v251 = vunpack.c.l.b16 %v228
      %v252 = vunpack.c.l.b16 %v229
      %v253 = vunpack.c.l.b16 %v230
      %v254 = vpack.c.b16 %v247, %v246
      %v255 = vpack.c.b16 %v249, %v248
      %v256 = vpack.c.b16 %v251, %v250
      %v257 = vpack.c.b16 %v253, %v252
      %vm262 = vcmask 523264
      %v264 = vsel %vm262, %v222, 0
      %266 = vmatprep.subr.bf16.mxu0 0
      %267 = vmatpush1.bf16.msra.mxu0 0
      %268 = vmatprep.subr.bf16.mxu0 0
      %269 = vmatpush1.bf16.msra.mxu0 0
      %270 = vmatprep.subr.bf16.mxu0 0
      %271 = vmatpush1.bf16.msra.mxu0 0
      %272 = vmatprep.subr.bf16.mxu0 0
      %273 = vmatpush1.bf16.msra.mxu0 0
      %274 = vmatprep.subr.bf16.mxu0 0
      %275 = vmatpush1.bf16.msra.mxu0 %v257
      %276 = vmatprep.subr.bf16.mxu0 0
      %277 = vmatpush1.bf16.msra.mxu0 %v256
      %278 = vmatprep.subr.bf16.mxu0 0
      %279 = vmatpush1.bf16.msra.mxu0 %v255
      %280 = vmatprep.subr.bf16.mxu0 0
      %281 = vmatpush1.bf16.msra.mxu0 %v254
      %282 = vmatprep.subr.bf16.mxu0 0
      %283 = vmatpush2.bf16.msra.mxu0 0
      %284 = vmatprep.subr.bf16.mxu0 0
      %285 = vmatpush2.bf16.msra.mxu0 0
      %286 = vmatprep.subr.bf16.mxu0 0
      %287 = vmatpush2.bf16.msra.mxu0 0
      %288 = vmatprep.subr.bf16.mxu0 0
      %289 = vmatpush2.bf16.msra.mxu0 0
      %290 = vmatprep.subr.bf16.mxu0 0
      %291 = vmatpush2.bf16.msra.mxu0 0
      %292 = vmatprep.subr.bf16.mxu0 0
      %293 = vmatpush2.bf16.msra.mxu0 0
      %294 = vmatprep.subr.bf16.mxu0 0
      %295 = vmatpush2.bf16.msra.mxu0 0
      %296 = vmatprep.subr.bf16.mxu0 0
      %297 = vmatpush2.bf16.msra.mxu0 0
      %298 = vmatprep.mubr.bf16.mxu0 0
      %299 = vmatmul.mubr.bf16.gmra.mxu0 %v264
      %v300 = vpop.f32.mrf.mxu0
      %v301 = vadd.f32 %v236, %v300
      %v302 = vpop.f32.mrf.mxu0
      %v303 = vpop.f32.mrf.mxu0
      %v304 = vpop.f32.mrf.mxu0
      %305 = vdwg.mxu0
      %v306 = vpack.c.bf16 %v301, %v301
      %v307 = vld [vmem:[%s3] sm:$0xf]
      %v308 = vld [vmem:[%s3 + $0x4] sm:$0xf]
      %v309 = vld [vmem:[%s3 + $0x8] sm:$0xf]
      %v310 = vld [vmem:[%s3 + $0xc] sm:$0xf]
      %v311 = vld [vmem:[%s4] sm:$0x1]
      %v313 = vlaneseq
      %v314 = vshrl.u32 %v313, 7
      %v315 = vsub.s32 0, %v314
      %v316 = vrot.slane %v311, %v315
      %v322 = vunpack.c.l.b16 %v307
      %v323 = vunpack.c.l.b16 %v308
      %v324 = vunpack.c.l.b16 %v309
      %v325 = vunpack.c.l.b16 %v310
      %v326 = vpack.c.b16 %v323, %v322
      %v327 = vpack.c.b16 %v325, %v324
      %vm330 = vcmask 261120
      %v332 = vsel %vm330, %v306, 0
      %334 = vmatprep.subr.bf16.mxu0 0
      %335 = vmatpush1.bf16.msra.mxu0 0
      %336 = vmatprep.subr.bf16.mxu0 0
      %337 = vmatpush1.bf16.msra.mxu0 0
      %338 = vmatprep.subr.bf16.mxu0 0
      %339 = vmatpush1.bf16.msra.mxu0 0
      %340 = vmatprep.subr.bf16.mxu0 0
      %341 = vmatpush1.bf16.msra.mxu0 0
      %342 = vmatprep.subr.bf16.mxu0 0
      %343 = vmatpush1.bf16.msra.mxu0 0
      %344 = vmatprep.subr.bf16.mxu0 0
      %345 = vmatpush1.bf16.msra.mxu0 0
      %346 = vmatprep.subr.bf16.mxu0 0
      %347 = vmatpush1.bf16.msra.mxu0 %v327
      %348 = vmatprep.subr.bf16.mxu0 0
      %349 = vmatpush1.bf16.msra.mxu0 %v326
      %350 = vmatprep.subr.bf16.mxu0 0
      %351 = vmatpush2.bf16.msra.mxu0 0
      %352 = vmatprep.subr.bf16.mxu0 0
      %353 = vmatpush2.bf16.msra.mxu0 0
      %354 = vmatprep.subr.bf16.mxu0 0
      %355 = vmatpush2.bf16.msra.mxu0 0
      %356 = vmatprep.subr.bf16.mxu0 0
      %357 = vmatpush2.bf16.msra.mxu0 0
      %358 = vmatprep.subr.bf16.mxu0 0
      %359 = vmatpush2.bf16.msra.mxu0 0
      %360 = vmatprep.subr.bf16.mxu0 0
      %361 = vmatpush2.bf16.msra.mxu0 0
      %362 = vmatprep.subr.bf16.mxu0 0
      %363 = vmatpush2.bf16.msra.mxu0 0
      %364 = vmatprep.subr.bf16.mxu0 0
      %365 = vmatpush2.bf16.msra.mxu0 0
      %366 = vmatprep.mubr.bf16.mxu0 0
      %367 = vmatmul.mubr.bf16.gmra.mxu0 %v332
      %v368 = vpop.f32.mrf.mxu0
      %v369 = vadd.f32 %v316, %v368
      %v370 = vpop.f32.mrf.mxu0
      %v371 = vpop.f32.mrf.mxu0
      %v372 = vpop.f32.mrf.mxu0
      %373 = vdwg.mxu0
      %374 = vst [vmem:[%s219] sm:$0xff] %v369
      %p375 = scmp.lt.s32.totalorder %s16, 1
      %s376 = scalar_select %p375, %s16, 1
      %s377 = smul.addr %s376, 8
      %s378 = scalar_lea.vmem %s5, %s377
      // Predicated region
      $region41: #{_lambda_.10} parent=39 // pred_check
        %p379 = pneg %p144
      $region42: #{_lambda_.10} parent=39 // pred_check_branch
        %381 = sbr.rel (%p379) target = $region44
      $region43: #{_lambda_.10} parent=39 // pred_region
        _
      $region44: #{_lambda_.10} parent=39 // pred_fallthru
        _
    $region40: #{_lambda_.10} parent=5 // pred_fallthru
      _
    %p382 = scmp.le.s32.totalorder 2, %s11
    // Predicated region
    $region45: #{_lambda_.10} parent=5 // pred_check
      %p383 = pneg %p382
    $region46: #{_lambda_.10} parent=5 // pred_check_branch
      %385 = sbr.rel (%p383) target = $region48
    $region47: #{_lambda_.10} parent=5 // pred_region
      %s386 = ssub.s32 %s11, 2
      // Predicated region
      $region49: #{_lambda_.10} parent=47 // pred_check
        %p387 = pneg %p150
      $region50: #{_lambda_.10} parent=47 // pred_check_branch
        %389 = sbr.rel (%p387) target = $region52
      $region51: #{_lambda_.10} parent=47 // pred_region
        %p390 = scmp.lt.s32.totalorder %s17, 1
        %s391 = scalar_select %p390, %s17, 1
        %s392 = smul.addr %s391, 8
        %s393 = scalar_lea.vmem %s5, %s392
      $region52: #{_lambda_.10} parent=47 // pred_fallthru
        _
    $region48: #{_lambda_.10} parent=5 // pred_fallthru
      _
  $region6: #{_lambda_.10} parent=0 // loop_footer
    %s15 = sadd.s32 1, %s11
  $region7: #{_lambda_.10} parent=0 // loop_footer_branch
    %10 = sbr.rel target = $region3
  $region8: #{_lambda_.10} parent=0 // loop_exit
    _

// kernel: _lambda_.11
$region0: #{_lambda_.11}
  #allocation0 [shape = 'u32[]', space=smem, size = 0x4, offset = 0x4, fixed_abs, tag = 'smem constant byte address 0x4 - core index']
  #allocation1 [shape = 'u32[144,128]{1,0:T(1,128)}', space=vmem, size = 0x12000, scoped, tag = 'internal scratch']
  %s0 = inlined_call_operand.vmem [shape: f32[16,32], index: 0, kind: input, shape index: {}]
  %s1 = inlined_call_operand.vmem [shape: f32[8,16,64], index: 1, kind: input, shape index: {}]
  %s2 = inlined_call_operand.vmem [shape: f32[8,16,3], index: 2, kind: input, shape index: {}]
  %s3 = inlined_call_operand.vmem [shape: f32[3,32], index: 3, kind: input, shape index: {}]
  %s4 = inlined_call_operand.vmem [shape: f32[1,32], index: 4, kind: input, shape index: {}]
  %s5 = inlined_call_operand.vmem [shape: bf16[32,32], index: 5, kind: input, shape index: {}]
  %s6 = inlined_call_operand.vmem [shape: f32[1,32], index: 6, kind: input, shape index: {}]
  %s7 = inlined_call_operand.vmem [shape: bf16[32,32], index: 7, kind: input, shape index: {}]
  %s8 = inlined_call_operand.vmem [shape: f32[1,32], index: 8, kind: input, shape index: {}]
  %s9 = inlined_call_operand.vmem [shape: bf16[32,32], index: 9, kind: input, shape index: {}]
  %s10 = inlined_call_operand.vmem [shape: f32[1,32], index: 10, kind: input, shape index: {}]
  %s11 = inlined_call_operand.vmem [shape: bf16[32,64], index: 11, kind: input, shape index: {}]
  %s12 = inlined_call_operand.vmem [shape: f32[1,64], index: 12, kind: input, shape index: {}]
  %s13 = inlined_call_operand.vmem [shape: f32[16,64], index: 13, kind: input, shape index: {}]
  %s14 = inlined_call_operand.vmem [shape: f32[16,64], index: 14, kind: output, shape index: {}]
  %s15 = sld [smem:[#allocation0]]
  $region165: #{_lambda_.11} parent=0
    _
  %s17 = ssub.s32 1, %s15
  %s18 = scalar_select 0, %s17, %s15
  $region1: #{_lambda_.11} parent=0
    #allocation2 [shape = 'u8[65536]{0}', space=vmem, size = 0x10000, scoped, tag = 'input window, operand 1']
    #allocation3 [shape = 'u8[65536]{0}', space=vmem, size = 0x10000, scoped, tag = 'input window, operand 2']
    loop: start=0, step=1, limit=4
    $region2: #{_lambda_.11} parent=1 // loop_pre_header
      _
    $region3: #{_lambda_.11} parent=1 // loop_header
      %s20 = sphi 0, %s24
      %p21 = scmp.ge.s32.totalorder %s20, 4
      %s30 = sphi 0, %s32
      %s33 = sphi 0, %s30
      %s34 = sphi 0, %s33
      %s50 = sphi 0, %s34
      %s56 = sphi 0, %s58
      %s59 = sphi 0, %s56
      %s60 = sphi 0, %s59
      %s76 = sphi 0, %s60
      %s82 = sphi 0, %s84
      %s85 = sphi 0, %s82
      %s86 = sphi 0, %s85
      %s102 = sphi 0, %s86
      %s106 = sphi 0, %s106
      %s108 = sphi 0, %s106
      %s109 = sphi 0, %s108
      %s123 = sphi 0, %s109
      %s127 = sphi 0, %s127
      %s129 = sphi 0, %s127
      %s130 = sphi 0, %s129
      %s144 = sphi 0, %s130
      %s148 = sphi 0, %s148
      %s150 = sphi 0, %s148
      %s151 = sphi 0, %s150
      %s165 = sphi 0, %s151
      %s169 = sphi 0, %s169
      %s171 = sphi 0, %s169
      %s172 = sphi 0, %s171
      %s186 = sphi 0, %s172
      %s190 = sphi 0, %s190
      %s192 = sphi 0, %s190
      %s193 = sphi 0, %s192
      %s207 = sphi 0, %s193
      %s211 = sphi 0, %s211
      %s213 = sphi 0, %s211
      %s214 = sphi 0, %s213
      %s228 = sphi 0, %s214
      %s232 = sphi 0, %s232
      %s234 = sphi 0, %s232
      %s235 = sphi 0, %s234
      %s249 = sphi 0, %s235
      %s253 = sphi 0, %s253
      %s255 = sphi 0, %s253
      %s256 = sphi 0, %s255
      %s270 = sphi 0, %s256
      %s274 = sphi 0, %s274
      %s276 = sphi 0, %s274
      %s277 = sphi 0, %s276
      %s291 = sphi 0, %s277
      %s295 = sphi 0, %s295
      %s297 = sphi 0, %s295
      %s298 = sphi 0, %s297
      %s312 = sphi 0, %s298
      %s318 = sphi 0, %s320
      %s321 = sphi 0, %s318
      %s322 = sphi 0, %s321
      %s338 = sphi 0, %s322
      %s344 = sphi 0, %s346
      %s347 = sphi 0, %s344
      %s348 = sphi 0, %s347
      %s364 = sphi 0, %s348
    $region4: #{_lambda_.11} parent=1 // loop_header_branch
      %23 = sbr.rel (%p21) target = $region8
    $region5: #{_lambda_.11} parent=1 // loop_body
      %s25 = ssub.s32 %s20, 1
      %s26 = ssub.s32 %s20, 2
      %s27 = sadd.s32 %s20, 1
      %s28 = ssub.s32 %s20, %s27
      %p29 = scmp.eq.s32.totalorder %s28, 0
      %s31 = sadd.s32 %s30, 1
      %s32 = scalar_select %p29, %s30, %s31
      %p35 = pneg %p29
      %p36 = scmp.eq.s32.totalorder %s20, 1
      %p37 = por %p35, %p36
      %p38 = scmp.ne.s32.totalorder %s30, %s33
      %p39 = scmp.eq.s32.totalorder %s20, 0
      %p40 = por %p38, %p39
      %p41 = scmp.ne.s32.totalorder %s30, %s33
      %p42 = scmp.eq.s32.totalorder %s25, 1
      %p43 = por %p41, %p42
      %p44 = scmp.ne.s32.totalorder %s33, %s34
      %p45 = scmp.eq.s32.totalorder %s25, 0
      %p46 = por %p44, %p45
      %p47 = scmp.ne.s32.totalorder %s33, %s34
      %p48 = scmp.eq.s32.totalorder %s26, 1
      %p49 = por %p47, %p48
      %p51 = scmp.ne.s32.totalorder %s34, %s50
      %p52 = scmp.eq.s32.totalorder %s26, 0
      %p53 = por %p51, %p52
      %s54 = ssub.s32 %s20, %s27
      %p55 = scmp.eq.s32.totalorder %s54, 0
      %s57 = sadd.s32 %s56, 1
      %s58 = scalar_select %p55, %s56, %s57
      %p61 = pneg %p55
      %p62 = scmp.eq.s32.totalorder %s20, 1
      %p63 = por %p61, %p62
      %p64 = scmp.ne.s32.totalorder %s56, %s59
      %p65 = scmp.eq.s32.totalorder %s20, 0
      %p66 = por %p64, %p65
      %p67 = scmp.ne.s32.totalorder %s56, %s59
      %p68 = scmp.eq.s32.totalorder %s25, 1
      %p69 = por %p67, %p68
      %p70 = scmp.ne.s32.totalorder %s59, %s60
      %p71 = scmp.eq.s32.totalorder %s25, 0
      %p72 = por %p70, %p71
      %p73 = scmp.ne.s32.totalorder %s59, %s60
      %p74 = scmp.eq.s32.totalorder %s26, 1
      %p75 = por %p73, %p74
      %p77 = scmp.ne.s32.totalorder %s60, %s76
      %p78 = scmp.eq.s32.totalorder %s26, 0
      %p79 = por %p77, %p78
      %s80 = ssub.s32 %s20, %s27
      %p81 = scmp.eq.s32.totalorder %s80, 0
      %s83 = sadd.s32 %s82, 1
      %s84 = scalar_select %p81, %s82, %s83
      %p87 = pneg %p81
      %p88 = scmp.eq.s32.totalorder %s20, 1
      %p89 = por %p87, %p88
      %p90 = scmp.ne.s32.totalorder %s82, %s85
      %p91 = scmp.eq.s32.totalorder %s20, 0
      %p92 = por %p90, %p91
      %p93 = scmp.ne.s32.totalorder %s82, %s85
      %p94 = scmp.eq.s32.totalorder %s25, 1
      %p95 = por %p93, %p94
      %p96 = scmp.ne.s32.totalorder %s85, %s86
      %p97 = scmp.eq.s32.totalorder %s25, 0
      %p98 = por %p96, %p97
      %p99 = scmp.ne.s32.totalorder %s85, %s86
      %p100 = scmp.eq.s32.totalorder %s26, 1
      %p101 = por %p99, %p100
      %p103 = scmp.ne.s32.totalorder %s86, %s102
      %p104 = scmp.eq.s32.totalorder %s26, 0
      %p105 = por %p103, %p104
      %s107 = sadd.s32 %s106, 1
      %p110 = scmp.eq.s32.totalorder %s20, 1
      %p111 = scmp.ne.s32.totalorder %s106, %s108
      %p112 = scmp.eq.s32.totalorder %s20, 0
      %p113 = por %p111, %p112
      %p114 = scmp.ne.s32.totalorder %s106, %s108
      %p115 = scmp.eq.s32.totalorder %s25, 1
      %p116 = por %p114, %p115
      %p117 = scmp.ne.s32.totalorder %s108, %s109
      %p118 = scmp.eq.s32.totalorder %s25, 0
      %p119 = por %p117, %p118
      %p120 = scmp.ne.s32.totalorder %s108, %s109
      %p121 = scmp.eq.s32.totalorder %s26, 1
      %p122 = por %p120, %p121
      %p124 = scmp.ne.s32.totalorder %s109, %s123
      %p125 = scmp.eq.s32.totalorder %s26, 0
      %p126 = por %p124, %p125
      %s128 = sadd.s32 %s127, 1
      %p131 = scmp.eq.s32.totalorder %s20, 1
      %p132 = scmp.ne.s32.totalorder %s127, %s129
      %p133 = scmp.eq.s32.totalorder %s20, 0
      %p134 = por %p132, %p133
      %p135 = scmp.ne.s32.totalorder %s127, %s129
      %p136 = scmp.eq.s32.totalorder %s25, 1
      %p137 = por %p135, %p136
      %p138 = scmp.ne.s32.totalorder %s129, %s130
      %p139 = scmp.eq.s32.totalorder %s25, 0
      %p140 = por %p138, %p139
      %p141 = scmp.ne.s32.totalorder %s129, %s130
      %p142 = scmp.eq.s32.totalorder %s26, 1
      %p143 = por %p141, %p142
      %p145 = scmp.ne.s32.totalorder %s130, %s144
      %p146 = scmp.eq.s32.totalorder %s26, 0
      %p147 = por %p145, %p146
      %s149 = sadd.s32 %s148, 1
      %p152 = scmp.eq.s32.totalorder %s20, 1
      %p153 = scmp.ne.s32.totalorder %s148, %s150
      %p154 = scmp.eq.s32.totalorder %s20, 0
      %p155 = por %p153, %p154
      %p156 = scmp.ne.s32.totalorder %s148, %s150
      %p157 = scmp.eq.s32.totalorder %s25, 1
      %p158 = por %p156, %p157
      %p159 = scmp.ne.s32.totalorder %s150, %s151
      %p160 = scmp.eq.s32.totalorder %s25, 0
      %p161 = por %p159, %p160
      %p162 = scmp.ne.s32.totalorder %s150, %s151
      %p163 = scmp.eq.s32.totalorder %s26, 1
      %p164 = por %p162, %p163
      %p166 = scmp.ne.s32.totalorder %s151, %s165
      %p167 = scmp.eq.s32.totalorder %s26, 0
      %p168 = por %p166, %p167
      %s170 = sadd.s32 %s169, 1
      %p173 = scmp.eq.s32.totalorder %s20, 1
      %p174 = scmp.ne.s32.totalorder %s169, %s171
      %p175 = scmp.eq.s32.totalorder %s20, 0
      %p176 = por %p174, %p175
      %p177 = scmp.ne.s32.totalorder %s169, %s171
      %p178 = scmp.eq.s32.totalorder %s25, 1
      %p179 = por %p177, %p178
      %p180 = scmp.ne.s32.totalorder %s171, %s172
      %p181 = scmp.eq.s32.totalorder %s25, 0
      %p182 = por %p180, %p181
      %p183 = scmp.ne.s32.totalorder %s171, %s172
      %p184 = scmp.eq.s32.totalorder %s26, 1
      %p185 = por %p183, %p184
      %p187 = scmp.ne.s32.totalorder %s172, %s186
      %p188 = scmp.eq.s32.totalorder %s26, 0
      %p189 = por %p187, %p188
      %s191 = sadd.s32 %s190, 1
      %p194 = scmp.eq.s32.totalorder %s20, 1
      %p195 = scmp.ne.s32.totalorder %s190, %s192
      %p196 = scmp.eq.s32.totalorder %s20, 0
      %p197 = por %p195, %p196
      %p198 = scmp.ne.s32.totalorder %s190, %s192
      %p199 = scmp.eq.s32.totalorder %s25, 1
      %p200 = por %p198, %p199
      %p201 = scmp.ne.s32.totalorder %s192, %s193
      %p202 = scmp.eq.s32.totalorder %s25, 0
      %p203 = por %p201, %p202
      %p204 = scmp.ne.s32.totalorder %s192, %s193
      %p205 = scmp.eq.s32.totalorder %s26, 1
      %p206 = por %p204, %p205
      %p208 = scmp.ne.s32.totalorder %s193, %s207
      %p209 = scmp.eq.s32.totalorder %s26, 0
      %p210 = por %p208, %p209
      %s212 = sadd.s32 %s211, 1
      %p215 = scmp.eq.s32.totalorder %s20, 1
      %p216 = scmp.ne.s32.totalorder %s211, %s213
      %p217 = scmp.eq.s32.totalorder %s20, 0
      %p218 = por %p216, %p217
      %p219 = scmp.ne.s32.totalorder %s211, %s213
      %p220 = scmp.eq.s32.totalorder %s25, 1
      %p221 = por %p219, %p220
      %p222 = scmp.ne.s32.totalorder %s213, %s214
      %p223 = scmp.eq.s32.totalorder %s25, 0
      %p224 = por %p222, %p223
      %p225 = scmp.ne.s32.totalorder %s213, %s214
      %p226 = scmp.eq.s32.totalorder %s26, 1
      %p227 = por %p225, %p226
      %p229 = scmp.ne.s32.totalorder %s214, %s228
      %p230 = scmp.eq.s32.totalorder %s26, 0
      %p231 = por %p229, %p230
      %s233 = sadd.s32 %s232, 1
      %p236 = scmp.eq.s32.totalorder %s20, 1
      %p237 = scmp.ne.s32.totalorder %s232, %s234
      %p238 = scmp.eq.s32.totalorder %s20, 0
      %p239 = por %p237, %p238
      %p240 = scmp.ne.s32.totalorder %s232, %s234
      %p241 = scmp.eq.s32.totalorder %s25, 1
      %p242 = por %p240, %p241
      %p243 = scmp.ne.s32.totalorder %s234, %s235
      %p244 = scmp.eq.s32.totalorder %s25, 0
      %p245 = por %p243, %p244
      %p246 = scmp.ne.s32.totalorder %s234, %s235
      %p247 = scmp.eq.s32.totalorder %s26, 1
      %p248 = por %p246, %p247
      %p250 = scmp.ne.s32.totalorder %s235, %s249
      %p251 = scmp.eq.s32.totalorder %s26, 0
      %p252 = por %p250, %p251
      %s254 = sadd.s32 %s253, 1
      %p257 = scmp.eq.s32.totalorder %s20, 1
      %p258 = scmp.ne.s32.totalorder %s253, %s255
      %p259 = scmp.eq.s32.totalorder %s20, 0
      %p260 = por %p258, %p259
      %p261 = scmp.ne.s32.totalorder %s253, %s255
      %p262 = scmp.eq.s32.totalorder %s25, 1
      %p263 = por %p261, %p262
      %p264 = scmp.ne.s32.totalorder %s255, %s256
      %p265 = scmp.eq.s32.totalorder %s25, 0
      %p266 = por %p264, %p265
      %p267 = scmp.ne.s32.totalorder %s255, %s256
      %p268 = scmp.eq.s32.totalorder %s26, 1
      %p269 = por %p267, %p268
      %p271 = scmp.ne.s32.totalorder %s256, %s270
      %p272 = scmp.eq.s32.totalorder %s26, 0
      %p273 = por %p271, %p272
      %s275 = sadd.s32 %s274, 1
      %p278 = scmp.eq.s32.totalorder %s20, 1
      %p279 = scmp.ne.s32.totalorder %s274, %s276
      %p280 = scmp.eq.s32.totalorder %s20, 0
      %p281 = por %p279, %p280
      %p282 = scmp.ne.s32.totalorder %s274, %s276
      %p283 = scmp.eq.s32.totalorder %s25, 1
      %p284 = por %p282, %p283
      %p285 = scmp.ne.s32.totalorder %s276, %s277
      %p286 = scmp.eq.s32.totalorder %s25, 0
      %p287 = por %p285, %p286
      %p288 = scmp.ne.s32.totalorder %s276, %s277
      %p289 = scmp.eq.s32.totalorder %s26, 1
      %p290 = por %p288, %p289
      %p292 = scmp.ne.s32.totalorder %s277, %s291
      %p293 = scmp.eq.s32.totalorder %s26, 0
      %p294 = por %p292, %p293
      %s296 = sadd.s32 %s295, 1
      %p299 = scmp.eq.s32.totalorder %s20, 1
      %p300 = scmp.ne.s32.totalorder %s295, %s297
      %p301 = scmp.eq.s32.totalorder %s20, 0
      %p302 = por %p300, %p301
      %p303 = scmp.ne.s32.totalorder %s295, %s297
      %p304 = scmp.eq.s32.totalorder %s25, 1
      %p305 = por %p303, %p304
      %p306 = scmp.ne.s32.totalorder %s297, %s298
      %p307 = scmp.eq.s32.totalorder %s25, 0
      %p308 = por %p306, %p307
      %p309 = scmp.ne.s32.totalorder %s297, %s298
      %p310 = scmp.eq.s32.totalorder %s26, 1
      %p311 = por %p309, %p310
      %p313 = scmp.ne.s32.totalorder %s298, %s312
      %p314 = scmp.eq.s32.totalorder %s26, 0
      %p315 = por %p313, %p314
      %s316 = ssub.s32 %s20, %s27
      %p317 = scmp.eq.s32.totalorder %s316, 0
      %s319 = sadd.s32 %s318, 1
      %s320 = scalar_select %p317, %s318, %s319
      %p323 = pneg %p317
      %p324 = scmp.eq.s32.totalorder %s20, 1
      %p325 = por %p323, %p324
      %p326 = scmp.ne.s32.totalorder %s318, %s321
      %p327 = scmp.eq.s32.totalorder %s20, 0
      %p328 = por %p326, %p327
      %p329 = scmp.ne.s32.totalorder %s318, %s321
      %p330 = scmp.eq.s32.totalorder %s25, 1
      %p331 = por %p329, %p330
      %p332 = scmp.ne.s32.totalorder %s321, %s322
      %p333 = scmp.eq.s32.totalorder %s25, 0
      %p334 = por %p332, %p333
      %p335 = scmp.ne.s32.totalorder %s321, %s322
      %p336 = scmp.eq.s32.totalorder %s26, 1
      %p337 = por %p335, %p336
      %p339 = scmp.ne.s32.totalorder %s322, %s338
      %p340 = scmp.eq.s32.totalorder %s26, 0
      %p341 = por %p339, %p340
      %s342 = ssub.s32 %s20, %s27
      %p343 = scmp.eq.s32.totalorder %s342, 0
      %s345 = sadd.s32 %s344, 1
      %s346 = scalar_select %p343, %s344, %s345
      %p349 = pneg %p343
      %p350 = scmp.eq.s32.totalorder %s20, 1
      %p351 = por %p349, %p350
      %p352 = scmp.ne.s32.totalorder %s344, %s347
      %p353 = scmp.eq.s32.totalorder %s20, 0
      %p354 = por %p352, %p353
      %p355 = scmp.ne.s32.totalorder %s344, %s347
      %p356 = scmp.eq.s32.totalorder %s25, 1
      %p357 = por %p355, %p356
      %p358 = scmp.ne.s32.totalorder %s347, %s348
      %p359 = scmp.eq.s32.totalorder %s25, 0
      %p360 = por %p358, %p359
      %p361 = scmp.ne.s32.totalorder %s347, %s348
      %p362 = scmp.eq.s32.totalorder %s26, 1
      %p363 = por %p361, %p362
      %p365 = scmp.ne.s32.totalorder %s348, %s364
      %p366 = scmp.eq.s32.totalorder %s26, 0
      %p367 = por %p365, %p366
      %p368 = scmp.le.s32.totalorder 1, %s20
      %p369 = scmp.lt.s32.totalorder %s20, 3
      %p370 = pnand %p368, %p369
      %p371 = pneg %p370
      // Predicated region
      $region9: #{_lambda_.11} parent=5 // pred_check
        _
      $region10: #{_lambda_.11} parent=5 // pred_check_branch
        %373 = sbr.rel (%p370) target = $region12
      $region11: #{_lambda_.11} parent=5 // pred_region
        %s374 = ssub.s32 %s20, 1
        // Predicated region
        $region13: #{_lambda_.11} parent=11 // pred_check
          %p375 = pneg %p119
        $region14: #{_lambda_.11} parent=11 // pred_check_branch
          %377 = sbr.rel (%p375) target = $region16
        $region15: #{_lambda_.11} parent=11 // pred_region
          _
        $region16: #{_lambda_.11} parent=11 // pred_fallthru
          _
        // Predicated region
        $region17: #{_lambda_.11} parent=11 // pred_check
          %p378 = pneg %p140
        $region18: #{_lambda_.11} parent=11 // pred_check_branch
          %380 = sbr.rel (%p378) target = $region20
        $region19: #{_lambda_.11} parent=11 // pred_region
          _
        $region20: #{_lambda_.11} parent=11 // pred_fallthru
          _
        // Predicated region
        $region21: #{_lambda_.11} parent=11 // pred_check
          %p381 = pneg %p161
        $region22: #{_lambda_.11} parent=11 // pred_check_branch
          %383 = sbr.rel (%p381) target = $region24
        $region23: #{_lambda_.11} parent=11 // pred_region
          _
        $region24: #{_lambda_.11} parent=11 // pred_fallthru
          _
        // Predicated region
        $region25: #{_lambda_.11} parent=11 // pred_check
          %p384 = pneg %p182
        $region26: #{_lambda_.11} parent=11 // pred_check_branch
          %386 = sbr.rel (%p384) target = $region28
        $region27: #{_lambda_.11} parent=11 // pred_region
          _
        $region28: #{_lambda_.11} parent=11 // pred_fallthru
          _
        // Predicated region
        $region29: #{_lambda_.11} parent=11 // pred_check
          %p387 = pneg %p203
        $region30: #{_lambda_.11} parent=11 // pred_check_branch
          %389 = sbr.rel (%p387) target = $region32
        $region31: #{_lambda_.11} parent=11 // pred_region
          _
        $region32: #{_lambda_.11} parent=11 // pred_fallthru
          _
        // Predicated region
        $region33: #{_lambda_.11} parent=11 // pred_check
          %p390 = pneg %p224
        $region34: #{_lambda_.11} parent=11 // pred_check_branch
          %392 = sbr.rel (%p390) target = $region36
        $region35: #{_lambda_.11} parent=11 // pred_region
          _
        $region36: #{_lambda_.11} parent=11 // pred_fallthru
          _
        // Predicated region
        $region37: #{_lambda_.11} parent=11 // pred_check
          %p393 = pneg %p245
        $region38: #{_lambda_.11} parent=11 // pred_check_branch
          %395 = sbr.rel (%p393) target = $region40
        $region39: #{_lambda_.11} parent=11 // pred_region
          _
        $region40: #{_lambda_.11} parent=11 // pred_fallthru
          _
        // Predicated region
        $region41: #{_lambda_.11} parent=11 // pred_check
          %p396 = pneg %p266
        $region42: #{_lambda_.11} parent=11 // pred_check_branch
          %398 = sbr.rel (%p396) target = $region44
        $region43: #{_lambda_.11} parent=11 // pred_region
          _
        $region44: #{_lambda_.11} parent=11 // pred_fallthru
          _
        // Predicated region
        $region45: #{_lambda_.11} parent=11 // pred_check
          %p399 = pneg %p287
        $region46: #{_lambda_.11} parent=11 // pred_check_branch
          %401 = sbr.rel (%p399) target = $region48
        $region47: #{_lambda_.11} parent=11 // pred_region
          _
        $region48: #{_lambda_.11} parent=11 // pred_fallthru
          _
        // Predicated region
        $region49: #{_lambda_.11} parent=11 // pred_check
          %p402 = pneg %p308
        $region50: #{_lambda_.11} parent=11 // pred_check_branch
          %404 = sbr.rel (%p402) target = $region52
        $region51: #{_lambda_.11} parent=11 // pred_region
          _
        $region52: #{_lambda_.11} parent=11 // pred_fallthru
          _
      $region12: #{_lambda_.11} parent=5 // pred_fallthru
        _
      %p405 = scmp.lt.s32.totalorder %s20, 2
      // Predicated region
      $region53: #{_lambda_.11} parent=5 // pred_check
        %p406 = pneg %p405
      $region54: #{_lambda_.11} parent=5 // pred_check_branch
        %408 = sbr.rel (%p406) target = $region56
      $region55: #{_lambda_.11} parent=5 // pred_region
        // Predicated region
        $region57: #{_lambda_.11} parent=55 // pred_check
          %p409 = pneg %p40
        $region58: #{_lambda_.11} parent=55 // pred_check_branch
          %411 = sbr.rel (%p409) target = $region60
        $region59: #{_lambda_.11} parent=55 // pred_region
          %p412 = scmp.lt.s32.totalorder %s20, 1
          %s413 = scalar_select %p412, %s20, 1
          %s414 = smul.addr %s413, 8
          %s415 = scalar_lea.vmem %s0, %s414
        $region60: #{_lambda_.11} parent=55 // pred_fallthru
          _
        // Predicated region
        $region61: #{_lambda_.11} parent=55 // pred_check
          %p416 = pneg %p66
        $region62: #{_lambda_.11} parent=55 // pred_check_branch
          %418 = sbr.rel (%p416) target = $region64
        $region63: #{_lambda_.11} parent=55 // pred_region
          %s419 = sand.u32 %s56, 1
          %s420 = sand.u32 %s56, 1
          %s421 = smul.addr %s420, 64
          %s422 = scalar_lea.vmem [#allocation2], %s421
          %s423 = smul.addr %s20, 8
          %s424 = scalar_lea.vmem %s1, %s423
          // Predicated region
          $region65: #{_lambda_.11} parent=63 // pred_check
            _
          $region66: #{_lambda_.11} parent=63 // pred_check_branch
            %426 = sbr.rel (0) target = $region68
          $region67: #{_lambda_.11} parent=63 // pred_region
            // Predicated region
            $region69: #{_lambda_.11} parent=67 // pred_check
              _
            $region70: #{_lambda_.11} parent=67 // pred_check_branch
              %428 = sbr.rel (0) target = $region72
            $region71: #{_lambda_.11} parent=67 // pred_region
              // Predicated region
              $region84: #{_lambda_.11} parent=71 // pred_check
                _
              $region85: #{_lambda_.11} parent=71 // pred_check_branch
                %458 = sbr.rel (0) target = $region87
              $region86: #{_lambda_.11} parent=71 // pred_region
                loop: start=0, step=1, limit=1
                $region88: #{_lambda_.11} parent=86 // loop_pre_header
                  _
                $region89: #{_lambda_.11} parent=86 // loop_header
                  %s460 = sphi 0, %s464
                  %p461 = scmp.ge.s32.totalorder %s460, 1
                  %s465 = sphi %s424, %s424
                  %s466 = sphi %s422, %s422
                $region90: #{_lambda_.11} parent=86 // loop_header_branch
                  %463 = sbr.rel (%p461) target = $region94
                $region91: #{_lambda_.11} parent=86 // loop_body
                  %v467 = vld [vmem:[%s465] sm:$0xff]
                  %468 = vst [vmem:[%s466] sm:$0xff] %v467
                  %v469 = vld [vmem:[%s465 + $0x10] sm:$0xff]
                  %470 = vst [vmem:[%s466 + $0x8] sm:$0xff] %v469
                  %v471 = vld [vmem:[%s465 + $0x20] sm:$0xff]
                  %472 = vst [vmem:[%s466 + $0x10] sm:$0xff] %v471
                  %v473 = vld [vmem:[%s465 + $0x30] sm:$0xff]
                  %474 = vst [vmem:[%s466 + $0x18] sm:$0xff] %v473
                  %v475 = vld [vmem:[%s465 + $0x40] sm:$0xff]
                  %476 = vst [vmem:[%s466 + $0x20] sm:$0xff] %v475
                  %v477 = vld [vmem:[%s465 + $0x50] sm:$0xff]
                  %478 = vst [vmem:[%s466 + $0x28] sm:$0xff] %v477
                  %v479 = vld [vmem:[%s465 + $0x60] sm:$0xff]
                  %480 = vst [vmem:[%s466 + $0x30] sm:$0xff] %v479
                  %v481 = vld [vmem:[%s465 + $0x70] sm:$0xff]
                  %482 = vst [vmem:[%s466 + $0x38] sm:$0xff] %v481
                $region92: #{_lambda_.11} parent=86 // loop_footer
                  %s464 = sadd.s32 1, %s460
                $region93: #{_lambda_.11} parent=86 // loop_footer_branch
                  %459 = sbr.rel target = $region89
                $region94: #{_lambda_.11} parent=86 // loop_exit
                  _
              $region87: #{_lambda_.11} parent=71 // pred_fallthru
                _
              // Predicated region
              $region95: #{_lambda_.11} parent=71 // pred_check
                _
              $region96: #{_lambda_.11} parent=71 // pred_check_branch
                %484 = sbr.rel target = $region98
              $region97: #{_lambda_.11} parent=71 // pred_region
                _
              $region98: #{_lambda_.11} parent=71 // pred_fallthru
                _
            $region72: #{_lambda_.11} parent=67 // pred_fallthru
              _
            // Predicated region
            $region73: #{_lambda_.11} parent=67 // pred_check
              _
            $region74: #{_lambda_.11} parent=67 // pred_check_branch
              %430 = sbr.rel target = $region76
            $region75: #{_lambda_.11} parent=67 // pred_region
              %s432 = ssub.s32 256, 1
              loop: start=0, step=1, limit=1
              $region77: #{_lambda_.11} parent=75 // loop_pre_header
                _
              $region78: #{_lambda_.11} parent=75 // loop_header
                %s434 = sphi 0, %s438
                %p435 = scmp.ge.s32.totalorder %s434, 1
                %s439 = sphi %s424, %s424
                %s440 = sphi %s422, %s422
              $region79: #{_lambda_.11} parent=75 // loop_header_branch
                %437 = sbr.rel (%p435) target = $region83
              $region80: #{_lambda_.11} parent=75 // loop_body
                %v441 = vld [vmem:[%s439] sm:%s432]
                %442 = vst [vmem:[%s440] sm:%s432] %v441
                %v443 = vld [vmem:[%s439 + $0x10] sm:%s432]
                %444 = vst [vmem:[%s440 + $0x8] sm:%s432] %v443
                %v445 = vld [vmem:[%s439 + $0x20] sm:%s432]
                %446 = vst [vmem:[%s440 + $0x10] sm:%s432] %v445
                %v447 = vld [vmem:[%s439 + $0x30] sm:%s432]
                %448 = vst [vmem:[%s440 + $0x18] sm:%s432] %v447
                %v449 = vld [vmem:[%s439 + $0x40] sm:%s432]
                %450 = vst [vmem:[%s440 + $0x20] sm:%s432] %v449
                %v451 = vld [vmem:[%s439 + $0x50] sm:%s432]
                %452 = vst [vmem:[%s440 + $0x28] sm:%s432] %v451
                %v453 = vld [vmem:[%s439 + $0x60] sm:%s432]
                %454 = vst [vmem:[%s440 + $0x30] sm:%s432] %v453
                %v455 = vld [vmem:[%s439 + $0x70] sm:%s432]
                %456 = vst [vmem:[%s440 + $0x38] sm:%s432] %v455
              $region81: #{_lambda_.11} parent=75 // loop_footer
                %s438 = sadd.s32 1, %s434
              $region82: #{_lambda_.11} parent=75 // loop_footer_branch
                %433 = sbr.rel target = $region78
              $region83: #{_lambda_.11} parent=75 // loop_exit
                _
            $region76: #{_lambda_.11} parent=67 // pred_fallthru
              _
          $region68: #{_lambda_.11} parent=63 // pred_fallthru
            _
          %485 = vnop
        $region64: #{_lambda_.11} parent=55 // pred_fallthru
          _
        // Predicated region
        $region99: #{_lambda_.11} parent=55 // pred_check
          %p486 = pneg %p92
        $region100: #{_lambda_.11} parent=55 // pred_check_branch
          %488 = sbr.rel (%p486) target = $region102
        $region101: #{_lambda_.11} parent=55 // pred_region
          %s489 = sand.u32 %s82, 1
          %s490 = sand.u32 %s82, 1
          %s491 = smul.addr %s490, 64
          %s492 = scalar_lea.vmem [#allocation3], %s491
          %s493 = smul.addr %s20, 8
          %s494 = scalar_lea.vmem %s2, %s493
          // Predicated region
          $region103: #{_lambda_.11} parent=101 // pred_check
            _
          $region104: #{_lambda_.11} parent=101 // pred_check_branch
            %496 = sbr.rel (0) target = $region106
          $region105: #{_lambda_.11} parent=101 // pred_region
            // Predicated region
            $region107: #{_lambda_.11} parent=105 // pred_check
              _
            $region108: #{_lambda_.11} parent=105 // pred_check_branch
              %498 = sbr.rel (0) target = $region110
            $region109: #{_lambda_.11} parent=105 // pred_region
              // Predicated region
              $region122: #{_lambda_.11} parent=109 // pred_check
                _
              $region123: #{_lambda_.11} parent=109 // pred_check_branch
                %528 = sbr.rel (0) target = $region125
              $region124: #{_lambda_.11} parent=109 // pred_region
                loop: start=0, step=1, limit=1
                $region126: #{_lambda_.11} parent=124 // loop_pre_header
                  _
                $region127: #{_lambda_.11} parent=124 // loop_header
                  %s530 = sphi 0, %s534
                  %p531 = scmp.ge.s32.totalorder %s530, 1
                  %s535 = sphi %s494, %s494
                  %s536 = sphi %s492, %s492
                $region128: #{_lambda_.11} parent=124 // loop_header_branch
                  %533 = sbr.rel (%p531) target = $region132
                $region129: #{_lambda_.11} parent=124 // loop_body
                  %v537 = vld [vmem:[%s535] sm:$0xff]
                  %538 = vst [vmem:[%s536] sm:$0xff] %v537
                  %v539 = vld [vmem:[%s535 + $0x10] sm:$0xff]
                  %540 = vst [vmem:[%s536 + $0x8] sm:$0xff] %v539
                  %v541 = vld [vmem:[%s535 + $0x20] sm:$0xff]
                  %542 = vst [vmem:[%s536 + $0x10] sm:$0xff] %v541
                  %v543 = vld [vmem:[%s535 + $0x30] sm:$0xff]
                  %544 = vst [vmem:[%s536 + $0x18] sm:$0xff] %v543
                  %v545 = vld [vmem:[%s535 + $0x40] sm:$0xff]
                  %546 = vst [vmem:[%s536 + $0x20] sm:$0xff] %v545
                  %v547 = vld [vmem:[%s535 + $0x50] sm:$0xff]
                  %548 = vst [vmem:[%s536 + $0x28] sm:$0xff] %v547
                  %v549 = vld [vmem:[%s535 + $0x60] sm:$0xff]
                  %550 = vst [vmem:[%s536 + $0x30] sm:$0xff] %v549
                  %v551 = vld [vmem:[%s535 + $0x70] sm:$0xff]
                  %552 = vst [vmem:[%s536 + $0x38] sm:$0xff] %v551
                $region130: #{_lambda_.11} parent=124 // loop_footer
                  %s534 = sadd.s32 1, %s530
                $region131: #{_lambda_.11} parent=124 // loop_footer_branch
                  %529 = sbr.rel target = $region127
                $region132: #{_lambda_.11} parent=124 // loop_exit
                  _
              $region125: #{_lambda_.11} parent=109 // pred_fallthru
                _
              // Predicated region
              $region133: #{_lambda_.11} parent=109 // pred_check
                _
              $region134: #{_lambda_.11} parent=109 // pred_check_branch
                %554 = sbr.rel target = $region136
              $region135: #{_lambda_.11} parent=109 // pred_region
                _
              $region136: #{_lambda_.11} parent=109 // pred_fallthru
                _
            $region110: #{_lambda_.11} parent=105 // pred_fallthru
              _
            // Predicated region
            $region111: #{_lambda_.11} parent=105 // pred_check
              _
            $region112: #{_lambda_.11} parent=105 // pred_check_branch
              %500 = sbr.rel target = $region114
            $region113: #{_lambda_.11} parent=105 // pred_region
              %s502 = ssub.s32 256, 1
              loop: start=0, step=1, limit=1
              $region115: #{_lambda_.11} parent=113 // loop_pre_header
                _
              $region116: #{_lambda_.11} parent=113 // loop_header
                %s504 = sphi 0, %s508
                %p505 = scmp.ge.s32.totalorder %s504, 1
                %s509 = sphi %s494, %s494
                %s510 = sphi %s492, %s492
              $region117: #{_lambda_.11} parent=113 // loop_header_branch
                %507 = sbr.rel (%p505) target = $region121
              $region118: #{_lambda_.11} parent=113 // loop_body
                %v511 = vld [vmem:[%s509] sm:%s502]
                %512 = vst [vmem:[%s510] sm:%s502] %v511
                %v513 = vld [vmem:[%s509 + $0x10] sm:%s502]
                %514 = vst [vmem:[%s510 + $0x8] sm:%s502] %v513
                %v515 = vld [vmem:[%s509 + $0x20] sm:%s502]
                %516 = vst [vmem:[%s510 + $0x10] sm:%s502] %v515
                %v517 = vld [vmem:[%s509 + $0x30] sm:%s502]
                %518 = vst [vmem:[%s510 + $0x18] sm:%s502] %v517
                %v519 = vld [vmem:[%s509 + $0x40] sm:%s502]
                %520 = vst [vmem:[%s510 + $0x20] sm:%s502] %v519
                %v521 = vld [vmem:[%s509 + $0x50] sm:%s502]
                %522 = vst [vmem:[%s510 + $0x28] sm:%s502] %v521
                %v523 = vld [vmem:[%s509 + $0x60] sm:%s502]
                %524 = vst [vmem:[%s510 + $0x30] sm:%s502] %v523
                %v525 = vld [vmem:[%s509 + $0x70] sm:%s502]
                %526 = vst [vmem:[%s510 + $0x38] sm:%s502] %v525
              $region119: #{_lambda_.11} parent=113 // loop_footer
                %s508 = sadd.s32 1, %s504
              $region120: #{_lambda_.11} parent=113 // loop_footer_branch
                %503 = sbr.rel target = $region116
              $region121: #{_lambda_.11} parent=113 // loop_exit
                _
            $region114: #{_lambda_.11} parent=105 // pred_fallthru
              _
          $region106: #{_lambda_.11} parent=101 // pred_fallthru
            _
          %555 = vnop
        $region102: #{_lambda_.11} parent=55 // pred_fallthru
          _
        // Predicated region
        $region137: #{_lambda_.11} parent=55 // pred_check
          %p556 = pneg %p328
        $region138: #{_lambda_.11} parent=55 // pred_check_branch
          %558 = sbr.rel (%p556) target = $region140
        $region139: #{_lambda_.11} parent=55 // pred_region
          %p559 = scmp.lt.s32.totalorder %s20, 1
          %s560 = scalar_select %p559, %s20, 1
          %s561 = smul.addr %s560, 8
          %s562 = scalar_lea.vmem %s13, %s561
        $region140: #{_lambda_.11} parent=55 // pred_fallthru
          _
      $region56: #{_lambda_.11} parent=5 // pred_fallthru
        _
      %p563 = scmp.le.s32.totalorder 1, %s20
      %p564 = scmp.lt.s32.totalorder %s20, 3
      %p565 = pnand %p563, %p564
      %p566 = pneg %p565
      // Predicated region
      $region141: #{_lambda_.11} parent=5 // pred_check
        _
      $region142: #{_lambda_.11} parent=5 // pred_check_branch
        %568 = sbr.rel (%p565) target = $region144
      $region143: #{_lambda_.11} parent=5 // pred_region
        %s569 = ssub.s32 %s20, 1
        %s570 = sand.u32 %s59, 1
        %s571 = sand.u32 %s59, 1
        %s572 = smul.addr %s571, 64
        %s573 = scalar_lea.vmem [#allocation2], %s572
        // Predicated region
        $region145: #{_lambda_.11} parent=143 // pred_check
          %p574 = pneg %p72
        $region146: #{_lambda_.11} parent=143 // pred_check_branch
          %576 = sbr.rel (%p574) target = $region148
        $region147: #{_lambda_.11} parent=143 // pred_region
          _
        $region148: #{_lambda_.11} parent=143 // pred_fallthru
          _
        %s577 = sand.u32 %s85, 1
        %s578 = sand.u32 %s85, 1
        %s579 = smul.addr %s578, 64
        %s580 = scalar_lea.vmem [#allocation3], %s579
        // Predicated region
        $region149: #{_lambda_.11} parent=143 // pred_check
          %p581 = pneg %p98
        $region150: #{_lambda_.11} parent=143 // pred_check_branch
          %583 = sbr.rel (%p581) target = $region152
        $region151: #{_lambda_.11} parent=143 // pred_region
          _
        $region152: #{_lambda_.11} parent=143 // pred_fallthru
          _
        %p584 = scmp.lt.s32.totalorder %s25, 1
        %s585 = scalar_select %p584, %s25, 1
        %s586 = smul.addr %s585, 8
        %s587 = scalar_lea.vmem %s0, %s586
        %p588 = pneg %p46
        %p589 = pneg %p43
        %s590 = sand.u32 %s59, 1
        %s591 = sand.u32 %s59, 1
        %s592 = smul.addr %s591, 64
        %s593 = scalar_lea.vmem [#allocation2], %s592
        %p594 = pneg %p72
        %p595 = pneg %p69
        %s596 = sand.u32 %s85, 1
        %s597 = sand.u32 %s85, 1
        %s598 = smul.addr %s597, 64
        %s599 = scalar_lea.vmem [#allocation3], %s598
        %p600 = pneg %p98
        %p601 = pneg %p95
        %p602 = pneg %p119
        %p603 = pneg %p116
        %p604 = pneg %p140
        %p605 = pneg %p137
        %p606 = pneg %p161
        %p607 = pneg %p158
        %p608 = pneg %p182
        %p609 = pneg %p179
        %p610 = pneg %p203
        %p611 = pneg %p200
        %p612 = pneg %p224
        %p613 = pneg %p221
        %p614 = pneg %p245
        %p615 = pneg %p242
        %p616 = pneg %p266
        %p617 = pneg %p263
        %p618 = pneg %p287
        %p619 = pneg %p284
        %p620 = pneg %p308
        %p621 = pneg %p305
        %p622 = scmp.lt.s32.totalorder %s25, 1
        %s623 = scalar_select %p622, %s25, 1
        %s624 = smul.addr %s623, 8
        %s625 = scalar_lea.vmem %s13, %s624
        %p626 = pneg %p334
        %p627 = pneg %p331
        %p628 = pneg %p360
        %p629 = pneg %p357
        %p630 = scmp.lt.s32.totalorder %s25, 1
        %s631 = scalar_select %p630, %s25, 1
        %s632 = smul.addr %s631, 8
        %s633 = scalar_lea.vmem %s14, %s632
        %p634 = scmp.lt.s32.totalorder %s25, 1
        %s635 = scalar_select %p634, %s25, 1
        %s636 = smul.addr %s635, 8
        %s637 = scalar_lea.vmem %s0, %s636
        %p638 = scmp.lt.s32.totalorder %s25, 1
        %s639 = scalar_select %p638, %s25, 1
        %s640 = smul.addr %s639, 8
        %s641 = scalar_lea.vmem %s13, %s640
        %p642 = scmp.lt.s32.totalorder %s25, 1
        %s643 = scalar_select %p642, %s25, 1
        %s644 = smul.addr %s643, 8
        %s645 = scalar_lea.vmem %s14, %s644
        %v647 = vld [vmem:[%s637] sm:$0xff]
        %v648 = vld [vmem:[%s3] sm:$0x7]
        %v649 = vld [vmem:[%s4] sm:$0x1]
        %v650 = vld [vmem:[%s5] sm:$0xf]
        %v651 = vld [vmem:[%s5 + $0x4] sm:$0xf]
        %v652 = vld [vmem:[%s5 + $0x8] sm:$0xf]
        %v653 = vld [vmem:[%s5 + $0xc] sm:$0xf]
        %v654 = vld [vmem:[%s6] sm:$0x1]
        %v655 = vld [vmem:[%s7] sm:$0xf]
        %v656 = vld [vmem:[%s7 + $0x4] sm:$0xf]
        %v657 = vld [vmem:[%s7 + $0x8] sm:$0xf]
        %v658 = vld [vmem:[%s7 + $0xc] sm:$0xf]
        %v659 = vld [vmem:[%s8] sm:$0x1]
        %v660 = vld [vmem:[%s9] sm:$0xf]
        %v661 = vld [vmem:[%s9 + $0x4] sm:$0xf]
        %v662 = vld [vmem:[%s9 + $0x8] sm:$0xf]
        %v663 = vld [vmem:[%s9 + $0xc] sm:$0xf]
        %v664 = vld [vmem:[%s10] sm:$0x1]
        %v665 = vld [vmem:[%s573] sm:$0xff]
        %v666 = vld [vmem:[%s580] sm:$0xff]
        %668 = vset.pattern.permute.xlu0 0
        %669 = vperm.xlu0 %668, %v666
        %v670 = vpop.permute.xlu0 %669
        %v672 = vlaneseq
        %v673 = vshrl.u32 %v672, 7
        %v674 = vsub.s32 0, %v673
        %v675 = vrot.slane %v648, %v674
        %v676 = vmul.f32 %v670, %v675
        %677 = vset.pattern.permute.xlu0 1
        %678 = vperm.xlu0 %677, %v666
        %v679 = vpop.permute.xlu0 %678
        %v681 = vlaneseq
        %v682 = vshrl.u32 %v681, 7
        %v683 = vsub.s32 1, %v682
        %v684 = vrot.slane %v648, %v683
        %v685 = vmul.f32 %v679, %v684
        %v686 = vadd.f32 %v676, %v685
        %687 = vset.pattern.permute.xlu0 2
        %688 = vperm.xlu0 %687, %v666
        %v689 = vpop.permute.xlu0 %688
        %v691 = vlaneseq
        %v692 = vshrl.u32 %v691, 7
        %v693 = vsub.s32 2, %v692
        %v694 = vrot.slane %v648, %v693
        %v695 = vmul.f32 %v689, %v694
        %v696 = vadd.f32 %v686, %v695
        %v698 = vlaneseq
        %v699 = vshrl.u32 %v698, 7
        %v700 = vsub.s32 0, %v699
        %v701 = vrot.slane %v649, %v700
        %v703 = vadd.f32 %v696, %v701
        %v704 = vmax.f32 %v703, 0.0
        %v705 = vpack.c.bf16 %v704, %v704
        %v707 = vlaneseq
        %v708 = vshrl.u32 %v707, 7
        %v709 = vsub.s32 0, %v708
        %v710 = vrot.slane %v654, %v709
        %v716 = vunpack.c.l.b16 %v650
        %v717 = vunpack.c.l.b16 %v651
        %v718 = vunpack.c.l.b16 %v652
        %v719 = vunpack.c.l.b16 %v653
        %v720 = vpack.c.b16 %v717, %v716
        %v721 = vpack.c.b16 %v719, %v718
        %vm724 = vcmask 261120
        %v726 = vsel %vm724, %v705, 0
        %728 = vmatprep.subr.bf16.mxu0 0
        %729 = vmatpush1.bf16.msra.mxu0 0
        %730 = vmatprep.subr.bf16.mxu0 0
        %731 = vmatpush1.bf16.msra.mxu0 0
        %732 = vmatprep.subr.bf16.mxu0 0
        %733 = vmatpush1.bf16.msra.mxu0 0
        %734 = vmatprep.subr.bf16.mxu0 0
        %735 = vmatpush1.bf16.msra.mxu0 0
        %736 = vmatprep.subr.bf16.mxu0 0
        %737 = vmatpush1.bf16.msra.mxu0 0
        %738 = vmatprep.subr.bf16.mxu0 0
        %739 = vmatpush1.bf16.msra.mxu0 0
        %740 = vmatprep.subr.bf16.mxu0 0
        %741 = vmatpush1.bf16.msra.mxu0 %v721
        %742 = vmatprep.subr.bf16.mxu0 0
        %743 = vmatpush1.bf16.msra.mxu0 %v720
        %744 = vmatprep.subr.bf16.mxu0 0
        %745 = vmatpush2.bf16.msra.mxu0 0
        %746 = vmatprep.subr.bf16.mxu0 0
        %747 = vmatpush2.bf16.msra.mxu0 0
        %748 = vmatprep.subr.bf16.mxu0 0
        %749 = vmatpush2.bf16.msra.mxu0 0
        %750 = vmatprep.subr.bf16.mxu0 0
        %751 = vmatpush2.bf16.msra.mxu0 0
        %752 = vmatprep.subr.bf16.mxu0 0
        %753 = vmatpush2.bf16.msra.mxu0 0
        %754 = vmatprep.subr.bf16.mxu0 0
        %755 = vmatpush2.bf16.msra.mxu0 0
        %756 = vmatprep.subr.bf16.mxu0 0
        %757 = vmatpush2.bf16.msra.mxu0 0
        %758 = vmatprep.subr.bf16.mxu0 0
        %759 = vmatpush2.bf16.msra.mxu0 0
        %760 = vmatprep.mubr.bf16.mxu0 0
        %761 = vmatmul.mubr.bf16.gmra.mxu0 %v726
        %v762 = vpop.f32.mrf.mxu0
        %v763 = vadd.f32 %v710, %v762
        %v764 = vpop.f32.mrf.mxu0
        %v765 = vpop.f32.mrf.mxu0
        %v766 = vpop.f32.mrf.mxu0
        %767 = vdwg.mxu0
        %v768 = vsub.f32 %v647, %v665
        %v769 = vadd.f32 %v768, %v763
        %v770 = vpack.c.bf16 %v769, %v769
        %v772 = vlaneseq
        %v773 = vshrl.u32 %v772, 7
        %v774 = vsub.s32 0, %v773
        %v775 = vrot.slane %v659, %v774
        %v781 = vunpack.c.l.b16 %v655
        %v782 = vunpack.c.l.b16 %v656
        %v783 = vunpack.c.l.b16 %v657
        %v784 = vunpack.c.l.b16 %v658
        %v785 = vpack.c.b16 %v782, %v781
        %v786 = vpack.c.b16 %v784, %v783
        %v790 = vsel %vm724, %v770, 0
        %792 = vmatprep.subr.bf16.mxu0 0
        %793 = vmatpush1.bf16.msra.mxu0 0
        %794 = vmatprep.subr.bf16.mxu0 0
        %795 = vmatpush1.bf16.msra.mxu0 0
        %796 = vmatprep.subr.bf16.mxu0 0
        %797 = vmatpush1.bf16.msra.mxu0 0
        %798 = vmatprep.subr.bf16.mxu0 0
        %799 = vmatpush1.bf16.msra.mxu0 0
        %800 = vmatprep.subr.bf16.mxu0 0
        %801 = vmatpush1.bf16.msra.mxu0 0
        %802 = vmatprep.subr.bf16.mxu0 0
        %803 = vmatpush1.bf16.msra.mxu0 0
        %804 = vmatprep.subr.bf16.mxu0 0
        %805 = vmatpush1.bf16.msra.mxu0 %v786
        %806 = vmatprep.subr.bf16.mxu0 0
        %807 = vmatpush1.bf16.msra.mxu0 %v785
        %808 = vmatprep.subr.bf16.mxu0 0
        %809 = vmatpush2.bf16.msra.mxu0 0
        %810 = vmatprep.subr.bf16.mxu0 0
        %811 = vmatpush2.bf16.msra.mxu0 0
        %812 = vmatprep.subr.bf16.mxu0 0
        %813 = vmatpush2.bf16.msra.mxu0 0
        %814 = vmatprep.subr.bf16.mxu0 0
        %815 = vmatpush2.bf16.msra.mxu0 0
        %816 = vmatprep.subr.bf16.mxu0 0
        %817 = vmatpush2.bf16.msra.mxu0 0
        %818 = vmatprep.subr.bf16.mxu0 0
        %819 = vmatpush2.bf16.msra.mxu0 0
        %820 = vmatprep.subr.bf16.mxu0 0
        %821 = vmatpush2.bf16.msra.mxu0 0
        %822 = vmatprep.subr.bf16.mxu0 0
        %823 = vmatpush2.bf16.msra.mxu0 0
        %824 = vmatprep.mubr.bf16.mxu0 0
        %825 = vmatmul.mubr.bf16.gmra.mxu0 %v790
        %v826 = vpop.f32.mrf.mxu0
        %v827 = vadd.f32 %v775, %v826
        %v828 = vpop.f32.mrf.mxu0
        %v829 = vpop.f32.mrf.mxu0
        %v830 = vpop.f32.mrf.mxu0
        %831 = vdwg.mxu0
        %v832 = vmax.f32 %v827, 0.0
        %v833 = vpack.c.bf16 %v832, %v832
        %v835 = vlaneseq
        %v836 = vshrl.u32 %v835, 7
        %v837 = vsub.s32 0, %v836
        %v838 = vrot.slane %v664, %v837
        %v844 = vunpack.c.l.b16 %v660
        %v845 = vunpack.c.l.b16 %v661
        %v846 = vunpack.c.l.b16 %v662
        %v847 = vunpack.c.l.b16 %v663
        %v848 = vpack.c.b16 %v845, %v844
        %v849 = vpack.c.b16 %v847, %v846
        %v853 = vsel %vm724, %v833, 0
        %855 = vmatprep.subr.bf16.mxu0 0
        %856 = vmatpush1.bf16.msra.mxu0 0
        %857 = vmatprep.subr.bf16.mxu0 0
        %858 = vmatpush1.bf16.msra.mxu0 0
        %859 = vmatprep.subr.bf16.mxu0 0
        %860 = vmatpush1.bf16.msra.mxu0 0
        %861 = vmatprep.subr.bf16.mxu0 0
        %862 = vmatpush1.bf16.msra.mxu0 0
        %863 = vmatprep.subr.bf16.mxu0 0
        %864 = vmatpush1.bf16.msra.mxu0 0
        %865 = vmatprep.subr.bf16.mxu0 0
        %866 = vmatpush1.bf16.msra.mxu0 0
        %867 = vmatprep.subr.bf16.mxu0 0
        %868 = vmatpush1.bf16.msra.mxu0 %v849
        %869 = vmatprep.subr.bf16.mxu0 0
        %870 = vmatpush1.bf16.msra.mxu0 %v848
        %871 = vmatprep.subr.bf16.mxu0 0
        %872 = vmatpush2.bf16.msra.mxu0 0
        %873 = vmatprep.subr.bf16.mxu0 0
        %874 = vmatpush2.bf16.msra.mxu0 0
        %875 = vmatprep.subr.bf16.mxu0 0
        %876 = vmatpush2.bf16.msra.mxu0 0
        %877 = vmatprep.subr.bf16.mxu0 0
        %878 = vmatpush2.bf16.msra.mxu0 0
        %879 = vmatprep.subr.bf16.mxu0 0
        %880 = vmatpush2.bf16.msra.mxu0 0
        %881 = vmatprep.subr.bf16.mxu0 0
        %882 = vmatpush2.bf16.msra.mxu0 0
        %883 = vmatprep.subr.bf16.mxu0 0
        %884 = vmatpush2.bf16.msra.mxu0 0
        %885 = vmatprep.subr.bf16.mxu0 0
        %886 = vmatpush2.bf16.msra.mxu0 0
        %887 = vmatprep.mubr.bf16.mxu0 0
        %888 = vmatmul.mubr.bf16.gmra.mxu0 %v853
        %v889 = vpop.f32.mrf.mxu0
        %v890 = vadd.f32 %v838, %v889
        %v891 = vpop.f32.mrf.mxu0
        %v892 = vpop.f32.mrf.mxu0
        %v893 = vpop.f32.mrf.mxu0
        %894 = vdwg.mxu0
        %896 = vrot.lane.b32.xlu0 %v763, 32
        %v897 = vpop.permute.xlu0 %896
        %v899 = vadd.f32 %v665, %v897
        %s900 = scalar_lea.vmem %s573, 8 [#allocation2]
        %v901 = vld [vmem:[%s900] sm:$0xff]
        %s902 = scalar_lea.vmem %s580, 8 [#allocation3]
        %v903 = vld [vmem:[%s902] sm:$0xff]
        %905 = vset.pattern.permute.xlu0 0
        %906 = vperm.xlu0 %905, %v903
        %v907 = vpop.permute.xlu0 %906
        %v909 = vmul.f32 %v907, %v675
        %910 = vset.pattern.permute.xlu0 1
        %911 = vperm.xlu0 %910, %v903
        %v912 = vpop.permute.xlu0 %911
        %v914 = vmul.f32 %v912, %v684
        %v915 = vadd.f32 %v909, %v914
        %916 = vset.pattern.permute.xlu0 2
        %917 = vperm.xlu0 %916, %v903
        %v918 = vpop.permute.xlu0 %917
        %v920 = vmul.f32 %v918, %v694
        %v921 = vadd.f32 %v915, %v920
        %v922 = vadd.f32 %v921, %v701
        %v923 = vmax.f32 %v922, 0.0
        %v924 = vpack.c.bf16 %v923, %v923
        %v926 = vsel %vm724, %v924, 0
        %928 = vmatprep.subr.bf16.mxu0 0
        %929 = vmatpush1.bf16.msra.mxu0 0
        %930 = vmatprep.subr.bf16.mxu0 0
        %931 = vmatpush1.bf16.msra.mxu0 0
        %932 = vmatprep.subr.bf16.mxu0 0
        %933 = vmatpush1.bf16.msra.mxu0 0
        %934 = vmatprep.subr.bf16.mxu0 0
        %935 = vmatpush1.bf16.msra.mxu0 0
        %936 = vmatprep.subr.bf16.mxu0 0
        %937 = vmatpush1.bf16.msra.mxu0 0
        %938 = vmatprep.subr.bf16.mxu0 0
        %939 = vmatpush1.bf16.msra.mxu0 0
        %940 = vmatprep.subr.bf16.mxu0 0
        %941 = vmatpush1.bf16.msra.mxu0 %v721
        %942 = vmatprep.subr.bf16.mxu0 0
        %943 = vmatpush1.bf16.msra.mxu0 %v720
        %944 = vmatprep.subr.bf16.mxu0 0
        %945 = vmatpush2.bf16.msra.mxu0 0
        %946 = vmatprep.subr.bf16.mxu0 0
        %947 = vmatpush2.bf16.msra.mxu0 0
        %948 = vmatprep.subr.bf16.mxu0 0
        %949 = vmatpush2.bf16.msra.mxu0 0
        %950 = vmatprep.subr.bf16.mxu0 0
        %951 = vmatpush2.bf16.msra.mxu0 0
        %952 = vmatprep.subr.bf16.mxu0 0
        %953 = vmatpush2.bf16.msra.mxu0 0
        %954 = vmatprep.subr.bf16.mxu0 0
        %955 = vmatpush2.bf16.msra.mxu0 0
        %956 = vmatprep.subr.bf16.mxu0 0
        %957 = vmatpush2.bf16.msra.mxu0 0
        %958 = vmatprep.subr.bf16.mxu0 0
        %959 = vmatpush2.bf16.msra.mxu0 0
        %960 = vmatprep.mubr.bf16.mxu0 0
        %961 = vmatmul.mubr.bf16.gmra.mxu0 %v926
        %v962 = vpop.f32.mrf.mxu0
        %v963 = vadd.f32 %v710, %v962
        %v964 = vpop.f32.mrf.mxu0
        %v965 = vpop.f32.mrf.mxu0
        %v966 = vpop.f32.mrf.mxu0
        %967 = vdwg.mxu0
        %v968 = vsub.f32 %v647, %v901
        %v969 = vadd.f32 %v968, %v963
        %v970 = vpack.c.bf16 %v969, %v969
        %v972 = vsel %vm724, %v970, 0
        %974 = vmatprep.subr.bf16.mxu0 0
        %975 = vmatpush1.bf16.msra.mxu0 0
        %976 = vmatprep.subr.bf16.mxu0 0
        %977 = vmatpush1.bf16.msra.mxu0 0
        %978 = vmatprep.subr.bf16.mxu0 0
        %979 = vmatpush1.bf16.msra.mxu0 0
        %980 = vmatprep.subr.bf16.mxu0 0
        %981 = vmatpush1.bf16.msra.mxu0 0
        %982 = vmatprep.subr.bf16.mxu0 0
        %983 = vmatpush1.bf16.msra.mxu0 0
        %984 = vmatprep.subr.bf16.mxu0 0
        %985 = vmatpush1.bf16.msra.mxu0 0
        %986 = vmatprep.subr.bf16.mxu0 0
        %987 = vmatpush1.bf16.msra.mxu0 %v786
        %988 = vmatprep.subr.bf16.mxu0 0
        %989 = vmatpush1.bf16.msra.mxu0 %v785
        %990 = vmatprep.subr.bf16.mxu0 0
        %991 = vmatpush2.bf16.msra.mxu0 0
        %992 = vmatprep.subr.bf16.mxu0 0
        %993 = vmatpush2.bf16.msra.mxu0 0
        %994 = vmatprep.subr.bf16.mxu0 0
        %995 = vmatpush2.bf16.msra.mxu0 0
        %996 = vmatprep.subr.bf16.mxu0 0
        %997 = vmatpush2.bf16.msra.mxu0 0
        %998 = vmatprep.subr.bf16.mxu0 0
        %999 = vmatpush2.bf16.msra.mxu0 0
        %1000 = vmatprep.subr.bf16.mxu0 0
        %1001 = vmatpush2.bf16.msra.mxu0 0
        %1002 = vmatprep.subr.bf16.mxu0 0
        %1003 = vmatpush2.bf16.msra.mxu0 0
        %1004 = vmatprep.subr.bf16.mxu0 0
        %1005 = vmatpush2.bf16.msra.mxu0 0
        %1006 = vmatprep.mubr.bf16.mxu0 0
        %1007 = vmatmul.mubr.bf16.gmra.mxu0 %v972
        %v1008 = vpop.f32.mrf.mxu0
        %v1009 = vadd.f32 %v775, %v1008
        %v1010 = vpop.f32.mrf.mxu0
        %v1011 = vpop.f32.mrf.mxu0
        %v1012 = vpop.f32.mrf.mxu0
        %1013 = vdwg.mxu0
        %v1014 = vmax.f32 %v1009, 0.0
        %v1015 = vpack.c.bf16 %v1014, %v1014
        %v1017 = vsel %vm724, %v1015, 0
        %1019 = vmatprep.subr.bf16.mxu0 0
        %1020 = vmatpush1.bf16.msra.mxu0 0
        %1021 = vmatprep.subr.bf16.mxu0 0
        %1022 = vmatpush1.bf16.msra.mxu0 0
        %1023 = vmatprep.subr.bf16.mxu0 0
        %1024 = vmatpush1.bf16.msra.mxu0 0
        %1025 = vmatprep.subr.bf16.mxu0 0
        %1026 = vmatpush1.bf16.msra.mxu0 0
        %1027 = vmatprep.subr.bf16.mxu0 0
        %1028 = vmatpush1.bf16.msra.mxu0 0
        %1029 = vmatprep.subr.bf16.mxu0 0
        %1030 = vmatpush1.bf16.msra.mxu0 0
        %1031 = vmatprep.subr.bf16.mxu0 0
        %1032 = vmatpush1.bf16.msra.mxu0 %v849
        %1033 = vmatprep.subr.bf16.mxu0 0
        %1034 = vmatpush1.bf16.msra.mxu0 %v848
        %1035 = vmatprep.subr.bf16.mxu0 0
        %1036 = vmatpush2.bf16.msra.mxu0 0
        %1037 = vmatprep.subr.bf16.mxu0 0
        %1038 = vmatpush2.bf16.msra.mxu0 0
        %1039 = vmatprep.subr.bf16.mxu0 0
        %1040 = vmatpush2.bf16.msra.mxu0 0
        %1041 = vmatprep.subr.bf16.mxu0 0
        %1042 = vmatpush2.bf16.msra.mxu0 0
        %1043 = vmatprep.subr.bf16.mxu0 0
        %1044 = vmatpush2.bf16.msra.mxu0 0
        %1045 = vmatprep.subr.bf16.mxu0 0
        %1046 = vmatpush2.bf16.msra.mxu0 0
        %1047 = vmatprep.subr.bf16.mxu0 0
        %1048 = vmatpush2.bf16.msra.mxu0 0
        %1049 = vmatprep.subr.bf16.mxu0 0
        %1050 = vmatpush2.bf16.msra.mxu0 0
        %1051 = vmatprep.mubr.bf16.mxu0 0
        %1052 = vmatmul.mubr.bf16.gmra.mxu0 %v1017
        %v1053 = vpop.f32.mrf.mxu0
        %v1054 = vadd.f32 %v838, %v1053
        %v1055 = vpop.f32.mrf.mxu0
        %v1056 = vpop.f32.mrf.mxu0
        %v1057 = vpop.f32.mrf.mxu0
        %1058 = vdwg.mxu0
        %1060 = vrot.lane.b32.xlu0 %v963, 32
        %v1061 = vpop.permute.xlu0 %1060
        %v1063 = vadd.f32 %v901, %v1061
        %v1064 = vmax.f32 %v890, %v1054
        %v1065 = vsub.f32 %v890, %v1064
        %v1066 = vmul.f32 %v1065, 1.442695
        %v1067 = vpow.pop %v1066
        %v1068 = vsub.f32 %v1054, %v1064
        %v1069 = vmul.f32 %v1068, 1.442695
        %v1070 = vpow.pop %v1069
        %v1071 = vadd.f32 %v1067, %v1070
        %1073 = vrot.lane.b32.xlu0 %v899, 96
        %v1074 = vpop.permute.xlu0 %1073
        %v1076 = vmul.f32 %v1067, %v1074
        %1078 = vrot.lane.b32.xlu0 %v1063, 96
        %v1079 = vpop.permute.xlu0 %1078
        %v1081 = vmul.f32 %v1070, %v1079
        %v1082 = vadd.f32 %v1076, %v1081
        %s1083 = scalar_lea.vmem %s573, 16 [#allocation2]
        %v1084 = vld [vmem:[%s1083] sm:$0xff]
        %s1085 = scalar_lea.vmem %s580, 16 [#allocation3]
        %v1086 = vld [vmem:[%s1085] sm:$0xff]
        %1088 = vset.pattern.permute.xlu0 0
        %1089 = vperm.xlu0 %1088, %v1086
        %v1090 = vpop.permute.xlu0 %1089
        %v1092 = vmul.f32 %v1090, %v675
        %1093 = vset.pattern.permute.xlu0 1
        %1094 = vperm.xlu0 %1093, %v1086
        %v1095 = vpop.permute.xlu0 %1094
        %v1097 = vmul.f32 %v1095, %v684
        %v1098 = vadd.f32 %v1092, %v1097
        %1099 = vset.pattern.permute.xlu0 2
        %1100 = vperm.xlu0 %1099, %v1086
        %v1101 = vpop.permute.xlu0 %1100
        %v1103 = vmul.f32 %v1101, %v694
        %v1104 = vadd.f32 %v1098, %v1103
        %v1105 = vadd.f32 %v1104, %v701
        %v1106 = vmax.f32 %v1105, 0.0
        %v1107 = vpack.c.bf16 %v1106, %v1106
        %v1109 = vsel %vm724, %v1107, 0
        %1111 = vmatprep.subr.bf16.mxu0 0
        %1112 = vmatpush1.bf16.msra.mxu0 0
        %1113 = vmatprep.subr.bf16.mxu0 0
        %1114 = vmatpush1.bf16.msra.mxu0 0
        %1115 = vmatprep.subr.bf16.mxu0 0
        %1116 = vmatpush1.bf16.msra.mxu0 0
        %1117 = vmatprep.subr.bf16.mxu0 0
        %1118 = vmatpush1.bf16.msra.mxu0 0
        %1119 = vmatprep.subr.bf16.mxu0 0
        %1120 = vmatpush1.bf16.msra.mxu0 0
        %1121 = vmatprep.subr.bf16.mxu0 0
        %1122 = vmatpush1.bf16.msra.mxu0 0
        %1123 = vmatprep.subr.bf16.mxu0 0
        %1124 = vmatpush1.bf16.msra.mxu0 %v721
        %1125 = vmatprep.subr.bf16.mxu0 0
        %1126 = vmatpush1.bf16.msra.mxu0 %v720
        %1127 = vmatprep.subr.bf16.mxu0 0
        %1128 = vmatpush2.bf16.msra.mxu0 0
        %1129 = vmatprep.subr.bf16.mxu0 0
        %1130 = vmatpush2.bf16.msra.mxu0 0
        %1131 = vmatprep.subr.bf16.mxu0 0
        %1132 = vmatpush2.bf16.msra.mxu0 0
        %1133 = vmatprep.subr.bf16.mxu0 0
        %1134 = vmatpush2.bf16.msra.mxu0 0
        %1135 = vmatprep.subr.bf16.mxu0 0
        %1136 = vmatpush2.bf16.msra.mxu0 0
        %1137 = vmatprep.subr.bf16.mxu0 0
        %1138 = vmatpush2.bf16.msra.mxu0 0
        %1139 = vmatprep.subr.bf16.mxu0 0
        %1140 = vmatpush2.bf16.msra.mxu0 0
        %1141 = vmatprep.subr.bf16.mxu0 0
        %1142 = vmatpush2.bf16.msra.mxu0 0
        %1143 = vmatprep.mubr.bf16.mxu0 0
        %1144 = vmatmul.mubr.bf16.gmra.mxu0 %v1109
        %v1145 = vpop.f32.mrf.mxu0
        %v1146 = vadd.f32 %v710, %v1145
        %v1147 = vpop.f32.mrf.mxu0
        %v1148 = vpop.f32.mrf.mxu0
        %v1149 = vpop.f32.mrf.mxu0
        %1150 = vdwg.mxu0
        %v1151 = vsub.f32 %v647, %v1084
        %v1152 = vadd.f32 %v1151, %v1146
        %v1153 = vpack.c.bf16 %v1152, %v1152
        %v1155 = vsel %vm724, %v1153, 0
        %1157 = vmatprep.subr.bf16.mxu0 0
        %1158 = vmatpush1.bf16.msra.mxu0 0
        %1159 = vmatprep.subr.bf16.mxu0 0
        %1160 = vmatpush1.bf16.msra.mxu0 0
        %1161 = vmatprep.subr.bf16.mxu0 0
        %1162 = vmatpush1.bf16.msra.mxu0 0
        %1163 = vmatprep.subr.bf16.mxu0 0
        %1164 = vmatpush1.bf16.msra.mxu0 0
        %1165 = vmatprep.subr.bf16.mxu0 0
        %1166 = vmatpush1.bf16.msra.mxu0 0
        %1167 = vmatprep.subr.bf16.mxu0 0
        %1168 = vmatpush1.bf16.msra.mxu0 0
        %1169 = vmatprep.subr.bf16.mxu0 0
        %1170 = vmatpush1.bf16.msra.mxu0 %v786
        %1171 = vmatprep.subr.bf16.mxu0 0
        %1172 = vmatpush1.bf16.msra.mxu0 %v785
        %1173 = vmatprep.subr.bf16.mxu0 0
        %1174 = vmatpush2.bf16.msra.mxu0 0
        %1175 = vmatprep.subr.bf16.mxu0 0
        %1176 = vmatpush2.bf16.msra.mxu0 0
        %1177 = vmatprep.subr.bf16.mxu0 0
        %1178 = vmatpush2.bf16.msra.mxu0 0
        %1179 = vmatprep.subr.bf16.mxu0 0
        %1180 = vmatpush2.bf16.msra.mxu0 0
        %1181 = vmatprep.subr.bf16.mxu0 0
        %1182 = vmatpush2.bf16.msra.mxu0 0
        %1183 = vmatprep.subr.bf16.mxu0 0
        %1184 = vmatpush2.bf16.msra.mxu0 0
        %1185 = vmatprep.subr.bf16.mxu0 0
        %1186 = vmatpush2.bf16.msra.mxu0 0
        %1187 = vmatprep.subr.bf16.mxu0 0
        %1188 = vmatpush2.bf16.msra.mxu0 0
        %1189 = vmatprep.mubr.bf16.mxu0 0
        %1190 = vmatmul.mubr.bf16.gmra.mxu0 %v1155
        %v1191 = vpop.f32.mrf.mxu0
        %v1192 = vadd.f32 %v775, %v1191
        %v1193 = vpop.f32.mrf.mxu0
        %v1194 = vpop.f32.mrf.mxu0
        %v1195 = vpop.f32.mrf.mxu0
        %1196 = vdwg.mxu0
        %v1197 = vmax.f32 %v1192, 0.0
        %v1198 = vpack.c.bf16 %v1197, %v1197
        %v1200 = vsel %vm724, %v1198, 0
        %1202 = vmatprep.subr.bf16.mxu0 0
        %1203 = vmatpush1.bf16.msra.mxu0 0
        %1204 = vmatprep.subr.bf16.mxu0 0
        %1205 = vmatpush1.bf16.msra.mxu0 0
        %1206 = vmatprep.subr.bf16.mxu0 0
        %1207 = vmatpush1.bf16.msra.mxu0 0
        %1208 = vmatprep.subr.bf16.mxu0 0
        %1209 = vmatpush1.bf16.msra.mxu0 0
        %1210 = vmatprep.subr.bf16.mxu0 0
        %1211 = vmatpush1.bf16.msra.mxu0 0
        %1212 = vmatprep.subr.bf16.mxu0 0
        %1213 = vmatpush1.bf16.msra.mxu0 0
        %1214 = vmatprep.subr.bf16.mxu0 0
        %1215 = vmatpush1.bf16.msra.mxu0 %v849
        %1216 = vmatprep.subr.bf16.mxu0 0
        %1217 = vmatpush1.bf16.msra.mxu0 %v848
        %1218 = vmatprep.subr.bf16.mxu0 0
        %1219 = vmatpush2.bf16.msra.mxu0 0
        %1220 = vmatprep.subr.bf16.mxu0 0
        %1221 = vmatpush2.bf16.msra.mxu0 0
        %1222 = vmatprep.subr.bf16.mxu0 0
        %1223 = vmatpush2.bf16.msra.mxu0 0
        %1224 = vmatprep.subr.bf16.mxu0 0
        %1225 = vmatpush2.bf16.msra.mxu0 0
        %1226 = vmatprep.subr.bf16.mxu0 0
        %1227 = vmatpush2.bf16.msra.mxu0 0
        %1228 = vmatprep.subr.bf16.mxu0 0
        %1229 = vmatpush2.bf16.msra.mxu0 0
        %1230 = vmatprep.subr.bf16.mxu0 0
        %1231 = vmatpush2.bf16.msra.mxu0 0
        %1232 = vmatprep.subr.bf16.mxu0 0
        %1233 = vmatpush2.bf16.msra.mxu0 0
        %1234 = vmatprep.mubr.bf16.mxu0 0
        %1235 = vmatmul.mubr.bf16.gmra.mxu0 %v1200
        %v1236 = vpop.f32.mrf.mxu0
        %v1237 = vadd.f32 %v838, %v1236
        %v1238 = vpop.f32.mrf.mxu0
        %v1239 = vpop.f32.mrf.mxu0
        %v1240 = vpop.f32.mrf.mxu0
        %1241 = vdwg.mxu0
        %1243 = vrot.lane.b32.xlu0 %v1146, 32
        %v1244 = vpop.permute.xlu0 %1243
        %v1246 = vadd.f32 %v1084, %v1244
        %v1247 = vmax.f32 %v1064, %v1237
        %v1248 = vsub.f32 %v1064, %v1247
        %v1249 = vmul.f32 %v1248, 1.442695
        %v1250 = vpow.pop %v1249
        %v1251 = vsub.f32 %v1237, %v1247
        %v1252 = vmul.f32 %v1251, 1.442695
        %v1253 = vpow.pop %v1252
        %v1254 = vmul.f32 %v1250, %v1071
        %v1255 = vadd.f32 %v1254, %v1253
        %v1256 = vmul.f32 %v1250, %v1082
        %1258 = vrot.lane.b32.xlu0 %v1246, 96
        %v1259 = vpop.permute.xlu0 %1258
        %v1261 = vmul.f32 %v1253, %v1259
        %v1262 = vadd.f32 %v1256, %v1261
        %s1263 = scalar_lea.vmem %s573, 24 [#allocation2]
        %v1264 = vld [vmem:[%s1263] sm:$0xff]
        %s1265 = scalar_lea.vmem %s580, 24 [#allocation3]
        %v1266 = vld [vmem:[%s1265] sm:$0xff]
        %1268 = vset.pattern.permute.xlu0 0
        %1269 = vperm.xlu0 %1268, %v1266
        %v1270 = vpop.permute.xlu0 %1269
        %v1272 = vmul.f32 %v1270, %v675
        %1273 = vset.pattern.permute.xlu0 1
        %1274 = vperm.xlu0 %1273, %v1266
        %v1275 = vpop.permute.xlu0 %1274
        %v1277 = vmul.f32 %v1275, %v684
        %v1278 = vadd.f32 %v1272, %v1277
        %1279 = vset.pattern.permute.xlu0 2
        %1280 = vperm.xlu0 %1279, %v1266
        %v1281 = vpop.permute.xlu0 %1280
        %v1283 = vmul.f32 %v1281, %v694
        %v1284 = vadd.f32 %v1278, %v1283
        %v1285 = vadd.f32 %v1284, %v701
        %v1286 = vmax.f32 %v1285, 0.0
        %v1287 = vpack.c.bf16 %v1286, %v1286
        %v1289 = vsel %vm724, %v1287, 0
        %1291 = vmatprep.subr.bf16.mxu0 0
        %1292 = vmatpush1.bf16.msra.mxu0 0
        %1293 = vmatprep.subr.bf16.mxu0 0
        %1294 = vmatpush1.bf16.msra.mxu0 0
        %1295 = vmatprep.subr.bf16.mxu0 0
        %1296 = vmatpush1.bf16.msra.mxu0 0
        %1297 = vmatprep.subr.bf16.mxu0 0
        %1298 = vmatpush1.bf16.msra.mxu0 0
        %1299 = vmatprep.subr.bf16.mxu0 0
        %1300 = vmatpush1.bf16.msra.mxu0 0
        %1301 = vmatprep.subr.bf16.mxu0 0
        %1302 = vmatpush1.bf16.msra.mxu0 0
        %1303 = vmatprep.subr.bf16.mxu0 0
        %1304 = vmatpush1.bf16.msra.mxu0 %v721
        %1305 = vmatprep.subr.bf16.mxu0 0
        %1306 = vmatpush1.bf16.msra.mxu0 %v720
        %1307 = vmatprep.subr.bf16.mxu0 0
        %1308 = vmatpush2.bf16.msra.mxu0 0
        %1309 = vmatprep.subr.bf16.mxu0 0
        %1310 = vmatpush2.bf16.msra.mxu0 0
        %1311 = vmatprep.subr.bf16.mxu0 0
        %1312 = vmatpush2.bf16.msra.mxu0 0
        %1313 = vmatprep.subr.bf16.mxu0 0
        %1314 = vmatpush2.bf16.msra.mxu0 0
        %1315 = vmatprep.subr.bf16.mxu0 0
        %1316 = vmatpush2.bf16.msra.mxu0 0
        %1317 = vmatprep.subr.bf16.mxu0 0
        %1318 = vmatpush2.bf16.msra.mxu0 0
        %1319 = vmatprep.subr.bf16.mxu0 0
        %1320 = vmatpush2.bf16.msra.mxu0 0
        %1321 = vmatprep.subr.bf16.mxu0 0
        %1322 = vmatpush2.bf16.msra.mxu0 0
        %1323 = vmatprep.mubr.bf16.mxu0 0
        %1324 = vmatmul.mubr.bf16.gmra.mxu0 %v1289
        %v1325 = vpop.f32.mrf.mxu0
        %v1326 = vadd.f32 %v710, %v1325
        %v1327 = vpop.f32.mrf.mxu0
        %v1328 = vpop.f32.mrf.mxu0
        %v1329 = vpop.f32.mrf.mxu0
        %1330 = vdwg.mxu0
        %v1331 = vsub.f32 %v647, %v1264
        %v1332 = vadd.f32 %v1331, %v1326
        %v1333 = vpack.c.bf16 %v1332, %v1332
        %v1335 = vsel %vm724, %v1333, 0
        %1337 = vmatprep.subr.bf16.mxu0 0
        %1338 = vmatpush1.bf16.msra.mxu0 0
        %1339 = vmatprep.subr.bf16.mxu0 0
        %1340 = vmatpush1.bf16.msra.mxu0 0
        %1341 = vmatprep.subr.bf16.mxu0 0
        %1342 = vmatpush1.bf16.msra.mxu0 0
        %1343 = vmatprep.subr.bf16.mxu0 0
        %1344 = vmatpush1.bf16.msra.mxu0 0
        %1345 = vmatprep.subr.bf16.mxu0 0
        %1346 = vmatpush1.bf16.msra.mxu0 0
        %1347 = vmatprep.subr.bf16.mxu0 0
        %1348 = vmatpush1.bf16.msra.mxu0 0
        %1349 = vmatprep.subr.bf16.mxu0 0
        %1350 = vmatpush1.bf16.msra.mxu0 %v786
        %1351 = vmatprep.subr.bf16.mxu0 0
        %1352 = vmatpush1.bf16.msra.mxu0 %v785
        %1353 = vmatprep.subr.bf16.mxu0 0
        %1354 = vmatpush2.bf16.msra.mxu0 0
        %1355 = vmatprep.subr.bf16.mxu0 0
        %1356 = vmatpush2.bf16.msra.mxu0 0
        %1357 = vmatprep.subr.bf16.mxu0 0
        %1358 = vmatpush2.bf16.msra.mxu0 0
        %1359 = vmatprep.subr.bf16.mxu0 0
        %1360 = vmatpush2.bf16.msra.mxu0 0
        %1361 = vmatprep.subr.bf16.mxu0 0
        %1362 = vmatpush2.bf16.msra.mxu0 0
        %1363 = vmatprep.subr.bf16.mxu0 0
        %1364 = vmatpush2.bf16.msra.mxu0 0
        %1365 = vmatprep.subr.bf16.mxu0 0
        %1366 = vmatpush2.bf16.msra.mxu0 0
        %1367 = vmatprep.subr.bf16.mxu0 0
        %1368 = vmatpush2.bf16.msra.mxu0 0
        %1369 = vmatprep.mubr.bf16.mxu0 0
        %1370 = vmatmul.mubr.bf16.gmra.mxu0 %v1335
        %v1371 = vpop.f32.mrf.mxu0
        %v1372 = vadd.f32 %v775, %v1371
        %v1373 = vpop.f32.mrf.mxu0
        %v1374 = vpop.f32.mrf.mxu0
        %v1375 = vpop.f32.mrf.mxu0
        %1376 = vdwg.mxu0
        %v1377 = vmax.f32 %v1372, 0.0
        %v1378 = vpack.c.bf16 %v1377, %v1377
        %v1380 = vsel %vm724, %v1378, 0
        %1382 = vmatprep.subr.bf16.mxu0 0
        %1383 = vmatpush1.bf16.msra.mxu0 0
        %1384 = vmatprep.subr.bf16.mxu0 0
        %1385 = vmatpush1.bf16.msra.mxu0 0
        %1386 = vmatprep.subr.bf16.mxu0 0
        %1387 = vmatpush1.bf16.msra.mxu0 0
        %1388 = vmatprep.subr.bf16.mxu0 0
        %1389 = vmatpush1.bf16.msra.mxu0 0
        %1390 = vmatprep.subr.bf16.mxu0 0
        %1391 = vmatpush1.bf16.msra.mxu0 0
        %1392 = vmatprep.subr.bf16.mxu0 0
        %1393 = vmatpush1.bf16.msra.mxu0 0
        %1394 = vmatprep.subr.bf16.mxu0 0
        %1395 = vmatpush1.bf16.msra.mxu0 %v849
        %1396 = vmatprep.subr.bf16.mxu0 0
        %1397 = vmatpush1.bf16.msra.mxu0 %v848
        %1398 = vmatprep.subr.bf16.mxu0 0
        %1399 = vmatpush2.bf16.msra.mxu0 0
        %1400 = vmatprep.subr.bf16.mxu0 0
        %1401 = vmatpush2.bf16.msra.mxu0 0
        %1402 = vmatprep.subr.bf16.mxu0 0
        %1403 = vmatpush2.bf16.msra.mxu0 0
        %1404 = vmatprep.subr.bf16.mxu0 0
        %1405 = vmatpush2.bf16.msra.mxu0 0
        %1406 = vmatprep.subr.bf16.mxu0 0
        %1407 = vmatpush2.bf16.msra.mxu0 0
        %1408 = vmatprep.subr.bf16.mxu0 0
        %1409 = vmatpush2.bf16.msra.mxu0 0
        %1410 = vmatprep.subr.bf16.mxu0 0
        %1411 = vmatpush2.bf16.msra.mxu0 0
        %1412 = vmatprep.subr.bf16.mxu0 0
        %1413 = vmatpush2.bf16.msra.mxu0 0
        %1414 = vmatprep.mubr.bf16.mxu0 0
        %1415 = vmatmul.mubr.bf16.gmra.mxu0 %v1380
        %v1416 = vpop.f32.mrf.mxu0
        %v1417 = vadd.f32 %v838, %v1416
        %v1418 = vpop.f32.mrf.mxu0
        %v1419 = vpop.f32.mrf.mxu0
        %v1420 = vpop.f32.mrf.mxu0
        %1421 = vdwg.mxu0
        %1423 = vrot.lane.b32.xlu0 %v1326, 32
        %v1424 = vpop.permute.xlu0 %1423
        %v1426 = vadd.f32 %v1264, %v1424
        %v1427 = vmax.f32 %v1247, %v1417
        %v1428 = vsub.f32 %v1247, %v1427
        %v1429 = vmul.f32 %v1428, 1.442695
        %v1430 = vpow.pop %v1429
        %v1431 = vsub.f32 %v1417, %v1427
        %v1432 = vmul.f32 %v1431, 1.442695
        %v1433 = vpow.pop %v1432
        %v1434 = vmul.f32 %v1430, %v1255
        %v1435 = vadd.f32 %v1434, %v1433
        %v1436 = vmul.f32 %v1430, %v1262
        %1438 = vrot.lane.b32.xlu0 %v1426, 96
        %v1439 = vpop.permute.xlu0 %1438
        %v1441 = vmul.f32 %v1433, %v1439
        %v1442 = vadd.f32 %v1436, %v1441
        %s1443 = scalar_lea.vmem %s573, 32 [#allocation2]
        %v1444 = vld [vmem:[%s1443] sm:$0xff]
        %s1445 = scalar_lea.vmem %s580, 32 [#allocation3]
        %v1446 = vld [vmem:[%s1445] sm:$0xff]
        %1448 = vset.pattern.permute.xlu0 0
        %1449 = vperm.xlu0 %1448, %v1446
        %v1450 = vpop.permute.xlu0 %1449
        %v1452 = vmul.f32 %v1450, %v675
        %1453 = vset.pattern.permute.xlu0 1
        %1454 = vperm.xlu0 %1453, %v1446
        %v1455 = vpop.permute.xlu0 %1454
        %v1457 = vmul.f32 %v1455, %v684
        %v1458 = vadd.f32 %v1452, %v1457
        %1459 = vset.pattern.permute.xlu0 2
        %1460 = vperm.xlu0 %1459, %v1446
        %v1461 = vpop.permute.xlu0 %1460
        %v1463 = vmul.f32 %v1461, %v694
        %v1464 = vadd.f32 %v1458, %v1463
        %v1465 = vadd.f32 %v1464, %v701
        %v1466 = vmax.f32 %v1465, 0.0
        %v1467 = vpack.c.bf16 %v1466, %v1466
        %v1469 = vsel %vm724, %v1467, 0
        %1471 = vmatprep.subr.bf16.mxu0 0
        %1472 = vmatpush1.bf16.msra.mxu0 0
        %1473 = vmatprep.subr.bf16.mxu0 0
        %1474 = vmatpush1.bf16.msra.mxu0 0
        %1475 = vmatprep.subr.bf16.mxu0 0
        %1476 = vmatpush1.bf16.msra.mxu0 0
        %1477 = vmatprep.subr.bf16.mxu0 0
        %1478 = vmatpush1.bf16.msra.mxu0 0
        %1479 = vmatprep.subr.bf16.mxu0 0
        %1480 = vmatpush1.bf16.msra.mxu0 0
        %1481 = vmatprep.subr.bf16.mxu0 0
        %1482 = vmatpush1.bf16.msra.mxu0 0
        %1483 = vmatprep.subr.bf16.mxu0 0
        %1484 = vmatpush1.bf16.msra.mxu0 %v721
        %1485 = vmatprep.subr.bf16.mxu0 0
        %1486 = vmatpush1.bf16.msra.mxu0 %v720
        %1487 = vmatprep.subr.bf16.mxu0 0
        %1488 = vmatpush2.bf16.msra.mxu0 0
        %1489 = vmatprep.subr.bf16.mxu0 0
        %1490 = vmatpush2.bf16.msra.mxu0 0
        %1491 = vmatprep.subr.bf16.mxu0 0
        %1492 = vmatpush2.bf16.msra.mxu0 0
        %1493 = vmatprep.subr.bf16.mxu0 0
        %1494 = vmatpush2.bf16.msra.mxu0 0
        %1495 = vmatprep.subr.bf16.mxu0 0
        %1496 = vmatpush2.bf16.msra.mxu0 0
        %1497 = vmatprep.subr.bf16.mxu0 0
        %1498 = vmatpush2.bf16.msra.mxu0 0
        %1499 = vmatprep.subr.bf16.mxu0 0
        %1500 = vmatpush2.bf16.msra.mxu0 0
        %1501 = vmatprep.subr.bf16.mxu0 0
        %1502 = vmatpush2.bf16.msra.mxu0 0
        %1503 = vmatprep.mubr.bf16.mxu0 0
        %1504 = vmatmul.mubr.bf16.gmra.mxu0 %v1469
        %v1505 = vpop.f32.mrf.mxu0
        %v1506 = vadd.f32 %v710, %v1505
        %v1507 = vpop.f32.mrf.mxu0
        %v1508 = vpop.f32.mrf.mxu0
        %v1509 = vpop.f32.mrf.mxu0
        %1510 = vdwg.mxu0
        %v1511 = vsub.f32 %v647, %v1444
        %v1512 = vadd.f32 %v1511, %v1506
        %v1513 = vpack.c.bf16 %v1512, %v1512
        %v1515 = vsel %vm724, %v1513, 0
        %1517 = vmatprep.subr.bf16.mxu0 0
        %1518 = vmatpush1.bf16.msra.mxu0 0
        %1519 = vmatprep.subr.bf16.mxu0 0
        %1520 = vmatpush1.bf16.msra.mxu0 0
        %1521 = vmatprep.subr.bf16.mxu0 0
        %1522 = vmatpush1.bf16.msra.mxu0 0
        %1523 = vmatprep.subr.bf16.mxu0 0
        %1524 = vmatpush1.bf16.msra.mxu0 0
        %1525 = vmatprep.subr.bf16.mxu0 0
        %1526 = vmatpush1.bf16.msra.mxu0 0
        %1527 = vmatprep.subr.bf16.mxu0 0
        %1528 = vmatpush1.bf16.msra.mxu0 0
        %1529 = vmatprep.subr.bf16.mxu0 0
        %1530 = vmatpush1.bf16.msra.mxu0 %v786
        %1531 = vmatprep.subr.bf16.mxu0 0
        %1532 = vmatpush1.bf16.msra.mxu0 %v785
        %1533 = vmatprep.subr.bf16.mxu0 0
        %1534 = vmatpush2.bf16.msra.mxu0 0
        %1535 = vmatprep.subr.bf16.mxu0 0
        %1536 = vmatpush2.bf16.msra.mxu0 0
        %1537 = vmatprep.subr.bf16.mxu0 0
        %1538 = vmatpush2.bf16.msra.mxu0 0
        %1539 = vmatprep.subr.bf16.mxu0 0
        %1540 = vmatpush2.bf16.msra.mxu0 0
        %1541 = vmatprep.subr.bf16.mxu0 0
        %1542 = vmatpush2.bf16.msra.mxu0 0
        %1543 = vmatprep.subr.bf16.mxu0 0
        %1544 = vmatpush2.bf16.msra.mxu0 0
        %1545 = vmatprep.subr.bf16.mxu0 0
        %1546 = vmatpush2.bf16.msra.mxu0 0
        %1547 = vmatprep.subr.bf16.mxu0 0
        %1548 = vmatpush2.bf16.msra.mxu0 0
        %1549 = vmatprep.mubr.bf16.mxu0 0
        %1550 = vmatmul.mubr.bf16.gmra.mxu0 %v1515
        %v1551 = vpop.f32.mrf.mxu0
        %v1552 = vadd.f32 %v775, %v1551
        %v1553 = vpop.f32.mrf.mxu0
        %v1554 = vpop.f32.mrf.mxu0
        %v1555 = vpop.f32.mrf.mxu0
        %1556 = vdwg.mxu0
        %v1557 = vmax.f32 %v1552, 0.0
        %v1558 = vpack.c.bf16 %v1557, %v1557
        %v1560 = vsel %vm724, %v1558, 0
        %1562 = vmatprep.subr.bf16.mxu0 0
        %1563 = vmatpush1.bf16.msra.mxu0 0
        %1564 = vmatprep.subr.bf16.mxu0 0
        %1565 = vmatpush1.bf16.msra.mxu0 0
        %1566 = vmatprep.subr.bf16.mxu0 0
        %1567 = vmatpush1.bf16.msra.mxu0 0
        %1568 = vmatprep.subr.bf16.mxu0 0
        %1569 = vmatpush1.bf16.msra.mxu0 0
        %1570 = vmatprep.subr.bf16.mxu0 0
        %1571 = vmatpush1.bf16.msra.mxu0 0
        %1572 = vmatprep.subr.bf16.mxu0 0
        %1573 = vmatpush1.bf16.msra.mxu0 0
        %1574 = vmatprep.subr.bf16.mxu0 0
        %1575 = vmatpush1.bf16.msra.mxu0 %v849
        %1576 = vmatprep.subr.bf16.mxu0 0
        %1577 = vmatpush1.bf16.msra.mxu0 %v848
        %1578 = vmatprep.subr.bf16.mxu0 0
        %1579 = vmatpush2.bf16.msra.mxu0 0
        %1580 = vmatprep.subr.bf16.mxu0 0
        %1581 = vmatpush2.bf16.msra.mxu0 0
        %1582 = vmatprep.subr.bf16.mxu0 0
        %1583 = vmatpush2.bf16.msra.mxu0 0
        %1584 = vmatprep.subr.bf16.mxu0 0
        %1585 = vmatpush2.bf16.msra.mxu0 0
        %1586 = vmatprep.subr.bf16.mxu0 0
        %1587 = vmatpush2.bf16.msra.mxu0 0
        %1588 = vmatprep.subr.bf16.mxu0 0
        %1589 = vmatpush2.bf16.msra.mxu0 0
        %1590 = vmatprep.subr.bf16.mxu0 0
        %1591 = vmatpush2.bf16.msra.mxu0 0
        %1592 = vmatprep.subr.bf16.mxu0 0
        %1593 = vmatpush2.bf16.msra.mxu0 0
        %1594 = vmatprep.mubr.bf16.mxu0 0
        %1595 = vmatmul.mubr.bf16.gmra.mxu0 %v1560
        %v1596 = vpop.f32.mrf.mxu0
        %v1597 = vadd.f32 %v838, %v1596
        %v1598 = vpop.f32.mrf.mxu0
        %v1599 = vpop.f32.mrf.mxu0
        %v1600 = vpop.f32.mrf.mxu0
        %1601 = vdwg.mxu0
        %1603 = vrot.lane.b32.xlu0 %v1506, 32
        %v1604 = vpop.permute.xlu0 %1603
        %v1606 = vadd.f32 %v1444, %v1604
        %v1607 = vmax.f32 %v1427, %v1597
        %v1608 = vsub.f32 %v1427, %v1607
        %v1609 = vmul.f32 %v1608, 1.442695
        %v1610 = vpow.pop %v1609
        %v1611 = vsub.f32 %v1597, %v1607
        %v1612 = vmul.f32 %v1611, 1.442695
        %v1613 = vpow.pop %v1612
        %v1614 = vmul.f32 %v1610, %v1435
        %v1615 = vadd.f32 %v1614, %v1613
        %v1616 = vmul.f32 %v1610, %v1442
        %1618 = vrot.lane.b32.xlu0 %v1606, 96
        %v1619 = vpop.permute.xlu0 %1618
        %v1621 = vmul.f32 %v1613, %v1619
        %v1622 = vadd.f32 %v1616, %v1621
        %s1623 = scalar_lea.vmem %s573, 40 [#allocation2]
        %v1624 = vld [vmem:[%s1623] sm:$0xff]
        %s1625 = scalar_lea.vmem %s580, 40 [#allocation3]
        %v1626 = vld [vmem:[%s1625] sm:$0xff]
        %1628 = vset.pattern.permute.xlu0 0
        %1629 = vperm.xlu0 %1628, %v1626
        %v1630 = vpop.permute.xlu0 %1629
        %v1632 = vmul.f32 %v1630, %v675
        %1633 = vset.pattern.permute.xlu0 1
        %1634 = vperm.xlu0 %1633, %v1626
        %v1635 = vpop.permute.xlu0 %1634
        %v1637 = vmul.f32 %v1635, %v684
        %v1638 = vadd.f32 %v1632, %v1637
        %1639 = vset.pattern.permute.xlu0 2
        %1640 = vperm.xlu0 %1639, %v1626
        %v1641 = vpop.permute.xlu0 %1640
        %v1643 = vmul.f32 %v1641, %v694
        %v1644 = vadd.f32 %v1638, %v1643
        %v1645 = vadd.f32 %v1644, %v701
        %v1646 = vmax.f32 %v1645, 0.0
        %v1647 = vpack.c.bf16 %v1646, %v1646
        %v1649 = vsel %vm724, %v1647, 0
        %1651 = vmatprep.subr.bf16.mxu0 0
        %1652 = vmatpush1.bf16.msra.mxu0 0
        %1653 = vmatprep.subr.bf16.mxu0 0
        %1654 = vmatpush1.bf16.msra.mxu0 0
        %1655 = vmatprep.subr.bf16.mxu0 0
        %1656 = vmatpush1.bf16.msra.mxu0 0
        %1657 = vmatprep.subr.bf16.mxu0 0
        %1658 = vmatpush1.bf16.msra.mxu0 0
        %1659 = vmatprep.subr.bf16.mxu0 0
        %1660 = vmatpush1.bf16.msra.mxu0 0
        %1661 = vmatprep.subr.bf16.mxu0 0
        %1662 = vmatpush1.bf16.msra.mxu0 0
        %1663 = vmatprep.subr.bf16.mxu0 0
        %1664 = vmatpush1.bf16.msra.mxu0 %v721
        %1665 = vmatprep.subr.bf16.mxu0 0
        %1666 = vmatpush1.bf16.msra.mxu0 %v720
        %1667 = vmatprep.subr.bf16.mxu0 0
        %1668 = vmatpush2.bf16.msra.mxu0 0
        %1669 = vmatprep.subr.bf16.mxu0 0
        %1670 = vmatpush2.bf16.msra.mxu0 0
        %1671 = vmatprep.subr.bf16.mxu0 0
        %1672 = vmatpush2.bf16.msra.mxu0 0
        %1673 = vmatprep.subr.bf16.mxu0 0
        %1674 = vmatpush2.bf16.msra.mxu0 0
        %1675 = vmatprep.subr.bf16.mxu0 0
        %1676 = vmatpush2.bf16.msra.mxu0 0
        %1677 = vmatprep.subr.bf16.mxu0 0
        %1678 = vmatpush2.bf16.msra.mxu0 0
        %1679 = vmatprep.subr.bf16.mxu0 0
        %1680 = vmatpush2.bf16.msra.mxu0 0
        %1681 = vmatprep.subr.bf16.mxu0 0
        %1682 = vmatpush2.bf16.msra.mxu0 0
        %1683 = vmatprep.mubr.bf16.mxu0 0
        %1684 = vmatmul.mubr.bf16.gmra.mxu0 %v1649
        %v1685 = vpop.f32.mrf.mxu0
        %v1686 = vadd.f32 %v710, %v1685
        %v1687 = vpop.f32.mrf.mxu0
        %v1688 = vpop.f32.mrf.mxu0
        %v1689 = vpop.f32.mrf.mxu0
        %1690 = vdwg.mxu0
        %v1691 = vsub.f32 %v647, %v1624
        %v1692 = vadd.f32 %v1691, %v1686
        %v1693 = vpack.c.bf16 %v1692, %v1692
        %v1695 = vsel %vm724, %v1693, 0
        %1697 = vmatprep.subr.bf16.mxu0 0
        %1698 = vmatpush1.bf16.msra.mxu0 0
        %1699 = vmatprep.subr.bf16.mxu0 0
        %1700 = vmatpush1.bf16.msra.mxu0 0
        %1701 = vmatprep.subr.bf16.mxu0 0
        %1702 = vmatpush1.bf16.msra.mxu0 0
        %1703 = vmatprep.subr.bf16.mxu0 0
        %1704 = vmatpush1.bf16.msra.mxu0 0
        %1705 = vmatprep.subr.bf16.mxu0 0
        %1706 = vmatpush1.bf16.msra.mxu0 0
        %1707 = vmatprep.subr.bf16.mxu0 0
        %1708 = vmatpush1.bf16.msra.mxu0 0
        %1709 = vmatprep.subr.bf16.mxu0 0
        %1710 = vmatpush1.bf16.msra.mxu0 %v786
        %1711 = vmatprep.subr.bf16.mxu0 0
        %1712 = vmatpush1.bf16.msra.mxu0 %v785
        %1713 = vmatprep.subr.bf16.mxu0 0
        %1714 = vmatpush2.bf16.msra.mxu0 0
        %1715 = vmatprep.subr.bf16.mxu0 0
        %1716 = vmatpush2.bf16.msra.mxu0 0
        %1717 = vmatprep.subr.bf16.mxu0 0
        %1718 = vmatpush2.bf16.msra.mxu0 0
        %1719 = vmatprep.subr.bf16.mxu0 0
        %1720 = vmatpush2.bf16.msra.mxu0 0
        %1721 = vmatprep.subr.bf16.mxu0 0
        %1722 = vmatpush2.bf16.msra.mxu0 0
        %1723 = vmatprep.subr.bf16.mxu0 0
        %1724 = vmatpush2.bf16.msra.mxu0 0
        %1725 = vmatprep.subr.bf16.mxu0 0
        %1726 = vmatpush2.bf16.msra.mxu0 0
        %1727 = vmatprep.subr.bf16.mxu0 0
        %1728 = vmatpush2.bf16.msra.mxu0 0
        %1729 = vmatprep.mubr.bf16.mxu0 0
        %1730 = vmatmul.mubr.bf16.gmra.mxu0 %v1695
        %v1731 = vpop.f32.mrf.mxu0
        %v1732 = vadd.f32 %v775, %v1731
        %v1733 = vpop.f32.mrf.mxu0
        %v1734 = vpop.f32.mrf.mxu0
        %v1735 = vpop.f32.mrf.mxu0
        %1736 = vdwg.mxu0
        %v1737 = vmax.f32 %v1732, 0.0
        %v1738 = vpack.c.bf16 %v1737, %v1737
        %v1740 = vsel %vm724, %v1738, 0
        %1742 = vmatprep.subr.bf16.mxu0 0
        %1743 = vmatpush1.bf16.msra.mxu0 0
        %1744 = vmatprep.subr.bf16.mxu0 0
        %1745 = vmatpush1.bf16.msra.mxu0 0
        %1746 = vmatprep.subr.bf16.mxu0 0
        %1747 = vmatpush1.bf16.msra.mxu0 0
        %1748 = vmatprep.subr.bf16.mxu0 0
        %1749 = vmatpush1.bf16.msra.mxu0 0
        %1750 = vmatprep.subr.bf16.mxu0 0
        %1751 = vmatpush1.bf16.msra.mxu0 0
        %1752 = vmatprep.subr.bf16.mxu0 0
        %1753 = vmatpush1.bf16.msra.mxu0 0
        %1754 = vmatprep.subr.bf16.mxu0 0
        %1755 = vmatpush1.bf16.msra.mxu0 %v849
        %1756 = vmatprep.subr.bf16.mxu0 0
        %1757 = vmatpush1.bf16.msra.mxu0 %v848
        %1758 = vmatprep.subr.bf16.mxu0 0
        %1759 = vmatpush2.bf16.msra.mxu0 0
        %1760 = vmatprep.subr.bf16.mxu0 0
        %1761 = vmatpush2.bf16.msra.mxu0 0
        %1762 = vmatprep.subr.bf16.mxu0 0
        %1763 = vmatpush2.bf16.msra.mxu0 0
        %1764 = vmatprep.subr.bf16.mxu0 0
        %1765 = vmatpush2.bf16.msra.mxu0 0
        %1766 = vmatprep.subr.bf16.mxu0 0
        %1767 = vmatpush2.bf16.msra.mxu0 0
        %1768 = vmatprep.subr.bf16.mxu0 0
        %1769 = vmatpush2.bf16.msra.mxu0 0
        %1770 = vmatprep.subr.bf16.mxu0 0
        %1771 = vmatpush2.bf16.msra.mxu0 0
        %1772 = vmatprep.subr.bf16.mxu0 0
        %1773 = vmatpush2.bf16.msra.mxu0 0
        %1774 = vmatprep.mubr.bf16.mxu0 0
        %1775 = vmatmul.mubr.bf16.gmra.mxu0 %v1740
        %v1776 = vpop.f32.mrf.mxu0
        %v1777 = vadd.f32 %v838, %v1776
        %v1778 = vpop.f32.mrf.mxu0
        %v1779 = vpop.f32.mrf.mxu0
        %v1780 = vpop.f32.mrf.mxu0
        %1781 = vdwg.mxu0
        %1783 = vrot.lane.b32.xlu0 %v1686, 32
        %v1784 = vpop.permute.xlu0 %1783
        %v1786 = vadd.f32 %v1624, %v1784
        %v1787 = vmax.f32 %v1607, %v1777
        %v1788 = vsub.f32 %v1607, %v1787
        %v1789 = vmul.f32 %v1788, 1.442695
        %v1790 = vpow.pop %v1789
        %v1791 = vsub.f32 %v1777, %v1787
        %v1792 = vmul.f32 %v1791, 1.442695
        %v1793 = vpow.pop %v1792
        %v1794 = vmul.f32 %v1790, %v1615
        %v1795 = vadd.f32 %v1794, %v1793
        %v1796 = vmul.f32 %v1790, %v1622
        %1798 = vrot.lane.b32.xlu0 %v1786, 96
        %v1799 = vpop.permute.xlu0 %1798
        %v1801 = vmul.f32 %v1793, %v1799
        %v1802 = vadd.f32 %v1796, %v1801
        %s1803 = scalar_lea.vmem %s573, 48 [#allocation2]
        %v1804 = vld [vmem:[%s1803] sm:$0xff]
        %s1805 = scalar_lea.vmem %s580, 48 [#allocation3]
        %v1806 = vld [vmem:[%s1805] sm:$0xff]
        %1808 = vset.pattern.permute.xlu0 0
        %1809 = vperm.xlu0 %1808, %v1806
        %v1810 = vpop.permute.xlu0 %1809
        %v1812 = vmul.f32 %v1810, %v675
        %1813 = vset.pattern.permute.xlu0 1
        %1814 = vperm.xlu0 %1813, %v1806
        %v1815 = vpop.permute.xlu0 %1814
        %v1817 = vmul.f32 %v1815, %v684
        %v1818 = vadd.f32 %v1812, %v1817
        %1819 = vset.pattern.permute.xlu0 2
        %1820 = vperm.xlu0 %1819, %v1806
        %v1821 = vpop.permute.xlu0 %1820
        %v1823 = vmul.f32 %v1821, %v694
        %v1824 = vadd.f32 %v1818, %v1823
        %v1825 = vadd.f32 %v1824, %v701
        %v1826 = vmax.f32 %v1825, 0.0
        %v1827 = vpack.c.bf16 %v1826, %v1826
        %v1829 = vsel %vm724, %v1827, 0
        %1831 = vmatprep.subr.bf16.mxu0 0
        %1832 = vmatpush1.bf16.msra.mxu0 0
        %1833 = vmatprep.subr.bf16.mxu0 0
        %1834 = vmatpush1.bf16.msra.mxu0 0
        %1835 = vmatprep.subr.bf16.mxu0 0
        %1836 = vmatpush1.bf16.msra.mxu0 0
        %1837 = vmatprep.subr.bf16.mxu0 0
        %1838 = vmatpush1.bf16.msra.mxu0 0
        %1839 = vmatprep.subr.bf16.mxu0 0
        %1840 = vmatpush1.bf16.msra.mxu0 0
        %1841 = vmatprep.subr.bf16.mxu0 0
        %1842 = vmatpush1.bf16.msra.mxu0 0
        %1843 = vmatprep.subr.bf16.mxu0 0
        %1844 = vmatpush1.bf16.msra.mxu0 %v721
        %1845 = vmatprep.subr.bf16.mxu0 0
        %1846 = vmatpush1.bf16.msra.mxu0 %v720
        %1847 = vmatprep.subr.bf16.mxu0 0
        %1848 = vmatpush2.bf16.msra.mxu0 0
        %1849 = vmatprep.subr.bf16.mxu0 0
        %1850 = vmatpush2.bf16.msra.mxu0 0
        %1851 = vmatprep.subr.bf16.mxu0 0
        %1852 = vmatpush2.bf16.msra.mxu0 0
        %1853 = vmatprep.subr.bf16.mxu0 0
        %1854 = vmatpush2.bf16.msra.mxu0 0
        %1855 = vmatprep.subr.bf16.mxu0 0
        %1856 = vmatpush2.bf16.msra.mxu0 0
        %1857 = vmatprep.subr.bf16.mxu0 0
        %1858 = vmatpush2.bf16.msra.mxu0 0
        %1859 = vmatprep.subr.bf16.mxu0 0
        %1860 = vmatpush2.bf16.msra.mxu0 0
        %1861 = vmatprep.subr.bf16.mxu0 0
        %1862 = vmatpush2.bf16.msra.mxu0 0
        %1863 = vmatprep.mubr.bf16.mxu0 0
        %1864 = vmatmul.mubr.bf16.gmra.mxu0 %v1829
        %v1865 = vpop.f32.mrf.mxu0
        %v1866 = vadd.f32 %v710, %v1865
        %v1867 = vpop.f32.mrf.mxu0
        %v1868 = vpop.f32.mrf.mxu0
        %v1869 = vpop.f32.mrf.mxu0
        %1870 = vdwg.mxu0
        %v1871 = vsub.f32 %v647, %v1804
        %v1872 = vadd.f32 %v1871, %v1866
        %v1873 = vpack.c.bf16 %v1872, %v1872
        %v1875 = vsel %vm724, %v1873, 0
        %1877 = vmatprep.subr.bf16.mxu0 0
        %1878 = vmatpush1.bf16.msra.mxu0 0
        %1879 = vmatprep.subr.bf16.mxu0 0
        %1880 = vmatpush1.bf16.msra.mxu0 0
        %1881 = vmatprep.subr.bf16.mxu0 0
        %1882 = vmatpush1.bf16.msra.mxu0 0
        %1883 = vmatprep.subr.bf16.mxu0 0
        %1884 = vmatpush1.bf16.msra.mxu0 0
        %1885 = vmatprep.subr.bf16.mxu0 0
        %1886 = vmatpush1.bf16.msra.mxu0 0
        %1887 = vmatprep.subr.bf16.mxu0 0
        %1888 = vmatpush1.bf16.msra.mxu0 0
        %1889 = vmatprep.subr.bf16.mxu0 0
        %1890 = vmatpush1.bf16.msra.mxu0 %v786
        %1891 = vmatprep.subr.bf16.mxu0 0
        %1892 = vmatpush1.bf16.msra.mxu0 %v785
        %1893 = vmatprep.subr.bf16.mxu0 0
        %1894 = vmatpush2.bf16.msra.mxu0 0
        %1895 = vmatprep.subr.bf16.mxu0 0
        %1896 = vmatpush2.bf16.msra.mxu0 0
        %1897 = vmatprep.subr.bf16.mxu0 0
        %1898 = vmatpush2.bf16.msra.mxu0 0
        %1899 = vmatprep.subr.bf16.mxu0 0
        %1900 = vmatpush2.bf16.msra.mxu0 0
        %1901 = vmatprep.subr.bf16.mxu0 0
        %1902 = vmatpush2.bf16.msra.mxu0 0
        %1903 = vmatprep.subr.bf16.mxu0 0
        %1904 = vmatpush2.bf16.msra.mxu0 0
        %1905 = vmatprep.subr.bf16.mxu0 0
        %1906 = vmatpush2.bf16.msra.mxu0 0
        %1907 = vmatprep.subr.bf16.mxu0 0
        %1908 = vmatpush2.bf16.msra.mxu0 0
        %1909 = vmatprep.mubr.bf16.mxu0 0
        %1910 = vmatmul.mubr.bf16.gmra.mxu0 %v1875
        %v1911 = vpop.f32.mrf.mxu0
        %v1912 = vadd.f32 %v775, %v1911
        %v1913 = vpop.f32.mrf.mxu0
        %v1914 = vpop.f32.mrf.mxu0
        %v1915 = vpop.f32.mrf.mxu0
        %1916 = vdwg.mxu0
        %v1917 = vmax.f32 %v1912, 0.0
        %v1918 = vpack.c.bf16 %v1917, %v1917
        %v1920 = vsel %vm724, %v1918, 0
        %1922 = vmatprep.subr.bf16.mxu0 0
        %1923 = vmatpush1.bf16.msra.mxu0 0
        %1924 = vmatprep.subr.bf16.mxu0 0
        %1925 = vmatpush1.bf16.msra.mxu0 0
        %1926 = vmatprep.subr.bf16.mxu0 0
        %1927 = vmatpush1.bf16.msra.mxu0 0
        %1928 = vmatprep.subr.bf16.mxu0 0
        %1929 = vmatpush1.bf16.msra.mxu0 0
        %1930 = vmatprep.subr.bf16.mxu0 0
        %1931 = vmatpush1.bf16.msra.mxu0 0
        %1932 = vmatprep.subr.bf16.mxu0 0
        %1933 = vmatpush1.bf16.msra.mxu0 0
        %1934 = vmatprep.subr.bf16.mxu0 0
        %1935 = vmatpush1.bf16.msra.mxu0 %v849
        %1936 = vmatprep.subr.bf16.mxu0 0
        %1937 = vmatpush1.bf16.msra.mxu0 %v848
        %1938 = vmatprep.subr.bf16.mxu0 0
        %1939 = vmatpush2.bf16.msra.mxu0 0
        %1940 = vmatprep.subr.bf16.mxu0 0
        %1941 = vmatpush2.bf16.msra.mxu0 0
        %1942 = vmatprep.subr.bf16.mxu0 0
        %1943 = vmatpush2.bf16.msra.mxu0 0
        %1944 = vmatprep.subr.bf16.mxu0 0
        %1945 = vmatpush2.bf16.msra.mxu0 0
        %1946 = vmatprep.subr.bf16.mxu0 0
        %1947 = vmatpush2.bf16.msra.mxu0 0
        %1948 = vmatprep.subr.bf16.mxu0 0
        %1949 = vmatpush2.bf16.msra.mxu0 0
        %1950 = vmatprep.subr.bf16.mxu0 0
        %1951 = vmatpush2.bf16.msra.mxu0 0
        %1952 = vmatprep.subr.bf16.mxu0 0
        %1953 = vmatpush2.bf16.msra.mxu0 0
        %1954 = vmatprep.mubr.bf16.mxu0 0
        %1955 = vmatmul.mubr.bf16.gmra.mxu0 %v1920
        %v1956 = vpop.f32.mrf.mxu0
        %v1957 = vadd.f32 %v838, %v1956
        %v1958 = vpop.f32.mrf.mxu0
        %v1959 = vpop.f32.mrf.mxu0
        %v1960 = vpop.f32.mrf.mxu0
        %1961 = vdwg.mxu0
        %1963 = vrot.lane.b32.xlu0 %v1866, 32
        %v1964 = vpop.permute.xlu0 %1963
        %v1966 = vadd.f32 %v1804, %v1964
        %v1967 = vmax.f32 %v1787, %v1957
        %v1968 = vsub.f32 %v1787, %v1967
        %v1969 = vmul.f32 %v1968, 1.442695
        %v1970 = vpow.pop %v1969
        %v1971 = vsub.f32 %v1957, %v1967
        %v1972 = vmul.f32 %v1971, 1.442695
        %v1973 = vpow.pop %v1972
        %v1974 = vmul.f32 %v1970, %v1795
        %v1975 = vadd.f32 %v1974, %v1973
        %v1976 = vmul.f32 %v1970, %v1802
        %1978 = vrot.lane.b32.xlu0 %v1966, 96
        %v1979 = vpop.permute.xlu0 %1978
        %v1981 = vmul.f32 %v1973, %v1979
        %v1982 = vadd.f32 %v1976, %v1981
        %s1983 = scalar_lea.vmem %s573, 56 [#allocation2]
        %v1984 = vld [vmem:[%s1983] sm:$0xff]
        %s1985 = scalar_lea.vmem %s580, 56 [#allocation3]
        %v1986 = vld [vmem:[%s1985] sm:$0xff]
        %1988 = vset.pattern.permute.xlu0 0
        %1989 = vperm.xlu0 %1988, %v1986
        %v1990 = vpop.permute.xlu0 %1989
        %v1992 = vmul.f32 %v1990, %v675
        %1993 = vset.pattern.permute.xlu0 1
        %1994 = vperm.xlu0 %1993, %v1986
        %v1995 = vpop.permute.xlu0 %1994
        %v1997 = vmul.f32 %v1995, %v684
        %v1998 = vadd.f32 %v1992, %v1997
        %1999 = vset.pattern.permute.xlu0 2
        %2000 = vperm.xlu0 %1999, %v1986
        %v2001 = vpop.permute.xlu0 %2000
        %v2003 = vmul.f32 %v2001, %v694
        %v2004 = vadd.f32 %v1998, %v2003
        %v2005 = vadd.f32 %v2004, %v701
        %v2006 = vmax.f32 %v2005, 0.0
        %v2007 = vpack.c.bf16 %v2006, %v2006
        %v2009 = vsel %vm724, %v2007, 0
        %2011 = vmatprep.subr.bf16.mxu0 0
        %2012 = vmatpush1.bf16.msra.mxu0 0
        %2013 = vmatprep.subr.bf16.mxu0 0
        %2014 = vmatpush1.bf16.msra.mxu0 0
        %2015 = vmatprep.subr.bf16.mxu0 0
        %2016 = vmatpush1.bf16.msra.mxu0 0
        %2017 = vmatprep.subr.bf16.mxu0 0
        %2018 = vmatpush1.bf16.msra.mxu0 0
        %2019 = vmatprep.subr.bf16.mxu0 0
        %2020 = vmatpush1.bf16.msra.mxu0 0
        %2021 = vmatprep.subr.bf16.mxu0 0
        %2022 = vmatpush1.bf16.msra.mxu0 0
        %2023 = vmatprep.subr.bf16.mxu0 0
        %2024 = vmatpush1.bf16.msra.mxu0 %v721
        %2025 = vmatprep.subr.bf16.mxu0 0
        %2026 = vmatpush1.bf16.msra.mxu0 %v720
        %2027 = vmatprep.subr.bf16.mxu0 0
        %2028 = vmatpush2.bf16.msra.mxu0 0
        %2029 = vmatprep.subr.bf16.mxu0 0
        %2030 = vmatpush2.bf16.msra.mxu0 0
        %2031 = vmatprep.subr.bf16.mxu0 0
        %2032 = vmatpush2.bf16.msra.mxu0 0
        %2033 = vmatprep.subr.bf16.mxu0 0
        %2034 = vmatpush2.bf16.msra.mxu0 0
        %2035 = vmatprep.subr.bf16.mxu0 0
        %2036 = vmatpush2.bf16.msra.mxu0 0
        %2037 = vmatprep.subr.bf16.mxu0 0
        %2038 = vmatpush2.bf16.msra.mxu0 0
        %2039 = vmatprep.subr.bf16.mxu0 0
        %2040 = vmatpush2.bf16.msra.mxu0 0
        %2041 = vmatprep.subr.bf16.mxu0 0
        %2042 = vmatpush2.bf16.msra.mxu0 0
        %2043 = vmatprep.mubr.bf16.mxu0 0
        %2044 = vmatmul.mubr.bf16.gmra.mxu0 %v2009
        %v2045 = vpop.f32.mrf.mxu0
        %v2046 = vadd.f32 %v710, %v2045
        %v2047 = vpop.f32.mrf.mxu0
        %v2048 = vpop.f32.mrf.mxu0
        %v2049 = vpop.f32.mrf.mxu0
        %2050 = vdwg.mxu0
        %v2051 = vsub.f32 %v647, %v1984
        %v2052 = vadd.f32 %v2051, %v2046
        %v2053 = vpack.c.bf16 %v2052, %v2052
        %v2055 = vsel %vm724, %v2053, 0
        %2057 = vmatprep.subr.bf16.mxu0 0
        %2058 = vmatpush1.bf16.msra.mxu0 0
        %2059 = vmatprep.subr.bf16.mxu0 0
        %2060 = vmatpush1.bf16.msra.mxu0 0
        %2061 = vmatprep.subr.bf16.mxu0 0
        %2062 = vmatpush1.bf16.msra.mxu0 0
        %2063 = vmatprep.subr.bf16.mxu0 0
        %2064 = vmatpush1.bf16.msra.mxu0 0
        %2065 = vmatprep.subr.bf16.mxu0 0
        %2066 = vmatpush1.bf16.msra.mxu0 0
        %2067 = vmatprep.subr.bf16.mxu0 0
        %2068 = vmatpush1.bf16.msra.mxu0 0
        %2069 = vmatprep.subr.bf16.mxu0 0
        %2070 = vmatpush1.bf16.msra.mxu0 %v786
        %2071 = vmatprep.subr.bf16.mxu0 0
        %2072 = vmatpush1.bf16.msra.mxu0 %v785
        %2073 = vmatprep.subr.bf16.mxu0 0
        %2074 = vmatpush2.bf16.msra.mxu0 0
        %2075 = vmatprep.subr.bf16.mxu0 0
        %2076 = vmatpush2.bf16.msra.mxu0 0
        %2077 = vmatprep.subr.bf16.mxu0 0
        %2078 = vmatpush2.bf16.msra.mxu0 0
        %2079 = vmatprep.subr.bf16.mxu0 0
        %2080 = vmatpush2.bf16.msra.mxu0 0
        %2081 = vmatprep.subr.bf16.mxu0 0
        %2082 = vmatpush2.bf16.msra.mxu0 0
        %2083 = vmatprep.subr.bf16.mxu0 0
        %2084 = vmatpush2.bf16.msra.mxu0 0
        %2085 = vmatprep.subr.bf16.mxu0 0
        %2086 = vmatpush2.bf16.msra.mxu0 0
        %2087 = vmatprep.subr.bf16.mxu0 0
        %2088 = vmatpush2.bf16.msra.mxu0 0
        %2089 = vmatprep.mubr.bf16.mxu0 0
        %2090 = vmatmul.mubr.bf16.gmra.mxu0 %v2055
        %v2091 = vpop.f32.mrf.mxu0
        %v2092 = vadd.f32 %v775, %v2091
        %v2093 = vpop.f32.mrf.mxu0
        %v2094 = vpop.f32.mrf.mxu0
        %v2095 = vpop.f32.mrf.mxu0
        %2096 = vdwg.mxu0
        %v2097 = vmax.f32 %v2092, 0.0
        %v2098 = vpack.c.bf16 %v2097, %v2097
        %v2100 = vsel %vm724, %v2098, 0
        %2102 = vmatprep.subr.bf16.mxu0 0
        %2103 = vmatpush1.bf16.msra.mxu0 0
        %2104 = vmatprep.subr.bf16.mxu0 0
        %2105 = vmatpush1.bf16.msra.mxu0 0
        %2106 = vmatprep.subr.bf16.mxu0 0
        %2107 = vmatpush1.bf16.msra.mxu0 0
        %2108 = vmatprep.subr.bf16.mxu0 0
        %2109 = vmatpush1.bf16.msra.mxu0 0
        %2110 = vmatprep.subr.bf16.mxu0 0
        %2111 = vmatpush1.bf16.msra.mxu0 0
        %2112 = vmatprep.subr.bf16.mxu0 0
        %2113 = vmatpush1.bf16.msra.mxu0 0
        %2114 = vmatprep.subr.bf16.mxu0 0
        %2115 = vmatpush1.bf16.msra.mxu0 %v849
        %2116 = vmatprep.subr.bf16.mxu0 0
        %2117 = vmatpush1.bf16.msra.mxu0 %v848
        %2118 = vmatprep.subr.bf16.mxu0 0
        %2119 = vmatpush2.bf16.msra.mxu0 0
        %2120 = vmatprep.subr.bf16.mxu0 0
        %2121 = vmatpush2.bf16.msra.mxu0 0
        %2122 = vmatprep.subr.bf16.mxu0 0
        %2123 = vmatpush2.bf16.msra.mxu0 0
        %2124 = vmatprep.subr.bf16.mxu0 0
        %2125 = vmatpush2.bf16.msra.mxu0 0
        %2126 = vmatprep.subr.bf16.mxu0 0
        %2127 = vmatpush2.bf16.msra.mxu0 0
        %2128 = vmatprep.subr.bf16.mxu0 0
        %2129 = vmatpush2.bf16.msra.mxu0 0
        %2130 = vmatprep.subr.bf16.mxu0 0
        %2131 = vmatpush2.bf16.msra.mxu0 0
        %2132 = vmatprep.subr.bf16.mxu0 0
        %2133 = vmatpush2.bf16.msra.mxu0 0
        %2134 = vmatprep.mubr.bf16.mxu0 0
        %2135 = vmatmul.mubr.bf16.gmra.mxu0 %v2100
        %v2136 = vpop.f32.mrf.mxu0
        %v2137 = vadd.f32 %v838, %v2136
        %v2138 = vpop.f32.mrf.mxu0
        %v2139 = vpop.f32.mrf.mxu0
        %v2140 = vpop.f32.mrf.mxu0
        %2141 = vdwg.mxu0
        %2143 = vrot.lane.b32.xlu0 %v2046, 32
        %v2144 = vpop.permute.xlu0 %2143
        %v2146 = vadd.f32 %v1984, %v2144
        %v2147 = vmax.f32 %v1967, %v2137
        %v2148 = vsub.f32 %v1967, %v2147
        %v2149 = vmul.f32 %v2148, 1.442695
        %v2150 = vpow.pop %v2149
        %v2151 = vsub.f32 %v2137, %v2147
        %v2152 = vmul.f32 %v2151, 1.442695
        %v2153 = vpow.pop %v2152
        %v2154 = vmul.f32 %v2150, %v1975
        %v2155 = vadd.f32 %v2154, %v2153
        %v2156 = vmul.f32 %v2150, %v1982
        %2158 = vrot.lane.b32.xlu0 %v2146, 96
        %v2159 = vpop.permute.xlu0 %2158
        %v2161 = vmul.f32 %v2153, %v2159
        %v2162 = vadd.f32 %v2156, %v2161
        %v2163 = vrcp.pop %v2155
        %v2164 = vmul.f32 %v2162, %v2163
        %v2165 = vpack.c.bf16 %v2164, %v2164
        %v2166 = vld [vmem:[%s11] sm:$0xf]
        %v2167 = vld [vmem:[%s11 + $0x4] sm:$0xf]
        %v2168 = vld [vmem:[%s11 + $0x8] sm:$0xf]
        %v2169 = vld [vmem:[%s11 + $0xc] sm:$0xf]
        %v2170 = vld [vmem:[%s12] sm:$0x1]
        %v2172 = vlaneseq
        %v2173 = vshrl.u32 %v2172, 7
        %v2174 = vsub.s32 0, %v2173
        %v2175 = vrot.slane %v2170, %v2174
        %v2181 = vunpack.c.l.b16 %v2166
        %v2182 = vunpack.c.l.b16 %v2167
        %v2183 = vunpack.c.l.b16 %v2168
        %v2184 = vunpack.c.l.b16 %v2169
        %v2185 = vpack.c.b16 %v2182, %v2181
        %v2186 = vpack.c.b16 %v2184, %v2183
        %v2190 = vsel %vm724, %v2165, 0
        %2192 = vmatprep.subr.bf16.mxu0 0
        %2193 = vmatpush1.bf16.msra.mxu0 0
        %2194 = vmatprep.subr.bf16.mxu0 0
        %2195 = vmatpush1.bf16.msra.mxu0 0
        %2196 = vmatprep.subr.bf16.mxu0 0
        %2197 = vmatpush1.bf16.msra.mxu0 0
        %2198 = vmatprep.subr.bf16.mxu0 0
        %2199 = vmatpush1.bf16.msra.mxu0 0
        %2200 = vmatprep.subr.bf16.mxu0 0
        %2201 = vmatpush1.bf16.msra.mxu0 0
        %2202 = vmatprep.subr.bf16.mxu0 0
        %2203 = vmatpush1.bf16.msra.mxu0 0
        %2204 = vmatprep.subr.bf16.mxu0 0
        %2205 = vmatpush1.bf16.msra.mxu0 %v2186
        %2206 = vmatprep.subr.bf16.mxu0 0
        %2207 = vmatpush1.bf16.msra.mxu0 %v2185
        %2208 = vmatprep.subr.bf16.mxu0 0
        %2209 = vmatpush2.bf16.msra.mxu0 0
        %2210 = vmatprep.subr.bf16.mxu0 0
        %2211 = vmatpush2.bf16.msra.mxu0 0
        %2212 = vmatprep.subr.bf16.mxu0 0
        %2213 = vmatpush2.bf16.msra.mxu0 0
        %2214 = vmatprep.subr.bf16.mxu0 0
        %2215 = vmatpush2.bf16.msra.mxu0 0
        %2216 = vmatprep.subr.bf16.mxu0 0
        %2217 = vmatpush2.bf16.msra.mxu0 0
        %2218 = vmatprep.subr.bf16.mxu0 0
        %2219 = vmatpush2.bf16.msra.mxu0 0
        %2220 = vmatprep.subr.bf16.mxu0 0
        %2221 = vmatpush2.bf16.msra.mxu0 0
        %2222 = vmatprep.subr.bf16.mxu0 0
        %2223 = vmatpush2.bf16.msra.mxu0 0
        %2224 = vmatprep.mubr.bf16.mxu0 0
        %2225 = vmatmul.mubr.bf16.gmra.mxu0 %v2190
        %v2226 = vpop.f32.mrf.mxu0
        %v2227 = vadd.f32 %v2175, %v2226
        %v2228 = vpop.f32.mrf.mxu0
        %v2229 = vpop.f32.mrf.mxu0
        %v2230 = vpop.f32.mrf.mxu0
        %2231 = vdwg.mxu0
        %v2232 = vld [vmem:[%s641] sm:$0xff]
        %v2233 = vadd.f32 %v2227, %v2232
        %vm2234 = vcmask 523264
        %2235 = vst.msk [vmem:[%s645] sm:$0xff] %vm2234, %v2233
        %p2236 = scmp.lt.s32.totalorder %s25, 1
        %s2237 = scalar_select %p2236, %s25, 1
        %s2238 = smul.addr %s2237, 8
        %s2239 = scalar_lea.vmem %s14, %s2238
        // Predicated region
        $region153: #{_lambda_.11} parent=143 // pred_check
          %p2240 = pneg %p357
        $region154: #{_lambda_.11} parent=143 // pred_check_branch
          %2242 = sbr.rel (%p2240) target = $region156
        $region155: #{_lambda_.11} parent=143 // pred_region
          _
        $region156: #{_lambda_.11} parent=143 // pred_fallthru
          _
      $region144: #{_lambda_.11} parent=5 // pred_fallthru
        _
      %p2243 = scmp.le.s32.totalorder 2, %s20
      // Predicated region
      $region157: #{_lambda_.11} parent=5 // pred_check
        %p2244 = pneg %p2243
      $region158: #{_lambda_.11} parent=5 // pred_check_branch
        %2246 = sbr.rel (%p2244) target = $region160
      $region159: #{_lambda_.11} parent=5 // pred_region
        %s2247 = ssub.s32 %s20, 2
        // Predicated region
        $region161: #{_lambda_.11} parent=159 // pred_check
          %p2248 = pneg %p363
        $region162: #{_lambda_.11} parent=159 // pred_check_branch
          %2250 = sbr.rel (%p2248) target = $region164
        $region163: #{_lambda_.11} parent=159 // pred_region
          %p2251 = scmp.lt.s32.totalorder %s26, 1
          %s2252 = scalar_select %p2251, %s26, 1
          %s2253 = smul.addr %s2252, 8
          %s2254 = scalar_lea.vmem %s14, %s2253
        $region164: #{_lambda_.11} parent=159 // pred_fallthru
          _
      $region160: #{_lambda_.11} parent=5 // pred_fallthru
        _
    $region6: #{_lambda_.11} parent=1 // loop_footer
      %s24 = sadd.s32 1, %s20
    $region7: #{_lambda_.11} parent=1 // loop_footer_branch
      %19 = sbr.rel target = $region3
    $region8: #{_lambda_.11} parent=1 // loop_exit
      _

</llo_original>
